<compile_context>
chip_gen: v6e
topology: v6e:2x2x1
jax: 0.10.0
libtpu: 0.0.40
codegen_flags: <defaults>
</compile_context>

<pallas_src>
import jax
import jax.numpy as jnp
from jax.experimental import pallas as pl
from jax.experimental.pallas import tpu as pltpu

IMG_SIZE = 32
CH_SIZE = 3
IN_DIM = IMG_SIZE * IMG_SIZE * CH_SIZE  # 3072
HID_DIM = 16
OUT_DIM = 10
_TILE_MULT = 16  # valid sublane multiple for both f32 (8) and bf16 (16) blocks


def _round_up(n, m):
    return ((n + m - 1) // m) * m


def _mlp_kernel(x_ref, w1_ref, b1_ref, w2_ref, b2_ref, o_ref):
    # x_ref:  (TB, 3072)   w1_ref: (3072, 16)  b1_ref: (1, 16)
    # w2_ref: (16, 10)     b2_ref: (1, 10)     o_ref:  (TB, 10)
    x = x_ref[...]
    w1 = w1_ref[...]

    # fc1 + ReLU.  f32 operands -> pinned HIGHEST (exact, multi-pass f32 MXU);
    # bf16 operands -> single-pass bf16 MXU, always accumulating in f32.
    prec = jax.lax.Precision.HIGHEST if x.dtype == jnp.float32 else None
    h = jnp.dot(x, w1, preferred_element_type=jnp.float32, precision=prec)
    h = jnp.maximum(h + b1_ref[...], 0.0)

    # fc4 (tiny matmul, kept f32).
    logits = jnp.dot(h, w2_ref[...], preferred_element_type=jnp.float32,
                     precision=jax.lax.Precision.HIGHEST) + b2_ref[...]

    # log_softmax along dim=1 (numerically stable, f32 throughout).
    m = jnp.max(logits, axis=1, keepdims=True)
    shifted = logits - m
    lse = jnp.log(jnp.sum(jnp.exp(shifted), axis=1, keepdims=True))
    o_ref[...] = (shifted - lse).astype(o_ref.dtype)


def _default_tile_cap(itemsize):
    """Largest default x-tile (rows) per generation.

    v5e/v6e: 6 MiB buffers (512 f32 / 1024 bf16 rows) reach ~85% of the HBM
    roofline.  v7x: double that, to amortize the ~0.35 us per-grid-step
    overhead against 3.2 TB/s HBM while staying inside 64 MiB physical VMEM.
    """
    try:
        kind = jax.devices()[0].device_kind.lower()
    except Exception:
        kind = ""
    is_v7 = "7" in kind
    rows_6mib = (6 << 20) // (IN_DIM * itemsize)  # 512 (f32) / 1024 (bf16)
    return 2 * rows_6mib if is_v7 else rows_6mib


def mlp_forward(x_nchw, w1, b1, w2, b2, *, tb=None, vmem_limit_bytes=None):
    """x_nchw: (B, 3, 32, 32) -> (B, 10) log-probabilities.

    x is streamed in the dtype it arrives in (no wrapper-side cast — that would
    be a separate XLA op and an extra HBM pass).  Hand over a bf16 x from the
    producer to genuinely halve the dominant HBM read; weights are cast once
    (192 KiB) to match the streaming dtype, accumulation stays f32.
    """
    B = x_nchw.shape[0]
    x_flat = x_nchw.reshape(B, IN_DIM)          # same semantics as torch .view
    x_dtype = x_flat.dtype
    itemsize = jnp.dtype(x_dtype).itemsize

    w1_in = w1.astype(x_dtype)                  # tiny, one-time
    b1_2d = b1.reshape(1, HID_DIM).astype(jnp.float32)
    w2_in = w2.astype(jnp.float32)
    b2_2d = b2.reshape(1, OUT_DIM).astype(jnp.float32)

    # Batch tile: multiple of 16, >= 2 grid steps when B allows it (both v7x
    # TensorCores / two DMA streams in flight), generation-aware cap.
    if tb is None:
        cap = _default_tile_cap(itemsize)
        tb = min(cap, _round_up(pl.cdiv(max(B, 1), 2), _TILE_MULT))
    else:
        tb = max(_TILE_MULT, _round_up(int(tb), _TILE_MULT))
    B_pad = _round_up(B, tb)
    if B_pad != B:
        x_flat = jnp.pad(x_flat, ((0, B_pad - B), (0, 0)))
    grid = (B_pad // tb,)

    if vmem_limit_bytes is None:
        need = 2 * tb * IN_DIM * itemsize        # double-buffered x tiles
        need += 2 * IN_DIM * 128 * itemsize      # w1 (16 lanes pad to 128), 2 bufs
        need += 2 * tb * 128 * 4                 # output tiles (lane-padded), 2 bufs
        need += 4 << 20                          # w2, biases, headroom
        vmem_limit_bytes = int(min(max(32 << 20, need), 56 << 20))

    cost = pl.CostEstimate(
        flops=2 * B_pad * IN_DIM * HID_DIM + 2 * B_pad * HID_DIM * OUT_DIM,
        transcendentals=B_pad * OUT_DIM,
        bytes_accessed=(B_pad * IN_DIM * itemsize        # streamed activations
                        + IN_DIM * HID_DIM * itemsize    # fc1 weight
                        + HID_DIM * OUT_DIM * 4          # fc4 weight
                        + (HID_DIM + OUT_DIM) * 4        # biases
                        + B_pad * OUT_DIM * 4),          # output
    )

    out = pl.pallas_call(
        _mlp_kernel,
        out_shape=jax.ShapeDtypeStruct((B_pad, OUT_DIM), jnp.float32),
        grid=grid,
        in_specs=[
            pl.BlockSpec((tb, IN_DIM), lambda i: (i, 0)),        # streamed per-tile
            pl.BlockSpec((IN_DIM, HID_DIM), lambda i: (0, 0)),   # VMEM-resident
            pl.BlockSpec((1, HID_DIM), lambda i: (0, 0)),
            pl.BlockSpec((HID_DIM, OUT_DIM), lambda i: (0, 0)),
            pl.BlockSpec((1, OUT_DIM), lambda i: (0, 0)),
        ],
        out_specs=pl.BlockSpec((tb, OUT_DIM), lambda i: (i, 0)),
        compiler_params=pltpu.CompilerParams(
            dimension_semantics=("parallel",),   # batch axis: shardable across TCs
            vmem_limit_bytes=vmem_limit_bytes,
        ),
        cost_estimate=cost,
    )(x_flat, w1_in, b1_2d, w2_in, b2_2d)

    return out[:B]


def init_params(key):
    """Deterministic init mirroring nn.Linear shapes (W stored transposed: in x out)."""
    k1, k2, k3, k4 = jax.random.split(key, 4)
    lim1 = 1.0 / jnp.sqrt(IN_DIM)
    lim2 = 1.0 / jnp.sqrt(HID_DIM)
    w1 = jax.random.uniform(k1, (IN_DIM, HID_DIM), jnp.float32, -lim1, lim1)
    b1 = jax.random.uniform(k2, (HID_DIM,), jnp.float32, -lim1, lim1)
    w2 = jax.random.uniform(k3, (HID_DIM, OUT_DIM), jnp.float32, -lim2, lim2)
    b2 = jax.random.uniform(k4, (OUT_DIM,), jnp.float32, -lim2, lim2)
    return w1, b1, w2, b2


if __name__ == "__main__":
    key = jax.random.PRNGKey(0)
    kx, kp = jax.random.split(key)
    w1, b1, w2, b2 = init_params(kp)

    def ref_fn(x):
        xf = x.reshape(x.shape[0], IN_DIM).astype(jnp.float32)
        h = jnp.maximum(
            jnp.dot(xf, w1, precision=jax.lax.Precision.HIGHEST) + b1, 0.0)
        logits = jnp.dot(h, w2, precision=jax.lax.Precision.HIGHEST) + b2
        return jax.nn.log_softmax(logits, axis=1)

    # Small batch (matches the PyTorch module's 3x32x32 input); f32-exact path.
    B = 2
    x = jax.random.normal(kx, (B, CH_SIZE, IMG_SIZE, IMG_SIZE), jnp.float32)
    out = jax.block_until_ready(mlp_forward(x, w1, b1, w2, b2))
    assert out.shape == (B, OUT_DIM)
    assert jnp.allclose(out, ref_fn(x), atol=1e-5), "f32 mismatch vs reference"

    # Larger batch: auto tb -> >= 2 grid steps (pipelined x DMA, both TCs on v7x).
    B2 = 256
    x2 = jax.random.normal(kx, (B2, CH_SIZE, IMG_SIZE, IMG_SIZE), jnp.float32)
    out2 = jax.block_until_ready(mlp_forward(x2, w1, b1, w2, b2))
    assert out2.shape == (B2, OUT_DIM)
    assert jnp.allclose(out2, ref_fn(x2), atol=1e-5), "tiled f32 mismatch vs reference"

    # Genuine bf16 streaming: the *producer* hands over bf16 activations, so the
    # kernel reads 2 B/elem from HBM (no wrapper-side cast / extra HBM pass).
    x2_bf16 = x2.astype(jnp.bfloat16)
    out3 = jax.block_until_ready(mlp_forward(x2_bf16, w1, b1, w2, b2, tb=128))
    assert out3.shape == (B2, OUT_DIM)
    assert jnp.allclose(out3, ref_fn(x2), atol=1e-1), "bf16 path mismatch vs reference"

    # Explicit (unaligned) tb exercises the clamp-to-multiple-of-16 + pad path.
    out4 = jax.block_until_ready(mlp_forward(x2, w1, b1, w2, b2, tb=100))
    assert jnp.allclose(out4, ref_fn(x2), atol=1e-5), "ragged-tile mismatch vs reference"

    print("KERNEL_OK")
</pallas_src>

<mosaic_0001>
module attributes {stable_mosaic.version = 11 : i64} {
  func.func @_mlp_kernel(%arg0: i32, %arg1: memref<16x3072xf32, #tpu.memory_space<vmem>>, %arg2: memref<3072x16xf32, #tpu.memory_space<vmem>>, %arg3: memref<1x16xf32, #tpu.memory_space<vmem>>, %arg4: memref<16x10xf32, #tpu.memory_space<vmem>>, %arg5: memref<1x10xf32, #tpu.memory_space<vmem>>, %arg6: memref<16x10xf32, #tpu.memory_space<vmem>>) attributes {dimension_semantics = [#tpu.dimension_semantics<parallel>], iteration_bounds = array<i64: 1>, scalar_prefetch = 0 : i64, scratch_operands = 0 : i64, tpu.core_type = #tpu.core_type<tc>, window_params = [{transform_indices = @transform_0, window_bounds = array<i64: 16, 3072>}, {pipeline_mode = #tpu.pipeline_mode<synchronous>, transform_indices = @transform_1, window_bounds = array<i64: 3072, 16>}, {pipeline_mode = #tpu.pipeline_mode<synchronous>, transform_indices = @transform_2, window_bounds = array<i64: 1, 16>}, {pipeline_mode = #tpu.pipeline_mode<synchronous>, transform_indices = @transform_3, window_bounds = array<i64: 16, 10>}, {pipeline_mode = #tpu.pipeline_mode<synchronous>, transform_indices = @transform_4, window_bounds = array<i64: 1, 10>}, {transform_indices = @transform_5, window_bounds = array<i64: 16, 10>}]} {
    %c0 = arith.constant 0 : index
    %c0_0 = arith.constant 0 : index
    %0 = vector.load %arg1[%c0, %c0_0] : memref<16x3072xf32, #tpu.memory_space<vmem>>, vector<16x3072xf32>
    %c0_1 = arith.constant 0 : index
    %c0_2 = arith.constant 0 : index
    %1 = vector.load %arg2[%c0_1, %c0_2] : memref<3072x16xf32, #tpu.memory_space<vmem>>, vector<3072x16xf32>
    %cst = arith.constant dense<0.000000e+00> : vector<16x16xf32>
    %2 = tpu.matmul %0, %1, %cst {dimension_numbers = #tpu.dot_dimension_numbers<[1], [0], [0], [1], [0, 0, 1, 1], [], []>, precision = #tpu.contract_precision<fp32>} : vector<16x3072xf32>, vector<3072x16xf32>, vector<16x16xf32> -> vector<16x16xf32>
    %c0_3 = arith.constant 0 : index
    %c0_4 = arith.constant 0 : index
    %3 = vector.load %arg3[%c0_3, %c0_4] : memref<1x16xf32, #tpu.memory_space<vmem>>, vector<1x16xf32>
    %4 = vector.broadcast %3 : vector<1x16xf32> to vector<16x16xf32>
    %5 = arith.addf %2, %4 : vector<16x16xf32>
    %cst_5 = arith.constant 0.000000e+00 : f32
    %6 = vector.broadcast %cst_5 : f32 to vector<16x16xf32>
    %7 = arith.maximumf %5, %6 : vector<16x16xf32>
    %c0_6 = arith.constant 0 : index
    %c0_7 = arith.constant 0 : index
    %8 = vector.load %arg4[%c0_6, %c0_7] : memref<16x10xf32, #tpu.memory_space<vmem>>, vector<16x10xf32>
    %cst_8 = arith.constant dense<0.000000e+00> : vector<16x10xf32>
    %9 = tpu.matmul %7, %8, %cst_8 {dimension_numbers = #tpu.dot_dimension_numbers<[1], [0], [0], [1], [0, 0, 1, 1], [], []>, precision = #tpu.contract_precision<fp32>} : vector<16x16xf32>, vector<16x10xf32>, vector<16x10xf32> -> vector<16x10xf32>
    %c0_9 = arith.constant 0 : index
    %c0_10 = arith.constant 0 : index
    %10 = vector.load %arg5[%c0_9, %c0_10] : memref<1x10xf32, #tpu.memory_space<vmem>>, vector<1x10xf32>
    %11 = vector.broadcast %10 : vector<1x10xf32> to vector<16x10xf32>
    %12 = arith.addf %9, %11 : vector<16x10xf32>
    %cst_11 = arith.constant dense<0xFF800000> : vector<16xf32>
    %13 = vector.multi_reduction <maximumf>, %12, %cst_11 [1] : vector<16x10xf32> to vector<16xf32>
    %14 = vector.shape_cast %13 : vector<16xf32> to vector<16x1xf32>
    %15 = vector.broadcast %14 : vector<16x1xf32> to vector<16x10xf32>
    %16 = arith.subf %12, %15 : vector<16x10xf32>
    %17 = math.exp %16 : vector<16x10xf32>
    %cst_12 = arith.constant dense<0.000000e+00> : vector<16xf32>
    %18 = vector.multi_reduction <add>, %17, %cst_12 [1] : vector<16x10xf32> to vector<16xf32>
    %19 = vector.shape_cast %18 : vector<16xf32> to vector<16x1xf32>
    %20 = math.log %19 : vector<16x1xf32>
    %21 = vector.broadcast %20 : vector<16x1xf32> to vector<16x10xf32>
    %22 = arith.subf %16, %21 : vector<16x10xf32>
    %c0_13 = arith.constant 0 : index
    %c0_14 = arith.constant 0 : index
    %23 = vector.load %arg6[%c0_13, %c0_14] : memref<16x10xf32, #tpu.memory_space<vmem>>, vector<16x10xf32>
    tpu.vector_store %arg6[%c0_13, %c0_14], %22 {strides = array<i32>} : memref<16x10xf32, #tpu.memory_space<vmem>>, vector<16x10xf32>,
    return
  }
  func.func @transform_0(%arg0: i32) -> (i32, i32) {
    %c0_i32 = arith.constant 0 : i32
    %c0_i32_0 = arith.constant 0 : i32
    return %arg0, %c0_i32 : i32, i32
  }
  func.func @transform_1(%arg0: i32) -> (i32, i32) {
    %c0_i32 = arith.constant 0 : i32
    %c0_i32_0 = arith.constant 0 : i32
    %c0_i32_1 = arith.constant 0 : i32
    return %c0_i32, %c0_i32_0 : i32, i32
  }
  func.func @transform_2(%arg0: i32) -> (i32, i32) {
    %c0_i32 = arith.constant 0 : i32
    %c0_i32_0 = arith.constant 0 : i32
    %c0_i32_1 = arith.constant 0 : i32
    return %c0_i32, %c0_i32_0 : i32, i32
  }
  func.func @transform_3(%arg0: i32) -> (i32, i32) {
    %c0_i32 = arith.constant 0 : i32
    %c0_i32_0 = arith.constant 0 : i32
    %c0_i32_1 = arith.constant 0 : i32
    return %c0_i32, %c0_i32_0 : i32, i32
  }
  func.func @transform_4(%arg0: i32) -> (i32, i32) {
    %c0_i32 = arith.constant 0 : i32
    %c0_i32_0 = arith.constant 0 : i32
    %c0_i32_1 = arith.constant 0 : i32
    return %c0_i32, %c0_i32_0 : i32, i32
  }
  func.func @transform_5(%arg0: i32) -> (i32, i32) {
    %c0_i32 = arith.constant 0 : i32
    %c0_i32_0 = arith.constant 0 : i32
    return %arg0, %c0_i32 : i32, i32
  }
}

</mosaic_0001>

<llo_original>
// kernel: tpu_custom_call.1
$region0: #{tpu_custom_call.1}
  #allocation0 [shape = 'u32[]', space=smem, size = 0x4, offset = 0x4, fixed_abs, tag = 'smem constant byte address 0x4 - core index']
  #allocation1 [shape = 'u32[144,128]{1,0:T(1,128)}', space=vmem, size = 0x12000, scoped, tag = 'internal scratch']
  %s0 = inlined_call_operand.vmem [shape: f32[16,3072], index: 0, kind: input, shape index: {}]
  %s1 = inlined_call_operand.vmem [shape: f32[3072,16], index: 1, kind: input, shape index: {}]
  %s2 = inlined_call_operand.vmem [shape: f32[1,16], index: 2, kind: input, shape index: {}]
  %s3 = inlined_call_operand.vmem [shape: f32[16,10], index: 3, kind: input, shape index: {}]
  %s4 = inlined_call_operand.vmem [shape: f32[1,10], index: 4, kind: input, shape index: {}]
  %s5 = inlined_call_operand.hbm [shape: f32[16,10], index: 5, kind: output, shape index: {}]
  %s6 = sld [smem:[#allocation0]]
  $region30: #{tpu_custom_call.1} parent=0
    _
  %s8 = ssub.s32 1, %s6
  %s9 = scalar_select 0, %s8, %s6
  $region1: #{tpu_custom_call.1} parent=0
    #allocation2 [shape = 'u8[8192]{0}', space=vmem, size = 0x2000, scoped, tag = 'output window, operand 0, single buffered']
    #allocation3 [shape = 's32[1]{0}', space=sflag, size = 0x4, scoped, tag = 'scoped memory for tpu_custom_call.1']
    %10 = vsyncpa [#allocation3], 0
    // Predicated region
    $region2: #{tpu_custom_call.1} parent=1 // pred_check
      _
    $region3: #{tpu_custom_call.1} parent=1 // pred_check_branch
      %12 = sbr.rel (0) target = $region5
    $region4: #{tpu_custom_call.1} parent=1 // pred_region
      _
    $region5: #{tpu_custom_call.1} parent=1 // pred_fallthru
      _
    // Predicated region
    $region6: #{tpu_custom_call.1} parent=1 // pred_check
      _
    $region7: #{tpu_custom_call.1} parent=1 // pred_check_branch
      %14 = sbr.rel (0) target = $region9
    $region8: #{tpu_custom_call.1} parent=1 // pred_region
      _
    $region9: #{tpu_custom_call.1} parent=1 // pred_fallthru
      _
    // Predicated region
    $region10: #{tpu_custom_call.1} parent=1 // pred_check
      _
    $region11: #{tpu_custom_call.1} parent=1 // pred_check_branch
      %16 = sbr.rel (0) target = $region13
    $region12: #{tpu_custom_call.1} parent=1 // pred_region
      _
    $region13: #{tpu_custom_call.1} parent=1 // pred_fallthru
      _
    // Predicated region
    $region14: #{tpu_custom_call.1} parent=1 // pred_check
      _
    $region15: #{tpu_custom_call.1} parent=1 // pred_check_branch
      %18 = sbr.rel (0) target = $region17
    $region16: #{tpu_custom_call.1} parent=1 // pred_region
      _
    $region17: #{tpu_custom_call.1} parent=1 // pred_fallthru
      _
    // Predicated region
    $region18: #{tpu_custom_call.1} parent=1 // pred_check
      _
    $region19: #{tpu_custom_call.1} parent=1 // pred_check_branch
      %20 = sbr.rel (0) target = $region21
    $region20: #{tpu_custom_call.1} parent=1 // pred_region
      _
    $region21: #{tpu_custom_call.1} parent=1 // pred_fallthru
      _
    %v21 = vld [vmem:[%s0] sm:$0xff]
    %v22 = vld [vmem:[%s0 + $0x8] sm:$0xff]
    %v23 = vld [vmem:[%s0 + $0x10] sm:$0xff]
    %v24 = vld [vmem:[%s0 + $0x18] sm:$0xff]
    %v25 = vld [vmem:[%s0 + $0x20] sm:$0xff]
    %v26 = vld [vmem:[%s0 + $0x28] sm:$0xff]
    %v27 = vld [vmem:[%s0 + $0x30] sm:$0xff]
    %v28 = vld [vmem:[%s0 + $0x38] sm:$0xff]
    %v29 = vld [vmem:[%s0 + $0x40] sm:$0xff]
    %v30 = vld [vmem:[%s0 + $0x48] sm:$0xff]
    %v31 = vld [vmem:[%s0 + $0x50] sm:$0xff]
    %v32 = vld [vmem:[%s0 + $0x58] sm:$0xff]
    %v33 = vld [vmem:[%s0 + $0x60] sm:$0xff]
    %v34 = vld [vmem:[%s0 + $0x68] sm:$0xff]
    %v35 = vld [vmem:[%s0 + $0x70] sm:$0xff]
    %v36 = vld [vmem:[%s0 + $0x78] sm:$0xff]
    %v37 = vld [vmem:[%s0 + $0x80] sm:$0xff]
    %v38 = vld [vmem:[%s0 + $0x88] sm:$0xff]
    %v39 = vld [vmem:[%s0 + $0x90] sm:$0xff]
    %v40 = vld [vmem:[%s0 + $0x98] sm:$0xff]
    %v41 = vld [vmem:[%s0 + $0xa0] sm:$0xff]
    %v42 = vld [vmem:[%s0 + $0xa8] sm:$0xff]
    %v43 = vld [vmem:[%s0 + $0xb0] sm:$0xff]
    %v44 = vld [vmem:[%s0 + $0xb8] sm:$0xff]
    %v45 = vld [vmem:[%s0 + $0xc0] sm:$0xff]
    %v46 = vld [vmem:[%s0 + $0xc8] sm:$0xff]
    %v47 = vld [vmem:[%s0 + $0xd0] sm:$0xff]
    %v48 = vld [vmem:[%s0 + $0xd8] sm:$0xff]
    %v49 = vld [vmem:[%s0 + $0xe0] sm:$0xff]
    %v50 = vld [vmem:[%s0 + $0xe8] sm:$0xff]
    %v51 = vld [vmem:[%s0 + $0xf0] sm:$0xff]
    %v52 = vld [vmem:[%s0 + $0xf8] sm:$0xff]
    %v53 = vld [vmem:[%s0 + $0x100] sm:$0xff]
    %v54 = vld [vmem:[%s0 + $0x108] sm:$0xff]
    %v55 = vld [vmem:[%s0 + $0x110] sm:$0xff]
    %v56 = vld [vmem:[%s0 + $0x118] sm:$0xff]
    %v57 = vld [vmem:[%s0 + $0x120] sm:$0xff]
    %v58 = vld [vmem:[%s0 + $0x128] sm:$0xff]
    %v59 = vld [vmem:[%s0 + $0x130] sm:$0xff]
    %v60 = vld [vmem:[%s0 + $0x138] sm:$0xff]
    %v61 = vld [vmem:[%s0 + $0x140] sm:$0xff]
    %v62 = vld [vmem:[%s0 + $0x148] sm:$0xff]
    %v63 = vld [vmem:[%s0 + $0x150] sm:$0xff]
    %v64 = vld [vmem:[%s0 + $0x158] sm:$0xff]
    %v65 = vld [vmem:[%s0 + $0x160] sm:$0xff]
    %v66 = vld [vmem:[%s0 + $0x168] sm:$0xff]
    %v67 = vld [vmem:[%s0 + $0x170] sm:$0xff]
    %v68 = vld [vmem:[%s0 + $0x178] sm:$0xff]
    %v69 = vld [vmem:[%s1] sm:$0xff]
    %v70 = vld [vmem:[%s1 + $0x8] sm:$0xff]
    %v71 = vld [vmem:[%s1 + $0x10] sm:$0xff]
    %v72 = vld [vmem:[%s1 + $0x18] sm:$0xff]
    %v73 = vld [vmem:[%s1 + $0x20] sm:$0xff]
    %v74 = vld [vmem:[%s1 + $0x28] sm:$0xff]
    %v75 = vld [vmem:[%s1 + $0x30] sm:$0xff]
    %v76 = vld [vmem:[%s1 + $0x38] sm:$0xff]
    %v77 = vld [vmem:[%s1 + $0x40] sm:$0xff]
    %v78 = vld [vmem:[%s1 + $0x48] sm:$0xff]
    %v79 = vld [vmem:[%s1 + $0x50] sm:$0xff]
    %v80 = vld [vmem:[%s1 + $0x58] sm:$0xff]
    %v81 = vld [vmem:[%s1 + $0x60] sm:$0xff]
    %v82 = vld [vmem:[%s1 + $0x68] sm:$0xff]
    %v83 = vld [vmem:[%s1 + $0x70] sm:$0xff]
    %v84 = vld [vmem:[%s1 + $0x78] sm:$0xff]
    %v85 = vld [vmem:[%s1 + $0x80] sm:$0xff]
    %v86 = vld [vmem:[%s1 + $0x88] sm:$0xff]
    %v87 = vld [vmem:[%s1 + $0x90] sm:$0xff]
    %v88 = vld [vmem:[%s1 + $0x98] sm:$0xff]
    %v89 = vld [vmem:[%s1 + $0xa0] sm:$0xff]
    %v90 = vld [vmem:[%s1 + $0xa8] sm:$0xff]
    %v91 = vld [vmem:[%s1 + $0xb0] sm:$0xff]
    %v92 = vld [vmem:[%s1 + $0xb8] sm:$0xff]
    %v93 = vld [vmem:[%s1 + $0xc0] sm:$0xff]
    %v94 = vld [vmem:[%s1 + $0xc8] sm:$0xff]
    %v95 = vld [vmem:[%s1 + $0xd0] sm:$0xff]
    %v96 = vld [vmem:[%s1 + $0xd8] sm:$0xff]
    %v97 = vld [vmem:[%s1 + $0xe0] sm:$0xff]
    %v98 = vld [vmem:[%s1 + $0xe8] sm:$0xff]
    %v99 = vld [vmem:[%s1 + $0xf0] sm:$0xff]
    %v100 = vld [vmem:[%s1 + $0xf8] sm:$0xff]
    %v101 = vld [vmem:[%s1 + $0x100] sm:$0xff]
    %v102 = vld [vmem:[%s1 + $0x108] sm:$0xff]
    %v103 = vld [vmem:[%s1 + $0x110] sm:$0xff]
    %v104 = vld [vmem:[%s1 + $0x118] sm:$0xff]
    %v105 = vld [vmem:[%s1 + $0x120] sm:$0xff]
    %v106 = vld [vmem:[%s1 + $0x128] sm:$0xff]
    %v107 = vld [vmem:[%s1 + $0x130] sm:$0xff]
    %v108 = vld [vmem:[%s1 + $0x138] sm:$0xff]
    %v109 = vld [vmem:[%s1 + $0x140] sm:$0xff]
    %v110 = vld [vmem:[%s1 + $0x148] sm:$0xff]
    %v111 = vld [vmem:[%s1 + $0x150] sm:$0xff]
    %v112 = vld [vmem:[%s1 + $0x158] sm:$0xff]
    %v113 = vld [vmem:[%s1 + $0x160] sm:$0xff]
    %v114 = vld [vmem:[%s1 + $0x168] sm:$0xff]
    %v115 = vld [vmem:[%s1 + $0x170] sm:$0xff]
    %v116 = vld [vmem:[%s1 + $0x178] sm:$0xff]
    %v117 = vld [vmem:[%s1 + $0x180] sm:$0xff]
    %v118 = vld [vmem:[%s1 + $0x188] sm:$0xff]
    %v119 = vld [vmem:[%s1 + $0x190] sm:$0xff]
    %v120 = vld [vmem:[%s1 + $0x198] sm:$0xff]
    %v121 = vld [vmem:[%s1 + $0x1a0] sm:$0xff]
    %v122 = vld [vmem:[%s1 + $0x1a8] sm:$0xff]
    %v123 = vld [vmem:[%s1 + $0x1b0] sm:$0xff]
    %v124 = vld [vmem:[%s1 + $0x1b8] sm:$0xff]
    %v125 = vld [vmem:[%s1 + $0x1c0] sm:$0xff]
    %v126 = vld [vmem:[%s1 + $0x1c8] sm:$0xff]
    %v127 = vld [vmem:[%s1 + $0x1d0] sm:$0xff]
    %v128 = vld [vmem:[%s1 + $0x1d8] sm:$0xff]
    %v129 = vld [vmem:[%s1 + $0x1e0] sm:$0xff]
    %v130 = vld [vmem:[%s1 + $0x1e8] sm:$0xff]
    %v131 = vld [vmem:[%s1 + $0x1f0] sm:$0xff]
    %v132 = vld [vmem:[%s1 + $0x1f8] sm:$0xff]
    %v133 = vld [vmem:[%s1 + $0x200] sm:$0xff]
    %v134 = vld [vmem:[%s1 + $0x208] sm:$0xff]
    %v135 = vld [vmem:[%s1 + $0x210] sm:$0xff]
    %v136 = vld [vmem:[%s1 + $0x218] sm:$0xff]
    %v137 = vld [vmem:[%s1 + $0x220] sm:$0xff]
    %v138 = vld [vmem:[%s1 + $0x228] sm:$0xff]
    %v139 = vld [vmem:[%s1 + $0x230] sm:$0xff]
    %v140 = vld [vmem:[%s1 + $0x238] sm:$0xff]
    %v141 = vld [vmem:[%s1 + $0x240] sm:$0xff]
    %v142 = vld [vmem:[%s1 + $0x248] sm:$0xff]
    %v143 = vld [vmem:[%s1 + $0x250] sm:$0xff]
    %v144 = vld [vmem:[%s1 + $0x258] sm:$0xff]
    %v145 = vld [vmem:[%s1 + $0x260] sm:$0xff]
    %v146 = vld [vmem:[%s1 + $0x268] sm:$0xff]
    %v147 = vld [vmem:[%s1 + $0x270] sm:$0xff]
    %v148 = vld [vmem:[%s1 + $0x278] sm:$0xff]
    %v149 = vld [vmem:[%s1 + $0x280] sm:$0xff]
    %v150 = vld [vmem:[%s1 + $0x288] sm:$0xff]
    %v151 = vld [vmem:[%s1 + $0x290] sm:$0xff]
    %v152 = vld [vmem:[%s1 + $0x298] sm:$0xff]
    %v153 = vld [vmem:[%s1 + $0x2a0] sm:$0xff]
    %v154 = vld [vmem:[%s1 + $0x2a8] sm:$0xff]
    %v155 = vld [vmem:[%s1 + $0x2b0] sm:$0xff]
    %v156 = vld [vmem:[%s1 + $0x2b8] sm:$0xff]
    %v157 = vld [vmem:[%s1 + $0x2c0] sm:$0xff]
    %v158 = vld [vmem:[%s1 + $0x2c8] sm:$0xff]
    %v159 = vld [vmem:[%s1 + $0x2d0] sm:$0xff]
    %v160 = vld [vmem:[%s1 + $0x2d8] sm:$0xff]
    %v161 = vld [vmem:[%s1 + $0x2e0] sm:$0xff]
    %v162 = vld [vmem:[%s1 + $0x2e8] sm:$0xff]
    %v163 = vld [vmem:[%s1 + $0x2f0] sm:$0xff]
    %v164 = vld [vmem:[%s1 + $0x2f8] sm:$0xff]
    %v165 = vld [vmem:[%s1 + $0x300] sm:$0xff]
    %v166 = vld [vmem:[%s1 + $0x308] sm:$0xff]
    %v167 = vld [vmem:[%s1 + $0x310] sm:$0xff]
    %v168 = vld [vmem:[%s1 + $0x318] sm:$0xff]
    %v169 = vld [vmem:[%s1 + $0x320] sm:$0xff]
    %v170 = vld [vmem:[%s1 + $0x328] sm:$0xff]
    %v171 = vld [vmem:[%s1 + $0x330] sm:$0xff]
    %v172 = vld [vmem:[%s1 + $0x338] sm:$0xff]
    %v173 = vld [vmem:[%s1 + $0x340] sm:$0xff]
    %v174 = vld [vmem:[%s1 + $0x348] sm:$0xff]
    %v175 = vld [vmem:[%s1 + $0x350] sm:$0xff]
    %v176 = vld [vmem:[%s1 + $0x358] sm:$0xff]
    %v177 = vld [vmem:[%s1 + $0x360] sm:$0xff]
    %v178 = vld [vmem:[%s1 + $0x368] sm:$0xff]
    %v179 = vld [vmem:[%s1 + $0x370] sm:$0xff]
    %v180 = vld [vmem:[%s1 + $0x378] sm:$0xff]
    %v181 = vld [vmem:[%s1 + $0x380] sm:$0xff]
    %v182 = vld [vmem:[%s1 + $0x388] sm:$0xff]
    %v183 = vld [vmem:[%s1 + $0x390] sm:$0xff]
    %v184 = vld [vmem:[%s1 + $0x398] sm:$0xff]
    %v185 = vld [vmem:[%s1 + $0x3a0] sm:$0xff]
    %v186 = vld [vmem:[%s1 + $0x3a8] sm:$0xff]
    %v187 = vld [vmem:[%s1 + $0x3b0] sm:$0xff]
    %v188 = vld [vmem:[%s1 + $0x3b8] sm:$0xff]
    %v189 = vld [vmem:[%s1 + $0x3c0] sm:$0xff]
    %v190 = vld [vmem:[%s1 + $0x3c8] sm:$0xff]
    %v191 = vld [vmem:[%s1 + $0x3d0] sm:$0xff]
    %v192 = vld [vmem:[%s1 + $0x3d8] sm:$0xff]
    %v193 = vld [vmem:[%s1 + $0x3e0] sm:$0xff]
    %v194 = vld [vmem:[%s1 + $0x3e8] sm:$0xff]
    %v195 = vld [vmem:[%s1 + $0x3f0] sm:$0xff]
    %v196 = vld [vmem:[%s1 + $0x3f8] sm:$0xff]
    %v197 = vld [vmem:[%s1 + $0x400] sm:$0xff]
    %v198 = vld [vmem:[%s1 + $0x408] sm:$0xff]
    %v199 = vld [vmem:[%s1 + $0x410] sm:$0xff]
    %v200 = vld [vmem:[%s1 + $0x418] sm:$0xff]
    %v201 = vld [vmem:[%s1 + $0x420] sm:$0xff]
    %v202 = vld [vmem:[%s1 + $0x428] sm:$0xff]
    %v203 = vld [vmem:[%s1 + $0x430] sm:$0xff]
    %v204 = vld [vmem:[%s1 + $0x438] sm:$0xff]
    %v205 = vld [vmem:[%s1 + $0x440] sm:$0xff]
    %v206 = vld [vmem:[%s1 + $0x448] sm:$0xff]
    %v207 = vld [vmem:[%s1 + $0x450] sm:$0xff]
    %v208 = vld [vmem:[%s1 + $0x458] sm:$0xff]
    %v209 = vld [vmem:[%s1 + $0x460] sm:$0xff]
    %v210 = vld [vmem:[%s1 + $0x468] sm:$0xff]
    %v211 = vld [vmem:[%s1 + $0x470] sm:$0xff]
    %v212 = vld [vmem:[%s1 + $0x478] sm:$0xff]
    %v213 = vld [vmem:[%s1 + $0x480] sm:$0xff]
    %v214 = vld [vmem:[%s1 + $0x488] sm:$0xff]
    %v215 = vld [vmem:[%s1 + $0x490] sm:$0xff]
    %v216 = vld [vmem:[%s1 + $0x498] sm:$0xff]
    %v217 = vld [vmem:[%s1 + $0x4a0] sm:$0xff]
    %v218 = vld [vmem:[%s1 + $0x4a8] sm:$0xff]
    %v219 = vld [vmem:[%s1 + $0x4b0] sm:$0xff]
    %v220 = vld [vmem:[%s1 + $0x4b8] sm:$0xff]
    %v221 = vld [vmem:[%s1 + $0x4c0] sm:$0xff]
    %v222 = vld [vmem:[%s1 + $0x4c8] sm:$0xff]
    %v223 = vld [vmem:[%s1 + $0x4d0] sm:$0xff]
    %v224 = vld [vmem:[%s1 + $0x4d8] sm:$0xff]
    %v225 = vld [vmem:[%s1 + $0x4e0] sm:$0xff]
    %v226 = vld [vmem:[%s1 + $0x4e8] sm:$0xff]
    %v227 = vld [vmem:[%s1 + $0x4f0] sm:$0xff]
    %v228 = vld [vmem:[%s1 + $0x4f8] sm:$0xff]
    %v229 = vld [vmem:[%s1 + $0x500] sm:$0xff]
    %v230 = vld [vmem:[%s1 + $0x508] sm:$0xff]
    %v231 = vld [vmem:[%s1 + $0x510] sm:$0xff]
    %v232 = vld [vmem:[%s1 + $0x518] sm:$0xff]
    %v233 = vld [vmem:[%s1 + $0x520] sm:$0xff]
    %v234 = vld [vmem:[%s1 + $0x528] sm:$0xff]
    %v235 = vld [vmem:[%s1 + $0x530] sm:$0xff]
    %v236 = vld [vmem:[%s1 + $0x538] sm:$0xff]
    %v237 = vld [vmem:[%s1 + $0x540] sm:$0xff]
    %v238 = vld [vmem:[%s1 + $0x548] sm:$0xff]
    %v239 = vld [vmem:[%s1 + $0x550] sm:$0xff]
    %v240 = vld [vmem:[%s1 + $0x558] sm:$0xff]
    %v241 = vld [vmem:[%s1 + $0x560] sm:$0xff]
    %v242 = vld [vmem:[%s1 + $0x568] sm:$0xff]
    %v243 = vld [vmem:[%s1 + $0x570] sm:$0xff]
    %v244 = vld [vmem:[%s1 + $0x578] sm:$0xff]
    %v245 = vld [vmem:[%s1 + $0x580] sm:$0xff]
    %v246 = vld [vmem:[%s1 + $0x588] sm:$0xff]
    %v247 = vld [vmem:[%s1 + $0x590] sm:$0xff]
    %v248 = vld [vmem:[%s1 + $0x598] sm:$0xff]
    %v249 = vld [vmem:[%s1 + $0x5a0] sm:$0xff]
    %v250 = vld [vmem:[%s1 + $0x5a8] sm:$0xff]
    %v251 = vld [vmem:[%s1 + $0x5b0] sm:$0xff]
    %v252 = vld [vmem:[%s1 + $0x5b8] sm:$0xff]
    %v253 = vld [vmem:[%s1 + $0x5c0] sm:$0xff]
    %v254 = vld [vmem:[%s1 + $0x5c8] sm:$0xff]
    %v255 = vld [vmem:[%s1 + $0x5d0] sm:$0xff]
    %v256 = vld [vmem:[%s1 + $0x5d8] sm:$0xff]
    %v257 = vld [vmem:[%s1 + $0x5e0] sm:$0xff]
    %v258 = vld [vmem:[%s1 + $0x5e8] sm:$0xff]
    %v259 = vld [vmem:[%s1 + $0x5f0] sm:$0xff]
    %v260 = vld [vmem:[%s1 + $0x5f8] sm:$0xff]
    %v261 = vld [vmem:[%s1 + $0x600] sm:$0xff]
    %v262 = vld [vmem:[%s1 + $0x608] sm:$0xff]
    %v263 = vld [vmem:[%s1 + $0x610] sm:$0xff]
    %v264 = vld [vmem:[%s1 + $0x618] sm:$0xff]
    %v265 = vld [vmem:[%s1 + $0x620] sm:$0xff]
    %v266 = vld [vmem:[%s1 + $0x628] sm:$0xff]
    %v267 = vld [vmem:[%s1 + $0x630] sm:$0xff]
    %v268 = vld [vmem:[%s1 + $0x638] sm:$0xff]
    %v269 = vld [vmem:[%s1 + $0x640] sm:$0xff]
    %v270 = vld [vmem:[%s1 + $0x648] sm:$0xff]
    %v271 = vld [vmem:[%s1 + $0x650] sm:$0xff]
    %v272 = vld [vmem:[%s1 + $0x658] sm:$0xff]
    %v273 = vld [vmem:[%s1 + $0x660] sm:$0xff]
    %v274 = vld [vmem:[%s1 + $0x668] sm:$0xff]
    %v275 = vld [vmem:[%s1 + $0x670] sm:$0xff]
    %v276 = vld [vmem:[%s1 + $0x678] sm:$0xff]
    %v277 = vld [vmem:[%s1 + $0x680] sm:$0xff]
    %v278 = vld [vmem:[%s1 + $0x688] sm:$0xff]
    %v279 = vld [vmem:[%s1 + $0x690] sm:$0xff]
    %v280 = vld [vmem:[%s1 + $0x698] sm:$0xff]
    %v281 = vld [vmem:[%s1 + $0x6a0] sm:$0xff]
    %v282 = vld [vmem:[%s1 + $0x6a8] sm:$0xff]
    %v283 = vld [vmem:[%s1 + $0x6b0] sm:$0xff]
    %v284 = vld [vmem:[%s1 + $0x6b8] sm:$0xff]
    %v285 = vld [vmem:[%s1 + $0x6c0] sm:$0xff]
    %v286 = vld [vmem:[%s1 + $0x6c8] sm:$0xff]
    %v287 = vld [vmem:[%s1 + $0x6d0] sm:$0xff]
    %v288 = vld [vmem:[%s1 + $0x6d8] sm:$0xff]
    %v289 = vld [vmem:[%s1 + $0x6e0] sm:$0xff]
    %v290 = vld [vmem:[%s1 + $0x6e8] sm:$0xff]
    %v291 = vld [vmem:[%s1 + $0x6f0] sm:$0xff]
    %v292 = vld [vmem:[%s1 + $0x6f8] sm:$0xff]
    %v293 = vld [vmem:[%s1 + $0x700] sm:$0xff]
    %v294 = vld [vmem:[%s1 + $0x708] sm:$0xff]
    %v295 = vld [vmem:[%s1 + $0x710] sm:$0xff]
    %v296 = vld [vmem:[%s1 + $0x718] sm:$0xff]
    %v297 = vld [vmem:[%s1 + $0x720] sm:$0xff]
    %v298 = vld [vmem:[%s1 + $0x728] sm:$0xff]
    %v299 = vld [vmem:[%s1 + $0x730] sm:$0xff]
    %v300 = vld [vmem:[%s1 + $0x738] sm:$0xff]
    %v301 = vld [vmem:[%s1 + $0x740] sm:$0xff]
    %v302 = vld [vmem:[%s1 + $0x748] sm:$0xff]
    %v303 = vld [vmem:[%s1 + $0x750] sm:$0xff]
    %v304 = vld [vmem:[%s1 + $0x758] sm:$0xff]
    %v305 = vld [vmem:[%s1 + $0x760] sm:$0xff]
    %v306 = vld [vmem:[%s1 + $0x768] sm:$0xff]
    %v307 = vld [vmem:[%s1 + $0x770] sm:$0xff]
    %v308 = vld [vmem:[%s1 + $0x778] sm:$0xff]
    %v309 = vld [vmem:[%s1 + $0x780] sm:$0xff]
    %v310 = vld [vmem:[%s1 + $0x788] sm:$0xff]
    %v311 = vld [vmem:[%s1 + $0x790] sm:$0xff]
    %v312 = vld [vmem:[%s1 + $0x798] sm:$0xff]
    %v313 = vld [vmem:[%s1 + $0x7a0] sm:$0xff]
    %v314 = vld [vmem:[%s1 + $0x7a8] sm:$0xff]
    %v315 = vld [vmem:[%s1 + $0x7b0] sm:$0xff]
    %v316 = vld [vmem:[%s1 + $0x7b8] sm:$0xff]
    %v317 = vld [vmem:[%s1 + $0x7c0] sm:$0xff]
    %v318 = vld [vmem:[%s1 + $0x7c8] sm:$0xff]
    %v319 = vld [vmem:[%s1 + $0x7d0] sm:$0xff]
    %v320 = vld [vmem:[%s1 + $0x7d8] sm:$0xff]
    %v321 = vld [vmem:[%s1 + $0x7e0] sm:$0xff]
    %v322 = vld [vmem:[%s1 + $0x7e8] sm:$0xff]
    %v323 = vld [vmem:[%s1 + $0x7f0] sm:$0xff]
    %v324 = vld [vmem:[%s1 + $0x7f8] sm:$0xff]
    %v325 = vld [vmem:[%s1 + $0x800] sm:$0xff]
    %v326 = vld [vmem:[%s1 + $0x808] sm:$0xff]
    %v327 = vld [vmem:[%s1 + $0x810] sm:$0xff]
    %v328 = vld [vmem:[%s1 + $0x818] sm:$0xff]
    %v329 = vld [vmem:[%s1 + $0x820] sm:$0xff]
    %v330 = vld [vmem:[%s1 + $0x828] sm:$0xff]
    %v331 = vld [vmem:[%s1 + $0x830] sm:$0xff]
    %v332 = vld [vmem:[%s1 + $0x838] sm:$0xff]
    %v333 = vld [vmem:[%s1 + $0x840] sm:$0xff]
    %v334 = vld [vmem:[%s1 + $0x848] sm:$0xff]
    %v335 = vld [vmem:[%s1 + $0x850] sm:$0xff]
    %v336 = vld [vmem:[%s1 + $0x858] sm:$0xff]
    %v337 = vld [vmem:[%s1 + $0x860] sm:$0xff]
    %v338 = vld [vmem:[%s1 + $0x868] sm:$0xff]
    %v339 = vld [vmem:[%s1 + $0x870] sm:$0xff]
    %v340 = vld [vmem:[%s1 + $0x878] sm:$0xff]
    %v341 = vld [vmem:[%s1 + $0x880] sm:$0xff]
    %v342 = vld [vmem:[%s1 + $0x888] sm:$0xff]
    %v343 = vld [vmem:[%s1 + $0x890] sm:$0xff]
    %v344 = vld [vmem:[%s1 + $0x898] sm:$0xff]
    %v345 = vld [vmem:[%s1 + $0x8a0] sm:$0xff]
    %v346 = vld [vmem:[%s1 + $0x8a8] sm:$0xff]
    %v347 = vld [vmem:[%s1 + $0x8b0] sm:$0xff]
    %v348 = vld [vmem:[%s1 + $0x8b8] sm:$0xff]
    %v349 = vld [vmem:[%s1 + $0x8c0] sm:$0xff]
    %v350 = vld [vmem:[%s1 + $0x8c8] sm:$0xff]
    %v351 = vld [vmem:[%s1 + $0x8d0] sm:$0xff]
    %v352 = vld [vmem:[%s1 + $0x8d8] sm:$0xff]
    %v353 = vld [vmem:[%s1 + $0x8e0] sm:$0xff]
    %v354 = vld [vmem:[%s1 + $0x8e8] sm:$0xff]
    %v355 = vld [vmem:[%s1 + $0x8f0] sm:$0xff]
    %v356 = vld [vmem:[%s1 + $0x8f8] sm:$0xff]
    %v357 = vld [vmem:[%s1 + $0x900] sm:$0xff]
    %v358 = vld [vmem:[%s1 + $0x908] sm:$0xff]
    %v359 = vld [vmem:[%s1 + $0x910] sm:$0xff]
    %v360 = vld [vmem:[%s1 + $0x918] sm:$0xff]
    %v361 = vld [vmem:[%s1 + $0x920] sm:$0xff]
    %v362 = vld [vmem:[%s1 + $0x928] sm:$0xff]
    %v363 = vld [vmem:[%s1 + $0x930] sm:$0xff]
    %v364 = vld [vmem:[%s1 + $0x938] sm:$0xff]
    %v365 = vld [vmem:[%s1 + $0x940] sm:$0xff]
    %v366 = vld [vmem:[%s1 + $0x948] sm:$0xff]
    %v367 = vld [vmem:[%s1 + $0x950] sm:$0xff]
    %v368 = vld [vmem:[%s1 + $0x958] sm:$0xff]
    %v369 = vld [vmem:[%s1 + $0x960] sm:$0xff]
    %v370 = vld [vmem:[%s1 + $0x968] sm:$0xff]
    %v371 = vld [vmem:[%s1 + $0x970] sm:$0xff]
    %v372 = vld [vmem:[%s1 + $0x978] sm:$0xff]
    %v373 = vld [vmem:[%s1 + $0x980] sm:$0xff]
    %v374 = vld [vmem:[%s1 + $0x988] sm:$0xff]
    %v375 = vld [vmem:[%s1 + $0x990] sm:$0xff]
    %v376 = vld [vmem:[%s1 + $0x998] sm:$0xff]
    %v377 = vld [vmem:[%s1 + $0x9a0] sm:$0xff]
    %v378 = vld [vmem:[%s1 + $0x9a8] sm:$0xff]
    %v379 = vld [vmem:[%s1 + $0x9b0] sm:$0xff]
    %v380 = vld [vmem:[%s1 + $0x9b8] sm:$0xff]
    %v381 = vld [vmem:[%s1 + $0x9c0] sm:$0xff]
    %v382 = vld [vmem:[%s1 + $0x9c8] sm:$0xff]
    %v383 = vld [vmem:[%s1 + $0x9d0] sm:$0xff]
    %v384 = vld [vmem:[%s1 + $0x9d8] sm:$0xff]
    %v385 = vld [vmem:[%s1 + $0x9e0] sm:$0xff]
    %v386 = vld [vmem:[%s1 + $0x9e8] sm:$0xff]
    %v387 = vld [vmem:[%s1 + $0x9f0] sm:$0xff]
    %v388 = vld [vmem:[%s1 + $0x9f8] sm:$0xff]
    %v389 = vld [vmem:[%s1 + $0xa00] sm:$0xff]
    %v390 = vld [vmem:[%s1 + $0xa08] sm:$0xff]
    %v391 = vld [vmem:[%s1 + $0xa10] sm:$0xff]
    %v392 = vld [vmem:[%s1 + $0xa18] sm:$0xff]
    %v393 = vld [vmem:[%s1 + $0xa20] sm:$0xff]
    %v394 = vld [vmem:[%s1 + $0xa28] sm:$0xff]
    %v395 = vld [vmem:[%s1 + $0xa30] sm:$0xff]
    %v396 = vld [vmem:[%s1 + $0xa38] sm:$0xff]
    %v397 = vld [vmem:[%s1 + $0xa40] sm:$0xff]
    %v398 = vld [vmem:[%s1 + $0xa48] sm:$0xff]
    %v399 = vld [vmem:[%s1 + $0xa50] sm:$0xff]
    %v400 = vld [vmem:[%s1 + $0xa58] sm:$0xff]
    %v401 = vld [vmem:[%s1 + $0xa60] sm:$0xff]
    %v402 = vld [vmem:[%s1 + $0xa68] sm:$0xff]
    %v403 = vld [vmem:[%s1 + $0xa70] sm:$0xff]
    %v404 = vld [vmem:[%s1 + $0xa78] sm:$0xff]
    %v405 = vld [vmem:[%s1 + $0xa80] sm:$0xff]
    %v406 = vld [vmem:[%s1 + $0xa88] sm:$0xff]
    %v407 = vld [vmem:[%s1 + $0xa90] sm:$0xff]
    %v408 = vld [vmem:[%s1 + $0xa98] sm:$0xff]
    %v409 = vld [vmem:[%s1 + $0xaa0] sm:$0xff]
    %v410 = vld [vmem:[%s1 + $0xaa8] sm:$0xff]
    %v411 = vld [vmem:[%s1 + $0xab0] sm:$0xff]
    %v412 = vld [vmem:[%s1 + $0xab8] sm:$0xff]
    %v413 = vld [vmem:[%s1 + $0xac0] sm:$0xff]
    %v414 = vld [vmem:[%s1 + $0xac8] sm:$0xff]
    %v415 = vld [vmem:[%s1 + $0xad0] sm:$0xff]
    %v416 = vld [vmem:[%s1 + $0xad8] sm:$0xff]
    %v417 = vld [vmem:[%s1 + $0xae0] sm:$0xff]
    %v418 = vld [vmem:[%s1 + $0xae8] sm:$0xff]
    %v419 = vld [vmem:[%s1 + $0xaf0] sm:$0xff]
    %v420 = vld [vmem:[%s1 + $0xaf8] sm:$0xff]
    %v421 = vld [vmem:[%s1 + $0xb00] sm:$0xff]
    %v422 = vld [vmem:[%s1 + $0xb08] sm:$0xff]
    %v423 = vld [vmem:[%s1 + $0xb10] sm:$0xff]
    %v424 = vld [vmem:[%s1 + $0xb18] sm:$0xff]
    %v425 = vld [vmem:[%s1 + $0xb20] sm:$0xff]
    %v426 = vld [vmem:[%s1 + $0xb28] sm:$0xff]
    %v427 = vld [vmem:[%s1 + $0xb30] sm:$0xff]
    %v428 = vld [vmem:[%s1 + $0xb38] sm:$0xff]
    %v429 = vld [vmem:[%s1 + $0xb40] sm:$0xff]
    %v430 = vld [vmem:[%s1 + $0xb48] sm:$0xff]
    %v431 = vld [vmem:[%s1 + $0xb50] sm:$0xff]
    %v432 = vld [vmem:[%s1 + $0xb58] sm:$0xff]
    %v433 = vld [vmem:[%s1 + $0xb60] sm:$0xff]
    %v434 = vld [vmem:[%s1 + $0xb68] sm:$0xff]
    %v435 = vld [vmem:[%s1 + $0xb70] sm:$0xff]
    %v436 = vld [vmem:[%s1 + $0xb78] sm:$0xff]
    %v437 = vld [vmem:[%s1 + $0xb80] sm:$0xff]
    %v438 = vld [vmem:[%s1 + $0xb88] sm:$0xff]
    %v439 = vld [vmem:[%s1 + $0xb90] sm:$0xff]
    %v440 = vld [vmem:[%s1 + $0xb98] sm:$0xff]
    %v441 = vld [vmem:[%s1 + $0xba0] sm:$0xff]
    %v442 = vld [vmem:[%s1 + $0xba8] sm:$0xff]
    %v443 = vld [vmem:[%s1 + $0xbb0] sm:$0xff]
    %v444 = vld [vmem:[%s1 + $0xbb8] sm:$0xff]
    %v445 = vld [vmem:[%s1 + $0xbc0] sm:$0xff]
    %v446 = vld [vmem:[%s1 + $0xbc8] sm:$0xff]
    %v447 = vld [vmem:[%s1 + $0xbd0] sm:$0xff]
    %v448 = vld [vmem:[%s1 + $0xbd8] sm:$0xff]
    %v449 = vld [vmem:[%s1 + $0xbe0] sm:$0xff]
    %v450 = vld [vmem:[%s1 + $0xbe8] sm:$0xff]
    %v451 = vld [vmem:[%s1 + $0xbf0] sm:$0xff]
    %v452 = vld [vmem:[%s1 + $0xbf8] sm:$0xff]
    %v453 = vld [vmem:[%s2] sm:$0x1]
    %v455 = vlaneseq
    %v456 = vshrl.u32 %v455, 7
    %v457 = vsub.s32 0, %v456
    %v458 = vrot.slane %v453, %v457
    %460 = vmatprep.subr.mxu0 0.0
    %v461 = vand.u32 %v84, 4294901760
    %462 = vmatpush1.msra.mxu0 %v461
    %463 = vmatprep.subr.mxu0 0.0
    %v464 = vand.u32 %v83, 4294901760
    %465 = vmatpush1.msra.mxu0 %v464
    %466 = vmatprep.subr.mxu0 0.0
    %v467 = vand.u32 %v82, 4294901760
    %468 = vmatpush1.msra.mxu0 %v467
    %469 = vmatprep.subr.mxu0 0.0
    %v470 = vand.u32 %v81, 4294901760
    %471 = vmatpush1.msra.mxu0 %v470
    %472 = vmatprep.subr.mxu0 0.0
    %v473 = vand.u32 %v80, 4294901760
    %474 = vmatpush1.msra.mxu0 %v473
    %475 = vmatprep.subr.mxu0 0.0
    %v476 = vand.u32 %v79, 4294901760
    %477 = vmatpush1.msra.mxu0 %v476
    %478 = vmatprep.subr.mxu0 0.0
    %v479 = vand.u32 %v78, 4294901760
    %480 = vmatpush1.msra.mxu0 %v479
    %481 = vmatprep.subr.mxu0 0.0
    %v482 = vand.u32 %v77, 4294901760
    %483 = vmatpush1.msra.mxu0 %v482
    %484 = vmatprep.subr.mxu0 0.0
    %v485 = vand.u32 %v76, 4294901760
    %486 = vmatpush1.msra.mxu0 %v485
    %487 = vmatprep.subr.mxu0 0.0
    %v488 = vand.u32 %v75, 4294901760
    %489 = vmatpush1.msra.mxu0 %v488
    %490 = vmatprep.subr.mxu0 0.0
    %v491 = vand.u32 %v74, 4294901760
    %492 = vmatpush1.msra.mxu0 %v491
    %493 = vmatprep.subr.mxu0 0.0
    %v494 = vand.u32 %v73, 4294901760
    %495 = vmatpush1.msra.mxu0 %v494
    %496 = vmatprep.subr.mxu0 0.0
    %v497 = vand.u32 %v72, 4294901760
    %498 = vmatpush1.msra.mxu0 %v497
    %499 = vmatprep.subr.mxu0 0.0
    %v500 = vand.u32 %v71, 4294901760
    %501 = vmatpush1.msra.mxu0 %v500
    %502 = vmatprep.subr.mxu0 0.0
    %v503 = vand.u32 %v70, 4294901760
    %504 = vmatpush1.msra.mxu0 %v503
    %505 = vmatprep.subr.mxu0 0.0
    %v506 = vand.u32 %v69, 4294901760
    %507 = vmatpush1.msra.mxu0 %v506
    %508 = vmatprep.subr.mxu0 0.0
    %v509 = vand.u32 %v100, 4294901760
    %510 = vmatpush2.msra.mxu0 %v509
    %511 = vmatprep.subr.mxu0 0.0
    %v512 = vand.u32 %v99, 4294901760
    %513 = vmatpush2.msra.mxu0 %v512
    %514 = vmatprep.subr.mxu0 0.0
    %v515 = vand.u32 %v98, 4294901760
    %516 = vmatpush2.msra.mxu0 %v515
    %517 = vmatprep.subr.mxu0 0.0
    %v518 = vand.u32 %v97, 4294901760
    %519 = vmatpush2.msra.mxu0 %v518
    %520 = vmatprep.subr.mxu0 0.0
    %v521 = vand.u32 %v96, 4294901760
    %522 = vmatpush2.msra.mxu0 %v521
    %523 = vmatprep.subr.mxu0 0.0
    %v524 = vand.u32 %v95, 4294901760
    %525 = vmatpush2.msra.mxu0 %v524
    %526 = vmatprep.subr.mxu0 0.0
    %v527 = vand.u32 %v94, 4294901760
    %528 = vmatpush2.msra.mxu0 %v527
    %529 = vmatprep.subr.mxu0 0.0
    %v530 = vand.u32 %v93, 4294901760
    %531 = vmatpush2.msra.mxu0 %v530
    %532 = vmatprep.subr.mxu0 0.0
    %v533 = vand.u32 %v92, 4294901760
    %534 = vmatpush2.msra.mxu0 %v533
    %535 = vmatprep.subr.mxu0 0.0
    %v536 = vand.u32 %v91, 4294901760
    %537 = vmatpush2.msra.mxu0 %v536
    %538 = vmatprep.subr.mxu0 0.0
    %v539 = vand.u32 %v90, 4294901760
    %540 = vmatpush2.msra.mxu0 %v539
    %541 = vmatprep.subr.mxu0 0.0
    %v542 = vand.u32 %v89, 4294901760
    %543 = vmatpush2.msra.mxu0 %v542
    %544 = vmatprep.subr.mxu0 0.0
    %v545 = vand.u32 %v88, 4294901760
    %546 = vmatpush2.msra.mxu0 %v545
    %547 = vmatprep.subr.mxu0 0.0
    %v548 = vand.u32 %v87, 4294901760
    %549 = vmatpush2.msra.mxu0 %v548
    %550 = vmatprep.subr.mxu0 0.0
    %v551 = vand.u32 %v86, 4294901760
    %552 = vmatpush2.msra.mxu0 %v551
    %553 = vmatprep.subr.mxu0 0.0
    %v554 = vand.u32 %v85, 4294901760
    %555 = vmatpush2.msra.mxu0 %v554
    %v556 = vand.u32 %v22, 4294901760
    %v557 = vsub.f32 %v22, %v556
    %v558 = vand.u32 %v557, 4294901760
    %v559 = vsub.f32 %v557, %v558
    %v560 = vand.u32 %v559, 4294901760
    %561 = vmatprep.mubr.f32.mxu0 %v560
    %v562 = vand.u32 %v21, 4294901760
    %v563 = vsub.f32 %v21, %v562
    %v564 = vand.u32 %v563, 4294901760
    %v565 = vsub.f32 %v563, %v564
    %v566 = vand.u32 %v565, 4294901760
    %567 = vmatmul.mubr.f32.gmra.mxu0 %v566
    %v568 = vpop.f32.mrf.mxu0
    %v569 = vadd.f32 %v458, %v568
    %v570 = vpop.f32.mrf.mxu0
    %v571 = vand.u32 %v46, 4294901760
    %v572 = vsub.f32 %v46, %v571
    %v573 = vand.u32 %v572, 4294901760
    %v574 = vsub.f32 %v572, %v573
    %v575 = vand.u32 %v574, 4294901760
    %576 = vmatprep.mubr.f32.mxu0 %v575
    %v577 = vand.u32 %v45, 4294901760
    %v578 = vsub.f32 %v45, %v577
    %v579 = vand.u32 %v578, 4294901760
    %v580 = vsub.f32 %v578, %v579
    %v581 = vand.u32 %v580, 4294901760
    %582 = vmatmul.mubr.f32.gmra.mxu0 %v581
    %v583 = vpop.f32.mrf.mxu0
    %v584 = vadd.f32 %v458, %v583
    %v585 = vpop.f32.mrf.mxu0
    %586 = vdwg.mxu0
    %587 = vmatprep.subr.mxu0 0.0
    %v588 = vand.u32 %v84, 4294901760
    %v589 = vsub.f32 %v84, %v588
    %v590 = vand.u32 %v589, 4294901760
    %v591 = vsub.f32 %v589, %v590
    %v592 = vand.u32 %v591, 4294901760
    %593 = vmatpush1.msra.mxu0 %v592
    %594 = vmatprep.subr.mxu0 0.0
    %v595 = vand.u32 %v83, 4294901760
    %v596 = vsub.f32 %v83, %v595
    %v597 = vand.u32 %v596, 4294901760
    %v598 = vsub.f32 %v596, %v597
    %v599 = vand.u32 %v598, 4294901760
    %600 = vmatpush1.msra.mxu0 %v599
    %601 = vmatprep.subr.mxu0 0.0
    %v602 = vand.u32 %v82, 4294901760
    %v603 = vsub.f32 %v82, %v602
    %v604 = vand.u32 %v603, 4294901760
    %v605 = vsub.f32 %v603, %v604
    %v606 = vand.u32 %v605, 4294901760
    %607 = vmatpush1.msra.mxu0 %v606
    %608 = vmatprep.subr.mxu0 0.0
    %v609 = vand.u32 %v81, 4294901760
    %v610 = vsub.f32 %v81, %v609
    %v611 = vand.u32 %v610, 4294901760
    %v612 = vsub.f32 %v610, %v611
    %v613 = vand.u32 %v612, 4294901760
    %614 = vmatpush1.msra.mxu0 %v613
    %615 = vmatprep.subr.mxu0 0.0
    %v616 = vand.u32 %v80, 4294901760
    %v617 = vsub.f32 %v80, %v616
    %v618 = vand.u32 %v617, 4294901760
    %v619 = vsub.f32 %v617, %v618
    %v620 = vand.u32 %v619, 4294901760
    %621 = vmatpush1.msra.mxu0 %v620
    %622 = vmatprep.subr.mxu0 0.0
    %v623 = vand.u32 %v79, 4294901760
    %v624 = vsub.f32 %v79, %v623
    %v625 = vand.u32 %v624, 4294901760
    %v626 = vsub.f32 %v624, %v625
    %v627 = vand.u32 %v626, 4294901760
    %628 = vmatpush1.msra.mxu0 %v627
    %629 = vmatprep.subr.mxu0 0.0
    %v630 = vand.u32 %v78, 4294901760
    %v631 = vsub.f32 %v78, %v630
    %v632 = vand.u32 %v631, 4294901760
    %v633 = vsub.f32 %v631, %v632
    %v634 = vand.u32 %v633, 4294901760
    %635 = vmatpush1.msra.mxu0 %v634
    %636 = vmatprep.subr.mxu0 0.0
    %v637 = vand.u32 %v77, 4294901760
    %v638 = vsub.f32 %v77, %v637
    %v639 = vand.u32 %v638, 4294901760
    %v640 = vsub.f32 %v638, %v639
    %v641 = vand.u32 %v640, 4294901760
    %642 = vmatpush1.msra.mxu0 %v641
    %643 = vmatprep.subr.mxu0 0.0
    %v644 = vand.u32 %v76, 4294901760
    %v645 = vsub.f32 %v76, %v644
    %v646 = vand.u32 %v645, 4294901760
    %v647 = vsub.f32 %v645, %v646
    %v648 = vand.u32 %v647, 4294901760
    %649 = vmatpush1.msra.mxu0 %v648
    %650 = vmatprep.subr.mxu0 0.0
    %v651 = vand.u32 %v75, 4294901760
    %v652 = vsub.f32 %v75, %v651
    %v653 = vand.u32 %v652, 4294901760
    %v654 = vsub.f32 %v652, %v653
    %v655 = vand.u32 %v654, 4294901760
    %656 = vmatpush1.msra.mxu0 %v655
    %657 = vmatprep.subr.mxu0 0.0
    %v658 = vand.u32 %v74, 4294901760
    %v659 = vsub.f32 %v74, %v658
    %v660 = vand.u32 %v659, 4294901760
    %v661 = vsub.f32 %v659, %v660
    %v662 = vand.u32 %v661, 4294901760
    %663 = vmatpush1.msra.mxu0 %v662
    %664 = vmatprep.subr.mxu0 0.0
    %v665 = vand.u32 %v73, 4294901760
    %v666 = vsub.f32 %v73, %v665
    %v667 = vand.u32 %v666, 4294901760
    %v668 = vsub.f32 %v666, %v667
    %v669 = vand.u32 %v668, 4294901760
    %670 = vmatpush1.msra.mxu0 %v669
    %671 = vmatprep.subr.mxu0 0.0
    %v672 = vand.u32 %v72, 4294901760
    %v673 = vsub.f32 %v72, %v672
    %v674 = vand.u32 %v673, 4294901760
    %v675 = vsub.f32 %v673, %v674
    %v676 = vand.u32 %v675, 4294901760
    %677 = vmatpush1.msra.mxu0 %v676
    %678 = vmatprep.subr.mxu0 0.0
    %v679 = vand.u32 %v71, 4294901760
    %v680 = vsub.f32 %v71, %v679
    %v681 = vand.u32 %v680, 4294901760
    %v682 = vsub.f32 %v680, %v681
    %v683 = vand.u32 %v682, 4294901760
    %684 = vmatpush1.msra.mxu0 %v683
    %685 = vmatprep.subr.mxu0 0.0
    %v686 = vand.u32 %v70, 4294901760
    %v687 = vsub.f32 %v70, %v686
    %v688 = vand.u32 %v687, 4294901760
    %v689 = vsub.f32 %v687, %v688
    %v690 = vand.u32 %v689, 4294901760
    %691 = vmatpush1.msra.mxu0 %v690
    %692 = vmatprep.subr.mxu0 0.0
    %v693 = vand.u32 %v69, 4294901760
    %v694 = vsub.f32 %v69, %v693
    %v695 = vand.u32 %v694, 4294901760
    %v696 = vsub.f32 %v694, %v695
    %v697 = vand.u32 %v696, 4294901760
    %698 = vmatpush1.msra.mxu0 %v697
    %699 = vmatprep.subr.mxu0 0.0
    %v700 = vand.u32 %v100, 4294901760
    %v701 = vsub.f32 %v100, %v700
    %v702 = vand.u32 %v701, 4294901760
    %v703 = vsub.f32 %v701, %v702
    %v704 = vand.u32 %v703, 4294901760
    %705 = vmatpush2.msra.mxu0 %v704
    %706 = vmatprep.subr.mxu0 0.0
    %v707 = vand.u32 %v99, 4294901760
    %v708 = vsub.f32 %v99, %v707
    %v709 = vand.u32 %v708, 4294901760
    %v710 = vsub.f32 %v708, %v709
    %v711 = vand.u32 %v710, 4294901760
    %712 = vmatpush2.msra.mxu0 %v711
    %713 = vmatprep.subr.mxu0 0.0
    %v714 = vand.u32 %v98, 4294901760
    %v715 = vsub.f32 %v98, %v714
    %v716 = vand.u32 %v715, 4294901760
    %v717 = vsub.f32 %v715, %v716
    %v718 = vand.u32 %v717, 4294901760
    %719 = vmatpush2.msra.mxu0 %v718
    %720 = vmatprep.subr.mxu0 0.0
    %v721 = vand.u32 %v97, 4294901760
    %v722 = vsub.f32 %v97, %v721
    %v723 = vand.u32 %v722, 4294901760
    %v724 = vsub.f32 %v722, %v723
    %v725 = vand.u32 %v724, 4294901760
    %726 = vmatpush2.msra.mxu0 %v725
    %727 = vmatprep.subr.mxu0 0.0
    %v728 = vand.u32 %v96, 4294901760
    %v729 = vsub.f32 %v96, %v728
    %v730 = vand.u32 %v729, 4294901760
    %v731 = vsub.f32 %v729, %v730
    %v732 = vand.u32 %v731, 4294901760
    %733 = vmatpush2.msra.mxu0 %v732
    %734 = vmatprep.subr.mxu0 0.0
    %v735 = vand.u32 %v95, 4294901760
    %v736 = vsub.f32 %v95, %v735
    %v737 = vand.u32 %v736, 4294901760
    %v738 = vsub.f32 %v736, %v737
    %v739 = vand.u32 %v738, 4294901760
    %740 = vmatpush2.msra.mxu0 %v739
    %741 = vmatprep.subr.mxu0 0.0
    %v742 = vand.u32 %v94, 4294901760
    %v743 = vsub.f32 %v94, %v742
    %v744 = vand.u32 %v743, 4294901760
    %v745 = vsub.f32 %v743, %v744
    %v746 = vand.u32 %v745, 4294901760
    %747 = vmatpush2.msra.mxu0 %v746
    %748 = vmatprep.subr.mxu0 0.0
    %v749 = vand.u32 %v93, 4294901760
    %v750 = vsub.f32 %v93, %v749
    %v751 = vand.u32 %v750, 4294901760
    %v752 = vsub.f32 %v750, %v751
    %v753 = vand.u32 %v752, 4294901760
    %754 = vmatpush2.msra.mxu0 %v753
    %755 = vmatprep.subr.mxu0 0.0
    %v756 = vand.u32 %v92, 4294901760
    %v757 = vsub.f32 %v92, %v756
    %v758 = vand.u32 %v757, 4294901760
    %v759 = vsub.f32 %v757, %v758
    %v760 = vand.u32 %v759, 4294901760
    %761 = vmatpush2.msra.mxu0 %v760
    %762 = vmatprep.subr.mxu0 0.0
    %v763 = vand.u32 %v91, 4294901760
    %v764 = vsub.f32 %v91, %v763
    %v765 = vand.u32 %v764, 4294901760
    %v766 = vsub.f32 %v764, %v765
    %v767 = vand.u32 %v766, 4294901760
    %768 = vmatpush2.msra.mxu0 %v767
    %769 = vmatprep.subr.mxu0 0.0
    %v770 = vand.u32 %v90, 4294901760
    %v771 = vsub.f32 %v90, %v770
    %v772 = vand.u32 %v771, 4294901760
    %v773 = vsub.f32 %v771, %v772
    %v774 = vand.u32 %v773, 4294901760
    %775 = vmatpush2.msra.mxu0 %v774
    %776 = vmatprep.subr.mxu0 0.0
    %v777 = vand.u32 %v89, 4294901760
    %v778 = vsub.f32 %v89, %v777
    %v779 = vand.u32 %v778, 4294901760
    %v780 = vsub.f32 %v778, %v779
    %v781 = vand.u32 %v780, 4294901760
    %782 = vmatpush2.msra.mxu0 %v781
    %783 = vmatprep.subr.mxu0 0.0
    %v784 = vand.u32 %v88, 4294901760
    %v785 = vsub.f32 %v88, %v784
    %v786 = vand.u32 %v785, 4294901760
    %v787 = vsub.f32 %v785, %v786
    %v788 = vand.u32 %v787, 4294901760
    %789 = vmatpush2.msra.mxu0 %v788
    %790 = vmatprep.subr.mxu0 0.0
    %v791 = vand.u32 %v87, 4294901760
    %v792 = vsub.f32 %v87, %v791
    %v793 = vand.u32 %v792, 4294901760
    %v794 = vsub.f32 %v792, %v793
    %v795 = vand.u32 %v794, 4294901760
    %796 = vmatpush2.msra.mxu0 %v795
    %797 = vmatprep.subr.mxu0 0.0
    %v798 = vand.u32 %v86, 4294901760
    %v799 = vsub.f32 %v86, %v798
    %v800 = vand.u32 %v799, 4294901760
    %v801 = vsub.f32 %v799, %v800
    %v802 = vand.u32 %v801, 4294901760
    %803 = vmatpush2.msra.mxu0 %v802
    %804 = vmatprep.subr.mxu0 0.0
    %v805 = vand.u32 %v85, 4294901760
    %v806 = vsub.f32 %v85, %v805
    %v807 = vand.u32 %v806, 4294901760
    %v808 = vsub.f32 %v806, %v807
    %v809 = vand.u32 %v808, 4294901760
    %810 = vmatpush2.msra.mxu0 %v809
    %v811 = vand.u32 %v22, 4294901760
    %812 = vmatprep.mubr.f32.mxu0 %v811
    %v813 = vand.u32 %v21, 4294901760
    %814 = vmatmul.mubr.f32.gmra.mxu0 %v813
    %v815 = vpop.f32.mrf.mxu0
    %v816 = vadd.f32 %v569, %v815
    %v817 = vpop.f32.mrf.mxu0
    %v818 = vand.u32 %v46, 4294901760
    %819 = vmatprep.mubr.f32.mxu0 %v818
    %v820 = vand.u32 %v45, 4294901760
    %821 = vmatmul.mubr.f32.gmra.mxu0 %v820
    %v822 = vpop.f32.mrf.mxu0
    %v823 = vadd.f32 %v584, %v822
    %v824 = vpop.f32.mrf.mxu0
    %825 = vdwg.mxu0
    %826 = vmatprep.subr.mxu0 0.0
    %v827 = vand.u32 %v84, 4294901760
    %v828 = vsub.f32 %v84, %v827
    %829 = vmatpush1.msra.mxu0 %v828
    %830 = vmatprep.subr.mxu0 0.0
    %v831 = vand.u32 %v83, 4294901760
    %v832 = vsub.f32 %v83, %v831
    %833 = vmatpush1.msra.mxu0 %v832
    %834 = vmatprep.subr.mxu0 0.0
    %v835 = vand.u32 %v82, 4294901760
    %v836 = vsub.f32 %v82, %v835
    %837 = vmatpush1.msra.mxu0 %v836
    %838 = vmatprep.subr.mxu0 0.0
    %v839 = vand.u32 %v81, 4294901760
    %v840 = vsub.f32 %v81, %v839
    %841 = vmatpush1.msra.mxu0 %v840
    %842 = vmatprep.subr.mxu0 0.0
    %v843 = vand.u32 %v80, 4294901760
    %v844 = vsub.f32 %v80, %v843
    %845 = vmatpush1.msra.mxu0 %v844
    %846 = vmatprep.subr.mxu0 0.0
    %v847 = vand.u32 %v79, 4294901760
    %v848 = vsub.f32 %v79, %v847
    %849 = vmatpush1.msra.mxu0 %v848
    %850 = vmatprep.subr.mxu0 0.0
    %v851 = vand.u32 %v78, 4294901760
    %v852 = vsub.f32 %v78, %v851
    %853 = vmatpush1.msra.mxu0 %v852
    %854 = vmatprep.subr.mxu0 0.0
    %v855 = vand.u32 %v77, 4294901760
    %v856 = vsub.f32 %v77, %v855
    %857 = vmatpush1.msra.mxu0 %v856
    %858 = vmatprep.subr.mxu0 0.0
    %v859 = vand.u32 %v76, 4294901760
    %v860 = vsub.f32 %v76, %v859
    %861 = vmatpush1.msra.mxu0 %v860
    %862 = vmatprep.subr.mxu0 0.0
    %v863 = vand.u32 %v75, 4294901760
    %v864 = vsub.f32 %v75, %v863
    %865 = vmatpush1.msra.mxu0 %v864
    %866 = vmatprep.subr.mxu0 0.0
    %v867 = vand.u32 %v74, 4294901760
    %v868 = vsub.f32 %v74, %v867
    %869 = vmatpush1.msra.mxu0 %v868
    %870 = vmatprep.subr.mxu0 0.0
    %v871 = vand.u32 %v73, 4294901760
    %v872 = vsub.f32 %v73, %v871
    %873 = vmatpush1.msra.mxu0 %v872
    %874 = vmatprep.subr.mxu0 0.0
    %v875 = vand.u32 %v72, 4294901760
    %v876 = vsub.f32 %v72, %v875
    %877 = vmatpush1.msra.mxu0 %v876
    %878 = vmatprep.subr.mxu0 0.0
    %v879 = vand.u32 %v71, 4294901760
    %v880 = vsub.f32 %v71, %v879
    %881 = vmatpush1.msra.mxu0 %v880
    %882 = vmatprep.subr.mxu0 0.0
    %v883 = vand.u32 %v70, 4294901760
    %v884 = vsub.f32 %v70, %v883
    %885 = vmatpush1.msra.mxu0 %v884
    %886 = vmatprep.subr.mxu0 0.0
    %v887 = vand.u32 %v69, 4294901760
    %v888 = vsub.f32 %v69, %v887
    %889 = vmatpush1.msra.mxu0 %v888
    %890 = vmatprep.subr.mxu0 0.0
    %v891 = vand.u32 %v100, 4294901760
    %v892 = vsub.f32 %v100, %v891
    %893 = vmatpush2.msra.mxu0 %v892
    %894 = vmatprep.subr.mxu0 0.0
    %v895 = vand.u32 %v99, 4294901760
    %v896 = vsub.f32 %v99, %v895
    %897 = vmatpush2.msra.mxu0 %v896
    %898 = vmatprep.subr.mxu0 0.0
    %v899 = vand.u32 %v98, 4294901760
    %v900 = vsub.f32 %v98, %v899
    %901 = vmatpush2.msra.mxu0 %v900
    %902 = vmatprep.subr.mxu0 0.0
    %v903 = vand.u32 %v97, 4294901760
    %v904 = vsub.f32 %v97, %v903
    %905 = vmatpush2.msra.mxu0 %v904
    %906 = vmatprep.subr.mxu0 0.0
    %v907 = vand.u32 %v96, 4294901760
    %v908 = vsub.f32 %v96, %v907
    %909 = vmatpush2.msra.mxu0 %v908
    %910 = vmatprep.subr.mxu0 0.0
    %v911 = vand.u32 %v95, 4294901760
    %v912 = vsub.f32 %v95, %v911
    %913 = vmatpush2.msra.mxu0 %v912
    %914 = vmatprep.subr.mxu0 0.0
    %v915 = vand.u32 %v94, 4294901760
    %v916 = vsub.f32 %v94, %v915
    %917 = vmatpush2.msra.mxu0 %v916
    %918 = vmatprep.subr.mxu0 0.0
    %v919 = vand.u32 %v93, 4294901760
    %v920 = vsub.f32 %v93, %v919
    %921 = vmatpush2.msra.mxu0 %v920
    %922 = vmatprep.subr.mxu0 0.0
    %v923 = vand.u32 %v92, 4294901760
    %v924 = vsub.f32 %v92, %v923
    %925 = vmatpush2.msra.mxu0 %v924
    %926 = vmatprep.subr.mxu0 0.0
    %v927 = vand.u32 %v91, 4294901760
    %v928 = vsub.f32 %v91, %v927
    %929 = vmatpush2.msra.mxu0 %v928
    %930 = vmatprep.subr.mxu0 0.0
    %v931 = vand.u32 %v90, 4294901760
    %v932 = vsub.f32 %v90, %v931
    %933 = vmatpush2.msra.mxu0 %v932
    %934 = vmatprep.subr.mxu0 0.0
    %v935 = vand.u32 %v89, 4294901760
    %v936 = vsub.f32 %v89, %v935
    %937 = vmatpush2.msra.mxu0 %v936
    %938 = vmatprep.subr.mxu0 0.0
    %v939 = vand.u32 %v88, 4294901760
    %v940 = vsub.f32 %v88, %v939
    %941 = vmatpush2.msra.mxu0 %v940
    %942 = vmatprep.subr.mxu0 0.0
    %v943 = vand.u32 %v87, 4294901760
    %v944 = vsub.f32 %v87, %v943
    %945 = vmatpush2.msra.mxu0 %v944
    %946 = vmatprep.subr.mxu0 0.0
    %v947 = vand.u32 %v86, 4294901760
    %v948 = vsub.f32 %v86, %v947
    %949 = vmatpush2.msra.mxu0 %v948
    %950 = vmatprep.subr.mxu0 0.0
    %v951 = vand.u32 %v85, 4294901760
    %v952 = vsub.f32 %v85, %v951
    %953 = vmatpush2.msra.mxu0 %v952
    %v954 = vand.u32 %v22, 4294901760
    %v955 = vsub.f32 %v22, %v954
    %956 = vmatprep.mubr.f32.mxu0 %v955
    %v957 = vand.u32 %v21, 4294901760
    %v958 = vsub.f32 %v21, %v957
    %959 = vmatmul.mubr.f32.gmra.mxu0 %v958
    %v960 = vpop.f32.mrf.mxu0
    %v961 = vadd.f32 %v816, %v960
    %v962 = vpop.f32.mrf.mxu0
    %v963 = vand.u32 %v46, 4294901760
    %v964 = vsub.f32 %v46, %v963
    %965 = vmatprep.mubr.f32.mxu0 %v964
    %v966 = vand.u32 %v45, 4294901760
    %v967 = vsub.f32 %v45, %v966
    %968 = vmatmul.mubr.f32.gmra.mxu0 %v967
    %v969 = vpop.f32.mrf.mxu0
    %v970 = vadd.f32 %v823, %v969
    %v971 = vpop.f32.mrf.mxu0
    %972 = vdwg.mxu0
    %973 = vmatprep.subr.mxu0 0.0
    %v974 = vand.u32 %v84, 4294901760
    %975 = vmatpush1.msra.mxu0 %v974
    %976 = vmatprep.subr.mxu0 0.0
    %v977 = vand.u32 %v83, 4294901760
    %978 = vmatpush1.msra.mxu0 %v977
    %979 = vmatprep.subr.mxu0 0.0
    %v980 = vand.u32 %v82, 4294901760
    %981 = vmatpush1.msra.mxu0 %v980
    %982 = vmatprep.subr.mxu0 0.0
    %v983 = vand.u32 %v81, 4294901760
    %984 = vmatpush1.msra.mxu0 %v983
    %985 = vmatprep.subr.mxu0 0.0
    %v986 = vand.u32 %v80, 4294901760
    %987 = vmatpush1.msra.mxu0 %v986
    %988 = vmatprep.subr.mxu0 0.0
    %v989 = vand.u32 %v79, 4294901760
    %990 = vmatpush1.msra.mxu0 %v989
    %991 = vmatprep.subr.mxu0 0.0
    %v992 = vand.u32 %v78, 4294901760
    %993 = vmatpush1.msra.mxu0 %v992
    %994 = vmatprep.subr.mxu0 0.0
    %v995 = vand.u32 %v77, 4294901760
    %996 = vmatpush1.msra.mxu0 %v995
    %997 = vmatprep.subr.mxu0 0.0
    %v998 = vand.u32 %v76, 4294901760
    %999 = vmatpush1.msra.mxu0 %v998
    %1000 = vmatprep.subr.mxu0 0.0
    %v1001 = vand.u32 %v75, 4294901760
    %1002 = vmatpush1.msra.mxu0 %v1001
    %1003 = vmatprep.subr.mxu0 0.0
    %v1004 = vand.u32 %v74, 4294901760
    %1005 = vmatpush1.msra.mxu0 %v1004
    %1006 = vmatprep.subr.mxu0 0.0
    %v1007 = vand.u32 %v73, 4294901760
    %1008 = vmatpush1.msra.mxu0 %v1007
    %1009 = vmatprep.subr.mxu0 0.0
    %v1010 = vand.u32 %v72, 4294901760
    %1011 = vmatpush1.msra.mxu0 %v1010
    %1012 = vmatprep.subr.mxu0 0.0
    %v1013 = vand.u32 %v71, 4294901760
    %1014 = vmatpush1.msra.mxu0 %v1013
    %1015 = vmatprep.subr.mxu0 0.0
    %v1016 = vand.u32 %v70, 4294901760
    %1017 = vmatpush1.msra.mxu0 %v1016
    %1018 = vmatprep.subr.mxu0 0.0
    %v1019 = vand.u32 %v69, 4294901760
    %1020 = vmatpush1.msra.mxu0 %v1019
    %1021 = vmatprep.subr.mxu0 0.0
    %v1022 = vand.u32 %v100, 4294901760
    %1023 = vmatpush2.msra.mxu0 %v1022
    %1024 = vmatprep.subr.mxu0 0.0
    %v1025 = vand.u32 %v99, 4294901760
    %1026 = vmatpush2.msra.mxu0 %v1025
    %1027 = vmatprep.subr.mxu0 0.0
    %v1028 = vand.u32 %v98, 4294901760
    %1029 = vmatpush2.msra.mxu0 %v1028
    %1030 = vmatprep.subr.mxu0 0.0
    %v1031 = vand.u32 %v97, 4294901760
    %1032 = vmatpush2.msra.mxu0 %v1031
    %1033 = vmatprep.subr.mxu0 0.0
    %v1034 = vand.u32 %v96, 4294901760
    %1035 = vmatpush2.msra.mxu0 %v1034
    %1036 = vmatprep.subr.mxu0 0.0
    %v1037 = vand.u32 %v95, 4294901760
    %1038 = vmatpush2.msra.mxu0 %v1037
    %1039 = vmatprep.subr.mxu0 0.0
    %v1040 = vand.u32 %v94, 4294901760
    %1041 = vmatpush2.msra.mxu0 %v1040
    %1042 = vmatprep.subr.mxu0 0.0
    %v1043 = vand.u32 %v93, 4294901760
    %1044 = vmatpush2.msra.mxu0 %v1043
    %1045 = vmatprep.subr.mxu0 0.0
    %v1046 = vand.u32 %v92, 4294901760
    %1047 = vmatpush2.msra.mxu0 %v1046
    %1048 = vmatprep.subr.mxu0 0.0
    %v1049 = vand.u32 %v91, 4294901760
    %1050 = vmatpush2.msra.mxu0 %v1049
    %1051 = vmatprep.subr.mxu0 0.0
    %v1052 = vand.u32 %v90, 4294901760
    %1053 = vmatpush2.msra.mxu0 %v1052
    %1054 = vmatprep.subr.mxu0 0.0
    %v1055 = vand.u32 %v89, 4294901760
    %1056 = vmatpush2.msra.mxu0 %v1055
    %1057 = vmatprep.subr.mxu0 0.0
    %v1058 = vand.u32 %v88, 4294901760
    %1059 = vmatpush2.msra.mxu0 %v1058
    %1060 = vmatprep.subr.mxu0 0.0
    %v1061 = vand.u32 %v87, 4294901760
    %1062 = vmatpush2.msra.mxu0 %v1061
    %1063 = vmatprep.subr.mxu0 0.0
    %v1064 = vand.u32 %v86, 4294901760
    %1065 = vmatpush2.msra.mxu0 %v1064
    %1066 = vmatprep.subr.mxu0 0.0
    %v1067 = vand.u32 %v85, 4294901760
    %1068 = vmatpush2.msra.mxu0 %v1067
    %v1069 = vand.u32 %v22, 4294901760
    %v1070 = vsub.f32 %v22, %v1069
    %v1071 = vand.u32 %v1070, 4294901760
    %1072 = vmatprep.mubr.f32.mxu0 %v1071
    %v1073 = vand.u32 %v21, 4294901760
    %v1074 = vsub.f32 %v21, %v1073
    %v1075 = vand.u32 %v1074, 4294901760
    %1076 = vmatmul.mubr.f32.gmra.mxu0 %v1075
    %v1077 = vpop.f32.mrf.mxu0
    %v1078 = vadd.f32 %v961, %v1077
    %v1079 = vpop.f32.mrf.mxu0
    %v1080 = vand.u32 %v46, 4294901760
    %v1081 = vsub.f32 %v46, %v1080
    %v1082 = vand.u32 %v1081, 4294901760
    %1083 = vmatprep.mubr.f32.mxu0 %v1082
    %v1084 = vand.u32 %v45, 4294901760
    %v1085 = vsub.f32 %v45, %v1084
    %v1086 = vand.u32 %v1085, 4294901760
    %1087 = vmatmul.mubr.f32.gmra.mxu0 %v1086
    %v1088 = vpop.f32.mrf.mxu0
    %v1089 = vadd.f32 %v970, %v1088
    %v1090 = vpop.f32.mrf.mxu0
    %1091 = vdwg.mxu0
    %1092 = vmatprep.subr.mxu0 0.0
    %v1093 = vand.u32 %v84, 4294901760
    %v1094 = vsub.f32 %v84, %v1093
    %v1095 = vand.u32 %v1094, 4294901760
    %1096 = vmatpush1.msra.mxu0 %v1095
    %1097 = vmatprep.subr.mxu0 0.0
    %v1098 = vand.u32 %v83, 4294901760
    %v1099 = vsub.f32 %v83, %v1098
    %v1100 = vand.u32 %v1099, 4294901760
    %1101 = vmatpush1.msra.mxu0 %v1100
    %1102 = vmatprep.subr.mxu0 0.0
    %v1103 = vand.u32 %v82, 4294901760
    %v1104 = vsub.f32 %v82, %v1103
    %v1105 = vand.u32 %v1104, 4294901760
    %1106 = vmatpush1.msra.mxu0 %v1105
    %1107 = vmatprep.subr.mxu0 0.0
    %v1108 = vand.u32 %v81, 4294901760
    %v1109 = vsub.f32 %v81, %v1108
    %v1110 = vand.u32 %v1109, 4294901760
    %1111 = vmatpush1.msra.mxu0 %v1110
    %1112 = vmatprep.subr.mxu0 0.0
    %v1113 = vand.u32 %v80, 4294901760
    %v1114 = vsub.f32 %v80, %v1113
    %v1115 = vand.u32 %v1114, 4294901760
    %1116 = vmatpush1.msra.mxu0 %v1115
    %1117 = vmatprep.subr.mxu0 0.0
    %v1118 = vand.u32 %v79, 4294901760
    %v1119 = vsub.f32 %v79, %v1118
    %v1120 = vand.u32 %v1119, 4294901760
    %1121 = vmatpush1.msra.mxu0 %v1120
    %1122 = vmatprep.subr.mxu0 0.0
    %v1123 = vand.u32 %v78, 4294901760
    %v1124 = vsub.f32 %v78, %v1123
    %v1125 = vand.u32 %v1124, 4294901760
    %1126 = vmatpush1.msra.mxu0 %v1125
    %1127 = vmatprep.subr.mxu0 0.0
    %v1128 = vand.u32 %v77, 4294901760
    %v1129 = vsub.f32 %v77, %v1128
    %v1130 = vand.u32 %v1129, 4294901760
    %1131 = vmatpush1.msra.mxu0 %v1130
    %1132 = vmatprep.subr.mxu0 0.0
    %v1133 = vand.u32 %v76, 4294901760
    %v1134 = vsub.f32 %v76, %v1133
    %v1135 = vand.u32 %v1134, 4294901760
    %1136 = vmatpush1.msra.mxu0 %v1135
    %1137 = vmatprep.subr.mxu0 0.0
    %v1138 = vand.u32 %v75, 4294901760
    %v1139 = vsub.f32 %v75, %v1138
    %v1140 = vand.u32 %v1139, 4294901760
    %1141 = vmatpush1.msra.mxu0 %v1140
    %1142 = vmatprep.subr.mxu0 0.0
    %v1143 = vand.u32 %v74, 4294901760
    %v1144 = vsub.f32 %v74, %v1143
    %v1145 = vand.u32 %v1144, 4294901760
    %1146 = vmatpush1.msra.mxu0 %v1145
    %1147 = vmatprep.subr.mxu0 0.0
    %v1148 = vand.u32 %v73, 4294901760
    %v1149 = vsub.f32 %v73, %v1148
    %v1150 = vand.u32 %v1149, 4294901760
    %1151 = vmatpush1.msra.mxu0 %v1150
    %1152 = vmatprep.subr.mxu0 0.0
    %v1153 = vand.u32 %v72, 4294901760
    %v1154 = vsub.f32 %v72, %v1153
    %v1155 = vand.u32 %v1154, 4294901760
    %1156 = vmatpush1.msra.mxu0 %v1155
    %1157 = vmatprep.subr.mxu0 0.0
    %v1158 = vand.u32 %v71, 4294901760
    %v1159 = vsub.f32 %v71, %v1158
    %v1160 = vand.u32 %v1159, 4294901760
    %1161 = vmatpush1.msra.mxu0 %v1160
    %1162 = vmatprep.subr.mxu0 0.0
    %v1163 = vand.u32 %v70, 4294901760
    %v1164 = vsub.f32 %v70, %v1163
    %v1165 = vand.u32 %v1164, 4294901760
    %1166 = vmatpush1.msra.mxu0 %v1165
    %1167 = vmatprep.subr.mxu0 0.0
    %v1168 = vand.u32 %v69, 4294901760
    %v1169 = vsub.f32 %v69, %v1168
    %v1170 = vand.u32 %v1169, 4294901760
    %1171 = vmatpush1.msra.mxu0 %v1170
    %1172 = vmatprep.subr.mxu0 0.0
    %v1173 = vand.u32 %v100, 4294901760
    %v1174 = vsub.f32 %v100, %v1173
    %v1175 = vand.u32 %v1174, 4294901760
    %1176 = vmatpush2.msra.mxu0 %v1175
    %1177 = vmatprep.subr.mxu0 0.0
    %v1178 = vand.u32 %v99, 4294901760
    %v1179 = vsub.f32 %v99, %v1178
    %v1180 = vand.u32 %v1179, 4294901760
    %1181 = vmatpush2.msra.mxu0 %v1180
    %1182 = vmatprep.subr.mxu0 0.0
    %v1183 = vand.u32 %v98, 4294901760
    %v1184 = vsub.f32 %v98, %v1183
    %v1185 = vand.u32 %v1184, 4294901760
    %1186 = vmatpush2.msra.mxu0 %v1185
    %1187 = vmatprep.subr.mxu0 0.0
    %v1188 = vand.u32 %v97, 4294901760
    %v1189 = vsub.f32 %v97, %v1188
    %v1190 = vand.u32 %v1189, 4294901760
    %1191 = vmatpush2.msra.mxu0 %v1190
    %1192 = vmatprep.subr.mxu0 0.0
    %v1193 = vand.u32 %v96, 4294901760
    %v1194 = vsub.f32 %v96, %v1193
    %v1195 = vand.u32 %v1194, 4294901760
    %1196 = vmatpush2.msra.mxu0 %v1195
    %1197 = vmatprep.subr.mxu0 0.0
    %v1198 = vand.u32 %v95, 4294901760
    %v1199 = vsub.f32 %v95, %v1198
    %v1200 = vand.u32 %v1199, 4294901760
    %1201 = vmatpush2.msra.mxu0 %v1200
    %1202 = vmatprep.subr.mxu0 0.0
    %v1203 = vand.u32 %v94, 4294901760
    %v1204 = vsub.f32 %v94, %v1203
    %v1205 = vand.u32 %v1204, 4294901760
    %1206 = vmatpush2.msra.mxu0 %v1205
    %1207 = vmatprep.subr.mxu0 0.0
    %v1208 = vand.u32 %v93, 4294901760
    %v1209 = vsub.f32 %v93, %v1208
    %v1210 = vand.u32 %v1209, 4294901760
    %1211 = vmatpush2.msra.mxu0 %v1210
    %1212 = vmatprep.subr.mxu0 0.0
    %v1213 = vand.u32 %v92, 4294901760
    %v1214 = vsub.f32 %v92, %v1213
    %v1215 = vand.u32 %v1214, 4294901760
    %1216 = vmatpush2.msra.mxu0 %v1215
    %1217 = vmatprep.subr.mxu0 0.0
    %v1218 = vand.u32 %v91, 4294901760
    %v1219 = vsub.f32 %v91, %v1218
    %v1220 = vand.u32 %v1219, 4294901760
    %1221 = vmatpush2.msra.mxu0 %v1220
    %1222 = vmatprep.subr.mxu0 0.0
    %v1223 = vand.u32 %v90, 4294901760
    %v1224 = vsub.f32 %v90, %v1223
    %v1225 = vand.u32 %v1224, 4294901760
    %1226 = vmatpush2.msra.mxu0 %v1225
    %1227 = vmatprep.subr.mxu0 0.0
    %v1228 = vand.u32 %v89, 4294901760
    %v1229 = vsub.f32 %v89, %v1228
    %v1230 = vand.u32 %v1229, 4294901760
    %1231 = vmatpush2.msra.mxu0 %v1230
    %1232 = vmatprep.subr.mxu0 0.0
    %v1233 = vand.u32 %v88, 4294901760
    %v1234 = vsub.f32 %v88, %v1233
    %v1235 = vand.u32 %v1234, 4294901760
    %1236 = vmatpush2.msra.mxu0 %v1235
    %1237 = vmatprep.subr.mxu0 0.0
    %v1238 = vand.u32 %v87, 4294901760
    %v1239 = vsub.f32 %v87, %v1238
    %v1240 = vand.u32 %v1239, 4294901760
    %1241 = vmatpush2.msra.mxu0 %v1240
    %1242 = vmatprep.subr.mxu0 0.0
    %v1243 = vand.u32 %v86, 4294901760
    %v1244 = vsub.f32 %v86, %v1243
    %v1245 = vand.u32 %v1244, 4294901760
    %1246 = vmatpush2.msra.mxu0 %v1245
    %1247 = vmatprep.subr.mxu0 0.0
    %v1248 = vand.u32 %v85, 4294901760
    %v1249 = vsub.f32 %v85, %v1248
    %v1250 = vand.u32 %v1249, 4294901760
    %1251 = vmatpush2.msra.mxu0 %v1250
    %v1252 = vand.u32 %v22, 4294901760
    %1253 = vmatprep.mubr.f32.mxu0 %v1252
    %v1254 = vand.u32 %v21, 4294901760
    %1255 = vmatmul.mubr.f32.gmra.mxu0 %v1254
    %v1256 = vpop.f32.mrf.mxu0
    %v1257 = vadd.f32 %v1078, %v1256
    %v1258 = vpop.f32.mrf.mxu0
    %v1259 = vand.u32 %v46, 4294901760
    %1260 = vmatprep.mubr.f32.mxu0 %v1259
    %v1261 = vand.u32 %v45, 4294901760
    %1262 = vmatmul.mubr.f32.gmra.mxu0 %v1261
    %v1263 = vpop.f32.mrf.mxu0
    %v1264 = vadd.f32 %v1089, %v1263
    %v1265 = vpop.f32.mrf.mxu0
    %1266 = vdwg.mxu0
    %1267 = vmatprep.subr.mxu0 0.0
    %v1268 = vand.u32 %v84, 4294901760
    %1269 = vmatpush1.msra.mxu0 %v1268
    %1270 = vmatprep.subr.mxu0 0.0
    %v1271 = vand.u32 %v83, 4294901760
    %1272 = vmatpush1.msra.mxu0 %v1271
    %1273 = vmatprep.subr.mxu0 0.0
    %v1274 = vand.u32 %v82, 4294901760
    %1275 = vmatpush1.msra.mxu0 %v1274
    %1276 = vmatprep.subr.mxu0 0.0
    %v1277 = vand.u32 %v81, 4294901760
    %1278 = vmatpush1.msra.mxu0 %v1277
    %1279 = vmatprep.subr.mxu0 0.0
    %v1280 = vand.u32 %v80, 4294901760
    %1281 = vmatpush1.msra.mxu0 %v1280
    %1282 = vmatprep.subr.mxu0 0.0
    %v1283 = vand.u32 %v79, 4294901760
    %1284 = vmatpush1.msra.mxu0 %v1283
    %1285 = vmatprep.subr.mxu0 0.0
    %v1286 = vand.u32 %v78, 4294901760
    %1287 = vmatpush1.msra.mxu0 %v1286
    %1288 = vmatprep.subr.mxu0 0.0
    %v1289 = vand.u32 %v77, 4294901760
    %1290 = vmatpush1.msra.mxu0 %v1289
    %1291 = vmatprep.subr.mxu0 0.0
    %v1292 = vand.u32 %v76, 4294901760
    %1293 = vmatpush1.msra.mxu0 %v1292
    %1294 = vmatprep.subr.mxu0 0.0
    %v1295 = vand.u32 %v75, 4294901760
    %1296 = vmatpush1.msra.mxu0 %v1295
    %1297 = vmatprep.subr.mxu0 0.0
    %v1298 = vand.u32 %v74, 4294901760
    %1299 = vmatpush1.msra.mxu0 %v1298
    %1300 = vmatprep.subr.mxu0 0.0
    %v1301 = vand.u32 %v73, 4294901760
    %1302 = vmatpush1.msra.mxu0 %v1301
    %1303 = vmatprep.subr.mxu0 0.0
    %v1304 = vand.u32 %v72, 4294901760
    %1305 = vmatpush1.msra.mxu0 %v1304
    %1306 = vmatprep.subr.mxu0 0.0
    %v1307 = vand.u32 %v71, 4294901760
    %1308 = vmatpush1.msra.mxu0 %v1307
    %1309 = vmatprep.subr.mxu0 0.0
    %v1310 = vand.u32 %v70, 4294901760
    %1311 = vmatpush1.msra.mxu0 %v1310
    %1312 = vmatprep.subr.mxu0 0.0
    %v1313 = vand.u32 %v69, 4294901760
    %1314 = vmatpush1.msra.mxu0 %v1313
    %1315 = vmatprep.subr.mxu0 0.0
    %v1316 = vand.u32 %v100, 4294901760
    %1317 = vmatpush2.msra.mxu0 %v1316
    %1318 = vmatprep.subr.mxu0 0.0
    %v1319 = vand.u32 %v99, 4294901760
    %1320 = vmatpush2.msra.mxu0 %v1319
    %1321 = vmatprep.subr.mxu0 0.0
    %v1322 = vand.u32 %v98, 4294901760
    %1323 = vmatpush2.msra.mxu0 %v1322
    %1324 = vmatprep.subr.mxu0 0.0
    %v1325 = vand.u32 %v97, 4294901760
    %1326 = vmatpush2.msra.mxu0 %v1325
    %1327 = vmatprep.subr.mxu0 0.0
    %v1328 = vand.u32 %v96, 4294901760
    %1329 = vmatpush2.msra.mxu0 %v1328
    %1330 = vmatprep.subr.mxu0 0.0
    %v1331 = vand.u32 %v95, 4294901760
    %1332 = vmatpush2.msra.mxu0 %v1331
    %1333 = vmatprep.subr.mxu0 0.0
    %v1334 = vand.u32 %v94, 4294901760
    %1335 = vmatpush2.msra.mxu0 %v1334
    %1336 = vmatprep.subr.mxu0 0.0
    %v1337 = vand.u32 %v93, 4294901760
    %1338 = vmatpush2.msra.mxu0 %v1337
    %1339 = vmatprep.subr.mxu0 0.0
    %v1340 = vand.u32 %v92, 4294901760
    %1341 = vmatpush2.msra.mxu0 %v1340
    %1342 = vmatprep.subr.mxu0 0.0
    %v1343 = vand.u32 %v91, 4294901760
    %1344 = vmatpush2.msra.mxu0 %v1343
    %1345 = vmatprep.subr.mxu0 0.0
    %v1346 = vand.u32 %v90, 4294901760
    %1347 = vmatpush2.msra.mxu0 %v1346
    %1348 = vmatprep.subr.mxu0 0.0
    %v1349 = vand.u32 %v89, 4294901760
    %1350 = vmatpush2.msra.mxu0 %v1349
    %1351 = vmatprep.subr.mxu0 0.0
    %v1352 = vand.u32 %v88, 4294901760
    %1353 = vmatpush2.msra.mxu0 %v1352
    %1354 = vmatprep.subr.mxu0 0.0
    %v1355 = vand.u32 %v87, 4294901760
    %1356 = vmatpush2.msra.mxu0 %v1355
    %1357 = vmatprep.subr.mxu0 0.0
    %v1358 = vand.u32 %v86, 4294901760
    %1359 = vmatpush2.msra.mxu0 %v1358
    %1360 = vmatprep.subr.mxu0 0.0
    %v1361 = vand.u32 %v85, 4294901760
    %1362 = vmatpush2.msra.mxu0 %v1361
    %v1363 = vand.u32 %v22, 4294901760
    %1364 = vmatprep.mubr.f32.mxu0 %v1363
    %v1365 = vand.u32 %v21, 4294901760
    %1366 = vmatmul.mubr.f32.gmra.mxu0 %v1365
    %v1367 = vpop.f32.mrf.mxu0
    %v1368 = vadd.f32 %v1257, %v1367
    %v1369 = vpop.f32.mrf.mxu0
    %v1370 = vand.u32 %v46, 4294901760
    %1371 = vmatprep.mubr.f32.mxu0 %v1370
    %v1372 = vand.u32 %v45, 4294901760
    %1373 = vmatmul.mubr.f32.gmra.mxu0 %v1372
    %v1374 = vpop.f32.mrf.mxu0
    %v1375 = vadd.f32 %v1264, %v1374
    %v1376 = vpop.f32.mrf.mxu0
    %1377 = vdwg.mxu0
    %1378 = vmatprep.subr.mxu0 0.0
    %v1379 = vand.u32 %v116, 4294901760
    %1380 = vmatpush1.msra.mxu0 %v1379
    %1381 = vmatprep.subr.mxu0 0.0
    %v1382 = vand.u32 %v115, 4294901760
    %1383 = vmatpush1.msra.mxu0 %v1382
    %1384 = vmatprep.subr.mxu0 0.0
    %v1385 = vand.u32 %v114, 4294901760
    %1386 = vmatpush1.msra.mxu0 %v1385
    %1387 = vmatprep.subr.mxu0 0.0
    %v1388 = vand.u32 %v113, 4294901760
    %1389 = vmatpush1.msra.mxu0 %v1388
    %1390 = vmatprep.subr.mxu0 0.0
    %v1391 = vand.u32 %v112, 4294901760
    %1392 = vmatpush1.msra.mxu0 %v1391
    %1393 = vmatprep.subr.mxu0 0.0
    %v1394 = vand.u32 %v111, 4294901760
    %1395 = vmatpush1.msra.mxu0 %v1394
    %1396 = vmatprep.subr.mxu0 0.0
    %v1397 = vand.u32 %v110, 4294901760
    %1398 = vmatpush1.msra.mxu0 %v1397
    %1399 = vmatprep.subr.mxu0 0.0
    %v1400 = vand.u32 %v109, 4294901760
    %1401 = vmatpush1.msra.mxu0 %v1400
    %1402 = vmatprep.subr.mxu0 0.0
    %v1403 = vand.u32 %v108, 4294901760
    %1404 = vmatpush1.msra.mxu0 %v1403
    %1405 = vmatprep.subr.mxu0 0.0
    %v1406 = vand.u32 %v107, 4294901760
    %1407 = vmatpush1.msra.mxu0 %v1406
    %1408 = vmatprep.subr.mxu0 0.0
    %v1409 = vand.u32 %v106, 4294901760
    %1410 = vmatpush1.msra.mxu0 %v1409
    %1411 = vmatprep.subr.mxu0 0.0
    %v1412 = vand.u32 %v105, 4294901760
    %1413 = vmatpush1.msra.mxu0 %v1412
    %1414 = vmatprep.subr.mxu0 0.0
    %v1415 = vand.u32 %v104, 4294901760
    %1416 = vmatpush1.msra.mxu0 %v1415
    %1417 = vmatprep.subr.mxu0 0.0
    %v1418 = vand.u32 %v103, 4294901760
    %1419 = vmatpush1.msra.mxu0 %v1418
    %1420 = vmatprep.subr.mxu0 0.0
    %v1421 = vand.u32 %v102, 4294901760
    %1422 = vmatpush1.msra.mxu0 %v1421
    %1423 = vmatprep.subr.mxu0 0.0
    %v1424 = vand.u32 %v101, 4294901760
    %1425 = vmatpush1.msra.mxu0 %v1424
    %1426 = vmatprep.subr.mxu0 0.0
    %v1427 = vand.u32 %v132, 4294901760
    %1428 = vmatpush2.msra.mxu0 %v1427
    %1429 = vmatprep.subr.mxu0 0.0
    %v1430 = vand.u32 %v131, 4294901760
    %1431 = vmatpush2.msra.mxu0 %v1430
    %1432 = vmatprep.subr.mxu0 0.0
    %v1433 = vand.u32 %v130, 4294901760
    %1434 = vmatpush2.msra.mxu0 %v1433
    %1435 = vmatprep.subr.mxu0 0.0
    %v1436 = vand.u32 %v129, 4294901760
    %1437 = vmatpush2.msra.mxu0 %v1436
    %1438 = vmatprep.subr.mxu0 0.0
    %v1439 = vand.u32 %v128, 4294901760
    %1440 = vmatpush2.msra.mxu0 %v1439
    %1441 = vmatprep.subr.mxu0 0.0
    %v1442 = vand.u32 %v127, 4294901760
    %1443 = vmatpush2.msra.mxu0 %v1442
    %1444 = vmatprep.subr.mxu0 0.0
    %v1445 = vand.u32 %v126, 4294901760
    %1446 = vmatpush2.msra.mxu0 %v1445
    %1447 = vmatprep.subr.mxu0 0.0
    %v1448 = vand.u32 %v125, 4294901760
    %1449 = vmatpush2.msra.mxu0 %v1448
    %1450 = vmatprep.subr.mxu0 0.0
    %v1451 = vand.u32 %v124, 4294901760
    %1452 = vmatpush2.msra.mxu0 %v1451
    %1453 = vmatprep.subr.mxu0 0.0
    %v1454 = vand.u32 %v123, 4294901760
    %1455 = vmatpush2.msra.mxu0 %v1454
    %1456 = vmatprep.subr.mxu0 0.0
    %v1457 = vand.u32 %v122, 4294901760
    %1458 = vmatpush2.msra.mxu0 %v1457
    %1459 = vmatprep.subr.mxu0 0.0
    %v1460 = vand.u32 %v121, 4294901760
    %1461 = vmatpush2.msra.mxu0 %v1460
    %1462 = vmatprep.subr.mxu0 0.0
    %v1463 = vand.u32 %v120, 4294901760
    %1464 = vmatpush2.msra.mxu0 %v1463
    %1465 = vmatprep.subr.mxu0 0.0
    %v1466 = vand.u32 %v119, 4294901760
    %1467 = vmatpush2.msra.mxu0 %v1466
    %1468 = vmatprep.subr.mxu0 0.0
    %v1469 = vand.u32 %v118, 4294901760
    %1470 = vmatpush2.msra.mxu0 %v1469
    %1471 = vmatprep.subr.mxu0 0.0
    %v1472 = vand.u32 %v117, 4294901760
    %1473 = vmatpush2.msra.mxu0 %v1472
    %v1474 = vand.u32 %v24, 4294901760
    %v1475 = vsub.f32 %v24, %v1474
    %v1476 = vand.u32 %v1475, 4294901760
    %v1477 = vsub.f32 %v1475, %v1476
    %v1478 = vand.u32 %v1477, 4294901760
    %1479 = vmatprep.mubr.f32.mxu0 %v1478
    %v1480 = vand.u32 %v23, 4294901760
    %v1481 = vsub.f32 %v23, %v1480
    %v1482 = vand.u32 %v1481, 4294901760
    %v1483 = vsub.f32 %v1481, %v1482
    %v1484 = vand.u32 %v1483, 4294901760
    %1485 = vmatmul.mubr.f32.gmra.mxu0 %v1484
    %v1486 = vpop.f32.mrf.mxu0
    %v1487 = vadd.f32 %v1368, %v1486
    %v1488 = vpop.f32.mrf.mxu0
    %v1489 = vand.u32 %v48, 4294901760
    %v1490 = vsub.f32 %v48, %v1489
    %v1491 = vand.u32 %v1490, 4294901760
    %v1492 = vsub.f32 %v1490, %v1491
    %v1493 = vand.u32 %v1492, 4294901760
    %1494 = vmatprep.mubr.f32.mxu0 %v1493
    %v1495 = vand.u32 %v47, 4294901760
    %v1496 = vsub.f32 %v47, %v1495
    %v1497 = vand.u32 %v1496, 4294901760
    %v1498 = vsub.f32 %v1496, %v1497
    %v1499 = vand.u32 %v1498, 4294901760
    %1500 = vmatmul.mubr.f32.gmra.mxu0 %v1499
    %v1501 = vpop.f32.mrf.mxu0
    %v1502 = vadd.f32 %v1375, %v1501
    %v1503 = vpop.f32.mrf.mxu0
    %1504 = vdwg.mxu0
    %1505 = vmatprep.subr.mxu0 0.0
    %v1506 = vand.u32 %v116, 4294901760
    %v1507 = vsub.f32 %v116, %v1506
    %v1508 = vand.u32 %v1507, 4294901760
    %v1509 = vsub.f32 %v1507, %v1508
    %v1510 = vand.u32 %v1509, 4294901760
    %1511 = vmatpush1.msra.mxu0 %v1510
    %1512 = vmatprep.subr.mxu0 0.0
    %v1513 = vand.u32 %v115, 4294901760
    %v1514 = vsub.f32 %v115, %v1513
    %v1515 = vand.u32 %v1514, 4294901760
    %v1516 = vsub.f32 %v1514, %v1515
    %v1517 = vand.u32 %v1516, 4294901760
    %1518 = vmatpush1.msra.mxu0 %v1517
    %1519 = vmatprep.subr.mxu0 0.0
    %v1520 = vand.u32 %v114, 4294901760
    %v1521 = vsub.f32 %v114, %v1520
    %v1522 = vand.u32 %v1521, 4294901760
    %v1523 = vsub.f32 %v1521, %v1522
    %v1524 = vand.u32 %v1523, 4294901760
    %1525 = vmatpush1.msra.mxu0 %v1524
    %1526 = vmatprep.subr.mxu0 0.0
    %v1527 = vand.u32 %v113, 4294901760
    %v1528 = vsub.f32 %v113, %v1527
    %v1529 = vand.u32 %v1528, 4294901760
    %v1530 = vsub.f32 %v1528, %v1529
    %v1531 = vand.u32 %v1530, 4294901760
    %1532 = vmatpush1.msra.mxu0 %v1531
    %1533 = vmatprep.subr.mxu0 0.0
    %v1534 = vand.u32 %v112, 4294901760
    %v1535 = vsub.f32 %v112, %v1534
    %v1536 = vand.u32 %v1535, 4294901760
    %v1537 = vsub.f32 %v1535, %v1536
    %v1538 = vand.u32 %v1537, 4294901760
    %1539 = vmatpush1.msra.mxu0 %v1538
    %1540 = vmatprep.subr.mxu0 0.0
    %v1541 = vand.u32 %v111, 4294901760
    %v1542 = vsub.f32 %v111, %v1541
    %v1543 = vand.u32 %v1542, 4294901760
    %v1544 = vsub.f32 %v1542, %v1543
    %v1545 = vand.u32 %v1544, 4294901760
    %1546 = vmatpush1.msra.mxu0 %v1545
    %1547 = vmatprep.subr.mxu0 0.0
    %v1548 = vand.u32 %v110, 4294901760
    %v1549 = vsub.f32 %v110, %v1548
    %v1550 = vand.u32 %v1549, 4294901760
    %v1551 = vsub.f32 %v1549, %v1550
    %v1552 = vand.u32 %v1551, 4294901760
    %1553 = vmatpush1.msra.mxu0 %v1552
    %1554 = vmatprep.subr.mxu0 0.0
    %v1555 = vand.u32 %v109, 4294901760
    %v1556 = vsub.f32 %v109, %v1555
    %v1557 = vand.u32 %v1556, 4294901760
    %v1558 = vsub.f32 %v1556, %v1557
    %v1559 = vand.u32 %v1558, 4294901760
    %1560 = vmatpush1.msra.mxu0 %v1559
    %1561 = vmatprep.subr.mxu0 0.0
    %v1562 = vand.u32 %v108, 4294901760
    %v1563 = vsub.f32 %v108, %v1562
    %v1564 = vand.u32 %v1563, 4294901760
    %v1565 = vsub.f32 %v1563, %v1564
    %v1566 = vand.u32 %v1565, 4294901760
    %1567 = vmatpush1.msra.mxu0 %v1566
    %1568 = vmatprep.subr.mxu0 0.0
    %v1569 = vand.u32 %v107, 4294901760
    %v1570 = vsub.f32 %v107, %v1569
    %v1571 = vand.u32 %v1570, 4294901760
    %v1572 = vsub.f32 %v1570, %v1571
    %v1573 = vand.u32 %v1572, 4294901760
    %1574 = vmatpush1.msra.mxu0 %v1573
    %1575 = vmatprep.subr.mxu0 0.0
    %v1576 = vand.u32 %v106, 4294901760
    %v1577 = vsub.f32 %v106, %v1576
    %v1578 = vand.u32 %v1577, 4294901760
    %v1579 = vsub.f32 %v1577, %v1578
    %v1580 = vand.u32 %v1579, 4294901760
    %1581 = vmatpush1.msra.mxu0 %v1580
    %1582 = vmatprep.subr.mxu0 0.0
    %v1583 = vand.u32 %v105, 4294901760
    %v1584 = vsub.f32 %v105, %v1583
    %v1585 = vand.u32 %v1584, 4294901760
    %v1586 = vsub.f32 %v1584, %v1585
    %v1587 = vand.u32 %v1586, 4294901760
    %1588 = vmatpush1.msra.mxu0 %v1587
    %1589 = vmatprep.subr.mxu0 0.0
    %v1590 = vand.u32 %v104, 4294901760
    %v1591 = vsub.f32 %v104, %v1590
    %v1592 = vand.u32 %v1591, 4294901760
    %v1593 = vsub.f32 %v1591, %v1592
    %v1594 = vand.u32 %v1593, 4294901760
    %1595 = vmatpush1.msra.mxu0 %v1594
    %1596 = vmatprep.subr.mxu0 0.0
    %v1597 = vand.u32 %v103, 4294901760
    %v1598 = vsub.f32 %v103, %v1597
    %v1599 = vand.u32 %v1598, 4294901760
    %v1600 = vsub.f32 %v1598, %v1599
    %v1601 = vand.u32 %v1600, 4294901760
    %1602 = vmatpush1.msra.mxu0 %v1601
    %1603 = vmatprep.subr.mxu0 0.0
    %v1604 = vand.u32 %v102, 4294901760
    %v1605 = vsub.f32 %v102, %v1604
    %v1606 = vand.u32 %v1605, 4294901760
    %v1607 = vsub.f32 %v1605, %v1606
    %v1608 = vand.u32 %v1607, 4294901760
    %1609 = vmatpush1.msra.mxu0 %v1608
    %1610 = vmatprep.subr.mxu0 0.0
    %v1611 = vand.u32 %v101, 4294901760
    %v1612 = vsub.f32 %v101, %v1611
    %v1613 = vand.u32 %v1612, 4294901760
    %v1614 = vsub.f32 %v1612, %v1613
    %v1615 = vand.u32 %v1614, 4294901760
    %1616 = vmatpush1.msra.mxu0 %v1615
    %1617 = vmatprep.subr.mxu0 0.0
    %v1618 = vand.u32 %v132, 4294901760
    %v1619 = vsub.f32 %v132, %v1618
    %v1620 = vand.u32 %v1619, 4294901760
    %v1621 = vsub.f32 %v1619, %v1620
    %v1622 = vand.u32 %v1621, 4294901760
    %1623 = vmatpush2.msra.mxu0 %v1622
    %1624 = vmatprep.subr.mxu0 0.0
    %v1625 = vand.u32 %v131, 4294901760
    %v1626 = vsub.f32 %v131, %v1625
    %v1627 = vand.u32 %v1626, 4294901760
    %v1628 = vsub.f32 %v1626, %v1627
    %v1629 = vand.u32 %v1628, 4294901760
    %1630 = vmatpush2.msra.mxu0 %v1629
    %1631 = vmatprep.subr.mxu0 0.0
    %v1632 = vand.u32 %v130, 4294901760
    %v1633 = vsub.f32 %v130, %v1632
    %v1634 = vand.u32 %v1633, 4294901760
    %v1635 = vsub.f32 %v1633, %v1634
    %v1636 = vand.u32 %v1635, 4294901760
    %1637 = vmatpush2.msra.mxu0 %v1636
    %1638 = vmatprep.subr.mxu0 0.0
    %v1639 = vand.u32 %v129, 4294901760
    %v1640 = vsub.f32 %v129, %v1639
    %v1641 = vand.u32 %v1640, 4294901760
    %v1642 = vsub.f32 %v1640, %v1641
    %v1643 = vand.u32 %v1642, 4294901760
    %1644 = vmatpush2.msra.mxu0 %v1643
    %1645 = vmatprep.subr.mxu0 0.0
    %v1646 = vand.u32 %v128, 4294901760
    %v1647 = vsub.f32 %v128, %v1646
    %v1648 = vand.u32 %v1647, 4294901760
    %v1649 = vsub.f32 %v1647, %v1648
    %v1650 = vand.u32 %v1649, 4294901760
    %1651 = vmatpush2.msra.mxu0 %v1650
    %1652 = vmatprep.subr.mxu0 0.0
    %v1653 = vand.u32 %v127, 4294901760
    %v1654 = vsub.f32 %v127, %v1653
    %v1655 = vand.u32 %v1654, 4294901760
    %v1656 = vsub.f32 %v1654, %v1655
    %v1657 = vand.u32 %v1656, 4294901760
    %1658 = vmatpush2.msra.mxu0 %v1657
    %1659 = vmatprep.subr.mxu0 0.0
    %v1660 = vand.u32 %v126, 4294901760
    %v1661 = vsub.f32 %v126, %v1660
    %v1662 = vand.u32 %v1661, 4294901760
    %v1663 = vsub.f32 %v1661, %v1662
    %v1664 = vand.u32 %v1663, 4294901760
    %1665 = vmatpush2.msra.mxu0 %v1664
    %1666 = vmatprep.subr.mxu0 0.0
    %v1667 = vand.u32 %v125, 4294901760
    %v1668 = vsub.f32 %v125, %v1667
    %v1669 = vand.u32 %v1668, 4294901760
    %v1670 = vsub.f32 %v1668, %v1669
    %v1671 = vand.u32 %v1670, 4294901760
    %1672 = vmatpush2.msra.mxu0 %v1671
    %1673 = vmatprep.subr.mxu0 0.0
    %v1674 = vand.u32 %v124, 4294901760
    %v1675 = vsub.f32 %v124, %v1674
    %v1676 = vand.u32 %v1675, 4294901760
    %v1677 = vsub.f32 %v1675, %v1676
    %v1678 = vand.u32 %v1677, 4294901760
    %1679 = vmatpush2.msra.mxu0 %v1678
    %1680 = vmatprep.subr.mxu0 0.0
    %v1681 = vand.u32 %v123, 4294901760
    %v1682 = vsub.f32 %v123, %v1681
    %v1683 = vand.u32 %v1682, 4294901760
    %v1684 = vsub.f32 %v1682, %v1683
    %v1685 = vand.u32 %v1684, 4294901760
    %1686 = vmatpush2.msra.mxu0 %v1685
    %1687 = vmatprep.subr.mxu0 0.0
    %v1688 = vand.u32 %v122, 4294901760
    %v1689 = vsub.f32 %v122, %v1688
    %v1690 = vand.u32 %v1689, 4294901760
    %v1691 = vsub.f32 %v1689, %v1690
    %v1692 = vand.u32 %v1691, 4294901760
    %1693 = vmatpush2.msra.mxu0 %v1692
    %1694 = vmatprep.subr.mxu0 0.0
    %v1695 = vand.u32 %v121, 4294901760
    %v1696 = vsub.f32 %v121, %v1695
    %v1697 = vand.u32 %v1696, 4294901760
    %v1698 = vsub.f32 %v1696, %v1697
    %v1699 = vand.u32 %v1698, 4294901760
    %1700 = vmatpush2.msra.mxu0 %v1699
    %1701 = vmatprep.subr.mxu0 0.0
    %v1702 = vand.u32 %v120, 4294901760
    %v1703 = vsub.f32 %v120, %v1702
    %v1704 = vand.u32 %v1703, 4294901760
    %v1705 = vsub.f32 %v1703, %v1704
    %v1706 = vand.u32 %v1705, 4294901760
    %1707 = vmatpush2.msra.mxu0 %v1706
    %1708 = vmatprep.subr.mxu0 0.0
    %v1709 = vand.u32 %v119, 4294901760
    %v1710 = vsub.f32 %v119, %v1709
    %v1711 = vand.u32 %v1710, 4294901760
    %v1712 = vsub.f32 %v1710, %v1711
    %v1713 = vand.u32 %v1712, 4294901760
    %1714 = vmatpush2.msra.mxu0 %v1713
    %1715 = vmatprep.subr.mxu0 0.0
    %v1716 = vand.u32 %v118, 4294901760
    %v1717 = vsub.f32 %v118, %v1716
    %v1718 = vand.u32 %v1717, 4294901760
    %v1719 = vsub.f32 %v1717, %v1718
    %v1720 = vand.u32 %v1719, 4294901760
    %1721 = vmatpush2.msra.mxu0 %v1720
    %1722 = vmatprep.subr.mxu0 0.0
    %v1723 = vand.u32 %v117, 4294901760
    %v1724 = vsub.f32 %v117, %v1723
    %v1725 = vand.u32 %v1724, 4294901760
    %v1726 = vsub.f32 %v1724, %v1725
    %v1727 = vand.u32 %v1726, 4294901760
    %1728 = vmatpush2.msra.mxu0 %v1727
    %v1729 = vand.u32 %v24, 4294901760
    %1730 = vmatprep.mubr.f32.mxu0 %v1729
    %v1731 = vand.u32 %v23, 4294901760
    %1732 = vmatmul.mubr.f32.gmra.mxu0 %v1731
    %v1733 = vpop.f32.mrf.mxu0
    %v1734 = vadd.f32 %v1487, %v1733
    %v1735 = vpop.f32.mrf.mxu0
    %v1736 = vand.u32 %v48, 4294901760
    %1737 = vmatprep.mubr.f32.mxu0 %v1736
    %v1738 = vand.u32 %v47, 4294901760
    %1739 = vmatmul.mubr.f32.gmra.mxu0 %v1738
    %v1740 = vpop.f32.mrf.mxu0
    %v1741 = vadd.f32 %v1502, %v1740
    %v1742 = vpop.f32.mrf.mxu0
    %1743 = vdwg.mxu0
    %1744 = vmatprep.subr.mxu0 0.0
    %v1745 = vand.u32 %v116, 4294901760
    %v1746 = vsub.f32 %v116, %v1745
    %1747 = vmatpush1.msra.mxu0 %v1746
    %1748 = vmatprep.subr.mxu0 0.0
    %v1749 = vand.u32 %v115, 4294901760
    %v1750 = vsub.f32 %v115, %v1749
    %1751 = vmatpush1.msra.mxu0 %v1750
    %1752 = vmatprep.subr.mxu0 0.0
    %v1753 = vand.u32 %v114, 4294901760
    %v1754 = vsub.f32 %v114, %v1753
    %1755 = vmatpush1.msra.mxu0 %v1754
    %1756 = vmatprep.subr.mxu0 0.0
    %v1757 = vand.u32 %v113, 4294901760
    %v1758 = vsub.f32 %v113, %v1757
    %1759 = vmatpush1.msra.mxu0 %v1758
    %1760 = vmatprep.subr.mxu0 0.0
    %v1761 = vand.u32 %v112, 4294901760
    %v1762 = vsub.f32 %v112, %v1761
    %1763 = vmatpush1.msra.mxu0 %v1762
    %1764 = vmatprep.subr.mxu0 0.0
    %v1765 = vand.u32 %v111, 4294901760
    %v1766 = vsub.f32 %v111, %v1765
    %1767 = vmatpush1.msra.mxu0 %v1766
    %1768 = vmatprep.subr.mxu0 0.0
    %v1769 = vand.u32 %v110, 4294901760
    %v1770 = vsub.f32 %v110, %v1769
    %1771 = vmatpush1.msra.mxu0 %v1770
    %1772 = vmatprep.subr.mxu0 0.0
    %v1773 = vand.u32 %v109, 4294901760
    %v1774 = vsub.f32 %v109, %v1773
    %1775 = vmatpush1.msra.mxu0 %v1774
    %1776 = vmatprep.subr.mxu0 0.0
    %v1777 = vand.u32 %v108, 4294901760
    %v1778 = vsub.f32 %v108, %v1777
    %1779 = vmatpush1.msra.mxu0 %v1778
    %1780 = vmatprep.subr.mxu0 0.0
    %v1781 = vand.u32 %v107, 4294901760
    %v1782 = vsub.f32 %v107, %v1781
    %1783 = vmatpush1.msra.mxu0 %v1782
    %1784 = vmatprep.subr.mxu0 0.0
    %v1785 = vand.u32 %v106, 4294901760
    %v1786 = vsub.f32 %v106, %v1785
    %1787 = vmatpush1.msra.mxu0 %v1786
    %1788 = vmatprep.subr.mxu0 0.0
    %v1789 = vand.u32 %v105, 4294901760
    %v1790 = vsub.f32 %v105, %v1789
    %1791 = vmatpush1.msra.mxu0 %v1790
    %1792 = vmatprep.subr.mxu0 0.0
    %v1793 = vand.u32 %v104, 4294901760
    %v1794 = vsub.f32 %v104, %v1793
    %1795 = vmatpush1.msra.mxu0 %v1794
    %1796 = vmatprep.subr.mxu0 0.0
    %v1797 = vand.u32 %v103, 4294901760
    %v1798 = vsub.f32 %v103, %v1797
    %1799 = vmatpush1.msra.mxu0 %v1798
    %1800 = vmatprep.subr.mxu0 0.0
    %v1801 = vand.u32 %v102, 4294901760
    %v1802 = vsub.f32 %v102, %v1801
    %1803 = vmatpush1.msra.mxu0 %v1802
    %1804 = vmatprep.subr.mxu0 0.0
    %v1805 = vand.u32 %v101, 4294901760
    %v1806 = vsub.f32 %v101, %v1805
    %1807 = vmatpush1.msra.mxu0 %v1806
    %1808 = vmatprep.subr.mxu0 0.0
    %v1809 = vand.u32 %v132, 4294901760
    %v1810 = vsub.f32 %v132, %v1809
    %1811 = vmatpush2.msra.mxu0 %v1810
    %1812 = vmatprep.subr.mxu0 0.0
    %v1813 = vand.u32 %v131, 4294901760
    %v1814 = vsub.f32 %v131, %v1813
    %1815 = vmatpush2.msra.mxu0 %v1814
    %1816 = vmatprep.subr.mxu0 0.0
    %v1817 = vand.u32 %v130, 4294901760
    %v1818 = vsub.f32 %v130, %v1817
    %1819 = vmatpush2.msra.mxu0 %v1818
    %1820 = vmatprep.subr.mxu0 0.0
    %v1821 = vand.u32 %v129, 4294901760
    %v1822 = vsub.f32 %v129, %v1821
    %1823 = vmatpush2.msra.mxu0 %v1822
    %1824 = vmatprep.subr.mxu0 0.0
    %v1825 = vand.u32 %v128, 4294901760
    %v1826 = vsub.f32 %v128, %v1825
    %1827 = vmatpush2.msra.mxu0 %v1826
    %1828 = vmatprep.subr.mxu0 0.0
    %v1829 = vand.u32 %v127, 4294901760
    %v1830 = vsub.f32 %v127, %v1829
    %1831 = vmatpush2.msra.mxu0 %v1830
    %1832 = vmatprep.subr.mxu0 0.0
    %v1833 = vand.u32 %v126, 4294901760
    %v1834 = vsub.f32 %v126, %v1833
    %1835 = vmatpush2.msra.mxu0 %v1834
    %1836 = vmatprep.subr.mxu0 0.0
    %v1837 = vand.u32 %v125, 4294901760
    %v1838 = vsub.f32 %v125, %v1837
    %1839 = vmatpush2.msra.mxu0 %v1838
    %1840 = vmatprep.subr.mxu0 0.0
    %v1841 = vand.u32 %v124, 4294901760
    %v1842 = vsub.f32 %v124, %v1841
    %1843 = vmatpush2.msra.mxu0 %v1842
    %1844 = vmatprep.subr.mxu0 0.0
    %v1845 = vand.u32 %v123, 4294901760
    %v1846 = vsub.f32 %v123, %v1845
    %1847 = vmatpush2.msra.mxu0 %v1846
    %1848 = vmatprep.subr.mxu0 0.0
    %v1849 = vand.u32 %v122, 4294901760
    %v1850 = vsub.f32 %v122, %v1849
    %1851 = vmatpush2.msra.mxu0 %v1850
    %1852 = vmatprep.subr.mxu0 0.0
    %v1853 = vand.u32 %v121, 4294901760
    %v1854 = vsub.f32 %v121, %v1853
    %1855 = vmatpush2.msra.mxu0 %v1854
    %1856 = vmatprep.subr.mxu0 0.0
    %v1857 = vand.u32 %v120, 4294901760
    %v1858 = vsub.f32 %v120, %v1857
    %1859 = vmatpush2.msra.mxu0 %v1858
    %1860 = vmatprep.subr.mxu0 0.0
    %v1861 = vand.u32 %v119, 4294901760
    %v1862 = vsub.f32 %v119, %v1861
    %1863 = vmatpush2.msra.mxu0 %v1862
    %1864 = vmatprep.subr.mxu0 0.0
    %v1865 = vand.u32 %v118, 4294901760
    %v1866 = vsub.f32 %v118, %v1865
    %1867 = vmatpush2.msra.mxu0 %v1866
    %1868 = vmatprep.subr.mxu0 0.0
    %v1869 = vand.u32 %v117, 4294901760
    %v1870 = vsub.f32 %v117, %v1869
    %1871 = vmatpush2.msra.mxu0 %v1870
    %v1872 = vand.u32 %v24, 4294901760
    %v1873 = vsub.f32 %v24, %v1872
    %1874 = vmatprep.mubr.f32.mxu0 %v1873
    %v1875 = vand.u32 %v23, 4294901760
    %v1876 = vsub.f32 %v23, %v1875
    %1877 = vmatmul.mubr.f32.gmra.mxu0 %v1876
    %v1878 = vpop.f32.mrf.mxu0
    %v1879 = vadd.f32 %v1734, %v1878
    %v1880 = vpop.f32.mrf.mxu0
    %v1881 = vand.u32 %v48, 4294901760
    %v1882 = vsub.f32 %v48, %v1881
    %1883 = vmatprep.mubr.f32.mxu0 %v1882
    %v1884 = vand.u32 %v47, 4294901760
    %v1885 = vsub.f32 %v47, %v1884
    %1886 = vmatmul.mubr.f32.gmra.mxu0 %v1885
    %v1887 = vpop.f32.mrf.mxu0
    %v1888 = vadd.f32 %v1741, %v1887
    %v1889 = vpop.f32.mrf.mxu0
    %1890 = vdwg.mxu0
    %1891 = vmatprep.subr.mxu0 0.0
    %v1892 = vand.u32 %v116, 4294901760
    %1893 = vmatpush1.msra.mxu0 %v1892
    %1894 = vmatprep.subr.mxu0 0.0
    %v1895 = vand.u32 %v115, 4294901760
    %1896 = vmatpush1.msra.mxu0 %v1895
    %1897 = vmatprep.subr.mxu0 0.0
    %v1898 = vand.u32 %v114, 4294901760
    %1899 = vmatpush1.msra.mxu0 %v1898
    %1900 = vmatprep.subr.mxu0 0.0
    %v1901 = vand.u32 %v113, 4294901760
    %1902 = vmatpush1.msra.mxu0 %v1901
    %1903 = vmatprep.subr.mxu0 0.0
    %v1904 = vand.u32 %v112, 4294901760
    %1905 = vmatpush1.msra.mxu0 %v1904
    %1906 = vmatprep.subr.mxu0 0.0
    %v1907 = vand.u32 %v111, 4294901760
    %1908 = vmatpush1.msra.mxu0 %v1907
    %1909 = vmatprep.subr.mxu0 0.0
    %v1910 = vand.u32 %v110, 4294901760
    %1911 = vmatpush1.msra.mxu0 %v1910
    %1912 = vmatprep.subr.mxu0 0.0
    %v1913 = vand.u32 %v109, 4294901760
    %1914 = vmatpush1.msra.mxu0 %v1913
    %1915 = vmatprep.subr.mxu0 0.0
    %v1916 = vand.u32 %v108, 4294901760
    %1917 = vmatpush1.msra.mxu0 %v1916
    %1918 = vmatprep.subr.mxu0 0.0
    %v1919 = vand.u32 %v107, 4294901760
    %1920 = vmatpush1.msra.mxu0 %v1919
    %1921 = vmatprep.subr.mxu0 0.0
    %v1922 = vand.u32 %v106, 4294901760
    %1923 = vmatpush1.msra.mxu0 %v1922
    %1924 = vmatprep.subr.mxu0 0.0
    %v1925 = vand.u32 %v105, 4294901760
    %1926 = vmatpush1.msra.mxu0 %v1925
    %1927 = vmatprep.subr.mxu0 0.0
    %v1928 = vand.u32 %v104, 4294901760
    %1929 = vmatpush1.msra.mxu0 %v1928
    %1930 = vmatprep.subr.mxu0 0.0
    %v1931 = vand.u32 %v103, 4294901760
    %1932 = vmatpush1.msra.mxu0 %v1931
    %1933 = vmatprep.subr.mxu0 0.0
    %v1934 = vand.u32 %v102, 4294901760
    %1935 = vmatpush1.msra.mxu0 %v1934
    %1936 = vmatprep.subr.mxu0 0.0
    %v1937 = vand.u32 %v101, 4294901760
    %1938 = vmatpush1.msra.mxu0 %v1937
    %1939 = vmatprep.subr.mxu0 0.0
    %v1940 = vand.u32 %v132, 4294901760
    %1941 = vmatpush2.msra.mxu0 %v1940
    %1942 = vmatprep.subr.mxu0 0.0
    %v1943 = vand.u32 %v131, 4294901760
    %1944 = vmatpush2.msra.mxu0 %v1943
    %1945 = vmatprep.subr.mxu0 0.0
    %v1946 = vand.u32 %v130, 4294901760
    %1947 = vmatpush2.msra.mxu0 %v1946
    %1948 = vmatprep.subr.mxu0 0.0
    %v1949 = vand.u32 %v129, 4294901760
    %1950 = vmatpush2.msra.mxu0 %v1949
    %1951 = vmatprep.subr.mxu0 0.0
    %v1952 = vand.u32 %v128, 4294901760
    %1953 = vmatpush2.msra.mxu0 %v1952
    %1954 = vmatprep.subr.mxu0 0.0
    %v1955 = vand.u32 %v127, 4294901760
    %1956 = vmatpush2.msra.mxu0 %v1955
    %1957 = vmatprep.subr.mxu0 0.0
    %v1958 = vand.u32 %v126, 4294901760
    %1959 = vmatpush2.msra.mxu0 %v1958
    %1960 = vmatprep.subr.mxu0 0.0
    %v1961 = vand.u32 %v125, 4294901760
    %1962 = vmatpush2.msra.mxu0 %v1961
    %1963 = vmatprep.subr.mxu0 0.0
    %v1964 = vand.u32 %v124, 4294901760
    %1965 = vmatpush2.msra.mxu0 %v1964
    %1966 = vmatprep.subr.mxu0 0.0
    %v1967 = vand.u32 %v123, 4294901760
    %1968 = vmatpush2.msra.mxu0 %v1967
    %1969 = vmatprep.subr.mxu0 0.0
    %v1970 = vand.u32 %v122, 4294901760
    %1971 = vmatpush2.msra.mxu0 %v1970
    %1972 = vmatprep.subr.mxu0 0.0
    %v1973 = vand.u32 %v121, 4294901760
    %1974 = vmatpush2.msra.mxu0 %v1973
    %1975 = vmatprep.subr.mxu0 0.0
    %v1976 = vand.u32 %v120, 4294901760
    %1977 = vmatpush2.msra.mxu0 %v1976
    %1978 = vmatprep.subr.mxu0 0.0
    %v1979 = vand.u32 %v119, 4294901760
    %1980 = vmatpush2.msra.mxu0 %v1979
    %1981 = vmatprep.subr.mxu0 0.0
    %v1982 = vand.u32 %v118, 4294901760
    %1983 = vmatpush2.msra.mxu0 %v1982
    %1984 = vmatprep.subr.mxu0 0.0
    %v1985 = vand.u32 %v117, 4294901760
    %1986 = vmatpush2.msra.mxu0 %v1985
    %v1987 = vand.u32 %v24, 4294901760
    %v1988 = vsub.f32 %v24, %v1987
    %v1989 = vand.u32 %v1988, 4294901760
    %1990 = vmatprep.mubr.f32.mxu0 %v1989
    %v1991 = vand.u32 %v23, 4294901760
    %v1992 = vsub.f32 %v23, %v1991
    %v1993 = vand.u32 %v1992, 4294901760
    %1994 = vmatmul.mubr.f32.gmra.mxu0 %v1993
    %v1995 = vpop.f32.mrf.mxu0
    %v1996 = vadd.f32 %v1879, %v1995
    %v1997 = vpop.f32.mrf.mxu0
    %v1998 = vand.u32 %v48, 4294901760
    %v1999 = vsub.f32 %v48, %v1998
    %v2000 = vand.u32 %v1999, 4294901760
    %2001 = vmatprep.mubr.f32.mxu0 %v2000
    %v2002 = vand.u32 %v47, 4294901760
    %v2003 = vsub.f32 %v47, %v2002
    %v2004 = vand.u32 %v2003, 4294901760
    %2005 = vmatmul.mubr.f32.gmra.mxu0 %v2004
    %v2006 = vpop.f32.mrf.mxu0
    %v2007 = vadd.f32 %v1888, %v2006
    %v2008 = vpop.f32.mrf.mxu0
    %2009 = vdwg.mxu0
    %2010 = vmatprep.subr.mxu0 0.0
    %v2011 = vand.u32 %v116, 4294901760
    %v2012 = vsub.f32 %v116, %v2011
    %v2013 = vand.u32 %v2012, 4294901760
    %2014 = vmatpush1.msra.mxu0 %v2013
    %2015 = vmatprep.subr.mxu0 0.0
    %v2016 = vand.u32 %v115, 4294901760
    %v2017 = vsub.f32 %v115, %v2016
    %v2018 = vand.u32 %v2017, 4294901760
    %2019 = vmatpush1.msra.mxu0 %v2018
    %2020 = vmatprep.subr.mxu0 0.0
    %v2021 = vand.u32 %v114, 4294901760
    %v2022 = vsub.f32 %v114, %v2021
    %v2023 = vand.u32 %v2022, 4294901760
    %2024 = vmatpush1.msra.mxu0 %v2023
    %2025 = vmatprep.subr.mxu0 0.0
    %v2026 = vand.u32 %v113, 4294901760
    %v2027 = vsub.f32 %v113, %v2026
    %v2028 = vand.u32 %v2027, 4294901760
    %2029 = vmatpush1.msra.mxu0 %v2028
    %2030 = vmatprep.subr.mxu0 0.0
    %v2031 = vand.u32 %v112, 4294901760
    %v2032 = vsub.f32 %v112, %v2031
    %v2033 = vand.u32 %v2032, 4294901760
    %2034 = vmatpush1.msra.mxu0 %v2033
    %2035 = vmatprep.subr.mxu0 0.0
    %v2036 = vand.u32 %v111, 4294901760
    %v2037 = vsub.f32 %v111, %v2036
    %v2038 = vand.u32 %v2037, 4294901760
    %2039 = vmatpush1.msra.mxu0 %v2038
    %2040 = vmatprep.subr.mxu0 0.0
    %v2041 = vand.u32 %v110, 4294901760
    %v2042 = vsub.f32 %v110, %v2041
    %v2043 = vand.u32 %v2042, 4294901760
    %2044 = vmatpush1.msra.mxu0 %v2043
    %2045 = vmatprep.subr.mxu0 0.0
    %v2046 = vand.u32 %v109, 4294901760
    %v2047 = vsub.f32 %v109, %v2046
    %v2048 = vand.u32 %v2047, 4294901760
    %2049 = vmatpush1.msra.mxu0 %v2048
    %2050 = vmatprep.subr.mxu0 0.0
    %v2051 = vand.u32 %v108, 4294901760
    %v2052 = vsub.f32 %v108, %v2051
    %v2053 = vand.u32 %v2052, 4294901760
    %2054 = vmatpush1.msra.mxu0 %v2053
    %2055 = vmatprep.subr.mxu0 0.0
    %v2056 = vand.u32 %v107, 4294901760
    %v2057 = vsub.f32 %v107, %v2056
    %v2058 = vand.u32 %v2057, 4294901760
    %2059 = vmatpush1.msra.mxu0 %v2058
    %2060 = vmatprep.subr.mxu0 0.0
    %v2061 = vand.u32 %v106, 4294901760
    %v2062 = vsub.f32 %v106, %v2061
    %v2063 = vand.u32 %v2062, 4294901760
    %2064 = vmatpush1.msra.mxu0 %v2063
    %2065 = vmatprep.subr.mxu0 0.0
    %v2066 = vand.u32 %v105, 4294901760
    %v2067 = vsub.f32 %v105, %v2066
    %v2068 = vand.u32 %v2067, 4294901760
    %2069 = vmatpush1.msra.mxu0 %v2068
    %2070 = vmatprep.subr.mxu0 0.0
    %v2071 = vand.u32 %v104, 4294901760
    %v2072 = vsub.f32 %v104, %v2071
    %v2073 = vand.u32 %v2072, 4294901760
    %2074 = vmatpush1.msra.mxu0 %v2073
    %2075 = vmatprep.subr.mxu0 0.0
    %v2076 = vand.u32 %v103, 4294901760
    %v2077 = vsub.f32 %v103, %v2076
    %v2078 = vand.u32 %v2077, 4294901760
    %2079 = vmatpush1.msra.mxu0 %v2078
    %2080 = vmatprep.subr.mxu0 0.0
    %v2081 = vand.u32 %v102, 4294901760
    %v2082 = vsub.f32 %v102, %v2081
    %v2083 = vand.u32 %v2082, 4294901760
    %2084 = vmatpush1.msra.mxu0 %v2083
    %2085 = vmatprep.subr.mxu0 0.0
    %v2086 = vand.u32 %v101, 4294901760
    %v2087 = vsub.f32 %v101, %v2086
    %v2088 = vand.u32 %v2087, 4294901760
    %2089 = vmatpush1.msra.mxu0 %v2088
    %2090 = vmatprep.subr.mxu0 0.0
    %v2091 = vand.u32 %v132, 4294901760
    %v2092 = vsub.f32 %v132, %v2091
    %v2093 = vand.u32 %v2092, 4294901760
    %2094 = vmatpush2.msra.mxu0 %v2093
    %2095 = vmatprep.subr.mxu0 0.0
    %v2096 = vand.u32 %v131, 4294901760
    %v2097 = vsub.f32 %v131, %v2096
    %v2098 = vand.u32 %v2097, 4294901760
    %2099 = vmatpush2.msra.mxu0 %v2098
    %2100 = vmatprep.subr.mxu0 0.0
    %v2101 = vand.u32 %v130, 4294901760
    %v2102 = vsub.f32 %v130, %v2101
    %v2103 = vand.u32 %v2102, 4294901760
    %2104 = vmatpush2.msra.mxu0 %v2103
    %2105 = vmatprep.subr.mxu0 0.0
    %v2106 = vand.u32 %v129, 4294901760
    %v2107 = vsub.f32 %v129, %v2106
    %v2108 = vand.u32 %v2107, 4294901760
    %2109 = vmatpush2.msra.mxu0 %v2108
    %2110 = vmatprep.subr.mxu0 0.0
    %v2111 = vand.u32 %v128, 4294901760
    %v2112 = vsub.f32 %v128, %v2111
    %v2113 = vand.u32 %v2112, 4294901760
    %2114 = vmatpush2.msra.mxu0 %v2113
    %2115 = vmatprep.subr.mxu0 0.0
    %v2116 = vand.u32 %v127, 4294901760
    %v2117 = vsub.f32 %v127, %v2116
    %v2118 = vand.u32 %v2117, 4294901760
    %2119 = vmatpush2.msra.mxu0 %v2118
    %2120 = vmatprep.subr.mxu0 0.0
    %v2121 = vand.u32 %v126, 4294901760
    %v2122 = vsub.f32 %v126, %v2121
    %v2123 = vand.u32 %v2122, 4294901760
    %2124 = vmatpush2.msra.mxu0 %v2123
    %2125 = vmatprep.subr.mxu0 0.0
    %v2126 = vand.u32 %v125, 4294901760
    %v2127 = vsub.f32 %v125, %v2126
    %v2128 = vand.u32 %v2127, 4294901760
    %2129 = vmatpush2.msra.mxu0 %v2128
    %2130 = vmatprep.subr.mxu0 0.0
    %v2131 = vand.u32 %v124, 4294901760
    %v2132 = vsub.f32 %v124, %v2131
    %v2133 = vand.u32 %v2132, 4294901760
    %2134 = vmatpush2.msra.mxu0 %v2133
    %2135 = vmatprep.subr.mxu0 0.0
    %v2136 = vand.u32 %v123, 4294901760
    %v2137 = vsub.f32 %v123, %v2136
    %v2138 = vand.u32 %v2137, 4294901760
    %2139 = vmatpush2.msra.mxu0 %v2138
    %2140 = vmatprep.subr.mxu0 0.0
    %v2141 = vand.u32 %v122, 4294901760
    %v2142 = vsub.f32 %v122, %v2141
    %v2143 = vand.u32 %v2142, 4294901760
    %2144 = vmatpush2.msra.mxu0 %v2143
    %2145 = vmatprep.subr.mxu0 0.0
    %v2146 = vand.u32 %v121, 4294901760
    %v2147 = vsub.f32 %v121, %v2146
    %v2148 = vand.u32 %v2147, 4294901760
    %2149 = vmatpush2.msra.mxu0 %v2148
    %2150 = vmatprep.subr.mxu0 0.0
    %v2151 = vand.u32 %v120, 4294901760
    %v2152 = vsub.f32 %v120, %v2151
    %v2153 = vand.u32 %v2152, 4294901760
    %2154 = vmatpush2.msra.mxu0 %v2153
    %2155 = vmatprep.subr.mxu0 0.0
    %v2156 = vand.u32 %v119, 4294901760
    %v2157 = vsub.f32 %v119, %v2156
    %v2158 = vand.u32 %v2157, 4294901760
    %2159 = vmatpush2.msra.mxu0 %v2158
    %2160 = vmatprep.subr.mxu0 0.0
    %v2161 = vand.u32 %v118, 4294901760
    %v2162 = vsub.f32 %v118, %v2161
    %v2163 = vand.u32 %v2162, 4294901760
    %2164 = vmatpush2.msra.mxu0 %v2163
    %2165 = vmatprep.subr.mxu0 0.0
    %v2166 = vand.u32 %v117, 4294901760
    %v2167 = vsub.f32 %v117, %v2166
    %v2168 = vand.u32 %v2167, 4294901760
    %2169 = vmatpush2.msra.mxu0 %v2168
    %v2170 = vand.u32 %v24, 4294901760
    %2171 = vmatprep.mubr.f32.mxu0 %v2170
    %v2172 = vand.u32 %v23, 4294901760
    %2173 = vmatmul.mubr.f32.gmra.mxu0 %v2172
    %v2174 = vpop.f32.mrf.mxu0
    %v2175 = vadd.f32 %v1996, %v2174
    %v2176 = vpop.f32.mrf.mxu0
    %v2177 = vand.u32 %v48, 4294901760
    %2178 = vmatprep.mubr.f32.mxu0 %v2177
    %v2179 = vand.u32 %v47, 4294901760
    %2180 = vmatmul.mubr.f32.gmra.mxu0 %v2179
    %v2181 = vpop.f32.mrf.mxu0
    %v2182 = vadd.f32 %v2007, %v2181
    %v2183 = vpop.f32.mrf.mxu0
    %2184 = vdwg.mxu0
    %2185 = vmatprep.subr.mxu0 0.0
    %v2186 = vand.u32 %v116, 4294901760
    %2187 = vmatpush1.msra.mxu0 %v2186
    %2188 = vmatprep.subr.mxu0 0.0
    %v2189 = vand.u32 %v115, 4294901760
    %2190 = vmatpush1.msra.mxu0 %v2189
    %2191 = vmatprep.subr.mxu0 0.0
    %v2192 = vand.u32 %v114, 4294901760
    %2193 = vmatpush1.msra.mxu0 %v2192
    %2194 = vmatprep.subr.mxu0 0.0
    %v2195 = vand.u32 %v113, 4294901760
    %2196 = vmatpush1.msra.mxu0 %v2195
    %2197 = vmatprep.subr.mxu0 0.0
    %v2198 = vand.u32 %v112, 4294901760
    %2199 = vmatpush1.msra.mxu0 %v2198
    %2200 = vmatprep.subr.mxu0 0.0
    %v2201 = vand.u32 %v111, 4294901760
    %2202 = vmatpush1.msra.mxu0 %v2201
    %2203 = vmatprep.subr.mxu0 0.0
    %v2204 = vand.u32 %v110, 4294901760
    %2205 = vmatpush1.msra.mxu0 %v2204
    %2206 = vmatprep.subr.mxu0 0.0
    %v2207 = vand.u32 %v109, 4294901760
    %2208 = vmatpush1.msra.mxu0 %v2207
    %2209 = vmatprep.subr.mxu0 0.0
    %v2210 = vand.u32 %v108, 4294901760
    %2211 = vmatpush1.msra.mxu0 %v2210
    %2212 = vmatprep.subr.mxu0 0.0
    %v2213 = vand.u32 %v107, 4294901760
    %2214 = vmatpush1.msra.mxu0 %v2213
    %2215 = vmatprep.subr.mxu0 0.0
    %v2216 = vand.u32 %v106, 4294901760
    %2217 = vmatpush1.msra.mxu0 %v2216
    %2218 = vmatprep.subr.mxu0 0.0
    %v2219 = vand.u32 %v105, 4294901760
    %2220 = vmatpush1.msra.mxu0 %v2219
    %2221 = vmatprep.subr.mxu0 0.0
    %v2222 = vand.u32 %v104, 4294901760
    %2223 = vmatpush1.msra.mxu0 %v2222
    %2224 = vmatprep.subr.mxu0 0.0
    %v2225 = vand.u32 %v103, 4294901760
    %2226 = vmatpush1.msra.mxu0 %v2225
    %2227 = vmatprep.subr.mxu0 0.0
    %v2228 = vand.u32 %v102, 4294901760
    %2229 = vmatpush1.msra.mxu0 %v2228
    %2230 = vmatprep.subr.mxu0 0.0
    %v2231 = vand.u32 %v101, 4294901760
    %2232 = vmatpush1.msra.mxu0 %v2231
    %2233 = vmatprep.subr.mxu0 0.0
    %v2234 = vand.u32 %v132, 4294901760
    %2235 = vmatpush2.msra.mxu0 %v2234
    %2236 = vmatprep.subr.mxu0 0.0
    %v2237 = vand.u32 %v131, 4294901760
    %2238 = vmatpush2.msra.mxu0 %v2237
    %2239 = vmatprep.subr.mxu0 0.0
    %v2240 = vand.u32 %v130, 4294901760
    %2241 = vmatpush2.msra.mxu0 %v2240
    %2242 = vmatprep.subr.mxu0 0.0
    %v2243 = vand.u32 %v129, 4294901760
    %2244 = vmatpush2.msra.mxu0 %v2243
    %2245 = vmatprep.subr.mxu0 0.0
    %v2246 = vand.u32 %v128, 4294901760
    %2247 = vmatpush2.msra.mxu0 %v2246
    %2248 = vmatprep.subr.mxu0 0.0
    %v2249 = vand.u32 %v127, 4294901760
    %2250 = vmatpush2.msra.mxu0 %v2249
    %2251 = vmatprep.subr.mxu0 0.0
    %v2252 = vand.u32 %v126, 4294901760
    %2253 = vmatpush2.msra.mxu0 %v2252
    %2254 = vmatprep.subr.mxu0 0.0
    %v2255 = vand.u32 %v125, 4294901760
    %2256 = vmatpush2.msra.mxu0 %v2255
    %2257 = vmatprep.subr.mxu0 0.0
    %v2258 = vand.u32 %v124, 4294901760
    %2259 = vmatpush2.msra.mxu0 %v2258
    %2260 = vmatprep.subr.mxu0 0.0
    %v2261 = vand.u32 %v123, 4294901760
    %2262 = vmatpush2.msra.mxu0 %v2261
    %2263 = vmatprep.subr.mxu0 0.0
    %v2264 = vand.u32 %v122, 4294901760
    %2265 = vmatpush2.msra.mxu0 %v2264
    %2266 = vmatprep.subr.mxu0 0.0
    %v2267 = vand.u32 %v121, 4294901760
    %2268 = vmatpush2.msra.mxu0 %v2267
    %2269 = vmatprep.subr.mxu0 0.0
    %v2270 = vand.u32 %v120, 4294901760
    %2271 = vmatpush2.msra.mxu0 %v2270
    %2272 = vmatprep.subr.mxu0 0.0
    %v2273 = vand.u32 %v119, 4294901760
    %2274 = vmatpush2.msra.mxu0 %v2273
    %2275 = vmatprep.subr.mxu0 0.0
    %v2276 = vand.u32 %v118, 4294901760
    %2277 = vmatpush2.msra.mxu0 %v2276
    %2278 = vmatprep.subr.mxu0 0.0
    %v2279 = vand.u32 %v117, 4294901760
    %2280 = vmatpush2.msra.mxu0 %v2279
    %v2281 = vand.u32 %v24, 4294901760
    %2282 = vmatprep.mubr.f32.mxu0 %v2281
    %v2283 = vand.u32 %v23, 4294901760
    %2284 = vmatmul.mubr.f32.gmra.mxu0 %v2283
    %v2285 = vpop.f32.mrf.mxu0
    %v2286 = vadd.f32 %v2175, %v2285
    %v2287 = vpop.f32.mrf.mxu0
    %v2288 = vand.u32 %v48, 4294901760
    %2289 = vmatprep.mubr.f32.mxu0 %v2288
    %v2290 = vand.u32 %v47, 4294901760
    %2291 = vmatmul.mubr.f32.gmra.mxu0 %v2290
    %v2292 = vpop.f32.mrf.mxu0
    %v2293 = vadd.f32 %v2182, %v2292
    %v2294 = vpop.f32.mrf.mxu0
    %2295 = vdwg.mxu0
    %2296 = vmatprep.subr.mxu0 0.0
    %v2297 = vand.u32 %v148, 4294901760
    %2298 = vmatpush1.msra.mxu0 %v2297
    %2299 = vmatprep.subr.mxu0 0.0
    %v2300 = vand.u32 %v147, 4294901760
    %2301 = vmatpush1.msra.mxu0 %v2300
    %2302 = vmatprep.subr.mxu0 0.0
    %v2303 = vand.u32 %v146, 4294901760
    %2304 = vmatpush1.msra.mxu0 %v2303
    %2305 = vmatprep.subr.mxu0 0.0
    %v2306 = vand.u32 %v145, 4294901760
    %2307 = vmatpush1.msra.mxu0 %v2306
    %2308 = vmatprep.subr.mxu0 0.0
    %v2309 = vand.u32 %v144, 4294901760
    %2310 = vmatpush1.msra.mxu0 %v2309
    %2311 = vmatprep.subr.mxu0 0.0
    %v2312 = vand.u32 %v143, 4294901760
    %2313 = vmatpush1.msra.mxu0 %v2312
    %2314 = vmatprep.subr.mxu0 0.0
    %v2315 = vand.u32 %v142, 4294901760
    %2316 = vmatpush1.msra.mxu0 %v2315
    %2317 = vmatprep.subr.mxu0 0.0
    %v2318 = vand.u32 %v141, 4294901760
    %2319 = vmatpush1.msra.mxu0 %v2318
    %2320 = vmatprep.subr.mxu0 0.0
    %v2321 = vand.u32 %v140, 4294901760
    %2322 = vmatpush1.msra.mxu0 %v2321
    %2323 = vmatprep.subr.mxu0 0.0
    %v2324 = vand.u32 %v139, 4294901760
    %2325 = vmatpush1.msra.mxu0 %v2324
    %2326 = vmatprep.subr.mxu0 0.0
    %v2327 = vand.u32 %v138, 4294901760
    %2328 = vmatpush1.msra.mxu0 %v2327
    %2329 = vmatprep.subr.mxu0 0.0
    %v2330 = vand.u32 %v137, 4294901760
    %2331 = vmatpush1.msra.mxu0 %v2330
    %2332 = vmatprep.subr.mxu0 0.0
    %v2333 = vand.u32 %v136, 4294901760
    %2334 = vmatpush1.msra.mxu0 %v2333
    %2335 = vmatprep.subr.mxu0 0.0
    %v2336 = vand.u32 %v135, 4294901760
    %2337 = vmatpush1.msra.mxu0 %v2336
    %2338 = vmatprep.subr.mxu0 0.0
    %v2339 = vand.u32 %v134, 4294901760
    %2340 = vmatpush1.msra.mxu0 %v2339
    %2341 = vmatprep.subr.mxu0 0.0
    %v2342 = vand.u32 %v133, 4294901760
    %2343 = vmatpush1.msra.mxu0 %v2342
    %2344 = vmatprep.subr.mxu0 0.0
    %v2345 = vand.u32 %v164, 4294901760
    %2346 = vmatpush2.msra.mxu0 %v2345
    %2347 = vmatprep.subr.mxu0 0.0
    %v2348 = vand.u32 %v163, 4294901760
    %2349 = vmatpush2.msra.mxu0 %v2348
    %2350 = vmatprep.subr.mxu0 0.0
    %v2351 = vand.u32 %v162, 4294901760
    %2352 = vmatpush2.msra.mxu0 %v2351
    %2353 = vmatprep.subr.mxu0 0.0
    %v2354 = vand.u32 %v161, 4294901760
    %2355 = vmatpush2.msra.mxu0 %v2354
    %2356 = vmatprep.subr.mxu0 0.0
    %v2357 = vand.u32 %v160, 4294901760
    %2358 = vmatpush2.msra.mxu0 %v2357
    %2359 = vmatprep.subr.mxu0 0.0
    %v2360 = vand.u32 %v159, 4294901760
    %2361 = vmatpush2.msra.mxu0 %v2360
    %2362 = vmatprep.subr.mxu0 0.0
    %v2363 = vand.u32 %v158, 4294901760
    %2364 = vmatpush2.msra.mxu0 %v2363
    %2365 = vmatprep.subr.mxu0 0.0
    %v2366 = vand.u32 %v157, 4294901760
    %2367 = vmatpush2.msra.mxu0 %v2366
    %2368 = vmatprep.subr.mxu0 0.0
    %v2369 = vand.u32 %v156, 4294901760
    %2370 = vmatpush2.msra.mxu0 %v2369
    %2371 = vmatprep.subr.mxu0 0.0
    %v2372 = vand.u32 %v155, 4294901760
    %2373 = vmatpush2.msra.mxu0 %v2372
    %2374 = vmatprep.subr.mxu0 0.0
    %v2375 = vand.u32 %v154, 4294901760
    %2376 = vmatpush2.msra.mxu0 %v2375
    %2377 = vmatprep.subr.mxu0 0.0
    %v2378 = vand.u32 %v153, 4294901760
    %2379 = vmatpush2.msra.mxu0 %v2378
    %2380 = vmatprep.subr.mxu0 0.0
    %v2381 = vand.u32 %v152, 4294901760
    %2382 = vmatpush2.msra.mxu0 %v2381
    %2383 = vmatprep.subr.mxu0 0.0
    %v2384 = vand.u32 %v151, 4294901760
    %2385 = vmatpush2.msra.mxu0 %v2384
    %2386 = vmatprep.subr.mxu0 0.0
    %v2387 = vand.u32 %v150, 4294901760
    %2388 = vmatpush2.msra.mxu0 %v2387
    %2389 = vmatprep.subr.mxu0 0.0
    %v2390 = vand.u32 %v149, 4294901760
    %2391 = vmatpush2.msra.mxu0 %v2390
    %v2392 = vand.u32 %v26, 4294901760
    %v2393 = vsub.f32 %v26, %v2392
    %v2394 = vand.u32 %v2393, 4294901760
    %v2395 = vsub.f32 %v2393, %v2394
    %v2396 = vand.u32 %v2395, 4294901760
    %2397 = vmatprep.mubr.f32.mxu0 %v2396
    %v2398 = vand.u32 %v25, 4294901760
    %v2399 = vsub.f32 %v25, %v2398
    %v2400 = vand.u32 %v2399, 4294901760
    %v2401 = vsub.f32 %v2399, %v2400
    %v2402 = vand.u32 %v2401, 4294901760
    %2403 = vmatmul.mubr.f32.gmra.mxu0 %v2402
    %v2404 = vpop.f32.mrf.mxu0
    %v2405 = vadd.f32 %v2286, %v2404
    %v2406 = vpop.f32.mrf.mxu0
    %v2407 = vand.u32 %v50, 4294901760
    %v2408 = vsub.f32 %v50, %v2407
    %v2409 = vand.u32 %v2408, 4294901760
    %v2410 = vsub.f32 %v2408, %v2409
    %v2411 = vand.u32 %v2410, 4294901760
    %2412 = vmatprep.mubr.f32.mxu0 %v2411
    %v2413 = vand.u32 %v49, 4294901760
    %v2414 = vsub.f32 %v49, %v2413
    %v2415 = vand.u32 %v2414, 4294901760
    %v2416 = vsub.f32 %v2414, %v2415
    %v2417 = vand.u32 %v2416, 4294901760
    %2418 = vmatmul.mubr.f32.gmra.mxu0 %v2417
    %v2419 = vpop.f32.mrf.mxu0
    %v2420 = vadd.f32 %v2293, %v2419
    %v2421 = vpop.f32.mrf.mxu0
    %2422 = vdwg.mxu0
    %2423 = vmatprep.subr.mxu0 0.0
    %v2424 = vand.u32 %v148, 4294901760
    %v2425 = vsub.f32 %v148, %v2424
    %v2426 = vand.u32 %v2425, 4294901760
    %v2427 = vsub.f32 %v2425, %v2426
    %v2428 = vand.u32 %v2427, 4294901760
    %2429 = vmatpush1.msra.mxu0 %v2428
    %2430 = vmatprep.subr.mxu0 0.0
    %v2431 = vand.u32 %v147, 4294901760
    %v2432 = vsub.f32 %v147, %v2431
    %v2433 = vand.u32 %v2432, 4294901760
    %v2434 = vsub.f32 %v2432, %v2433
    %v2435 = vand.u32 %v2434, 4294901760
    %2436 = vmatpush1.msra.mxu0 %v2435
    %2437 = vmatprep.subr.mxu0 0.0
    %v2438 = vand.u32 %v146, 4294901760
    %v2439 = vsub.f32 %v146, %v2438
    %v2440 = vand.u32 %v2439, 4294901760
    %v2441 = vsub.f32 %v2439, %v2440
    %v2442 = vand.u32 %v2441, 4294901760
    %2443 = vmatpush1.msra.mxu0 %v2442
    %2444 = vmatprep.subr.mxu0 0.0
    %v2445 = vand.u32 %v145, 4294901760
    %v2446 = vsub.f32 %v145, %v2445
    %v2447 = vand.u32 %v2446, 4294901760
    %v2448 = vsub.f32 %v2446, %v2447
    %v2449 = vand.u32 %v2448, 4294901760
    %2450 = vmatpush1.msra.mxu0 %v2449
    %2451 = vmatprep.subr.mxu0 0.0
    %v2452 = vand.u32 %v144, 4294901760
    %v2453 = vsub.f32 %v144, %v2452
    %v2454 = vand.u32 %v2453, 4294901760
    %v2455 = vsub.f32 %v2453, %v2454
    %v2456 = vand.u32 %v2455, 4294901760
    %2457 = vmatpush1.msra.mxu0 %v2456
    %2458 = vmatprep.subr.mxu0 0.0
    %v2459 = vand.u32 %v143, 4294901760
    %v2460 = vsub.f32 %v143, %v2459
    %v2461 = vand.u32 %v2460, 4294901760
    %v2462 = vsub.f32 %v2460, %v2461
    %v2463 = vand.u32 %v2462, 4294901760
    %2464 = vmatpush1.msra.mxu0 %v2463
    %2465 = vmatprep.subr.mxu0 0.0
    %v2466 = vand.u32 %v142, 4294901760
    %v2467 = vsub.f32 %v142, %v2466
    %v2468 = vand.u32 %v2467, 4294901760
    %v2469 = vsub.f32 %v2467, %v2468
    %v2470 = vand.u32 %v2469, 4294901760
    %2471 = vmatpush1.msra.mxu0 %v2470
    %2472 = vmatprep.subr.mxu0 0.0
    %v2473 = vand.u32 %v141, 4294901760
    %v2474 = vsub.f32 %v141, %v2473
    %v2475 = vand.u32 %v2474, 4294901760
    %v2476 = vsub.f32 %v2474, %v2475
    %v2477 = vand.u32 %v2476, 4294901760
    %2478 = vmatpush1.msra.mxu0 %v2477
    %2479 = vmatprep.subr.mxu0 0.0
    %v2480 = vand.u32 %v140, 4294901760
    %v2481 = vsub.f32 %v140, %v2480
    %v2482 = vand.u32 %v2481, 4294901760
    %v2483 = vsub.f32 %v2481, %v2482
    %v2484 = vand.u32 %v2483, 4294901760
    %2485 = vmatpush1.msra.mxu0 %v2484
    %2486 = vmatprep.subr.mxu0 0.0
    %v2487 = vand.u32 %v139, 4294901760
    %v2488 = vsub.f32 %v139, %v2487
    %v2489 = vand.u32 %v2488, 4294901760
    %v2490 = vsub.f32 %v2488, %v2489
    %v2491 = vand.u32 %v2490, 4294901760
    %2492 = vmatpush1.msra.mxu0 %v2491
    %2493 = vmatprep.subr.mxu0 0.0
    %v2494 = vand.u32 %v138, 4294901760
    %v2495 = vsub.f32 %v138, %v2494
    %v2496 = vand.u32 %v2495, 4294901760
    %v2497 = vsub.f32 %v2495, %v2496
    %v2498 = vand.u32 %v2497, 4294901760
    %2499 = vmatpush1.msra.mxu0 %v2498
    %2500 = vmatprep.subr.mxu0 0.0
    %v2501 = vand.u32 %v137, 4294901760
    %v2502 = vsub.f32 %v137, %v2501
    %v2503 = vand.u32 %v2502, 4294901760
    %v2504 = vsub.f32 %v2502, %v2503
    %v2505 = vand.u32 %v2504, 4294901760
    %2506 = vmatpush1.msra.mxu0 %v2505
    %2507 = vmatprep.subr.mxu0 0.0
    %v2508 = vand.u32 %v136, 4294901760
    %v2509 = vsub.f32 %v136, %v2508
    %v2510 = vand.u32 %v2509, 4294901760
    %v2511 = vsub.f32 %v2509, %v2510
    %v2512 = vand.u32 %v2511, 4294901760
    %2513 = vmatpush1.msra.mxu0 %v2512
    %2514 = vmatprep.subr.mxu0 0.0
    %v2515 = vand.u32 %v135, 4294901760
    %v2516 = vsub.f32 %v135, %v2515
    %v2517 = vand.u32 %v2516, 4294901760
    %v2518 = vsub.f32 %v2516, %v2517
    %v2519 = vand.u32 %v2518, 4294901760
    %2520 = vmatpush1.msra.mxu0 %v2519
    %2521 = vmatprep.subr.mxu0 0.0
    %v2522 = vand.u32 %v134, 4294901760
    %v2523 = vsub.f32 %v134, %v2522
    %v2524 = vand.u32 %v2523, 4294901760
    %v2525 = vsub.f32 %v2523, %v2524
    %v2526 = vand.u32 %v2525, 4294901760
    %2527 = vmatpush1.msra.mxu0 %v2526
    %2528 = vmatprep.subr.mxu0 0.0
    %v2529 = vand.u32 %v133, 4294901760
    %v2530 = vsub.f32 %v133, %v2529
    %v2531 = vand.u32 %v2530, 4294901760
    %v2532 = vsub.f32 %v2530, %v2531
    %v2533 = vand.u32 %v2532, 4294901760
    %2534 = vmatpush1.msra.mxu0 %v2533
    %2535 = vmatprep.subr.mxu0 0.0
    %v2536 = vand.u32 %v164, 4294901760
    %v2537 = vsub.f32 %v164, %v2536
    %v2538 = vand.u32 %v2537, 4294901760
    %v2539 = vsub.f32 %v2537, %v2538
    %v2540 = vand.u32 %v2539, 4294901760
    %2541 = vmatpush2.msra.mxu0 %v2540
    %2542 = vmatprep.subr.mxu0 0.0
    %v2543 = vand.u32 %v163, 4294901760
    %v2544 = vsub.f32 %v163, %v2543
    %v2545 = vand.u32 %v2544, 4294901760
    %v2546 = vsub.f32 %v2544, %v2545
    %v2547 = vand.u32 %v2546, 4294901760
    %2548 = vmatpush2.msra.mxu0 %v2547
    %2549 = vmatprep.subr.mxu0 0.0
    %v2550 = vand.u32 %v162, 4294901760
    %v2551 = vsub.f32 %v162, %v2550
    %v2552 = vand.u32 %v2551, 4294901760
    %v2553 = vsub.f32 %v2551, %v2552
    %v2554 = vand.u32 %v2553, 4294901760
    %2555 = vmatpush2.msra.mxu0 %v2554
    %2556 = vmatprep.subr.mxu0 0.0
    %v2557 = vand.u32 %v161, 4294901760
    %v2558 = vsub.f32 %v161, %v2557
    %v2559 = vand.u32 %v2558, 4294901760
    %v2560 = vsub.f32 %v2558, %v2559
    %v2561 = vand.u32 %v2560, 4294901760
    %2562 = vmatpush2.msra.mxu0 %v2561
    %2563 = vmatprep.subr.mxu0 0.0
    %v2564 = vand.u32 %v160, 4294901760
    %v2565 = vsub.f32 %v160, %v2564
    %v2566 = vand.u32 %v2565, 4294901760
    %v2567 = vsub.f32 %v2565, %v2566
    %v2568 = vand.u32 %v2567, 4294901760
    %2569 = vmatpush2.msra.mxu0 %v2568
    %2570 = vmatprep.subr.mxu0 0.0
    %v2571 = vand.u32 %v159, 4294901760
    %v2572 = vsub.f32 %v159, %v2571
    %v2573 = vand.u32 %v2572, 4294901760
    %v2574 = vsub.f32 %v2572, %v2573
    %v2575 = vand.u32 %v2574, 4294901760
    %2576 = vmatpush2.msra.mxu0 %v2575
    %2577 = vmatprep.subr.mxu0 0.0
    %v2578 = vand.u32 %v158, 4294901760
    %v2579 = vsub.f32 %v158, %v2578
    %v2580 = vand.u32 %v2579, 4294901760
    %v2581 = vsub.f32 %v2579, %v2580
    %v2582 = vand.u32 %v2581, 4294901760
    %2583 = vmatpush2.msra.mxu0 %v2582
    %2584 = vmatprep.subr.mxu0 0.0
    %v2585 = vand.u32 %v157, 4294901760
    %v2586 = vsub.f32 %v157, %v2585
    %v2587 = vand.u32 %v2586, 4294901760
    %v2588 = vsub.f32 %v2586, %v2587
    %v2589 = vand.u32 %v2588, 4294901760
    %2590 = vmatpush2.msra.mxu0 %v2589
    %2591 = vmatprep.subr.mxu0 0.0
    %v2592 = vand.u32 %v156, 4294901760
    %v2593 = vsub.f32 %v156, %v2592
    %v2594 = vand.u32 %v2593, 4294901760
    %v2595 = vsub.f32 %v2593, %v2594
    %v2596 = vand.u32 %v2595, 4294901760
    %2597 = vmatpush2.msra.mxu0 %v2596
    %2598 = vmatprep.subr.mxu0 0.0
    %v2599 = vand.u32 %v155, 4294901760
    %v2600 = vsub.f32 %v155, %v2599
    %v2601 = vand.u32 %v2600, 4294901760
    %v2602 = vsub.f32 %v2600, %v2601
    %v2603 = vand.u32 %v2602, 4294901760
    %2604 = vmatpush2.msra.mxu0 %v2603
    %2605 = vmatprep.subr.mxu0 0.0
    %v2606 = vand.u32 %v154, 4294901760
    %v2607 = vsub.f32 %v154, %v2606
    %v2608 = vand.u32 %v2607, 4294901760
    %v2609 = vsub.f32 %v2607, %v2608
    %v2610 = vand.u32 %v2609, 4294901760
    %2611 = vmatpush2.msra.mxu0 %v2610
    %2612 = vmatprep.subr.mxu0 0.0
    %v2613 = vand.u32 %v153, 4294901760
    %v2614 = vsub.f32 %v153, %v2613
    %v2615 = vand.u32 %v2614, 4294901760
    %v2616 = vsub.f32 %v2614, %v2615
    %v2617 = vand.u32 %v2616, 4294901760
    %2618 = vmatpush2.msra.mxu0 %v2617
    %2619 = vmatprep.subr.mxu0 0.0
    %v2620 = vand.u32 %v152, 4294901760
    %v2621 = vsub.f32 %v152, %v2620
    %v2622 = vand.u32 %v2621, 4294901760
    %v2623 = vsub.f32 %v2621, %v2622
    %v2624 = vand.u32 %v2623, 4294901760
    %2625 = vmatpush2.msra.mxu0 %v2624
    %2626 = vmatprep.subr.mxu0 0.0
    %v2627 = vand.u32 %v151, 4294901760
    %v2628 = vsub.f32 %v151, %v2627
    %v2629 = vand.u32 %v2628, 4294901760
    %v2630 = vsub.f32 %v2628, %v2629
    %v2631 = vand.u32 %v2630, 4294901760
    %2632 = vmatpush2.msra.mxu0 %v2631
    %2633 = vmatprep.subr.mxu0 0.0
    %v2634 = vand.u32 %v150, 4294901760
    %v2635 = vsub.f32 %v150, %v2634
    %v2636 = vand.u32 %v2635, 4294901760
    %v2637 = vsub.f32 %v2635, %v2636
    %v2638 = vand.u32 %v2637, 4294901760
    %2639 = vmatpush2.msra.mxu0 %v2638
    %2640 = vmatprep.subr.mxu0 0.0
    %v2641 = vand.u32 %v149, 4294901760
    %v2642 = vsub.f32 %v149, %v2641
    %v2643 = vand.u32 %v2642, 4294901760
    %v2644 = vsub.f32 %v2642, %v2643
    %v2645 = vand.u32 %v2644, 4294901760
    %2646 = vmatpush2.msra.mxu0 %v2645
    %v2647 = vand.u32 %v26, 4294901760
    %2648 = vmatprep.mubr.f32.mxu0 %v2647
    %v2649 = vand.u32 %v25, 4294901760
    %2650 = vmatmul.mubr.f32.gmra.mxu0 %v2649
    %v2651 = vpop.f32.mrf.mxu0
    %v2652 = vadd.f32 %v2405, %v2651
    %v2653 = vpop.f32.mrf.mxu0
    %v2654 = vand.u32 %v50, 4294901760
    %2655 = vmatprep.mubr.f32.mxu0 %v2654
    %v2656 = vand.u32 %v49, 4294901760
    %2657 = vmatmul.mubr.f32.gmra.mxu0 %v2656
    %v2658 = vpop.f32.mrf.mxu0
    %v2659 = vadd.f32 %v2420, %v2658
    %v2660 = vpop.f32.mrf.mxu0
    %2661 = vdwg.mxu0
    %2662 = vmatprep.subr.mxu0 0.0
    %v2663 = vand.u32 %v148, 4294901760
    %v2664 = vsub.f32 %v148, %v2663
    %2665 = vmatpush1.msra.mxu0 %v2664
    %2666 = vmatprep.subr.mxu0 0.0
    %v2667 = vand.u32 %v147, 4294901760
    %v2668 = vsub.f32 %v147, %v2667
    %2669 = vmatpush1.msra.mxu0 %v2668
    %2670 = vmatprep.subr.mxu0 0.0
    %v2671 = vand.u32 %v146, 4294901760
    %v2672 = vsub.f32 %v146, %v2671
    %2673 = vmatpush1.msra.mxu0 %v2672
    %2674 = vmatprep.subr.mxu0 0.0
    %v2675 = vand.u32 %v145, 4294901760
    %v2676 = vsub.f32 %v145, %v2675
    %2677 = vmatpush1.msra.mxu0 %v2676
    %2678 = vmatprep.subr.mxu0 0.0
    %v2679 = vand.u32 %v144, 4294901760
    %v2680 = vsub.f32 %v144, %v2679
    %2681 = vmatpush1.msra.mxu0 %v2680
    %2682 = vmatprep.subr.mxu0 0.0
    %v2683 = vand.u32 %v143, 4294901760
    %v2684 = vsub.f32 %v143, %v2683
    %2685 = vmatpush1.msra.mxu0 %v2684
    %2686 = vmatprep.subr.mxu0 0.0
    %v2687 = vand.u32 %v142, 4294901760
    %v2688 = vsub.f32 %v142, %v2687
    %2689 = vmatpush1.msra.mxu0 %v2688
    %2690 = vmatprep.subr.mxu0 0.0
    %v2691 = vand.u32 %v141, 4294901760
    %v2692 = vsub.f32 %v141, %v2691
    %2693 = vmatpush1.msra.mxu0 %v2692
    %2694 = vmatprep.subr.mxu0 0.0
    %v2695 = vand.u32 %v140, 4294901760
    %v2696 = vsub.f32 %v140, %v2695
    %2697 = vmatpush1.msra.mxu0 %v2696
    %2698 = vmatprep.subr.mxu0 0.0
    %v2699 = vand.u32 %v139, 4294901760
    %v2700 = vsub.f32 %v139, %v2699
    %2701 = vmatpush1.msra.mxu0 %v2700
    %2702 = vmatprep.subr.mxu0 0.0
    %v2703 = vand.u32 %v138, 4294901760
    %v2704 = vsub.f32 %v138, %v2703
    %2705 = vmatpush1.msra.mxu0 %v2704
    %2706 = vmatprep.subr.mxu0 0.0
    %v2707 = vand.u32 %v137, 4294901760
    %v2708 = vsub.f32 %v137, %v2707
    %2709 = vmatpush1.msra.mxu0 %v2708
    %2710 = vmatprep.subr.mxu0 0.0
    %v2711 = vand.u32 %v136, 4294901760
    %v2712 = vsub.f32 %v136, %v2711
    %2713 = vmatpush1.msra.mxu0 %v2712
    %2714 = vmatprep.subr.mxu0 0.0
    %v2715 = vand.u32 %v135, 4294901760
    %v2716 = vsub.f32 %v135, %v2715
    %2717 = vmatpush1.msra.mxu0 %v2716
    %2718 = vmatprep.subr.mxu0 0.0
    %v2719 = vand.u32 %v134, 4294901760
    %v2720 = vsub.f32 %v134, %v2719
    %2721 = vmatpush1.msra.mxu0 %v2720
    %2722 = vmatprep.subr.mxu0 0.0
    %v2723 = vand.u32 %v133, 4294901760
    %v2724 = vsub.f32 %v133, %v2723
    %2725 = vmatpush1.msra.mxu0 %v2724
    %2726 = vmatprep.subr.mxu0 0.0
    %v2727 = vand.u32 %v164, 4294901760
    %v2728 = vsub.f32 %v164, %v2727
    %2729 = vmatpush2.msra.mxu0 %v2728
    %2730 = vmatprep.subr.mxu0 0.0
    %v2731 = vand.u32 %v163, 4294901760
    %v2732 = vsub.f32 %v163, %v2731
    %2733 = vmatpush2.msra.mxu0 %v2732
    %2734 = vmatprep.subr.mxu0 0.0
    %v2735 = vand.u32 %v162, 4294901760
    %v2736 = vsub.f32 %v162, %v2735
    %2737 = vmatpush2.msra.mxu0 %v2736
    %2738 = vmatprep.subr.mxu0 0.0
    %v2739 = vand.u32 %v161, 4294901760
    %v2740 = vsub.f32 %v161, %v2739
    %2741 = vmatpush2.msra.mxu0 %v2740
    %2742 = vmatprep.subr.mxu0 0.0
    %v2743 = vand.u32 %v160, 4294901760
    %v2744 = vsub.f32 %v160, %v2743
    %2745 = vmatpush2.msra.mxu0 %v2744
    %2746 = vmatprep.subr.mxu0 0.0
    %v2747 = vand.u32 %v159, 4294901760
    %v2748 = vsub.f32 %v159, %v2747
    %2749 = vmatpush2.msra.mxu0 %v2748
    %2750 = vmatprep.subr.mxu0 0.0
    %v2751 = vand.u32 %v158, 4294901760
    %v2752 = vsub.f32 %v158, %v2751
    %2753 = vmatpush2.msra.mxu0 %v2752
    %2754 = vmatprep.subr.mxu0 0.0
    %v2755 = vand.u32 %v157, 4294901760
    %v2756 = vsub.f32 %v157, %v2755
    %2757 = vmatpush2.msra.mxu0 %v2756
    %2758 = vmatprep.subr.mxu0 0.0
    %v2759 = vand.u32 %v156, 4294901760
    %v2760 = vsub.f32 %v156, %v2759
    %2761 = vmatpush2.msra.mxu0 %v2760
    %2762 = vmatprep.subr.mxu0 0.0
    %v2763 = vand.u32 %v155, 4294901760
    %v2764 = vsub.f32 %v155, %v2763
    %2765 = vmatpush2.msra.mxu0 %v2764
    %2766 = vmatprep.subr.mxu0 0.0
    %v2767 = vand.u32 %v154, 4294901760
    %v2768 = vsub.f32 %v154, %v2767
    %2769 = vmatpush2.msra.mxu0 %v2768
    %2770 = vmatprep.subr.mxu0 0.0
    %v2771 = vand.u32 %v153, 4294901760
    %v2772 = vsub.f32 %v153, %v2771
    %2773 = vmatpush2.msra.mxu0 %v2772
    %2774 = vmatprep.subr.mxu0 0.0
    %v2775 = vand.u32 %v152, 4294901760
    %v2776 = vsub.f32 %v152, %v2775
    %2777 = vmatpush2.msra.mxu0 %v2776
    %2778 = vmatprep.subr.mxu0 0.0
    %v2779 = vand.u32 %v151, 4294901760
    %v2780 = vsub.f32 %v151, %v2779
    %2781 = vmatpush2.msra.mxu0 %v2780
    %2782 = vmatprep.subr.mxu0 0.0
    %v2783 = vand.u32 %v150, 4294901760
    %v2784 = vsub.f32 %v150, %v2783
    %2785 = vmatpush2.msra.mxu0 %v2784
    %2786 = vmatprep.subr.mxu0 0.0
    %v2787 = vand.u32 %v149, 4294901760
    %v2788 = vsub.f32 %v149, %v2787
    %2789 = vmatpush2.msra.mxu0 %v2788
    %v2790 = vand.u32 %v26, 4294901760
    %v2791 = vsub.f32 %v26, %v2790
    %2792 = vmatprep.mubr.f32.mxu0 %v2791
    %v2793 = vand.u32 %v25, 4294901760
    %v2794 = vsub.f32 %v25, %v2793
    %2795 = vmatmul.mubr.f32.gmra.mxu0 %v2794
    %v2796 = vpop.f32.mrf.mxu0
    %v2797 = vadd.f32 %v2652, %v2796
    %v2798 = vpop.f32.mrf.mxu0
    %v2799 = vand.u32 %v50, 4294901760
    %v2800 = vsub.f32 %v50, %v2799
    %2801 = vmatprep.mubr.f32.mxu0 %v2800
    %v2802 = vand.u32 %v49, 4294901760
    %v2803 = vsub.f32 %v49, %v2802
    %2804 = vmatmul.mubr.f32.gmra.mxu0 %v2803
    %v2805 = vpop.f32.mrf.mxu0
    %v2806 = vadd.f32 %v2659, %v2805
    %v2807 = vpop.f32.mrf.mxu0
    %2808 = vdwg.mxu0
    %2809 = vmatprep.subr.mxu0 0.0
    %v2810 = vand.u32 %v148, 4294901760
    %2811 = vmatpush1.msra.mxu0 %v2810
    %2812 = vmatprep.subr.mxu0 0.0
    %v2813 = vand.u32 %v147, 4294901760
    %2814 = vmatpush1.msra.mxu0 %v2813
    %2815 = vmatprep.subr.mxu0 0.0
    %v2816 = vand.u32 %v146, 4294901760
    %2817 = vmatpush1.msra.mxu0 %v2816
    %2818 = vmatprep.subr.mxu0 0.0
    %v2819 = vand.u32 %v145, 4294901760
    %2820 = vmatpush1.msra.mxu0 %v2819
    %2821 = vmatprep.subr.mxu0 0.0
    %v2822 = vand.u32 %v144, 4294901760
    %2823 = vmatpush1.msra.mxu0 %v2822
    %2824 = vmatprep.subr.mxu0 0.0
    %v2825 = vand.u32 %v143, 4294901760
    %2826 = vmatpush1.msra.mxu0 %v2825
    %2827 = vmatprep.subr.mxu0 0.0
    %v2828 = vand.u32 %v142, 4294901760
    %2829 = vmatpush1.msra.mxu0 %v2828
    %2830 = vmatprep.subr.mxu0 0.0
    %v2831 = vand.u32 %v141, 4294901760
    %2832 = vmatpush1.msra.mxu0 %v2831
    %2833 = vmatprep.subr.mxu0 0.0
    %v2834 = vand.u32 %v140, 4294901760
    %2835 = vmatpush1.msra.mxu0 %v2834
    %2836 = vmatprep.subr.mxu0 0.0
    %v2837 = vand.u32 %v139, 4294901760
    %2838 = vmatpush1.msra.mxu0 %v2837
    %2839 = vmatprep.subr.mxu0 0.0
    %v2840 = vand.u32 %v138, 4294901760
    %2841 = vmatpush1.msra.mxu0 %v2840
    %2842 = vmatprep.subr.mxu0 0.0
    %v2843 = vand.u32 %v137, 4294901760
    %2844 = vmatpush1.msra.mxu0 %v2843
    %2845 = vmatprep.subr.mxu0 0.0
    %v2846 = vand.u32 %v136, 4294901760
    %2847 = vmatpush1.msra.mxu0 %v2846
    %2848 = vmatprep.subr.mxu0 0.0
    %v2849 = vand.u32 %v135, 4294901760
    %2850 = vmatpush1.msra.mxu0 %v2849
    %2851 = vmatprep.subr.mxu0 0.0
    %v2852 = vand.u32 %v134, 4294901760
    %2853 = vmatpush1.msra.mxu0 %v2852
    %2854 = vmatprep.subr.mxu0 0.0
    %v2855 = vand.u32 %v133, 4294901760
    %2856 = vmatpush1.msra.mxu0 %v2855
    %2857 = vmatprep.subr.mxu0 0.0
    %v2858 = vand.u32 %v164, 4294901760
    %2859 = vmatpush2.msra.mxu0 %v2858
    %2860 = vmatprep.subr.mxu0 0.0
    %v2861 = vand.u32 %v163, 4294901760
    %2862 = vmatpush2.msra.mxu0 %v2861
    %2863 = vmatprep.subr.mxu0 0.0
    %v2864 = vand.u32 %v162, 4294901760
    %2865 = vmatpush2.msra.mxu0 %v2864
    %2866 = vmatprep.subr.mxu0 0.0
    %v2867 = vand.u32 %v161, 4294901760
    %2868 = vmatpush2.msra.mxu0 %v2867
    %2869 = vmatprep.subr.mxu0 0.0
    %v2870 = vand.u32 %v160, 4294901760
    %2871 = vmatpush2.msra.mxu0 %v2870
    %2872 = vmatprep.subr.mxu0 0.0
    %v2873 = vand.u32 %v159, 4294901760
    %2874 = vmatpush2.msra.mxu0 %v2873
    %2875 = vmatprep.subr.mxu0 0.0
    %v2876 = vand.u32 %v158, 4294901760
    %2877 = vmatpush2.msra.mxu0 %v2876
    %2878 = vmatprep.subr.mxu0 0.0
    %v2879 = vand.u32 %v157, 4294901760
    %2880 = vmatpush2.msra.mxu0 %v2879
    %2881 = vmatprep.subr.mxu0 0.0
    %v2882 = vand.u32 %v156, 4294901760
    %2883 = vmatpush2.msra.mxu0 %v2882
    %2884 = vmatprep.subr.mxu0 0.0
    %v2885 = vand.u32 %v155, 4294901760
    %2886 = vmatpush2.msra.mxu0 %v2885
    %2887 = vmatprep.subr.mxu0 0.0
    %v2888 = vand.u32 %v154, 4294901760
    %2889 = vmatpush2.msra.mxu0 %v2888
    %2890 = vmatprep.subr.mxu0 0.0
    %v2891 = vand.u32 %v153, 4294901760
    %2892 = vmatpush2.msra.mxu0 %v2891
    %2893 = vmatprep.subr.mxu0 0.0
    %v2894 = vand.u32 %v152, 4294901760
    %2895 = vmatpush2.msra.mxu0 %v2894
    %2896 = vmatprep.subr.mxu0 0.0
    %v2897 = vand.u32 %v151, 4294901760
    %2898 = vmatpush2.msra.mxu0 %v2897
    %2899 = vmatprep.subr.mxu0 0.0
    %v2900 = vand.u32 %v150, 4294901760
    %2901 = vmatpush2.msra.mxu0 %v2900
    %2902 = vmatprep.subr.mxu0 0.0
    %v2903 = vand.u32 %v149, 4294901760
    %2904 = vmatpush2.msra.mxu0 %v2903
    %v2905 = vand.u32 %v26, 4294901760
    %v2906 = vsub.f32 %v26, %v2905
    %v2907 = vand.u32 %v2906, 4294901760
    %2908 = vmatprep.mubr.f32.mxu0 %v2907
    %v2909 = vand.u32 %v25, 4294901760
    %v2910 = vsub.f32 %v25, %v2909
    %v2911 = vand.u32 %v2910, 4294901760
    %2912 = vmatmul.mubr.f32.gmra.mxu0 %v2911
    %v2913 = vpop.f32.mrf.mxu0
    %v2914 = vadd.f32 %v2797, %v2913
    %v2915 = vpop.f32.mrf.mxu0
    %v2916 = vand.u32 %v50, 4294901760
    %v2917 = vsub.f32 %v50, %v2916
    %v2918 = vand.u32 %v2917, 4294901760
    %2919 = vmatprep.mubr.f32.mxu0 %v2918
    %v2920 = vand.u32 %v49, 4294901760
    %v2921 = vsub.f32 %v49, %v2920
    %v2922 = vand.u32 %v2921, 4294901760
    %2923 = vmatmul.mubr.f32.gmra.mxu0 %v2922
    %v2924 = vpop.f32.mrf.mxu0
    %v2925 = vadd.f32 %v2806, %v2924
    %v2926 = vpop.f32.mrf.mxu0
    %2927 = vdwg.mxu0
    %2928 = vmatprep.subr.mxu0 0.0
    %v2929 = vand.u32 %v148, 4294901760
    %v2930 = vsub.f32 %v148, %v2929
    %v2931 = vand.u32 %v2930, 4294901760
    %2932 = vmatpush1.msra.mxu0 %v2931
    %2933 = vmatprep.subr.mxu0 0.0
    %v2934 = vand.u32 %v147, 4294901760
    %v2935 = vsub.f32 %v147, %v2934
    %v2936 = vand.u32 %v2935, 4294901760
    %2937 = vmatpush1.msra.mxu0 %v2936
    %2938 = vmatprep.subr.mxu0 0.0
    %v2939 = vand.u32 %v146, 4294901760
    %v2940 = vsub.f32 %v146, %v2939
    %v2941 = vand.u32 %v2940, 4294901760
    %2942 = vmatpush1.msra.mxu0 %v2941
    %2943 = vmatprep.subr.mxu0 0.0
    %v2944 = vand.u32 %v145, 4294901760
    %v2945 = vsub.f32 %v145, %v2944
    %v2946 = vand.u32 %v2945, 4294901760
    %2947 = vmatpush1.msra.mxu0 %v2946
    %2948 = vmatprep.subr.mxu0 0.0
    %v2949 = vand.u32 %v144, 4294901760
    %v2950 = vsub.f32 %v144, %v2949
    %v2951 = vand.u32 %v2950, 4294901760
    %2952 = vmatpush1.msra.mxu0 %v2951
    %2953 = vmatprep.subr.mxu0 0.0
    %v2954 = vand.u32 %v143, 4294901760
    %v2955 = vsub.f32 %v143, %v2954
    %v2956 = vand.u32 %v2955, 4294901760
    %2957 = vmatpush1.msra.mxu0 %v2956
    %2958 = vmatprep.subr.mxu0 0.0
    %v2959 = vand.u32 %v142, 4294901760
    %v2960 = vsub.f32 %v142, %v2959
    %v2961 = vand.u32 %v2960, 4294901760
    %2962 = vmatpush1.msra.mxu0 %v2961
    %2963 = vmatprep.subr.mxu0 0.0
    %v2964 = vand.u32 %v141, 4294901760
    %v2965 = vsub.f32 %v141, %v2964
    %v2966 = vand.u32 %v2965, 4294901760
    %2967 = vmatpush1.msra.mxu0 %v2966
    %2968 = vmatprep.subr.mxu0 0.0
    %v2969 = vand.u32 %v140, 4294901760
    %v2970 = vsub.f32 %v140, %v2969
    %v2971 = vand.u32 %v2970, 4294901760
    %2972 = vmatpush1.msra.mxu0 %v2971
    %2973 = vmatprep.subr.mxu0 0.0
    %v2974 = vand.u32 %v139, 4294901760
    %v2975 = vsub.f32 %v139, %v2974
    %v2976 = vand.u32 %v2975, 4294901760
    %2977 = vmatpush1.msra.mxu0 %v2976
    %2978 = vmatprep.subr.mxu0 0.0
    %v2979 = vand.u32 %v138, 4294901760
    %v2980 = vsub.f32 %v138, %v2979
    %v2981 = vand.u32 %v2980, 4294901760
    %2982 = vmatpush1.msra.mxu0 %v2981
    %2983 = vmatprep.subr.mxu0 0.0
    %v2984 = vand.u32 %v137, 4294901760
    %v2985 = vsub.f32 %v137, %v2984
    %v2986 = vand.u32 %v2985, 4294901760
    %2987 = vmatpush1.msra.mxu0 %v2986
    %2988 = vmatprep.subr.mxu0 0.0
    %v2989 = vand.u32 %v136, 4294901760
    %v2990 = vsub.f32 %v136, %v2989
    %v2991 = vand.u32 %v2990, 4294901760
    %2992 = vmatpush1.msra.mxu0 %v2991
    %2993 = vmatprep.subr.mxu0 0.0
    %v2994 = vand.u32 %v135, 4294901760
    %v2995 = vsub.f32 %v135, %v2994
    %v2996 = vand.u32 %v2995, 4294901760
    %2997 = vmatpush1.msra.mxu0 %v2996
    %2998 = vmatprep.subr.mxu0 0.0
    %v2999 = vand.u32 %v134, 4294901760
    %v3000 = vsub.f32 %v134, %v2999
    %v3001 = vand.u32 %v3000, 4294901760
    %3002 = vmatpush1.msra.mxu0 %v3001
    %3003 = vmatprep.subr.mxu0 0.0
    %v3004 = vand.u32 %v133, 4294901760
    %v3005 = vsub.f32 %v133, %v3004
    %v3006 = vand.u32 %v3005, 4294901760
    %3007 = vmatpush1.msra.mxu0 %v3006
    %3008 = vmatprep.subr.mxu0 0.0
    %v3009 = vand.u32 %v164, 4294901760
    %v3010 = vsub.f32 %v164, %v3009
    %v3011 = vand.u32 %v3010, 4294901760
    %3012 = vmatpush2.msra.mxu0 %v3011
    %3013 = vmatprep.subr.mxu0 0.0
    %v3014 = vand.u32 %v163, 4294901760
    %v3015 = vsub.f32 %v163, %v3014
    %v3016 = vand.u32 %v3015, 4294901760
    %3017 = vmatpush2.msra.mxu0 %v3016
    %3018 = vmatprep.subr.mxu0 0.0
    %v3019 = vand.u32 %v162, 4294901760
    %v3020 = vsub.f32 %v162, %v3019
    %v3021 = vand.u32 %v3020, 4294901760
    %3022 = vmatpush2.msra.mxu0 %v3021
    %3023 = vmatprep.subr.mxu0 0.0
    %v3024 = vand.u32 %v161, 4294901760
    %v3025 = vsub.f32 %v161, %v3024
    %v3026 = vand.u32 %v3025, 4294901760
    %3027 = vmatpush2.msra.mxu0 %v3026
    %3028 = vmatprep.subr.mxu0 0.0
    %v3029 = vand.u32 %v160, 4294901760
    %v3030 = vsub.f32 %v160, %v3029
    %v3031 = vand.u32 %v3030, 4294901760
    %3032 = vmatpush2.msra.mxu0 %v3031
    %3033 = vmatprep.subr.mxu0 0.0
    %v3034 = vand.u32 %v159, 4294901760
    %v3035 = vsub.f32 %v159, %v3034
    %v3036 = vand.u32 %v3035, 4294901760
    %3037 = vmatpush2.msra.mxu0 %v3036
    %3038 = vmatprep.subr.mxu0 0.0
    %v3039 = vand.u32 %v158, 4294901760
    %v3040 = vsub.f32 %v158, %v3039
    %v3041 = vand.u32 %v3040, 4294901760
    %3042 = vmatpush2.msra.mxu0 %v3041
    %3043 = vmatprep.subr.mxu0 0.0
    %v3044 = vand.u32 %v157, 4294901760
    %v3045 = vsub.f32 %v157, %v3044
    %v3046 = vand.u32 %v3045, 4294901760
    %3047 = vmatpush2.msra.mxu0 %v3046
    %3048 = vmatprep.subr.mxu0 0.0
    %v3049 = vand.u32 %v156, 4294901760
    %v3050 = vsub.f32 %v156, %v3049
    %v3051 = vand.u32 %v3050, 4294901760
    %3052 = vmatpush2.msra.mxu0 %v3051
    %3053 = vmatprep.subr.mxu0 0.0
    %v3054 = vand.u32 %v155, 4294901760
    %v3055 = vsub.f32 %v155, %v3054
    %v3056 = vand.u32 %v3055, 4294901760
    %3057 = vmatpush2.msra.mxu0 %v3056
    %3058 = vmatprep.subr.mxu0 0.0
    %v3059 = vand.u32 %v154, 4294901760
    %v3060 = vsub.f32 %v154, %v3059
    %v3061 = vand.u32 %v3060, 4294901760
    %3062 = vmatpush2.msra.mxu0 %v3061
    %3063 = vmatprep.subr.mxu0 0.0
    %v3064 = vand.u32 %v153, 4294901760
    %v3065 = vsub.f32 %v153, %v3064
    %v3066 = vand.u32 %v3065, 4294901760
    %3067 = vmatpush2.msra.mxu0 %v3066
    %3068 = vmatprep.subr.mxu0 0.0
    %v3069 = vand.u32 %v152, 4294901760
    %v3070 = vsub.f32 %v152, %v3069
    %v3071 = vand.u32 %v3070, 4294901760
    %3072 = vmatpush2.msra.mxu0 %v3071
    %3073 = vmatprep.subr.mxu0 0.0
    %v3074 = vand.u32 %v151, 4294901760
    %v3075 = vsub.f32 %v151, %v3074
    %v3076 = vand.u32 %v3075, 4294901760
    %3077 = vmatpush2.msra.mxu0 %v3076
    %3078 = vmatprep.subr.mxu0 0.0
    %v3079 = vand.u32 %v150, 4294901760
    %v3080 = vsub.f32 %v150, %v3079
    %v3081 = vand.u32 %v3080, 4294901760
    %3082 = vmatpush2.msra.mxu0 %v3081
    %3083 = vmatprep.subr.mxu0 0.0
    %v3084 = vand.u32 %v149, 4294901760
    %v3085 = vsub.f32 %v149, %v3084
    %v3086 = vand.u32 %v3085, 4294901760
    %3087 = vmatpush2.msra.mxu0 %v3086
    %v3088 = vand.u32 %v26, 4294901760
    %3089 = vmatprep.mubr.f32.mxu0 %v3088
    %v3090 = vand.u32 %v25, 4294901760
    %3091 = vmatmul.mubr.f32.gmra.mxu0 %v3090
    %v3092 = vpop.f32.mrf.mxu0
    %v3093 = vadd.f32 %v2914, %v3092
    %v3094 = vpop.f32.mrf.mxu0
    %v3095 = vand.u32 %v50, 4294901760
    %3096 = vmatprep.mubr.f32.mxu0 %v3095
    %v3097 = vand.u32 %v49, 4294901760
    %3098 = vmatmul.mubr.f32.gmra.mxu0 %v3097
    %v3099 = vpop.f32.mrf.mxu0
    %v3100 = vadd.f32 %v2925, %v3099
    %v3101 = vpop.f32.mrf.mxu0
    %3102 = vdwg.mxu0
    %3103 = vmatprep.subr.mxu0 0.0
    %v3104 = vand.u32 %v148, 4294901760
    %3105 = vmatpush1.msra.mxu0 %v3104
    %3106 = vmatprep.subr.mxu0 0.0
    %v3107 = vand.u32 %v147, 4294901760
    %3108 = vmatpush1.msra.mxu0 %v3107
    %3109 = vmatprep.subr.mxu0 0.0
    %v3110 = vand.u32 %v146, 4294901760
    %3111 = vmatpush1.msra.mxu0 %v3110
    %3112 = vmatprep.subr.mxu0 0.0
    %v3113 = vand.u32 %v145, 4294901760
    %3114 = vmatpush1.msra.mxu0 %v3113
    %3115 = vmatprep.subr.mxu0 0.0
    %v3116 = vand.u32 %v144, 4294901760
    %3117 = vmatpush1.msra.mxu0 %v3116
    %3118 = vmatprep.subr.mxu0 0.0
    %v3119 = vand.u32 %v143, 4294901760
    %3120 = vmatpush1.msra.mxu0 %v3119
    %3121 = vmatprep.subr.mxu0 0.0
    %v3122 = vand.u32 %v142, 4294901760
    %3123 = vmatpush1.msra.mxu0 %v3122
    %3124 = vmatprep.subr.mxu0 0.0
    %v3125 = vand.u32 %v141, 4294901760
    %3126 = vmatpush1.msra.mxu0 %v3125
    %3127 = vmatprep.subr.mxu0 0.0
    %v3128 = vand.u32 %v140, 4294901760
    %3129 = vmatpush1.msra.mxu0 %v3128
    %3130 = vmatprep.subr.mxu0 0.0
    %v3131 = vand.u32 %v139, 4294901760
    %3132 = vmatpush1.msra.mxu0 %v3131
    %3133 = vmatprep.subr.mxu0 0.0
    %v3134 = vand.u32 %v138, 4294901760
    %3135 = vmatpush1.msra.mxu0 %v3134
    %3136 = vmatprep.subr.mxu0 0.0
    %v3137 = vand.u32 %v137, 4294901760
    %3138 = vmatpush1.msra.mxu0 %v3137
    %3139 = vmatprep.subr.mxu0 0.0
    %v3140 = vand.u32 %v136, 4294901760
    %3141 = vmatpush1.msra.mxu0 %v3140
    %3142 = vmatprep.subr.mxu0 0.0
    %v3143 = vand.u32 %v135, 4294901760
    %3144 = vmatpush1.msra.mxu0 %v3143
    %3145 = vmatprep.subr.mxu0 0.0
    %v3146 = vand.u32 %v134, 4294901760
    %3147 = vmatpush1.msra.mxu0 %v3146
    %3148 = vmatprep.subr.mxu0 0.0
    %v3149 = vand.u32 %v133, 4294901760
    %3150 = vmatpush1.msra.mxu0 %v3149
    %3151 = vmatprep.subr.mxu0 0.0
    %v3152 = vand.u32 %v164, 4294901760
    %3153 = vmatpush2.msra.mxu0 %v3152
    %3154 = vmatprep.subr.mxu0 0.0
    %v3155 = vand.u32 %v163, 4294901760
    %3156 = vmatpush2.msra.mxu0 %v3155
    %3157 = vmatprep.subr.mxu0 0.0
    %v3158 = vand.u32 %v162, 4294901760
    %3159 = vmatpush2.msra.mxu0 %v3158
    %3160 = vmatprep.subr.mxu0 0.0
    %v3161 = vand.u32 %v161, 4294901760
    %3162 = vmatpush2.msra.mxu0 %v3161
    %3163 = vmatprep.subr.mxu0 0.0
    %v3164 = vand.u32 %v160, 4294901760
    %3165 = vmatpush2.msra.mxu0 %v3164
    %3166 = vmatprep.subr.mxu0 0.0
    %v3167 = vand.u32 %v159, 4294901760
    %3168 = vmatpush2.msra.mxu0 %v3167
    %3169 = vmatprep.subr.mxu0 0.0
    %v3170 = vand.u32 %v158, 4294901760
    %3171 = vmatpush2.msra.mxu0 %v3170
    %3172 = vmatprep.subr.mxu0 0.0
    %v3173 = vand.u32 %v157, 4294901760
    %3174 = vmatpush2.msra.mxu0 %v3173
    %3175 = vmatprep.subr.mxu0 0.0
    %v3176 = vand.u32 %v156, 4294901760
    %3177 = vmatpush2.msra.mxu0 %v3176
    %3178 = vmatprep.subr.mxu0 0.0
    %v3179 = vand.u32 %v155, 4294901760
    %3180 = vmatpush2.msra.mxu0 %v3179
    %3181 = vmatprep.subr.mxu0 0.0
    %v3182 = vand.u32 %v154, 4294901760
    %3183 = vmatpush2.msra.mxu0 %v3182
    %3184 = vmatprep.subr.mxu0 0.0
    %v3185 = vand.u32 %v153, 4294901760
    %3186 = vmatpush2.msra.mxu0 %v3185
    %3187 = vmatprep.subr.mxu0 0.0
    %v3188 = vand.u32 %v152, 4294901760
    %3189 = vmatpush2.msra.mxu0 %v3188
    %3190 = vmatprep.subr.mxu0 0.0
    %v3191 = vand.u32 %v151, 4294901760
    %3192 = vmatpush2.msra.mxu0 %v3191
    %3193 = vmatprep.subr.mxu0 0.0
    %v3194 = vand.u32 %v150, 4294901760
    %3195 = vmatpush2.msra.mxu0 %v3194
    %3196 = vmatprep.subr.mxu0 0.0
    %v3197 = vand.u32 %v149, 4294901760
    %3198 = vmatpush2.msra.mxu0 %v3197
    %v3199 = vand.u32 %v26, 4294901760
    %3200 = vmatprep.mubr.f32.mxu0 %v3199
    %v3201 = vand.u32 %v25, 4294901760
    %3202 = vmatmul.mubr.f32.gmra.mxu0 %v3201
    %v3203 = vpop.f32.mrf.mxu0
    %v3204 = vadd.f32 %v3093, %v3203
    %v3205 = vpop.f32.mrf.mxu0
    %v3206 = vand.u32 %v50, 4294901760
    %3207 = vmatprep.mubr.f32.mxu0 %v3206
    %v3208 = vand.u32 %v49, 4294901760
    %3209 = vmatmul.mubr.f32.gmra.mxu0 %v3208
    %v3210 = vpop.f32.mrf.mxu0
    %v3211 = vadd.f32 %v3100, %v3210
    %v3212 = vpop.f32.mrf.mxu0
    %3213 = vdwg.mxu0
    %3214 = vmatprep.subr.mxu0 0.0
    %v3215 = vand.u32 %v180, 4294901760
    %3216 = vmatpush1.msra.mxu0 %v3215
    %3217 = vmatprep.subr.mxu0 0.0
    %v3218 = vand.u32 %v179, 4294901760
    %3219 = vmatpush1.msra.mxu0 %v3218
    %3220 = vmatprep.subr.mxu0 0.0
    %v3221 = vand.u32 %v178, 4294901760
    %3222 = vmatpush1.msra.mxu0 %v3221
    %3223 = vmatprep.subr.mxu0 0.0
    %v3224 = vand.u32 %v177, 4294901760
    %3225 = vmatpush1.msra.mxu0 %v3224
    %3226 = vmatprep.subr.mxu0 0.0
    %v3227 = vand.u32 %v176, 4294901760
    %3228 = vmatpush1.msra.mxu0 %v3227
    %3229 = vmatprep.subr.mxu0 0.0
    %v3230 = vand.u32 %v175, 4294901760
    %3231 = vmatpush1.msra.mxu0 %v3230
    %3232 = vmatprep.subr.mxu0 0.0
    %v3233 = vand.u32 %v174, 4294901760
    %3234 = vmatpush1.msra.mxu0 %v3233
    %3235 = vmatprep.subr.mxu0 0.0
    %v3236 = vand.u32 %v173, 4294901760
    %3237 = vmatpush1.msra.mxu0 %v3236
    %3238 = vmatprep.subr.mxu0 0.0
    %v3239 = vand.u32 %v172, 4294901760
    %3240 = vmatpush1.msra.mxu0 %v3239
    %3241 = vmatprep.subr.mxu0 0.0
    %v3242 = vand.u32 %v171, 4294901760
    %3243 = vmatpush1.msra.mxu0 %v3242
    %3244 = vmatprep.subr.mxu0 0.0
    %v3245 = vand.u32 %v170, 4294901760
    %3246 = vmatpush1.msra.mxu0 %v3245
    %3247 = vmatprep.subr.mxu0 0.0
    %v3248 = vand.u32 %v169, 4294901760
    %3249 = vmatpush1.msra.mxu0 %v3248
    %3250 = vmatprep.subr.mxu0 0.0
    %v3251 = vand.u32 %v168, 4294901760
    %3252 = vmatpush1.msra.mxu0 %v3251
    %3253 = vmatprep.subr.mxu0 0.0
    %v3254 = vand.u32 %v167, 4294901760
    %3255 = vmatpush1.msra.mxu0 %v3254
    %3256 = vmatprep.subr.mxu0 0.0
    %v3257 = vand.u32 %v166, 4294901760
    %3258 = vmatpush1.msra.mxu0 %v3257
    %3259 = vmatprep.subr.mxu0 0.0
    %v3260 = vand.u32 %v165, 4294901760
    %3261 = vmatpush1.msra.mxu0 %v3260
    %3262 = vmatprep.subr.mxu0 0.0
    %v3263 = vand.u32 %v196, 4294901760
    %3264 = vmatpush2.msra.mxu0 %v3263
    %3265 = vmatprep.subr.mxu0 0.0
    %v3266 = vand.u32 %v195, 4294901760
    %3267 = vmatpush2.msra.mxu0 %v3266
    %3268 = vmatprep.subr.mxu0 0.0
    %v3269 = vand.u32 %v194, 4294901760
    %3270 = vmatpush2.msra.mxu0 %v3269
    %3271 = vmatprep.subr.mxu0 0.0
    %v3272 = vand.u32 %v193, 4294901760
    %3273 = vmatpush2.msra.mxu0 %v3272
    %3274 = vmatprep.subr.mxu0 0.0
    %v3275 = vand.u32 %v192, 4294901760
    %3276 = vmatpush2.msra.mxu0 %v3275
    %3277 = vmatprep.subr.mxu0 0.0
    %v3278 = vand.u32 %v191, 4294901760
    %3279 = vmatpush2.msra.mxu0 %v3278
    %3280 = vmatprep.subr.mxu0 0.0
    %v3281 = vand.u32 %v190, 4294901760
    %3282 = vmatpush2.msra.mxu0 %v3281
    %3283 = vmatprep.subr.mxu0 0.0
    %v3284 = vand.u32 %v189, 4294901760
    %3285 = vmatpush2.msra.mxu0 %v3284
    %3286 = vmatprep.subr.mxu0 0.0
    %v3287 = vand.u32 %v188, 4294901760
    %3288 = vmatpush2.msra.mxu0 %v3287
    %3289 = vmatprep.subr.mxu0 0.0
    %v3290 = vand.u32 %v187, 4294901760
    %3291 = vmatpush2.msra.mxu0 %v3290
    %3292 = vmatprep.subr.mxu0 0.0
    %v3293 = vand.u32 %v186, 4294901760
    %3294 = vmatpush2.msra.mxu0 %v3293
    %3295 = vmatprep.subr.mxu0 0.0
    %v3296 = vand.u32 %v185, 4294901760
    %3297 = vmatpush2.msra.mxu0 %v3296
    %3298 = vmatprep.subr.mxu0 0.0
    %v3299 = vand.u32 %v184, 4294901760
    %3300 = vmatpush2.msra.mxu0 %v3299
    %3301 = vmatprep.subr.mxu0 0.0
    %v3302 = vand.u32 %v183, 4294901760
    %3303 = vmatpush2.msra.mxu0 %v3302
    %3304 = vmatprep.subr.mxu0 0.0
    %v3305 = vand.u32 %v182, 4294901760
    %3306 = vmatpush2.msra.mxu0 %v3305
    %3307 = vmatprep.subr.mxu0 0.0
    %v3308 = vand.u32 %v181, 4294901760
    %3309 = vmatpush2.msra.mxu0 %v3308
    %v3310 = vand.u32 %v28, 4294901760
    %v3311 = vsub.f32 %v28, %v3310
    %v3312 = vand.u32 %v3311, 4294901760
    %v3313 = vsub.f32 %v3311, %v3312
    %v3314 = vand.u32 %v3313, 4294901760
    %3315 = vmatprep.mubr.f32.mxu0 %v3314
    %v3316 = vand.u32 %v27, 4294901760
    %v3317 = vsub.f32 %v27, %v3316
    %v3318 = vand.u32 %v3317, 4294901760
    %v3319 = vsub.f32 %v3317, %v3318
    %v3320 = vand.u32 %v3319, 4294901760
    %3321 = vmatmul.mubr.f32.gmra.mxu0 %v3320
    %v3322 = vpop.f32.mrf.mxu0
    %v3323 = vadd.f32 %v3204, %v3322
    %v3324 = vpop.f32.mrf.mxu0
    %v3325 = vand.u32 %v52, 4294901760
    %v3326 = vsub.f32 %v52, %v3325
    %v3327 = vand.u32 %v3326, 4294901760
    %v3328 = vsub.f32 %v3326, %v3327
    %v3329 = vand.u32 %v3328, 4294901760
    %3330 = vmatprep.mubr.f32.mxu0 %v3329
    %v3331 = vand.u32 %v51, 4294901760
    %v3332 = vsub.f32 %v51, %v3331
    %v3333 = vand.u32 %v3332, 4294901760
    %v3334 = vsub.f32 %v3332, %v3333
    %v3335 = vand.u32 %v3334, 4294901760
    %3336 = vmatmul.mubr.f32.gmra.mxu0 %v3335
    %v3337 = vpop.f32.mrf.mxu0
    %v3338 = vadd.f32 %v3211, %v3337
    %v3339 = vpop.f32.mrf.mxu0
    %3340 = vdwg.mxu0
    %3341 = vmatprep.subr.mxu0 0.0
    %v3342 = vand.u32 %v180, 4294901760
    %v3343 = vsub.f32 %v180, %v3342
    %v3344 = vand.u32 %v3343, 4294901760
    %v3345 = vsub.f32 %v3343, %v3344
    %v3346 = vand.u32 %v3345, 4294901760
    %3347 = vmatpush1.msra.mxu0 %v3346
    %3348 = vmatprep.subr.mxu0 0.0
    %v3349 = vand.u32 %v179, 4294901760
    %v3350 = vsub.f32 %v179, %v3349
    %v3351 = vand.u32 %v3350, 4294901760
    %v3352 = vsub.f32 %v3350, %v3351
    %v3353 = vand.u32 %v3352, 4294901760
    %3354 = vmatpush1.msra.mxu0 %v3353
    %3355 = vmatprep.subr.mxu0 0.0
    %v3356 = vand.u32 %v178, 4294901760
    %v3357 = vsub.f32 %v178, %v3356
    %v3358 = vand.u32 %v3357, 4294901760
    %v3359 = vsub.f32 %v3357, %v3358
    %v3360 = vand.u32 %v3359, 4294901760
    %3361 = vmatpush1.msra.mxu0 %v3360
    %3362 = vmatprep.subr.mxu0 0.0
    %v3363 = vand.u32 %v177, 4294901760
    %v3364 = vsub.f32 %v177, %v3363
    %v3365 = vand.u32 %v3364, 4294901760
    %v3366 = vsub.f32 %v3364, %v3365
    %v3367 = vand.u32 %v3366, 4294901760
    %3368 = vmatpush1.msra.mxu0 %v3367
    %3369 = vmatprep.subr.mxu0 0.0
    %v3370 = vand.u32 %v176, 4294901760
    %v3371 = vsub.f32 %v176, %v3370
    %v3372 = vand.u32 %v3371, 4294901760
    %v3373 = vsub.f32 %v3371, %v3372
    %v3374 = vand.u32 %v3373, 4294901760
    %3375 = vmatpush1.msra.mxu0 %v3374
    %3376 = vmatprep.subr.mxu0 0.0
    %v3377 = vand.u32 %v175, 4294901760
    %v3378 = vsub.f32 %v175, %v3377
    %v3379 = vand.u32 %v3378, 4294901760
    %v3380 = vsub.f32 %v3378, %v3379
    %v3381 = vand.u32 %v3380, 4294901760
    %3382 = vmatpush1.msra.mxu0 %v3381
    %3383 = vmatprep.subr.mxu0 0.0
    %v3384 = vand.u32 %v174, 4294901760
    %v3385 = vsub.f32 %v174, %v3384
    %v3386 = vand.u32 %v3385, 4294901760
    %v3387 = vsub.f32 %v3385, %v3386
    %v3388 = vand.u32 %v3387, 4294901760
    %3389 = vmatpush1.msra.mxu0 %v3388
    %3390 = vmatprep.subr.mxu0 0.0
    %v3391 = vand.u32 %v173, 4294901760
    %v3392 = vsub.f32 %v173, %v3391
    %v3393 = vand.u32 %v3392, 4294901760
    %v3394 = vsub.f32 %v3392, %v3393
    %v3395 = vand.u32 %v3394, 4294901760
    %3396 = vmatpush1.msra.mxu0 %v3395
    %3397 = vmatprep.subr.mxu0 0.0
    %v3398 = vand.u32 %v172, 4294901760
    %v3399 = vsub.f32 %v172, %v3398
    %v3400 = vand.u32 %v3399, 4294901760
    %v3401 = vsub.f32 %v3399, %v3400
    %v3402 = vand.u32 %v3401, 4294901760
    %3403 = vmatpush1.msra.mxu0 %v3402
    %3404 = vmatprep.subr.mxu0 0.0
    %v3405 = vand.u32 %v171, 4294901760
    %v3406 = vsub.f32 %v171, %v3405
    %v3407 = vand.u32 %v3406, 4294901760
    %v3408 = vsub.f32 %v3406, %v3407
    %v3409 = vand.u32 %v3408, 4294901760
    %3410 = vmatpush1.msra.mxu0 %v3409
    %3411 = vmatprep.subr.mxu0 0.0
    %v3412 = vand.u32 %v170, 4294901760
    %v3413 = vsub.f32 %v170, %v3412
    %v3414 = vand.u32 %v3413, 4294901760
    %v3415 = vsub.f32 %v3413, %v3414
    %v3416 = vand.u32 %v3415, 4294901760
    %3417 = vmatpush1.msra.mxu0 %v3416
    %3418 = vmatprep.subr.mxu0 0.0
    %v3419 = vand.u32 %v169, 4294901760
    %v3420 = vsub.f32 %v169, %v3419
    %v3421 = vand.u32 %v3420, 4294901760
    %v3422 = vsub.f32 %v3420, %v3421
    %v3423 = vand.u32 %v3422, 4294901760
    %3424 = vmatpush1.msra.mxu0 %v3423
    %3425 = vmatprep.subr.mxu0 0.0
    %v3426 = vand.u32 %v168, 4294901760
    %v3427 = vsub.f32 %v168, %v3426
    %v3428 = vand.u32 %v3427, 4294901760
    %v3429 = vsub.f32 %v3427, %v3428
    %v3430 = vand.u32 %v3429, 4294901760
    %3431 = vmatpush1.msra.mxu0 %v3430
    %3432 = vmatprep.subr.mxu0 0.0
    %v3433 = vand.u32 %v167, 4294901760
    %v3434 = vsub.f32 %v167, %v3433
    %v3435 = vand.u32 %v3434, 4294901760
    %v3436 = vsub.f32 %v3434, %v3435
    %v3437 = vand.u32 %v3436, 4294901760
    %3438 = vmatpush1.msra.mxu0 %v3437
    %3439 = vmatprep.subr.mxu0 0.0
    %v3440 = vand.u32 %v166, 4294901760
    %v3441 = vsub.f32 %v166, %v3440
    %v3442 = vand.u32 %v3441, 4294901760
    %v3443 = vsub.f32 %v3441, %v3442
    %v3444 = vand.u32 %v3443, 4294901760
    %3445 = vmatpush1.msra.mxu0 %v3444
    %3446 = vmatprep.subr.mxu0 0.0
    %v3447 = vand.u32 %v165, 4294901760
    %v3448 = vsub.f32 %v165, %v3447
    %v3449 = vand.u32 %v3448, 4294901760
    %v3450 = vsub.f32 %v3448, %v3449
    %v3451 = vand.u32 %v3450, 4294901760
    %3452 = vmatpush1.msra.mxu0 %v3451
    %3453 = vmatprep.subr.mxu0 0.0
    %v3454 = vand.u32 %v196, 4294901760
    %v3455 = vsub.f32 %v196, %v3454
    %v3456 = vand.u32 %v3455, 4294901760
    %v3457 = vsub.f32 %v3455, %v3456
    %v3458 = vand.u32 %v3457, 4294901760
    %3459 = vmatpush2.msra.mxu0 %v3458
    %3460 = vmatprep.subr.mxu0 0.0
    %v3461 = vand.u32 %v195, 4294901760
    %v3462 = vsub.f32 %v195, %v3461
    %v3463 = vand.u32 %v3462, 4294901760
    %v3464 = vsub.f32 %v3462, %v3463
    %v3465 = vand.u32 %v3464, 4294901760
    %3466 = vmatpush2.msra.mxu0 %v3465
    %3467 = vmatprep.subr.mxu0 0.0
    %v3468 = vand.u32 %v194, 4294901760
    %v3469 = vsub.f32 %v194, %v3468
    %v3470 = vand.u32 %v3469, 4294901760
    %v3471 = vsub.f32 %v3469, %v3470
    %v3472 = vand.u32 %v3471, 4294901760
    %3473 = vmatpush2.msra.mxu0 %v3472
    %3474 = vmatprep.subr.mxu0 0.0
    %v3475 = vand.u32 %v193, 4294901760
    %v3476 = vsub.f32 %v193, %v3475
    %v3477 = vand.u32 %v3476, 4294901760
    %v3478 = vsub.f32 %v3476, %v3477
    %v3479 = vand.u32 %v3478, 4294901760
    %3480 = vmatpush2.msra.mxu0 %v3479
    %3481 = vmatprep.subr.mxu0 0.0
    %v3482 = vand.u32 %v192, 4294901760
    %v3483 = vsub.f32 %v192, %v3482
    %v3484 = vand.u32 %v3483, 4294901760
    %v3485 = vsub.f32 %v3483, %v3484
    %v3486 = vand.u32 %v3485, 4294901760
    %3487 = vmatpush2.msra.mxu0 %v3486
    %3488 = vmatprep.subr.mxu0 0.0
    %v3489 = vand.u32 %v191, 4294901760
    %v3490 = vsub.f32 %v191, %v3489
    %v3491 = vand.u32 %v3490, 4294901760
    %v3492 = vsub.f32 %v3490, %v3491
    %v3493 = vand.u32 %v3492, 4294901760
    %3494 = vmatpush2.msra.mxu0 %v3493
    %3495 = vmatprep.subr.mxu0 0.0
    %v3496 = vand.u32 %v190, 4294901760
    %v3497 = vsub.f32 %v190, %v3496
    %v3498 = vand.u32 %v3497, 4294901760
    %v3499 = vsub.f32 %v3497, %v3498
    %v3500 = vand.u32 %v3499, 4294901760
    %3501 = vmatpush2.msra.mxu0 %v3500
    %3502 = vmatprep.subr.mxu0 0.0
    %v3503 = vand.u32 %v189, 4294901760
    %v3504 = vsub.f32 %v189, %v3503
    %v3505 = vand.u32 %v3504, 4294901760
    %v3506 = vsub.f32 %v3504, %v3505
    %v3507 = vand.u32 %v3506, 4294901760
    %3508 = vmatpush2.msra.mxu0 %v3507
    %3509 = vmatprep.subr.mxu0 0.0
    %v3510 = vand.u32 %v188, 4294901760
    %v3511 = vsub.f32 %v188, %v3510
    %v3512 = vand.u32 %v3511, 4294901760
    %v3513 = vsub.f32 %v3511, %v3512
    %v3514 = vand.u32 %v3513, 4294901760
    %3515 = vmatpush2.msra.mxu0 %v3514
    %3516 = vmatprep.subr.mxu0 0.0
    %v3517 = vand.u32 %v187, 4294901760
    %v3518 = vsub.f32 %v187, %v3517
    %v3519 = vand.u32 %v3518, 4294901760
    %v3520 = vsub.f32 %v3518, %v3519
    %v3521 = vand.u32 %v3520, 4294901760
    %3522 = vmatpush2.msra.mxu0 %v3521
    %3523 = vmatprep.subr.mxu0 0.0
    %v3524 = vand.u32 %v186, 4294901760
    %v3525 = vsub.f32 %v186, %v3524
    %v3526 = vand.u32 %v3525, 4294901760
    %v3527 = vsub.f32 %v3525, %v3526
    %v3528 = vand.u32 %v3527, 4294901760
    %3529 = vmatpush2.msra.mxu0 %v3528
    %3530 = vmatprep.subr.mxu0 0.0
    %v3531 = vand.u32 %v185, 4294901760
    %v3532 = vsub.f32 %v185, %v3531
    %v3533 = vand.u32 %v3532, 4294901760
    %v3534 = vsub.f32 %v3532, %v3533
    %v3535 = vand.u32 %v3534, 4294901760
    %3536 = vmatpush2.msra.mxu0 %v3535
    %3537 = vmatprep.subr.mxu0 0.0
    %v3538 = vand.u32 %v184, 4294901760
    %v3539 = vsub.f32 %v184, %v3538
    %v3540 = vand.u32 %v3539, 4294901760
    %v3541 = vsub.f32 %v3539, %v3540
    %v3542 = vand.u32 %v3541, 4294901760
    %3543 = vmatpush2.msra.mxu0 %v3542
    %3544 = vmatprep.subr.mxu0 0.0
    %v3545 = vand.u32 %v183, 4294901760
    %v3546 = vsub.f32 %v183, %v3545
    %v3547 = vand.u32 %v3546, 4294901760
    %v3548 = vsub.f32 %v3546, %v3547
    %v3549 = vand.u32 %v3548, 4294901760
    %3550 = vmatpush2.msra.mxu0 %v3549
    %3551 = vmatprep.subr.mxu0 0.0
    %v3552 = vand.u32 %v182, 4294901760
    %v3553 = vsub.f32 %v182, %v3552
    %v3554 = vand.u32 %v3553, 4294901760
    %v3555 = vsub.f32 %v3553, %v3554
    %v3556 = vand.u32 %v3555, 4294901760
    %3557 = vmatpush2.msra.mxu0 %v3556
    %3558 = vmatprep.subr.mxu0 0.0
    %v3559 = vand.u32 %v181, 4294901760
    %v3560 = vsub.f32 %v181, %v3559
    %v3561 = vand.u32 %v3560, 4294901760
    %v3562 = vsub.f32 %v3560, %v3561
    %v3563 = vand.u32 %v3562, 4294901760
    %3564 = vmatpush2.msra.mxu0 %v3563
    %v3565 = vand.u32 %v28, 4294901760
    %3566 = vmatprep.mubr.f32.mxu0 %v3565
    %v3567 = vand.u32 %v27, 4294901760
    %3568 = vmatmul.mubr.f32.gmra.mxu0 %v3567
    %v3569 = vpop.f32.mrf.mxu0
    %v3570 = vadd.f32 %v3323, %v3569
    %v3571 = vpop.f32.mrf.mxu0
    %v3572 = vand.u32 %v52, 4294901760
    %3573 = vmatprep.mubr.f32.mxu0 %v3572
    %v3574 = vand.u32 %v51, 4294901760
    %3575 = vmatmul.mubr.f32.gmra.mxu0 %v3574
    %v3576 = vpop.f32.mrf.mxu0
    %v3577 = vadd.f32 %v3338, %v3576
    %v3578 = vpop.f32.mrf.mxu0
    %3579 = vdwg.mxu0
    %3580 = vmatprep.subr.mxu0 0.0
    %v3581 = vand.u32 %v180, 4294901760
    %v3582 = vsub.f32 %v180, %v3581
    %3583 = vmatpush1.msra.mxu0 %v3582
    %3584 = vmatprep.subr.mxu0 0.0
    %v3585 = vand.u32 %v179, 4294901760
    %v3586 = vsub.f32 %v179, %v3585
    %3587 = vmatpush1.msra.mxu0 %v3586
    %3588 = vmatprep.subr.mxu0 0.0
    %v3589 = vand.u32 %v178, 4294901760
    %v3590 = vsub.f32 %v178, %v3589
    %3591 = vmatpush1.msra.mxu0 %v3590
    %3592 = vmatprep.subr.mxu0 0.0
    %v3593 = vand.u32 %v177, 4294901760
    %v3594 = vsub.f32 %v177, %v3593
    %3595 = vmatpush1.msra.mxu0 %v3594
    %3596 = vmatprep.subr.mxu0 0.0
    %v3597 = vand.u32 %v176, 4294901760
    %v3598 = vsub.f32 %v176, %v3597
    %3599 = vmatpush1.msra.mxu0 %v3598
    %3600 = vmatprep.subr.mxu0 0.0
    %v3601 = vand.u32 %v175, 4294901760
    %v3602 = vsub.f32 %v175, %v3601
    %3603 = vmatpush1.msra.mxu0 %v3602
    %3604 = vmatprep.subr.mxu0 0.0
    %v3605 = vand.u32 %v174, 4294901760
    %v3606 = vsub.f32 %v174, %v3605
    %3607 = vmatpush1.msra.mxu0 %v3606
    %3608 = vmatprep.subr.mxu0 0.0
    %v3609 = vand.u32 %v173, 4294901760
    %v3610 = vsub.f32 %v173, %v3609
    %3611 = vmatpush1.msra.mxu0 %v3610
    %3612 = vmatprep.subr.mxu0 0.0
    %v3613 = vand.u32 %v172, 4294901760
    %v3614 = vsub.f32 %v172, %v3613
    %3615 = vmatpush1.msra.mxu0 %v3614
    %3616 = vmatprep.subr.mxu0 0.0
    %v3617 = vand.u32 %v171, 4294901760
    %v3618 = vsub.f32 %v171, %v3617
    %3619 = vmatpush1.msra.mxu0 %v3618
    %3620 = vmatprep.subr.mxu0 0.0
    %v3621 = vand.u32 %v170, 4294901760
    %v3622 = vsub.f32 %v170, %v3621
    %3623 = vmatpush1.msra.mxu0 %v3622
    %3624 = vmatprep.subr.mxu0 0.0
    %v3625 = vand.u32 %v169, 4294901760
    %v3626 = vsub.f32 %v169, %v3625
    %3627 = vmatpush1.msra.mxu0 %v3626
    %3628 = vmatprep.subr.mxu0 0.0
    %v3629 = vand.u32 %v168, 4294901760
    %v3630 = vsub.f32 %v168, %v3629
    %3631 = vmatpush1.msra.mxu0 %v3630
    %3632 = vmatprep.subr.mxu0 0.0
    %v3633 = vand.u32 %v167, 4294901760
    %v3634 = vsub.f32 %v167, %v3633
    %3635 = vmatpush1.msra.mxu0 %v3634
    %3636 = vmatprep.subr.mxu0 0.0
    %v3637 = vand.u32 %v166, 4294901760
    %v3638 = vsub.f32 %v166, %v3637
    %3639 = vmatpush1.msra.mxu0 %v3638
    %3640 = vmatprep.subr.mxu0 0.0
    %v3641 = vand.u32 %v165, 4294901760
    %v3642 = vsub.f32 %v165, %v3641
    %3643 = vmatpush1.msra.mxu0 %v3642
    %3644 = vmatprep.subr.mxu0 0.0
    %v3645 = vand.u32 %v196, 4294901760
    %v3646 = vsub.f32 %v196, %v3645
    %3647 = vmatpush2.msra.mxu0 %v3646
    %3648 = vmatprep.subr.mxu0 0.0
    %v3649 = vand.u32 %v195, 4294901760
    %v3650 = vsub.f32 %v195, %v3649
    %3651 = vmatpush2.msra.mxu0 %v3650
    %3652 = vmatprep.subr.mxu0 0.0
    %v3653 = vand.u32 %v194, 4294901760
    %v3654 = vsub.f32 %v194, %v3653
    %3655 = vmatpush2.msra.mxu0 %v3654
    %3656 = vmatprep.subr.mxu0 0.0
    %v3657 = vand.u32 %v193, 4294901760
    %v3658 = vsub.f32 %v193, %v3657
    %3659 = vmatpush2.msra.mxu0 %v3658
    %3660 = vmatprep.subr.mxu0 0.0
    %v3661 = vand.u32 %v192, 4294901760
    %v3662 = vsub.f32 %v192, %v3661
    %3663 = vmatpush2.msra.mxu0 %v3662
    %3664 = vmatprep.subr.mxu0 0.0
    %v3665 = vand.u32 %v191, 4294901760
    %v3666 = vsub.f32 %v191, %v3665
    %3667 = vmatpush2.msra.mxu0 %v3666
    %3668 = vmatprep.subr.mxu0 0.0
    %v3669 = vand.u32 %v190, 4294901760
    %v3670 = vsub.f32 %v190, %v3669
    %3671 = vmatpush2.msra.mxu0 %v3670
    %3672 = vmatprep.subr.mxu0 0.0
    %v3673 = vand.u32 %v189, 4294901760
    %v3674 = vsub.f32 %v189, %v3673
    %3675 = vmatpush2.msra.mxu0 %v3674
    %3676 = vmatprep.subr.mxu0 0.0
    %v3677 = vand.u32 %v188, 4294901760
    %v3678 = vsub.f32 %v188, %v3677
    %3679 = vmatpush2.msra.mxu0 %v3678
    %3680 = vmatprep.subr.mxu0 0.0
    %v3681 = vand.u32 %v187, 4294901760
    %v3682 = vsub.f32 %v187, %v3681
    %3683 = vmatpush2.msra.mxu0 %v3682
    %3684 = vmatprep.subr.mxu0 0.0
    %v3685 = vand.u32 %v186, 4294901760
    %v3686 = vsub.f32 %v186, %v3685
    %3687 = vmatpush2.msra.mxu0 %v3686
    %3688 = vmatprep.subr.mxu0 0.0
    %v3689 = vand.u32 %v185, 4294901760
    %v3690 = vsub.f32 %v185, %v3689
    %3691 = vmatpush2.msra.mxu0 %v3690
    %3692 = vmatprep.subr.mxu0 0.0
    %v3693 = vand.u32 %v184, 4294901760
    %v3694 = vsub.f32 %v184, %v3693
    %3695 = vmatpush2.msra.mxu0 %v3694
    %3696 = vmatprep.subr.mxu0 0.0
    %v3697 = vand.u32 %v183, 4294901760
    %v3698 = vsub.f32 %v183, %v3697
    %3699 = vmatpush2.msra.mxu0 %v3698
    %3700 = vmatprep.subr.mxu0 0.0
    %v3701 = vand.u32 %v182, 4294901760
    %v3702 = vsub.f32 %v182, %v3701
    %3703 = vmatpush2.msra.mxu0 %v3702
    %3704 = vmatprep.subr.mxu0 0.0
    %v3705 = vand.u32 %v181, 4294901760
    %v3706 = vsub.f32 %v181, %v3705
    %3707 = vmatpush2.msra.mxu0 %v3706
    %v3708 = vand.u32 %v28, 4294901760
    %v3709 = vsub.f32 %v28, %v3708
    %3710 = vmatprep.mubr.f32.mxu0 %v3709
    %v3711 = vand.u32 %v27, 4294901760
    %v3712 = vsub.f32 %v27, %v3711
    %3713 = vmatmul.mubr.f32.gmra.mxu0 %v3712
    %v3714 = vpop.f32.mrf.mxu0
    %v3715 = vadd.f32 %v3570, %v3714
    %v3716 = vpop.f32.mrf.mxu0
    %v3717 = vand.u32 %v52, 4294901760
    %v3718 = vsub.f32 %v52, %v3717
    %3719 = vmatprep.mubr.f32.mxu0 %v3718
    %v3720 = vand.u32 %v51, 4294901760
    %v3721 = vsub.f32 %v51, %v3720
    %3722 = vmatmul.mubr.f32.gmra.mxu0 %v3721
    %v3723 = vpop.f32.mrf.mxu0
    %v3724 = vadd.f32 %v3577, %v3723
    %v3725 = vpop.f32.mrf.mxu0
    %3726 = vdwg.mxu0
    %3727 = vmatprep.subr.mxu0 0.0
    %v3728 = vand.u32 %v180, 4294901760
    %3729 = vmatpush1.msra.mxu0 %v3728
    %3730 = vmatprep.subr.mxu0 0.0
    %v3731 = vand.u32 %v179, 4294901760
    %3732 = vmatpush1.msra.mxu0 %v3731
    %3733 = vmatprep.subr.mxu0 0.0
    %v3734 = vand.u32 %v178, 4294901760
    %3735 = vmatpush1.msra.mxu0 %v3734
    %3736 = vmatprep.subr.mxu0 0.0
    %v3737 = vand.u32 %v177, 4294901760
    %3738 = vmatpush1.msra.mxu0 %v3737
    %3739 = vmatprep.subr.mxu0 0.0
    %v3740 = vand.u32 %v176, 4294901760
    %3741 = vmatpush1.msra.mxu0 %v3740
    %3742 = vmatprep.subr.mxu0 0.0
    %v3743 = vand.u32 %v175, 4294901760
    %3744 = vmatpush1.msra.mxu0 %v3743
    %3745 = vmatprep.subr.mxu0 0.0
    %v3746 = vand.u32 %v174, 4294901760
    %3747 = vmatpush1.msra.mxu0 %v3746
    %3748 = vmatprep.subr.mxu0 0.0
    %v3749 = vand.u32 %v173, 4294901760
    %3750 = vmatpush1.msra.mxu0 %v3749
    %3751 = vmatprep.subr.mxu0 0.0
    %v3752 = vand.u32 %v172, 4294901760
    %3753 = vmatpush1.msra.mxu0 %v3752
    %3754 = vmatprep.subr.mxu0 0.0
    %v3755 = vand.u32 %v171, 4294901760
    %3756 = vmatpush1.msra.mxu0 %v3755
    %3757 = vmatprep.subr.mxu0 0.0
    %v3758 = vand.u32 %v170, 4294901760
    %3759 = vmatpush1.msra.mxu0 %v3758
    %3760 = vmatprep.subr.mxu0 0.0
    %v3761 = vand.u32 %v169, 4294901760
    %3762 = vmatpush1.msra.mxu0 %v3761
    %3763 = vmatprep.subr.mxu0 0.0
    %v3764 = vand.u32 %v168, 4294901760
    %3765 = vmatpush1.msra.mxu0 %v3764
    %3766 = vmatprep.subr.mxu0 0.0
    %v3767 = vand.u32 %v167, 4294901760
    %3768 = vmatpush1.msra.mxu0 %v3767
    %3769 = vmatprep.subr.mxu0 0.0
    %v3770 = vand.u32 %v166, 4294901760
    %3771 = vmatpush1.msra.mxu0 %v3770
    %3772 = vmatprep.subr.mxu0 0.0
    %v3773 = vand.u32 %v165, 4294901760
    %3774 = vmatpush1.msra.mxu0 %v3773
    %3775 = vmatprep.subr.mxu0 0.0
    %v3776 = vand.u32 %v196, 4294901760
    %3777 = vmatpush2.msra.mxu0 %v3776
    %3778 = vmatprep.subr.mxu0 0.0
    %v3779 = vand.u32 %v195, 4294901760
    %3780 = vmatpush2.msra.mxu0 %v3779
    %3781 = vmatprep.subr.mxu0 0.0
    %v3782 = vand.u32 %v194, 4294901760
    %3783 = vmatpush2.msra.mxu0 %v3782
    %3784 = vmatprep.subr.mxu0 0.0
    %v3785 = vand.u32 %v193, 4294901760
    %3786 = vmatpush2.msra.mxu0 %v3785
    %3787 = vmatprep.subr.mxu0 0.0
    %v3788 = vand.u32 %v192, 4294901760
    %3789 = vmatpush2.msra.mxu0 %v3788
    %3790 = vmatprep.subr.mxu0 0.0
    %v3791 = vand.u32 %v191, 4294901760
    %3792 = vmatpush2.msra.mxu0 %v3791
    %3793 = vmatprep.subr.mxu0 0.0
    %v3794 = vand.u32 %v190, 4294901760
    %3795 = vmatpush2.msra.mxu0 %v3794
    %3796 = vmatprep.subr.mxu0 0.0
    %v3797 = vand.u32 %v189, 4294901760
    %3798 = vmatpush2.msra.mxu0 %v3797
    %3799 = vmatprep.subr.mxu0 0.0
    %v3800 = vand.u32 %v188, 4294901760
    %3801 = vmatpush2.msra.mxu0 %v3800
    %3802 = vmatprep.subr.mxu0 0.0
    %v3803 = vand.u32 %v187, 4294901760
    %3804 = vmatpush2.msra.mxu0 %v3803
    %3805 = vmatprep.subr.mxu0 0.0
    %v3806 = vand.u32 %v186, 4294901760
    %3807 = vmatpush2.msra.mxu0 %v3806
    %3808 = vmatprep.subr.mxu0 0.0
    %v3809 = vand.u32 %v185, 4294901760
    %3810 = vmatpush2.msra.mxu0 %v3809
    %3811 = vmatprep.subr.mxu0 0.0
    %v3812 = vand.u32 %v184, 4294901760
    %3813 = vmatpush2.msra.mxu0 %v3812
    %3814 = vmatprep.subr.mxu0 0.0
    %v3815 = vand.u32 %v183, 4294901760
    %3816 = vmatpush2.msra.mxu0 %v3815
    %3817 = vmatprep.subr.mxu0 0.0
    %v3818 = vand.u32 %v182, 4294901760
    %3819 = vmatpush2.msra.mxu0 %v3818
    %3820 = vmatprep.subr.mxu0 0.0
    %v3821 = vand.u32 %v181, 4294901760
    %3822 = vmatpush2.msra.mxu0 %v3821
    %v3823 = vand.u32 %v28, 4294901760
    %v3824 = vsub.f32 %v28, %v3823
    %v3825 = vand.u32 %v3824, 4294901760
    %3826 = vmatprep.mubr.f32.mxu0 %v3825
    %v3827 = vand.u32 %v27, 4294901760
    %v3828 = vsub.f32 %v27, %v3827
    %v3829 = vand.u32 %v3828, 4294901760
    %3830 = vmatmul.mubr.f32.gmra.mxu0 %v3829
    %v3831 = vpop.f32.mrf.mxu0
    %v3832 = vadd.f32 %v3715, %v3831
    %v3833 = vpop.f32.mrf.mxu0
    %v3834 = vand.u32 %v52, 4294901760
    %v3835 = vsub.f32 %v52, %v3834
    %v3836 = vand.u32 %v3835, 4294901760
    %3837 = vmatprep.mubr.f32.mxu0 %v3836
    %v3838 = vand.u32 %v51, 4294901760
    %v3839 = vsub.f32 %v51, %v3838
    %v3840 = vand.u32 %v3839, 4294901760
    %3841 = vmatmul.mubr.f32.gmra.mxu0 %v3840
    %v3842 = vpop.f32.mrf.mxu0
    %v3843 = vadd.f32 %v3724, %v3842
    %v3844 = vpop.f32.mrf.mxu0
    %3845 = vdwg.mxu0
    %3846 = vmatprep.subr.mxu0 0.0
    %v3847 = vand.u32 %v180, 4294901760
    %v3848 = vsub.f32 %v180, %v3847
    %v3849 = vand.u32 %v3848, 4294901760
    %3850 = vmatpush1.msra.mxu0 %v3849
    %3851 = vmatprep.subr.mxu0 0.0
    %v3852 = vand.u32 %v179, 4294901760
    %v3853 = vsub.f32 %v179, %v3852
    %v3854 = vand.u32 %v3853, 4294901760
    %3855 = vmatpush1.msra.mxu0 %v3854
    %3856 = vmatprep.subr.mxu0 0.0
    %v3857 = vand.u32 %v178, 4294901760
    %v3858 = vsub.f32 %v178, %v3857
    %v3859 = vand.u32 %v3858, 4294901760
    %3860 = vmatpush1.msra.mxu0 %v3859
    %3861 = vmatprep.subr.mxu0 0.0
    %v3862 = vand.u32 %v177, 4294901760
    %v3863 = vsub.f32 %v177, %v3862
    %v3864 = vand.u32 %v3863, 4294901760
    %3865 = vmatpush1.msra.mxu0 %v3864
    %3866 = vmatprep.subr.mxu0 0.0
    %v3867 = vand.u32 %v176, 4294901760
    %v3868 = vsub.f32 %v176, %v3867
    %v3869 = vand.u32 %v3868, 4294901760
    %3870 = vmatpush1.msra.mxu0 %v3869
    %3871 = vmatprep.subr.mxu0 0.0
    %v3872 = vand.u32 %v175, 4294901760
    %v3873 = vsub.f32 %v175, %v3872
    %v3874 = vand.u32 %v3873, 4294901760
    %3875 = vmatpush1.msra.mxu0 %v3874
    %3876 = vmatprep.subr.mxu0 0.0
    %v3877 = vand.u32 %v174, 4294901760
    %v3878 = vsub.f32 %v174, %v3877
    %v3879 = vand.u32 %v3878, 4294901760
    %3880 = vmatpush1.msra.mxu0 %v3879
    %3881 = vmatprep.subr.mxu0 0.0
    %v3882 = vand.u32 %v173, 4294901760
    %v3883 = vsub.f32 %v173, %v3882
    %v3884 = vand.u32 %v3883, 4294901760
    %3885 = vmatpush1.msra.mxu0 %v3884
    %3886 = vmatprep.subr.mxu0 0.0
    %v3887 = vand.u32 %v172, 4294901760
    %v3888 = vsub.f32 %v172, %v3887
    %v3889 = vand.u32 %v3888, 4294901760
    %3890 = vmatpush1.msra.mxu0 %v3889
    %3891 = vmatprep.subr.mxu0 0.0
    %v3892 = vand.u32 %v171, 4294901760
    %v3893 = vsub.f32 %v171, %v3892
    %v3894 = vand.u32 %v3893, 4294901760
    %3895 = vmatpush1.msra.mxu0 %v3894
    %3896 = vmatprep.subr.mxu0 0.0
    %v3897 = vand.u32 %v170, 4294901760
    %v3898 = vsub.f32 %v170, %v3897
    %v3899 = vand.u32 %v3898, 4294901760
    %3900 = vmatpush1.msra.mxu0 %v3899
    %3901 = vmatprep.subr.mxu0 0.0
    %v3902 = vand.u32 %v169, 4294901760
    %v3903 = vsub.f32 %v169, %v3902
    %v3904 = vand.u32 %v3903, 4294901760
    %3905 = vmatpush1.msra.mxu0 %v3904
    %3906 = vmatprep.subr.mxu0 0.0
    %v3907 = vand.u32 %v168, 4294901760
    %v3908 = vsub.f32 %v168, %v3907
    %v3909 = vand.u32 %v3908, 4294901760
    %3910 = vmatpush1.msra.mxu0 %v3909
    %3911 = vmatprep.subr.mxu0 0.0
    %v3912 = vand.u32 %v167, 4294901760
    %v3913 = vsub.f32 %v167, %v3912
    %v3914 = vand.u32 %v3913, 4294901760
    %3915 = vmatpush1.msra.mxu0 %v3914
    %3916 = vmatprep.subr.mxu0 0.0
    %v3917 = vand.u32 %v166, 4294901760
    %v3918 = vsub.f32 %v166, %v3917
    %v3919 = vand.u32 %v3918, 4294901760
    %3920 = vmatpush1.msra.mxu0 %v3919
    %3921 = vmatprep.subr.mxu0 0.0
    %v3922 = vand.u32 %v165, 4294901760
    %v3923 = vsub.f32 %v165, %v3922
    %v3924 = vand.u32 %v3923, 4294901760
    %3925 = vmatpush1.msra.mxu0 %v3924
    %3926 = vmatprep.subr.mxu0 0.0
    %v3927 = vand.u32 %v196, 4294901760
    %v3928 = vsub.f32 %v196, %v3927
    %v3929 = vand.u32 %v3928, 4294901760
    %3930 = vmatpush2.msra.mxu0 %v3929
    %3931 = vmatprep.subr.mxu0 0.0
    %v3932 = vand.u32 %v195, 4294901760
    %v3933 = vsub.f32 %v195, %v3932
    %v3934 = vand.u32 %v3933, 4294901760
    %3935 = vmatpush2.msra.mxu0 %v3934
    %3936 = vmatprep.subr.mxu0 0.0
    %v3937 = vand.u32 %v194, 4294901760
    %v3938 = vsub.f32 %v194, %v3937
    %v3939 = vand.u32 %v3938, 4294901760
    %3940 = vmatpush2.msra.mxu0 %v3939
    %3941 = vmatprep.subr.mxu0 0.0
    %v3942 = vand.u32 %v193, 4294901760
    %v3943 = vsub.f32 %v193, %v3942
    %v3944 = vand.u32 %v3943, 4294901760
    %3945 = vmatpush2.msra.mxu0 %v3944
    %3946 = vmatprep.subr.mxu0 0.0
    %v3947 = vand.u32 %v192, 4294901760
    %v3948 = vsub.f32 %v192, %v3947
    %v3949 = vand.u32 %v3948, 4294901760
    %3950 = vmatpush2.msra.mxu0 %v3949
    %3951 = vmatprep.subr.mxu0 0.0
    %v3952 = vand.u32 %v191, 4294901760
    %v3953 = vsub.f32 %v191, %v3952
    %v3954 = vand.u32 %v3953, 4294901760
    %3955 = vmatpush2.msra.mxu0 %v3954
    %3956 = vmatprep.subr.mxu0 0.0
    %v3957 = vand.u32 %v190, 4294901760
    %v3958 = vsub.f32 %v190, %v3957
    %v3959 = vand.u32 %v3958, 4294901760
    %3960 = vmatpush2.msra.mxu0 %v3959
    %3961 = vmatprep.subr.mxu0 0.0
    %v3962 = vand.u32 %v189, 4294901760
    %v3963 = vsub.f32 %v189, %v3962
    %v3964 = vand.u32 %v3963, 4294901760
    %3965 = vmatpush2.msra.mxu0 %v3964
    %3966 = vmatprep.subr.mxu0 0.0
    %v3967 = vand.u32 %v188, 4294901760
    %v3968 = vsub.f32 %v188, %v3967
    %v3969 = vand.u32 %v3968, 4294901760
    %3970 = vmatpush2.msra.mxu0 %v3969
    %3971 = vmatprep.subr.mxu0 0.0
    %v3972 = vand.u32 %v187, 4294901760
    %v3973 = vsub.f32 %v187, %v3972
    %v3974 = vand.u32 %v3973, 4294901760
    %3975 = vmatpush2.msra.mxu0 %v3974
    %3976 = vmatprep.subr.mxu0 0.0
    %v3977 = vand.u32 %v186, 4294901760
    %v3978 = vsub.f32 %v186, %v3977
    %v3979 = vand.u32 %v3978, 4294901760
    %3980 = vmatpush2.msra.mxu0 %v3979
    %3981 = vmatprep.subr.mxu0 0.0
    %v3982 = vand.u32 %v185, 4294901760
    %v3983 = vsub.f32 %v185, %v3982
    %v3984 = vand.u32 %v3983, 4294901760
    %3985 = vmatpush2.msra.mxu0 %v3984
    %3986 = vmatprep.subr.mxu0 0.0
    %v3987 = vand.u32 %v184, 4294901760
    %v3988 = vsub.f32 %v184, %v3987
    %v3989 = vand.u32 %v3988, 4294901760
    %3990 = vmatpush2.msra.mxu0 %v3989
    %3991 = vmatprep.subr.mxu0 0.0
    %v3992 = vand.u32 %v183, 4294901760
    %v3993 = vsub.f32 %v183, %v3992
    %v3994 = vand.u32 %v3993, 4294901760
    %3995 = vmatpush2.msra.mxu0 %v3994
    %3996 = vmatprep.subr.mxu0 0.0
    %v3997 = vand.u32 %v182, 4294901760
    %v3998 = vsub.f32 %v182, %v3997
    %v3999 = vand.u32 %v3998, 4294901760
    %4000 = vmatpush2.msra.mxu0 %v3999
    %4001 = vmatprep.subr.mxu0 0.0
    %v4002 = vand.u32 %v181, 4294901760
    %v4003 = vsub.f32 %v181, %v4002
    %v4004 = vand.u32 %v4003, 4294901760
    %4005 = vmatpush2.msra.mxu0 %v4004
    %v4006 = vand.u32 %v28, 4294901760
    %4007 = vmatprep.mubr.f32.mxu0 %v4006
    %v4008 = vand.u32 %v27, 4294901760
    %4009 = vmatmul.mubr.f32.gmra.mxu0 %v4008
    %v4010 = vpop.f32.mrf.mxu0
    %v4011 = vadd.f32 %v3832, %v4010
    %v4012 = vpop.f32.mrf.mxu0
    %v4013 = vand.u32 %v52, 4294901760
    %4014 = vmatprep.mubr.f32.mxu0 %v4013
    %v4015 = vand.u32 %v51, 4294901760
    %4016 = vmatmul.mubr.f32.gmra.mxu0 %v4015
    %v4017 = vpop.f32.mrf.mxu0
    %v4018 = vadd.f32 %v3843, %v4017
    %v4019 = vpop.f32.mrf.mxu0
    %4020 = vdwg.mxu0
    %4021 = vmatprep.subr.mxu0 0.0
    %v4022 = vand.u32 %v180, 4294901760
    %4023 = vmatpush1.msra.mxu0 %v4022
    %4024 = vmatprep.subr.mxu0 0.0
    %v4025 = vand.u32 %v179, 4294901760
    %4026 = vmatpush1.msra.mxu0 %v4025
    %4027 = vmatprep.subr.mxu0 0.0
    %v4028 = vand.u32 %v178, 4294901760
    %4029 = vmatpush1.msra.mxu0 %v4028
    %4030 = vmatprep.subr.mxu0 0.0
    %v4031 = vand.u32 %v177, 4294901760
    %4032 = vmatpush1.msra.mxu0 %v4031
    %4033 = vmatprep.subr.mxu0 0.0
    %v4034 = vand.u32 %v176, 4294901760
    %4035 = vmatpush1.msra.mxu0 %v4034
    %4036 = vmatprep.subr.mxu0 0.0
    %v4037 = vand.u32 %v175, 4294901760
    %4038 = vmatpush1.msra.mxu0 %v4037
    %4039 = vmatprep.subr.mxu0 0.0
    %v4040 = vand.u32 %v174, 4294901760
    %4041 = vmatpush1.msra.mxu0 %v4040
    %4042 = vmatprep.subr.mxu0 0.0
    %v4043 = vand.u32 %v173, 4294901760
    %4044 = vmatpush1.msra.mxu0 %v4043
    %4045 = vmatprep.subr.mxu0 0.0
    %v4046 = vand.u32 %v172, 4294901760
    %4047 = vmatpush1.msra.mxu0 %v4046
    %4048 = vmatprep.subr.mxu0 0.0
    %v4049 = vand.u32 %v171, 4294901760
    %4050 = vmatpush1.msra.mxu0 %v4049
    %4051 = vmatprep.subr.mxu0 0.0
    %v4052 = vand.u32 %v170, 4294901760
    %4053 = vmatpush1.msra.mxu0 %v4052
    %4054 = vmatprep.subr.mxu0 0.0
    %v4055 = vand.u32 %v169, 4294901760
    %4056 = vmatpush1.msra.mxu0 %v4055
    %4057 = vmatprep.subr.mxu0 0.0
    %v4058 = vand.u32 %v168, 4294901760
    %4059 = vmatpush1.msra.mxu0 %v4058
    %4060 = vmatprep.subr.mxu0 0.0
    %v4061 = vand.u32 %v167, 4294901760
    %4062 = vmatpush1.msra.mxu0 %v4061
    %4063 = vmatprep.subr.mxu0 0.0
    %v4064 = vand.u32 %v166, 4294901760
    %4065 = vmatpush1.msra.mxu0 %v4064
    %4066 = vmatprep.subr.mxu0 0.0
    %v4067 = vand.u32 %v165, 4294901760
    %4068 = vmatpush1.msra.mxu0 %v4067
    %4069 = vmatprep.subr.mxu0 0.0
    %v4070 = vand.u32 %v196, 4294901760
    %4071 = vmatpush2.msra.mxu0 %v4070
    %4072 = vmatprep.subr.mxu0 0.0
    %v4073 = vand.u32 %v195, 4294901760
    %4074 = vmatpush2.msra.mxu0 %v4073
    %4075 = vmatprep.subr.mxu0 0.0
    %v4076 = vand.u32 %v194, 4294901760
    %4077 = vmatpush2.msra.mxu0 %v4076
    %4078 = vmatprep.subr.mxu0 0.0
    %v4079 = vand.u32 %v193, 4294901760
    %4080 = vmatpush2.msra.mxu0 %v4079
    %4081 = vmatprep.subr.mxu0 0.0
    %v4082 = vand.u32 %v192, 4294901760
    %4083 = vmatpush2.msra.mxu0 %v4082
    %4084 = vmatprep.subr.mxu0 0.0
    %v4085 = vand.u32 %v191, 4294901760
    %4086 = vmatpush2.msra.mxu0 %v4085
    %4087 = vmatprep.subr.mxu0 0.0
    %v4088 = vand.u32 %v190, 4294901760
    %4089 = vmatpush2.msra.mxu0 %v4088
    %4090 = vmatprep.subr.mxu0 0.0
    %v4091 = vand.u32 %v189, 4294901760
    %4092 = vmatpush2.msra.mxu0 %v4091
    %4093 = vmatprep.subr.mxu0 0.0
    %v4094 = vand.u32 %v188, 4294901760
    %4095 = vmatpush2.msra.mxu0 %v4094
    %4096 = vmatprep.subr.mxu0 0.0
    %v4097 = vand.u32 %v187, 4294901760
    %4098 = vmatpush2.msra.mxu0 %v4097
    %4099 = vmatprep.subr.mxu0 0.0
    %v4100 = vand.u32 %v186, 4294901760
    %4101 = vmatpush2.msra.mxu0 %v4100
    %4102 = vmatprep.subr.mxu0 0.0
    %v4103 = vand.u32 %v185, 4294901760
    %4104 = vmatpush2.msra.mxu0 %v4103
    %4105 = vmatprep.subr.mxu0 0.0
    %v4106 = vand.u32 %v184, 4294901760
    %4107 = vmatpush2.msra.mxu0 %v4106
    %4108 = vmatprep.subr.mxu0 0.0
    %v4109 = vand.u32 %v183, 4294901760
    %4110 = vmatpush2.msra.mxu0 %v4109
    %4111 = vmatprep.subr.mxu0 0.0
    %v4112 = vand.u32 %v182, 4294901760
    %4113 = vmatpush2.msra.mxu0 %v4112
    %4114 = vmatprep.subr.mxu0 0.0
    %v4115 = vand.u32 %v181, 4294901760
    %4116 = vmatpush2.msra.mxu0 %v4115
    %v4117 = vand.u32 %v28, 4294901760
    %4118 = vmatprep.mubr.f32.mxu0 %v4117
    %v4119 = vand.u32 %v27, 4294901760
    %4120 = vmatmul.mubr.f32.gmra.mxu0 %v4119
    %v4121 = vpop.f32.mrf.mxu0
    %v4122 = vadd.f32 %v4011, %v4121
    %v4123 = vpop.f32.mrf.mxu0
    %v4124 = vand.u32 %v52, 4294901760
    %4125 = vmatprep.mubr.f32.mxu0 %v4124
    %v4126 = vand.u32 %v51, 4294901760
    %4127 = vmatmul.mubr.f32.gmra.mxu0 %v4126
    %v4128 = vpop.f32.mrf.mxu0
    %v4129 = vadd.f32 %v4018, %v4128
    %v4130 = vpop.f32.mrf.mxu0
    %4131 = vdwg.mxu0
    %4132 = vmatprep.subr.mxu0 0.0
    %v4133 = vand.u32 %v212, 4294901760
    %4134 = vmatpush1.msra.mxu0 %v4133
    %4135 = vmatprep.subr.mxu0 0.0
    %v4136 = vand.u32 %v211, 4294901760
    %4137 = vmatpush1.msra.mxu0 %v4136
    %4138 = vmatprep.subr.mxu0 0.0
    %v4139 = vand.u32 %v210, 4294901760
    %4140 = vmatpush1.msra.mxu0 %v4139
    %4141 = vmatprep.subr.mxu0 0.0
    %v4142 = vand.u32 %v209, 4294901760
    %4143 = vmatpush1.msra.mxu0 %v4142
    %4144 = vmatprep.subr.mxu0 0.0
    %v4145 = vand.u32 %v208, 4294901760
    %4146 = vmatpush1.msra.mxu0 %v4145
    %4147 = vmatprep.subr.mxu0 0.0
    %v4148 = vand.u32 %v207, 4294901760
    %4149 = vmatpush1.msra.mxu0 %v4148
    %4150 = vmatprep.subr.mxu0 0.0
    %v4151 = vand.u32 %v206, 4294901760
    %4152 = vmatpush1.msra.mxu0 %v4151
    %4153 = vmatprep.subr.mxu0 0.0
    %v4154 = vand.u32 %v205, 4294901760
    %4155 = vmatpush1.msra.mxu0 %v4154
    %4156 = vmatprep.subr.mxu0 0.0
    %v4157 = vand.u32 %v204, 4294901760
    %4158 = vmatpush1.msra.mxu0 %v4157
    %4159 = vmatprep.subr.mxu0 0.0
    %v4160 = vand.u32 %v203, 4294901760
    %4161 = vmatpush1.msra.mxu0 %v4160
    %4162 = vmatprep.subr.mxu0 0.0
    %v4163 = vand.u32 %v202, 4294901760
    %4164 = vmatpush1.msra.mxu0 %v4163
    %4165 = vmatprep.subr.mxu0 0.0
    %v4166 = vand.u32 %v201, 4294901760
    %4167 = vmatpush1.msra.mxu0 %v4166
    %4168 = vmatprep.subr.mxu0 0.0
    %v4169 = vand.u32 %v200, 4294901760
    %4170 = vmatpush1.msra.mxu0 %v4169
    %4171 = vmatprep.subr.mxu0 0.0
    %v4172 = vand.u32 %v199, 4294901760
    %4173 = vmatpush1.msra.mxu0 %v4172
    %4174 = vmatprep.subr.mxu0 0.0
    %v4175 = vand.u32 %v198, 4294901760
    %4176 = vmatpush1.msra.mxu0 %v4175
    %4177 = vmatprep.subr.mxu0 0.0
    %v4178 = vand.u32 %v197, 4294901760
    %4179 = vmatpush1.msra.mxu0 %v4178
    %4180 = vmatprep.subr.mxu0 0.0
    %v4181 = vand.u32 %v228, 4294901760
    %4182 = vmatpush2.msra.mxu0 %v4181
    %4183 = vmatprep.subr.mxu0 0.0
    %v4184 = vand.u32 %v227, 4294901760
    %4185 = vmatpush2.msra.mxu0 %v4184
    %4186 = vmatprep.subr.mxu0 0.0
    %v4187 = vand.u32 %v226, 4294901760
    %4188 = vmatpush2.msra.mxu0 %v4187
    %4189 = vmatprep.subr.mxu0 0.0
    %v4190 = vand.u32 %v225, 4294901760
    %4191 = vmatpush2.msra.mxu0 %v4190
    %4192 = vmatprep.subr.mxu0 0.0
    %v4193 = vand.u32 %v224, 4294901760
    %4194 = vmatpush2.msra.mxu0 %v4193
    %4195 = vmatprep.subr.mxu0 0.0
    %v4196 = vand.u32 %v223, 4294901760
    %4197 = vmatpush2.msra.mxu0 %v4196
    %4198 = vmatprep.subr.mxu0 0.0
    %v4199 = vand.u32 %v222, 4294901760
    %4200 = vmatpush2.msra.mxu0 %v4199
    %4201 = vmatprep.subr.mxu0 0.0
    %v4202 = vand.u32 %v221, 4294901760
    %4203 = vmatpush2.msra.mxu0 %v4202
    %4204 = vmatprep.subr.mxu0 0.0
    %v4205 = vand.u32 %v220, 4294901760
    %4206 = vmatpush2.msra.mxu0 %v4205
    %4207 = vmatprep.subr.mxu0 0.0
    %v4208 = vand.u32 %v219, 4294901760
    %4209 = vmatpush2.msra.mxu0 %v4208
    %4210 = vmatprep.subr.mxu0 0.0
    %v4211 = vand.u32 %v218, 4294901760
    %4212 = vmatpush2.msra.mxu0 %v4211
    %4213 = vmatprep.subr.mxu0 0.0
    %v4214 = vand.u32 %v217, 4294901760
    %4215 = vmatpush2.msra.mxu0 %v4214
    %4216 = vmatprep.subr.mxu0 0.0
    %v4217 = vand.u32 %v216, 4294901760
    %4218 = vmatpush2.msra.mxu0 %v4217
    %4219 = vmatprep.subr.mxu0 0.0
    %v4220 = vand.u32 %v215, 4294901760
    %4221 = vmatpush2.msra.mxu0 %v4220
    %4222 = vmatprep.subr.mxu0 0.0
    %v4223 = vand.u32 %v214, 4294901760
    %4224 = vmatpush2.msra.mxu0 %v4223
    %4225 = vmatprep.subr.mxu0 0.0
    %v4226 = vand.u32 %v213, 4294901760
    %4227 = vmatpush2.msra.mxu0 %v4226
    %v4228 = vand.u32 %v30, 4294901760
    %v4229 = vsub.f32 %v30, %v4228
    %v4230 = vand.u32 %v4229, 4294901760
    %v4231 = vsub.f32 %v4229, %v4230
    %v4232 = vand.u32 %v4231, 4294901760
    %4233 = vmatprep.mubr.f32.mxu0 %v4232
    %v4234 = vand.u32 %v29, 4294901760
    %v4235 = vsub.f32 %v29, %v4234
    %v4236 = vand.u32 %v4235, 4294901760
    %v4237 = vsub.f32 %v4235, %v4236
    %v4238 = vand.u32 %v4237, 4294901760
    %4239 = vmatmul.mubr.f32.gmra.mxu0 %v4238
    %v4240 = vpop.f32.mrf.mxu0
    %v4241 = vadd.f32 %v4122, %v4240
    %v4242 = vpop.f32.mrf.mxu0
    %v4243 = vand.u32 %v54, 4294901760
    %v4244 = vsub.f32 %v54, %v4243
    %v4245 = vand.u32 %v4244, 4294901760
    %v4246 = vsub.f32 %v4244, %v4245
    %v4247 = vand.u32 %v4246, 4294901760
    %4248 = vmatprep.mubr.f32.mxu0 %v4247
    %v4249 = vand.u32 %v53, 4294901760
    %v4250 = vsub.f32 %v53, %v4249
    %v4251 = vand.u32 %v4250, 4294901760
    %v4252 = vsub.f32 %v4250, %v4251
    %v4253 = vand.u32 %v4252, 4294901760
    %4254 = vmatmul.mubr.f32.gmra.mxu0 %v4253
    %v4255 = vpop.f32.mrf.mxu0
    %v4256 = vadd.f32 %v4129, %v4255
    %v4257 = vpop.f32.mrf.mxu0
    %4258 = vdwg.mxu0
    %4259 = vmatprep.subr.mxu0 0.0
    %v4260 = vand.u32 %v212, 4294901760
    %v4261 = vsub.f32 %v212, %v4260
    %v4262 = vand.u32 %v4261, 4294901760
    %v4263 = vsub.f32 %v4261, %v4262
    %v4264 = vand.u32 %v4263, 4294901760
    %4265 = vmatpush1.msra.mxu0 %v4264
    %4266 = vmatprep.subr.mxu0 0.0
    %v4267 = vand.u32 %v211, 4294901760
    %v4268 = vsub.f32 %v211, %v4267
    %v4269 = vand.u32 %v4268, 4294901760
    %v4270 = vsub.f32 %v4268, %v4269
    %v4271 = vand.u32 %v4270, 4294901760
    %4272 = vmatpush1.msra.mxu0 %v4271
    %4273 = vmatprep.subr.mxu0 0.0
    %v4274 = vand.u32 %v210, 4294901760
    %v4275 = vsub.f32 %v210, %v4274
    %v4276 = vand.u32 %v4275, 4294901760
    %v4277 = vsub.f32 %v4275, %v4276
    %v4278 = vand.u32 %v4277, 4294901760
    %4279 = vmatpush1.msra.mxu0 %v4278
    %4280 = vmatprep.subr.mxu0 0.0
    %v4281 = vand.u32 %v209, 4294901760
    %v4282 = vsub.f32 %v209, %v4281
    %v4283 = vand.u32 %v4282, 4294901760
    %v4284 = vsub.f32 %v4282, %v4283
    %v4285 = vand.u32 %v4284, 4294901760
    %4286 = vmatpush1.msra.mxu0 %v4285
    %4287 = vmatprep.subr.mxu0 0.0
    %v4288 = vand.u32 %v208, 4294901760
    %v4289 = vsub.f32 %v208, %v4288
    %v4290 = vand.u32 %v4289, 4294901760
    %v4291 = vsub.f32 %v4289, %v4290
    %v4292 = vand.u32 %v4291, 4294901760
    %4293 = vmatpush1.msra.mxu0 %v4292
    %4294 = vmatprep.subr.mxu0 0.0
    %v4295 = vand.u32 %v207, 4294901760
    %v4296 = vsub.f32 %v207, %v4295
    %v4297 = vand.u32 %v4296, 4294901760
    %v4298 = vsub.f32 %v4296, %v4297
    %v4299 = vand.u32 %v4298, 4294901760
    %4300 = vmatpush1.msra.mxu0 %v4299
    %4301 = vmatprep.subr.mxu0 0.0
    %v4302 = vand.u32 %v206, 4294901760
    %v4303 = vsub.f32 %v206, %v4302
    %v4304 = vand.u32 %v4303, 4294901760
    %v4305 = vsub.f32 %v4303, %v4304
    %v4306 = vand.u32 %v4305, 4294901760
    %4307 = vmatpush1.msra.mxu0 %v4306
    %4308 = vmatprep.subr.mxu0 0.0
    %v4309 = vand.u32 %v205, 4294901760
    %v4310 = vsub.f32 %v205, %v4309
    %v4311 = vand.u32 %v4310, 4294901760
    %v4312 = vsub.f32 %v4310, %v4311
    %v4313 = vand.u32 %v4312, 4294901760
    %4314 = vmatpush1.msra.mxu0 %v4313
    %4315 = vmatprep.subr.mxu0 0.0
    %v4316 = vand.u32 %v204, 4294901760
    %v4317 = vsub.f32 %v204, %v4316
    %v4318 = vand.u32 %v4317, 4294901760
    %v4319 = vsub.f32 %v4317, %v4318
    %v4320 = vand.u32 %v4319, 4294901760
    %4321 = vmatpush1.msra.mxu0 %v4320
    %4322 = vmatprep.subr.mxu0 0.0
    %v4323 = vand.u32 %v203, 4294901760
    %v4324 = vsub.f32 %v203, %v4323
    %v4325 = vand.u32 %v4324, 4294901760
    %v4326 = vsub.f32 %v4324, %v4325
    %v4327 = vand.u32 %v4326, 4294901760
    %4328 = vmatpush1.msra.mxu0 %v4327
    %4329 = vmatprep.subr.mxu0 0.0
    %v4330 = vand.u32 %v202, 4294901760
    %v4331 = vsub.f32 %v202, %v4330
    %v4332 = vand.u32 %v4331, 4294901760
    %v4333 = vsub.f32 %v4331, %v4332
    %v4334 = vand.u32 %v4333, 4294901760
    %4335 = vmatpush1.msra.mxu0 %v4334
    %4336 = vmatprep.subr.mxu0 0.0
    %v4337 = vand.u32 %v201, 4294901760
    %v4338 = vsub.f32 %v201, %v4337
    %v4339 = vand.u32 %v4338, 4294901760
    %v4340 = vsub.f32 %v4338, %v4339
    %v4341 = vand.u32 %v4340, 4294901760
    %4342 = vmatpush1.msra.mxu0 %v4341
    %4343 = vmatprep.subr.mxu0 0.0
    %v4344 = vand.u32 %v200, 4294901760
    %v4345 = vsub.f32 %v200, %v4344
    %v4346 = vand.u32 %v4345, 4294901760
    %v4347 = vsub.f32 %v4345, %v4346
    %v4348 = vand.u32 %v4347, 4294901760
    %4349 = vmatpush1.msra.mxu0 %v4348
    %4350 = vmatprep.subr.mxu0 0.0
    %v4351 = vand.u32 %v199, 4294901760
    %v4352 = vsub.f32 %v199, %v4351
    %v4353 = vand.u32 %v4352, 4294901760
    %v4354 = vsub.f32 %v4352, %v4353
    %v4355 = vand.u32 %v4354, 4294901760
    %4356 = vmatpush1.msra.mxu0 %v4355
    %4357 = vmatprep.subr.mxu0 0.0
    %v4358 = vand.u32 %v198, 4294901760
    %v4359 = vsub.f32 %v198, %v4358
    %v4360 = vand.u32 %v4359, 4294901760
    %v4361 = vsub.f32 %v4359, %v4360
    %v4362 = vand.u32 %v4361, 4294901760
    %4363 = vmatpush1.msra.mxu0 %v4362
    %4364 = vmatprep.subr.mxu0 0.0
    %v4365 = vand.u32 %v197, 4294901760
    %v4366 = vsub.f32 %v197, %v4365
    %v4367 = vand.u32 %v4366, 4294901760
    %v4368 = vsub.f32 %v4366, %v4367
    %v4369 = vand.u32 %v4368, 4294901760
    %4370 = vmatpush1.msra.mxu0 %v4369
    %4371 = vmatprep.subr.mxu0 0.0
    %v4372 = vand.u32 %v228, 4294901760
    %v4373 = vsub.f32 %v228, %v4372
    %v4374 = vand.u32 %v4373, 4294901760
    %v4375 = vsub.f32 %v4373, %v4374
    %v4376 = vand.u32 %v4375, 4294901760
    %4377 = vmatpush2.msra.mxu0 %v4376
    %4378 = vmatprep.subr.mxu0 0.0
    %v4379 = vand.u32 %v227, 4294901760
    %v4380 = vsub.f32 %v227, %v4379
    %v4381 = vand.u32 %v4380, 4294901760
    %v4382 = vsub.f32 %v4380, %v4381
    %v4383 = vand.u32 %v4382, 4294901760
    %4384 = vmatpush2.msra.mxu0 %v4383
    %4385 = vmatprep.subr.mxu0 0.0
    %v4386 = vand.u32 %v226, 4294901760
    %v4387 = vsub.f32 %v226, %v4386
    %v4388 = vand.u32 %v4387, 4294901760
    %v4389 = vsub.f32 %v4387, %v4388
    %v4390 = vand.u32 %v4389, 4294901760
    %4391 = vmatpush2.msra.mxu0 %v4390
    %4392 = vmatprep.subr.mxu0 0.0
    %v4393 = vand.u32 %v225, 4294901760
    %v4394 = vsub.f32 %v225, %v4393
    %v4395 = vand.u32 %v4394, 4294901760
    %v4396 = vsub.f32 %v4394, %v4395
    %v4397 = vand.u32 %v4396, 4294901760
    %4398 = vmatpush2.msra.mxu0 %v4397
    %4399 = vmatprep.subr.mxu0 0.0
    %v4400 = vand.u32 %v224, 4294901760
    %v4401 = vsub.f32 %v224, %v4400
    %v4402 = vand.u32 %v4401, 4294901760
    %v4403 = vsub.f32 %v4401, %v4402
    %v4404 = vand.u32 %v4403, 4294901760
    %4405 = vmatpush2.msra.mxu0 %v4404
    %4406 = vmatprep.subr.mxu0 0.0
    %v4407 = vand.u32 %v223, 4294901760
    %v4408 = vsub.f32 %v223, %v4407
    %v4409 = vand.u32 %v4408, 4294901760
    %v4410 = vsub.f32 %v4408, %v4409
    %v4411 = vand.u32 %v4410, 4294901760
    %4412 = vmatpush2.msra.mxu0 %v4411
    %4413 = vmatprep.subr.mxu0 0.0
    %v4414 = vand.u32 %v222, 4294901760
    %v4415 = vsub.f32 %v222, %v4414
    %v4416 = vand.u32 %v4415, 4294901760
    %v4417 = vsub.f32 %v4415, %v4416
    %v4418 = vand.u32 %v4417, 4294901760
    %4419 = vmatpush2.msra.mxu0 %v4418
    %4420 = vmatprep.subr.mxu0 0.0
    %v4421 = vand.u32 %v221, 4294901760
    %v4422 = vsub.f32 %v221, %v4421
    %v4423 = vand.u32 %v4422, 4294901760
    %v4424 = vsub.f32 %v4422, %v4423
    %v4425 = vand.u32 %v4424, 4294901760
    %4426 = vmatpush2.msra.mxu0 %v4425
    %4427 = vmatprep.subr.mxu0 0.0
    %v4428 = vand.u32 %v220, 4294901760
    %v4429 = vsub.f32 %v220, %v4428
    %v4430 = vand.u32 %v4429, 4294901760
    %v4431 = vsub.f32 %v4429, %v4430
    %v4432 = vand.u32 %v4431, 4294901760
    %4433 = vmatpush2.msra.mxu0 %v4432
    %4434 = vmatprep.subr.mxu0 0.0
    %v4435 = vand.u32 %v219, 4294901760
    %v4436 = vsub.f32 %v219, %v4435
    %v4437 = vand.u32 %v4436, 4294901760
    %v4438 = vsub.f32 %v4436, %v4437
    %v4439 = vand.u32 %v4438, 4294901760
    %4440 = vmatpush2.msra.mxu0 %v4439
    %4441 = vmatprep.subr.mxu0 0.0
    %v4442 = vand.u32 %v218, 4294901760
    %v4443 = vsub.f32 %v218, %v4442
    %v4444 = vand.u32 %v4443, 4294901760
    %v4445 = vsub.f32 %v4443, %v4444
    %v4446 = vand.u32 %v4445, 4294901760
    %4447 = vmatpush2.msra.mxu0 %v4446
    %4448 = vmatprep.subr.mxu0 0.0
    %v4449 = vand.u32 %v217, 4294901760
    %v4450 = vsub.f32 %v217, %v4449
    %v4451 = vand.u32 %v4450, 4294901760
    %v4452 = vsub.f32 %v4450, %v4451
    %v4453 = vand.u32 %v4452, 4294901760
    %4454 = vmatpush2.msra.mxu0 %v4453
    %4455 = vmatprep.subr.mxu0 0.0
    %v4456 = vand.u32 %v216, 4294901760
    %v4457 = vsub.f32 %v216, %v4456
    %v4458 = vand.u32 %v4457, 4294901760
    %v4459 = vsub.f32 %v4457, %v4458
    %v4460 = vand.u32 %v4459, 4294901760
    %4461 = vmatpush2.msra.mxu0 %v4460
    %4462 = vmatprep.subr.mxu0 0.0
    %v4463 = vand.u32 %v215, 4294901760
    %v4464 = vsub.f32 %v215, %v4463
    %v4465 = vand.u32 %v4464, 4294901760
    %v4466 = vsub.f32 %v4464, %v4465
    %v4467 = vand.u32 %v4466, 4294901760
    %4468 = vmatpush2.msra.mxu0 %v4467
    %4469 = vmatprep.subr.mxu0 0.0
    %v4470 = vand.u32 %v214, 4294901760
    %v4471 = vsub.f32 %v214, %v4470
    %v4472 = vand.u32 %v4471, 4294901760
    %v4473 = vsub.f32 %v4471, %v4472
    %v4474 = vand.u32 %v4473, 4294901760
    %4475 = vmatpush2.msra.mxu0 %v4474
    %4476 = vmatprep.subr.mxu0 0.0
    %v4477 = vand.u32 %v213, 4294901760
    %v4478 = vsub.f32 %v213, %v4477
    %v4479 = vand.u32 %v4478, 4294901760
    %v4480 = vsub.f32 %v4478, %v4479
    %v4481 = vand.u32 %v4480, 4294901760
    %4482 = vmatpush2.msra.mxu0 %v4481
    %v4483 = vand.u32 %v30, 4294901760
    %4484 = vmatprep.mubr.f32.mxu0 %v4483
    %v4485 = vand.u32 %v29, 4294901760
    %4486 = vmatmul.mubr.f32.gmra.mxu0 %v4485
    %v4487 = vpop.f32.mrf.mxu0
    %v4488 = vadd.f32 %v4241, %v4487
    %v4489 = vpop.f32.mrf.mxu0
    %v4490 = vand.u32 %v54, 4294901760
    %4491 = vmatprep.mubr.f32.mxu0 %v4490
    %v4492 = vand.u32 %v53, 4294901760
    %4493 = vmatmul.mubr.f32.gmra.mxu0 %v4492
    %v4494 = vpop.f32.mrf.mxu0
    %v4495 = vadd.f32 %v4256, %v4494
    %v4496 = vpop.f32.mrf.mxu0
    %4497 = vdwg.mxu0
    %4498 = vmatprep.subr.mxu0 0.0
    %v4499 = vand.u32 %v212, 4294901760
    %v4500 = vsub.f32 %v212, %v4499
    %4501 = vmatpush1.msra.mxu0 %v4500
    %4502 = vmatprep.subr.mxu0 0.0
    %v4503 = vand.u32 %v211, 4294901760
    %v4504 = vsub.f32 %v211, %v4503
    %4505 = vmatpush1.msra.mxu0 %v4504
    %4506 = vmatprep.subr.mxu0 0.0
    %v4507 = vand.u32 %v210, 4294901760
    %v4508 = vsub.f32 %v210, %v4507
    %4509 = vmatpush1.msra.mxu0 %v4508
    %4510 = vmatprep.subr.mxu0 0.0
    %v4511 = vand.u32 %v209, 4294901760
    %v4512 = vsub.f32 %v209, %v4511
    %4513 = vmatpush1.msra.mxu0 %v4512
    %4514 = vmatprep.subr.mxu0 0.0
    %v4515 = vand.u32 %v208, 4294901760
    %v4516 = vsub.f32 %v208, %v4515
    %4517 = vmatpush1.msra.mxu0 %v4516
    %4518 = vmatprep.subr.mxu0 0.0
    %v4519 = vand.u32 %v207, 4294901760
    %v4520 = vsub.f32 %v207, %v4519
    %4521 = vmatpush1.msra.mxu0 %v4520
    %4522 = vmatprep.subr.mxu0 0.0
    %v4523 = vand.u32 %v206, 4294901760
    %v4524 = vsub.f32 %v206, %v4523
    %4525 = vmatpush1.msra.mxu0 %v4524
    %4526 = vmatprep.subr.mxu0 0.0
    %v4527 = vand.u32 %v205, 4294901760
    %v4528 = vsub.f32 %v205, %v4527
    %4529 = vmatpush1.msra.mxu0 %v4528
    %4530 = vmatprep.subr.mxu0 0.0
    %v4531 = vand.u32 %v204, 4294901760
    %v4532 = vsub.f32 %v204, %v4531
    %4533 = vmatpush1.msra.mxu0 %v4532
    %4534 = vmatprep.subr.mxu0 0.0
    %v4535 = vand.u32 %v203, 4294901760
    %v4536 = vsub.f32 %v203, %v4535
    %4537 = vmatpush1.msra.mxu0 %v4536
    %4538 = vmatprep.subr.mxu0 0.0
    %v4539 = vand.u32 %v202, 4294901760
    %v4540 = vsub.f32 %v202, %v4539
    %4541 = vmatpush1.msra.mxu0 %v4540
    %4542 = vmatprep.subr.mxu0 0.0
    %v4543 = vand.u32 %v201, 4294901760
    %v4544 = vsub.f32 %v201, %v4543
    %4545 = vmatpush1.msra.mxu0 %v4544
    %4546 = vmatprep.subr.mxu0 0.0
    %v4547 = vand.u32 %v200, 4294901760
    %v4548 = vsub.f32 %v200, %v4547
    %4549 = vmatpush1.msra.mxu0 %v4548
    %4550 = vmatprep.subr.mxu0 0.0
    %v4551 = vand.u32 %v199, 4294901760
    %v4552 = vsub.f32 %v199, %v4551
    %4553 = vmatpush1.msra.mxu0 %v4552
    %4554 = vmatprep.subr.mxu0 0.0
    %v4555 = vand.u32 %v198, 4294901760
    %v4556 = vsub.f32 %v198, %v4555
    %4557 = vmatpush1.msra.mxu0 %v4556
    %4558 = vmatprep.subr.mxu0 0.0
    %v4559 = vand.u32 %v197, 4294901760
    %v4560 = vsub.f32 %v197, %v4559
    %4561 = vmatpush1.msra.mxu0 %v4560
    %4562 = vmatprep.subr.mxu0 0.0
    %v4563 = vand.u32 %v228, 4294901760
    %v4564 = vsub.f32 %v228, %v4563
    %4565 = vmatpush2.msra.mxu0 %v4564
    %4566 = vmatprep.subr.mxu0 0.0
    %v4567 = vand.u32 %v227, 4294901760
    %v4568 = vsub.f32 %v227, %v4567
    %4569 = vmatpush2.msra.mxu0 %v4568
    %4570 = vmatprep.subr.mxu0 0.0
    %v4571 = vand.u32 %v226, 4294901760
    %v4572 = vsub.f32 %v226, %v4571
    %4573 = vmatpush2.msra.mxu0 %v4572
    %4574 = vmatprep.subr.mxu0 0.0
    %v4575 = vand.u32 %v225, 4294901760
    %v4576 = vsub.f32 %v225, %v4575
    %4577 = vmatpush2.msra.mxu0 %v4576
    %4578 = vmatprep.subr.mxu0 0.0
    %v4579 = vand.u32 %v224, 4294901760
    %v4580 = vsub.f32 %v224, %v4579
    %4581 = vmatpush2.msra.mxu0 %v4580
    %4582 = vmatprep.subr.mxu0 0.0
    %v4583 = vand.u32 %v223, 4294901760
    %v4584 = vsub.f32 %v223, %v4583
    %4585 = vmatpush2.msra.mxu0 %v4584
    %4586 = vmatprep.subr.mxu0 0.0
    %v4587 = vand.u32 %v222, 4294901760
    %v4588 = vsub.f32 %v222, %v4587
    %4589 = vmatpush2.msra.mxu0 %v4588
    %4590 = vmatprep.subr.mxu0 0.0
    %v4591 = vand.u32 %v221, 4294901760
    %v4592 = vsub.f32 %v221, %v4591
    %4593 = vmatpush2.msra.mxu0 %v4592
    %4594 = vmatprep.subr.mxu0 0.0
    %v4595 = vand.u32 %v220, 4294901760
    %v4596 = vsub.f32 %v220, %v4595
    %4597 = vmatpush2.msra.mxu0 %v4596
    %4598 = vmatprep.subr.mxu0 0.0
    %v4599 = vand.u32 %v219, 4294901760
    %v4600 = vsub.f32 %v219, %v4599
    %4601 = vmatpush2.msra.mxu0 %v4600
    %4602 = vmatprep.subr.mxu0 0.0
    %v4603 = vand.u32 %v218, 4294901760
    %v4604 = vsub.f32 %v218, %v4603
    %4605 = vmatpush2.msra.mxu0 %v4604
    %4606 = vmatprep.subr.mxu0 0.0
    %v4607 = vand.u32 %v217, 4294901760
    %v4608 = vsub.f32 %v217, %v4607
    %4609 = vmatpush2.msra.mxu0 %v4608
    %4610 = vmatprep.subr.mxu0 0.0
    %v4611 = vand.u32 %v216, 4294901760
    %v4612 = vsub.f32 %v216, %v4611
    %4613 = vmatpush2.msra.mxu0 %v4612
    %4614 = vmatprep.subr.mxu0 0.0
    %v4615 = vand.u32 %v215, 4294901760
    %v4616 = vsub.f32 %v215, %v4615
    %4617 = vmatpush2.msra.mxu0 %v4616
    %4618 = vmatprep.subr.mxu0 0.0
    %v4619 = vand.u32 %v214, 4294901760
    %v4620 = vsub.f32 %v214, %v4619
    %4621 = vmatpush2.msra.mxu0 %v4620
    %4622 = vmatprep.subr.mxu0 0.0
    %v4623 = vand.u32 %v213, 4294901760
    %v4624 = vsub.f32 %v213, %v4623
    %4625 = vmatpush2.msra.mxu0 %v4624
    %v4626 = vand.u32 %v30, 4294901760
    %v4627 = vsub.f32 %v30, %v4626
    %4628 = vmatprep.mubr.f32.mxu0 %v4627
    %v4629 = vand.u32 %v29, 4294901760
    %v4630 = vsub.f32 %v29, %v4629
    %4631 = vmatmul.mubr.f32.gmra.mxu0 %v4630
    %v4632 = vpop.f32.mrf.mxu0
    %v4633 = vadd.f32 %v4488, %v4632
    %v4634 = vpop.f32.mrf.mxu0
    %v4635 = vand.u32 %v54, 4294901760
    %v4636 = vsub.f32 %v54, %v4635
    %4637 = vmatprep.mubr.f32.mxu0 %v4636
    %v4638 = vand.u32 %v53, 4294901760
    %v4639 = vsub.f32 %v53, %v4638
    %4640 = vmatmul.mubr.f32.gmra.mxu0 %v4639
    %v4641 = vpop.f32.mrf.mxu0
    %v4642 = vadd.f32 %v4495, %v4641
    %v4643 = vpop.f32.mrf.mxu0
    %4644 = vdwg.mxu0
    %4645 = vmatprep.subr.mxu0 0.0
    %v4646 = vand.u32 %v212, 4294901760
    %4647 = vmatpush1.msra.mxu0 %v4646
    %4648 = vmatprep.subr.mxu0 0.0
    %v4649 = vand.u32 %v211, 4294901760
    %4650 = vmatpush1.msra.mxu0 %v4649
    %4651 = vmatprep.subr.mxu0 0.0
    %v4652 = vand.u32 %v210, 4294901760
    %4653 = vmatpush1.msra.mxu0 %v4652
    %4654 = vmatprep.subr.mxu0 0.0
    %v4655 = vand.u32 %v209, 4294901760
    %4656 = vmatpush1.msra.mxu0 %v4655
    %4657 = vmatprep.subr.mxu0 0.0
    %v4658 = vand.u32 %v208, 4294901760
    %4659 = vmatpush1.msra.mxu0 %v4658
    %4660 = vmatprep.subr.mxu0 0.0
    %v4661 = vand.u32 %v207, 4294901760
    %4662 = vmatpush1.msra.mxu0 %v4661
    %4663 = vmatprep.subr.mxu0 0.0
    %v4664 = vand.u32 %v206, 4294901760
    %4665 = vmatpush1.msra.mxu0 %v4664
    %4666 = vmatprep.subr.mxu0 0.0
    %v4667 = vand.u32 %v205, 4294901760
    %4668 = vmatpush1.msra.mxu0 %v4667
    %4669 = vmatprep.subr.mxu0 0.0
    %v4670 = vand.u32 %v204, 4294901760
    %4671 = vmatpush1.msra.mxu0 %v4670
    %4672 = vmatprep.subr.mxu0 0.0
    %v4673 = vand.u32 %v203, 4294901760
    %4674 = vmatpush1.msra.mxu0 %v4673
    %4675 = vmatprep.subr.mxu0 0.0
    %v4676 = vand.u32 %v202, 4294901760
    %4677 = vmatpush1.msra.mxu0 %v4676
    %4678 = vmatprep.subr.mxu0 0.0
    %v4679 = vand.u32 %v201, 4294901760
    %4680 = vmatpush1.msra.mxu0 %v4679
    %4681 = vmatprep.subr.mxu0 0.0
    %v4682 = vand.u32 %v200, 4294901760
    %4683 = vmatpush1.msra.mxu0 %v4682
    %4684 = vmatprep.subr.mxu0 0.0
    %v4685 = vand.u32 %v199, 4294901760
    %4686 = vmatpush1.msra.mxu0 %v4685
    %4687 = vmatprep.subr.mxu0 0.0
    %v4688 = vand.u32 %v198, 4294901760
    %4689 = vmatpush1.msra.mxu0 %v4688
    %4690 = vmatprep.subr.mxu0 0.0
    %v4691 = vand.u32 %v197, 4294901760
    %4692 = vmatpush1.msra.mxu0 %v4691
    %4693 = vmatprep.subr.mxu0 0.0
    %v4694 = vand.u32 %v228, 4294901760
    %4695 = vmatpush2.msra.mxu0 %v4694
    %4696 = vmatprep.subr.mxu0 0.0
    %v4697 = vand.u32 %v227, 4294901760
    %4698 = vmatpush2.msra.mxu0 %v4697
    %4699 = vmatprep.subr.mxu0 0.0
    %v4700 = vand.u32 %v226, 4294901760
    %4701 = vmatpush2.msra.mxu0 %v4700
    %4702 = vmatprep.subr.mxu0 0.0
    %v4703 = vand.u32 %v225, 4294901760
    %4704 = vmatpush2.msra.mxu0 %v4703
    %4705 = vmatprep.subr.mxu0 0.0
    %v4706 = vand.u32 %v224, 4294901760
    %4707 = vmatpush2.msra.mxu0 %v4706
    %4708 = vmatprep.subr.mxu0 0.0
    %v4709 = vand.u32 %v223, 4294901760
    %4710 = vmatpush2.msra.mxu0 %v4709
    %4711 = vmatprep.subr.mxu0 0.0
    %v4712 = vand.u32 %v222, 4294901760
    %4713 = vmatpush2.msra.mxu0 %v4712
    %4714 = vmatprep.subr.mxu0 0.0
    %v4715 = vand.u32 %v221, 4294901760
    %4716 = vmatpush2.msra.mxu0 %v4715
    %4717 = vmatprep.subr.mxu0 0.0
    %v4718 = vand.u32 %v220, 4294901760
    %4719 = vmatpush2.msra.mxu0 %v4718
    %4720 = vmatprep.subr.mxu0 0.0
    %v4721 = vand.u32 %v219, 4294901760
    %4722 = vmatpush2.msra.mxu0 %v4721
    %4723 = vmatprep.subr.mxu0 0.0
    %v4724 = vand.u32 %v218, 4294901760
    %4725 = vmatpush2.msra.mxu0 %v4724
    %4726 = vmatprep.subr.mxu0 0.0
    %v4727 = vand.u32 %v217, 4294901760
    %4728 = vmatpush2.msra.mxu0 %v4727
    %4729 = vmatprep.subr.mxu0 0.0
    %v4730 = vand.u32 %v216, 4294901760
    %4731 = vmatpush2.msra.mxu0 %v4730
    %4732 = vmatprep.subr.mxu0 0.0
    %v4733 = vand.u32 %v215, 4294901760
    %4734 = vmatpush2.msra.mxu0 %v4733
    %4735 = vmatprep.subr.mxu0 0.0
    %v4736 = vand.u32 %v214, 4294901760
    %4737 = vmatpush2.msra.mxu0 %v4736
    %4738 = vmatprep.subr.mxu0 0.0
    %v4739 = vand.u32 %v213, 4294901760
    %4740 = vmatpush2.msra.mxu0 %v4739
    %v4741 = vand.u32 %v30, 4294901760
    %v4742 = vsub.f32 %v30, %v4741
    %v4743 = vand.u32 %v4742, 4294901760
    %4744 = vmatprep.mubr.f32.mxu0 %v4743
    %v4745 = vand.u32 %v29, 4294901760
    %v4746 = vsub.f32 %v29, %v4745
    %v4747 = vand.u32 %v4746, 4294901760
    %4748 = vmatmul.mubr.f32.gmra.mxu0 %v4747
    %v4749 = vpop.f32.mrf.mxu0
    %v4750 = vadd.f32 %v4633, %v4749
    %v4751 = vpop.f32.mrf.mxu0
    %v4752 = vand.u32 %v54, 4294901760
    %v4753 = vsub.f32 %v54, %v4752
    %v4754 = vand.u32 %v4753, 4294901760
    %4755 = vmatprep.mubr.f32.mxu0 %v4754
    %v4756 = vand.u32 %v53, 4294901760
    %v4757 = vsub.f32 %v53, %v4756
    %v4758 = vand.u32 %v4757, 4294901760
    %4759 = vmatmul.mubr.f32.gmra.mxu0 %v4758
    %v4760 = vpop.f32.mrf.mxu0
    %v4761 = vadd.f32 %v4642, %v4760
    %v4762 = vpop.f32.mrf.mxu0
    %4763 = vdwg.mxu0
    %4764 = vmatprep.subr.mxu0 0.0
    %v4765 = vand.u32 %v212, 4294901760
    %v4766 = vsub.f32 %v212, %v4765
    %v4767 = vand.u32 %v4766, 4294901760
    %4768 = vmatpush1.msra.mxu0 %v4767
    %4769 = vmatprep.subr.mxu0 0.0
    %v4770 = vand.u32 %v211, 4294901760
    %v4771 = vsub.f32 %v211, %v4770
    %v4772 = vand.u32 %v4771, 4294901760
    %4773 = vmatpush1.msra.mxu0 %v4772
    %4774 = vmatprep.subr.mxu0 0.0
    %v4775 = vand.u32 %v210, 4294901760
    %v4776 = vsub.f32 %v210, %v4775
    %v4777 = vand.u32 %v4776, 4294901760
    %4778 = vmatpush1.msra.mxu0 %v4777
    %4779 = vmatprep.subr.mxu0 0.0
    %v4780 = vand.u32 %v209, 4294901760
    %v4781 = vsub.f32 %v209, %v4780
    %v4782 = vand.u32 %v4781, 4294901760
    %4783 = vmatpush1.msra.mxu0 %v4782
    %4784 = vmatprep.subr.mxu0 0.0
    %v4785 = vand.u32 %v208, 4294901760
    %v4786 = vsub.f32 %v208, %v4785
    %v4787 = vand.u32 %v4786, 4294901760
    %4788 = vmatpush1.msra.mxu0 %v4787
    %4789 = vmatprep.subr.mxu0 0.0
    %v4790 = vand.u32 %v207, 4294901760
    %v4791 = vsub.f32 %v207, %v4790
    %v4792 = vand.u32 %v4791, 4294901760
    %4793 = vmatpush1.msra.mxu0 %v4792
    %4794 = vmatprep.subr.mxu0 0.0
    %v4795 = vand.u32 %v206, 4294901760
    %v4796 = vsub.f32 %v206, %v4795
    %v4797 = vand.u32 %v4796, 4294901760
    %4798 = vmatpush1.msra.mxu0 %v4797
    %4799 = vmatprep.subr.mxu0 0.0
    %v4800 = vand.u32 %v205, 4294901760
    %v4801 = vsub.f32 %v205, %v4800
    %v4802 = vand.u32 %v4801, 4294901760
    %4803 = vmatpush1.msra.mxu0 %v4802
    %4804 = vmatprep.subr.mxu0 0.0
    %v4805 = vand.u32 %v204, 4294901760
    %v4806 = vsub.f32 %v204, %v4805
    %v4807 = vand.u32 %v4806, 4294901760
    %4808 = vmatpush1.msra.mxu0 %v4807
    %4809 = vmatprep.subr.mxu0 0.0
    %v4810 = vand.u32 %v203, 4294901760
    %v4811 = vsub.f32 %v203, %v4810
    %v4812 = vand.u32 %v4811, 4294901760
    %4813 = vmatpush1.msra.mxu0 %v4812
    %4814 = vmatprep.subr.mxu0 0.0
    %v4815 = vand.u32 %v202, 4294901760
    %v4816 = vsub.f32 %v202, %v4815
    %v4817 = vand.u32 %v4816, 4294901760
    %4818 = vmatpush1.msra.mxu0 %v4817
    %4819 = vmatprep.subr.mxu0 0.0
    %v4820 = vand.u32 %v201, 4294901760
    %v4821 = vsub.f32 %v201, %v4820
    %v4822 = vand.u32 %v4821, 4294901760
    %4823 = vmatpush1.msra.mxu0 %v4822
    %4824 = vmatprep.subr.mxu0 0.0
    %v4825 = vand.u32 %v200, 4294901760
    %v4826 = vsub.f32 %v200, %v4825
    %v4827 = vand.u32 %v4826, 4294901760
    %4828 = vmatpush1.msra.mxu0 %v4827
    %4829 = vmatprep.subr.mxu0 0.0
    %v4830 = vand.u32 %v199, 4294901760
    %v4831 = vsub.f32 %v199, %v4830
    %v4832 = vand.u32 %v4831, 4294901760
    %4833 = vmatpush1.msra.mxu0 %v4832
    %4834 = vmatprep.subr.mxu0 0.0
    %v4835 = vand.u32 %v198, 4294901760
    %v4836 = vsub.f32 %v198, %v4835
    %v4837 = vand.u32 %v4836, 4294901760
    %4838 = vmatpush1.msra.mxu0 %v4837
    %4839 = vmatprep.subr.mxu0 0.0
    %v4840 = vand.u32 %v197, 4294901760
    %v4841 = vsub.f32 %v197, %v4840
    %v4842 = vand.u32 %v4841, 4294901760
    %4843 = vmatpush1.msra.mxu0 %v4842
    %4844 = vmatprep.subr.mxu0 0.0
    %v4845 = vand.u32 %v228, 4294901760
    %v4846 = vsub.f32 %v228, %v4845
    %v4847 = vand.u32 %v4846, 4294901760
    %4848 = vmatpush2.msra.mxu0 %v4847
    %4849 = vmatprep.subr.mxu0 0.0
    %v4850 = vand.u32 %v227, 4294901760
    %v4851 = vsub.f32 %v227, %v4850
    %v4852 = vand.u32 %v4851, 4294901760
    %4853 = vmatpush2.msra.mxu0 %v4852
    %4854 = vmatprep.subr.mxu0 0.0
    %v4855 = vand.u32 %v226, 4294901760
    %v4856 = vsub.f32 %v226, %v4855
    %v4857 = vand.u32 %v4856, 4294901760
    %4858 = vmatpush2.msra.mxu0 %v4857
    %4859 = vmatprep.subr.mxu0 0.0
    %v4860 = vand.u32 %v225, 4294901760
    %v4861 = vsub.f32 %v225, %v4860
    %v4862 = vand.u32 %v4861, 4294901760
    %4863 = vmatpush2.msra.mxu0 %v4862
    %4864 = vmatprep.subr.mxu0 0.0
    %v4865 = vand.u32 %v224, 4294901760
    %v4866 = vsub.f32 %v224, %v4865
    %v4867 = vand.u32 %v4866, 4294901760
    %4868 = vmatpush2.msra.mxu0 %v4867
    %4869 = vmatprep.subr.mxu0 0.0
    %v4870 = vand.u32 %v223, 4294901760
    %v4871 = vsub.f32 %v223, %v4870
    %v4872 = vand.u32 %v4871, 4294901760
    %4873 = vmatpush2.msra.mxu0 %v4872
    %4874 = vmatprep.subr.mxu0 0.0
    %v4875 = vand.u32 %v222, 4294901760
    %v4876 = vsub.f32 %v222, %v4875
    %v4877 = vand.u32 %v4876, 4294901760
    %4878 = vmatpush2.msra.mxu0 %v4877
    %4879 = vmatprep.subr.mxu0 0.0
    %v4880 = vand.u32 %v221, 4294901760
    %v4881 = vsub.f32 %v221, %v4880
    %v4882 = vand.u32 %v4881, 4294901760
    %4883 = vmatpush2.msra.mxu0 %v4882
    %4884 = vmatprep.subr.mxu0 0.0
    %v4885 = vand.u32 %v220, 4294901760
    %v4886 = vsub.f32 %v220, %v4885
    %v4887 = vand.u32 %v4886, 4294901760
    %4888 = vmatpush2.msra.mxu0 %v4887
    %4889 = vmatprep.subr.mxu0 0.0
    %v4890 = vand.u32 %v219, 4294901760
    %v4891 = vsub.f32 %v219, %v4890
    %v4892 = vand.u32 %v4891, 4294901760
    %4893 = vmatpush2.msra.mxu0 %v4892
    %4894 = vmatprep.subr.mxu0 0.0
    %v4895 = vand.u32 %v218, 4294901760
    %v4896 = vsub.f32 %v218, %v4895
    %v4897 = vand.u32 %v4896, 4294901760
    %4898 = vmatpush2.msra.mxu0 %v4897
    %4899 = vmatprep.subr.mxu0 0.0
    %v4900 = vand.u32 %v217, 4294901760
    %v4901 = vsub.f32 %v217, %v4900
    %v4902 = vand.u32 %v4901, 4294901760
    %4903 = vmatpush2.msra.mxu0 %v4902
    %4904 = vmatprep.subr.mxu0 0.0
    %v4905 = vand.u32 %v216, 4294901760
    %v4906 = vsub.f32 %v216, %v4905
    %v4907 = vand.u32 %v4906, 4294901760
    %4908 = vmatpush2.msra.mxu0 %v4907
    %4909 = vmatprep.subr.mxu0 0.0
    %v4910 = vand.u32 %v215, 4294901760
    %v4911 = vsub.f32 %v215, %v4910
    %v4912 = vand.u32 %v4911, 4294901760
    %4913 = vmatpush2.msra.mxu0 %v4912
    %4914 = vmatprep.subr.mxu0 0.0
    %v4915 = vand.u32 %v214, 4294901760
    %v4916 = vsub.f32 %v214, %v4915
    %v4917 = vand.u32 %v4916, 4294901760
    %4918 = vmatpush2.msra.mxu0 %v4917
    %4919 = vmatprep.subr.mxu0 0.0
    %v4920 = vand.u32 %v213, 4294901760
    %v4921 = vsub.f32 %v213, %v4920
    %v4922 = vand.u32 %v4921, 4294901760
    %4923 = vmatpush2.msra.mxu0 %v4922
    %v4924 = vand.u32 %v30, 4294901760
    %4925 = vmatprep.mubr.f32.mxu0 %v4924
    %v4926 = vand.u32 %v29, 4294901760
    %4927 = vmatmul.mubr.f32.gmra.mxu0 %v4926
    %v4928 = vpop.f32.mrf.mxu0
    %v4929 = vadd.f32 %v4750, %v4928
    %v4930 = vpop.f32.mrf.mxu0
    %v4931 = vand.u32 %v54, 4294901760
    %4932 = vmatprep.mubr.f32.mxu0 %v4931
    %v4933 = vand.u32 %v53, 4294901760
    %4934 = vmatmul.mubr.f32.gmra.mxu0 %v4933
    %v4935 = vpop.f32.mrf.mxu0
    %v4936 = vadd.f32 %v4761, %v4935
    %v4937 = vpop.f32.mrf.mxu0
    %4938 = vdwg.mxu0
    %4939 = vmatprep.subr.mxu0 0.0
    %v4940 = vand.u32 %v212, 4294901760
    %4941 = vmatpush1.msra.mxu0 %v4940
    %4942 = vmatprep.subr.mxu0 0.0
    %v4943 = vand.u32 %v211, 4294901760
    %4944 = vmatpush1.msra.mxu0 %v4943
    %4945 = vmatprep.subr.mxu0 0.0
    %v4946 = vand.u32 %v210, 4294901760
    %4947 = vmatpush1.msra.mxu0 %v4946
    %4948 = vmatprep.subr.mxu0 0.0
    %v4949 = vand.u32 %v209, 4294901760
    %4950 = vmatpush1.msra.mxu0 %v4949
    %4951 = vmatprep.subr.mxu0 0.0
    %v4952 = vand.u32 %v208, 4294901760
    %4953 = vmatpush1.msra.mxu0 %v4952
    %4954 = vmatprep.subr.mxu0 0.0
    %v4955 = vand.u32 %v207, 4294901760
    %4956 = vmatpush1.msra.mxu0 %v4955
    %4957 = vmatprep.subr.mxu0 0.0
    %v4958 = vand.u32 %v206, 4294901760
    %4959 = vmatpush1.msra.mxu0 %v4958
    %4960 = vmatprep.subr.mxu0 0.0
    %v4961 = vand.u32 %v205, 4294901760
    %4962 = vmatpush1.msra.mxu0 %v4961
    %4963 = vmatprep.subr.mxu0 0.0
    %v4964 = vand.u32 %v204, 4294901760
    %4965 = vmatpush1.msra.mxu0 %v4964
    %4966 = vmatprep.subr.mxu0 0.0
    %v4967 = vand.u32 %v203, 4294901760
    %4968 = vmatpush1.msra.mxu0 %v4967
    %4969 = vmatprep.subr.mxu0 0.0
    %v4970 = vand.u32 %v202, 4294901760
    %4971 = vmatpush1.msra.mxu0 %v4970
    %4972 = vmatprep.subr.mxu0 0.0
    %v4973 = vand.u32 %v201, 4294901760
    %4974 = vmatpush1.msra.mxu0 %v4973
    %4975 = vmatprep.subr.mxu0 0.0
    %v4976 = vand.u32 %v200, 4294901760
    %4977 = vmatpush1.msra.mxu0 %v4976
    %4978 = vmatprep.subr.mxu0 0.0
    %v4979 = vand.u32 %v199, 4294901760
    %4980 = vmatpush1.msra.mxu0 %v4979
    %4981 = vmatprep.subr.mxu0 0.0
    %v4982 = vand.u32 %v198, 4294901760
    %4983 = vmatpush1.msra.mxu0 %v4982
    %4984 = vmatprep.subr.mxu0 0.0
    %v4985 = vand.u32 %v197, 4294901760
    %4986 = vmatpush1.msra.mxu0 %v4985
    %4987 = vmatprep.subr.mxu0 0.0
    %v4988 = vand.u32 %v228, 4294901760
    %4989 = vmatpush2.msra.mxu0 %v4988
    %4990 = vmatprep.subr.mxu0 0.0
    %v4991 = vand.u32 %v227, 4294901760
    %4992 = vmatpush2.msra.mxu0 %v4991
    %4993 = vmatprep.subr.mxu0 0.0
    %v4994 = vand.u32 %v226, 4294901760
    %4995 = vmatpush2.msra.mxu0 %v4994
    %4996 = vmatprep.subr.mxu0 0.0
    %v4997 = vand.u32 %v225, 4294901760
    %4998 = vmatpush2.msra.mxu0 %v4997
    %4999 = vmatprep.subr.mxu0 0.0
    %v5000 = vand.u32 %v224, 4294901760
    %5001 = vmatpush2.msra.mxu0 %v5000
    %5002 = vmatprep.subr.mxu0 0.0
    %v5003 = vand.u32 %v223, 4294901760
    %5004 = vmatpush2.msra.mxu0 %v5003
    %5005 = vmatprep.subr.mxu0 0.0
    %v5006 = vand.u32 %v222, 4294901760
    %5007 = vmatpush2.msra.mxu0 %v5006
    %5008 = vmatprep.subr.mxu0 0.0
    %v5009 = vand.u32 %v221, 4294901760
    %5010 = vmatpush2.msra.mxu0 %v5009
    %5011 = vmatprep.subr.mxu0 0.0
    %v5012 = vand.u32 %v220, 4294901760
    %5013 = vmatpush2.msra.mxu0 %v5012
    %5014 = vmatprep.subr.mxu0 0.0
    %v5015 = vand.u32 %v219, 4294901760
    %5016 = vmatpush2.msra.mxu0 %v5015
    %5017 = vmatprep.subr.mxu0 0.0
    %v5018 = vand.u32 %v218, 4294901760
    %5019 = vmatpush2.msra.mxu0 %v5018
    %5020 = vmatprep.subr.mxu0 0.0
    %v5021 = vand.u32 %v217, 4294901760
    %5022 = vmatpush2.msra.mxu0 %v5021
    %5023 = vmatprep.subr.mxu0 0.0
    %v5024 = vand.u32 %v216, 4294901760
    %5025 = vmatpush2.msra.mxu0 %v5024
    %5026 = vmatprep.subr.mxu0 0.0
    %v5027 = vand.u32 %v215, 4294901760
    %5028 = vmatpush2.msra.mxu0 %v5027
    %5029 = vmatprep.subr.mxu0 0.0
    %v5030 = vand.u32 %v214, 4294901760
    %5031 = vmatpush2.msra.mxu0 %v5030
    %5032 = vmatprep.subr.mxu0 0.0
    %v5033 = vand.u32 %v213, 4294901760
    %5034 = vmatpush2.msra.mxu0 %v5033
    %v5035 = vand.u32 %v30, 4294901760
    %5036 = vmatprep.mubr.f32.mxu0 %v5035
    %v5037 = vand.u32 %v29, 4294901760
    %5038 = vmatmul.mubr.f32.gmra.mxu0 %v5037
    %v5039 = vpop.f32.mrf.mxu0
    %v5040 = vadd.f32 %v4929, %v5039
    %v5041 = vpop.f32.mrf.mxu0
    %v5042 = vand.u32 %v54, 4294901760
    %5043 = vmatprep.mubr.f32.mxu0 %v5042
    %v5044 = vand.u32 %v53, 4294901760
    %5045 = vmatmul.mubr.f32.gmra.mxu0 %v5044
    %v5046 = vpop.f32.mrf.mxu0
    %v5047 = vadd.f32 %v4936, %v5046
    %v5048 = vpop.f32.mrf.mxu0
    %5049 = vdwg.mxu0
    %5050 = vmatprep.subr.mxu0 0.0
    %v5051 = vand.u32 %v244, 4294901760
    %5052 = vmatpush1.msra.mxu0 %v5051
    %5053 = vmatprep.subr.mxu0 0.0
    %v5054 = vand.u32 %v243, 4294901760
    %5055 = vmatpush1.msra.mxu0 %v5054
    %5056 = vmatprep.subr.mxu0 0.0
    %v5057 = vand.u32 %v242, 4294901760
    %5058 = vmatpush1.msra.mxu0 %v5057
    %5059 = vmatprep.subr.mxu0 0.0
    %v5060 = vand.u32 %v241, 4294901760
    %5061 = vmatpush1.msra.mxu0 %v5060
    %5062 = vmatprep.subr.mxu0 0.0
    %v5063 = vand.u32 %v240, 4294901760
    %5064 = vmatpush1.msra.mxu0 %v5063
    %5065 = vmatprep.subr.mxu0 0.0
    %v5066 = vand.u32 %v239, 4294901760
    %5067 = vmatpush1.msra.mxu0 %v5066
    %5068 = vmatprep.subr.mxu0 0.0
    %v5069 = vand.u32 %v238, 4294901760
    %5070 = vmatpush1.msra.mxu0 %v5069
    %5071 = vmatprep.subr.mxu0 0.0
    %v5072 = vand.u32 %v237, 4294901760
    %5073 = vmatpush1.msra.mxu0 %v5072
    %5074 = vmatprep.subr.mxu0 0.0
    %v5075 = vand.u32 %v236, 4294901760
    %5076 = vmatpush1.msra.mxu0 %v5075
    %5077 = vmatprep.subr.mxu0 0.0
    %v5078 = vand.u32 %v235, 4294901760
    %5079 = vmatpush1.msra.mxu0 %v5078
    %5080 = vmatprep.subr.mxu0 0.0
    %v5081 = vand.u32 %v234, 4294901760
    %5082 = vmatpush1.msra.mxu0 %v5081
    %5083 = vmatprep.subr.mxu0 0.0
    %v5084 = vand.u32 %v233, 4294901760
    %5085 = vmatpush1.msra.mxu0 %v5084
    %5086 = vmatprep.subr.mxu0 0.0
    %v5087 = vand.u32 %v232, 4294901760
    %5088 = vmatpush1.msra.mxu0 %v5087
    %5089 = vmatprep.subr.mxu0 0.0
    %v5090 = vand.u32 %v231, 4294901760
    %5091 = vmatpush1.msra.mxu0 %v5090
    %5092 = vmatprep.subr.mxu0 0.0
    %v5093 = vand.u32 %v230, 4294901760
    %5094 = vmatpush1.msra.mxu0 %v5093
    %5095 = vmatprep.subr.mxu0 0.0
    %v5096 = vand.u32 %v229, 4294901760
    %5097 = vmatpush1.msra.mxu0 %v5096
    %5098 = vmatprep.subr.mxu0 0.0
    %v5099 = vand.u32 %v260, 4294901760
    %5100 = vmatpush2.msra.mxu0 %v5099
    %5101 = vmatprep.subr.mxu0 0.0
    %v5102 = vand.u32 %v259, 4294901760
    %5103 = vmatpush2.msra.mxu0 %v5102
    %5104 = vmatprep.subr.mxu0 0.0
    %v5105 = vand.u32 %v258, 4294901760
    %5106 = vmatpush2.msra.mxu0 %v5105
    %5107 = vmatprep.subr.mxu0 0.0
    %v5108 = vand.u32 %v257, 4294901760
    %5109 = vmatpush2.msra.mxu0 %v5108
    %5110 = vmatprep.subr.mxu0 0.0
    %v5111 = vand.u32 %v256, 4294901760
    %5112 = vmatpush2.msra.mxu0 %v5111
    %5113 = vmatprep.subr.mxu0 0.0
    %v5114 = vand.u32 %v255, 4294901760
    %5115 = vmatpush2.msra.mxu0 %v5114
    %5116 = vmatprep.subr.mxu0 0.0
    %v5117 = vand.u32 %v254, 4294901760
    %5118 = vmatpush2.msra.mxu0 %v5117
    %5119 = vmatprep.subr.mxu0 0.0
    %v5120 = vand.u32 %v253, 4294901760
    %5121 = vmatpush2.msra.mxu0 %v5120
    %5122 = vmatprep.subr.mxu0 0.0
    %v5123 = vand.u32 %v252, 4294901760
    %5124 = vmatpush2.msra.mxu0 %v5123
    %5125 = vmatprep.subr.mxu0 0.0
    %v5126 = vand.u32 %v251, 4294901760
    %5127 = vmatpush2.msra.mxu0 %v5126
    %5128 = vmatprep.subr.mxu0 0.0
    %v5129 = vand.u32 %v250, 4294901760
    %5130 = vmatpush2.msra.mxu0 %v5129
    %5131 = vmatprep.subr.mxu0 0.0
    %v5132 = vand.u32 %v249, 4294901760
    %5133 = vmatpush2.msra.mxu0 %v5132
    %5134 = vmatprep.subr.mxu0 0.0
    %v5135 = vand.u32 %v248, 4294901760
    %5136 = vmatpush2.msra.mxu0 %v5135
    %5137 = vmatprep.subr.mxu0 0.0
    %v5138 = vand.u32 %v247, 4294901760
    %5139 = vmatpush2.msra.mxu0 %v5138
    %5140 = vmatprep.subr.mxu0 0.0
    %v5141 = vand.u32 %v246, 4294901760
    %5142 = vmatpush2.msra.mxu0 %v5141
    %5143 = vmatprep.subr.mxu0 0.0
    %v5144 = vand.u32 %v245, 4294901760
    %5145 = vmatpush2.msra.mxu0 %v5144
    %v5146 = vand.u32 %v32, 4294901760
    %v5147 = vsub.f32 %v32, %v5146
    %v5148 = vand.u32 %v5147, 4294901760
    %v5149 = vsub.f32 %v5147, %v5148
    %v5150 = vand.u32 %v5149, 4294901760
    %5151 = vmatprep.mubr.f32.mxu0 %v5150
    %v5152 = vand.u32 %v31, 4294901760
    %v5153 = vsub.f32 %v31, %v5152
    %v5154 = vand.u32 %v5153, 4294901760
    %v5155 = vsub.f32 %v5153, %v5154
    %v5156 = vand.u32 %v5155, 4294901760
    %5157 = vmatmul.mubr.f32.gmra.mxu0 %v5156
    %v5158 = vpop.f32.mrf.mxu0
    %v5159 = vadd.f32 %v5040, %v5158
    %v5160 = vpop.f32.mrf.mxu0
    %v5161 = vand.u32 %v56, 4294901760
    %v5162 = vsub.f32 %v56, %v5161
    %v5163 = vand.u32 %v5162, 4294901760
    %v5164 = vsub.f32 %v5162, %v5163
    %v5165 = vand.u32 %v5164, 4294901760
    %5166 = vmatprep.mubr.f32.mxu0 %v5165
    %v5167 = vand.u32 %v55, 4294901760
    %v5168 = vsub.f32 %v55, %v5167
    %v5169 = vand.u32 %v5168, 4294901760
    %v5170 = vsub.f32 %v5168, %v5169
    %v5171 = vand.u32 %v5170, 4294901760
    %5172 = vmatmul.mubr.f32.gmra.mxu0 %v5171
    %v5173 = vpop.f32.mrf.mxu0
    %v5174 = vadd.f32 %v5047, %v5173
    %v5175 = vpop.f32.mrf.mxu0
    %5176 = vdwg.mxu0
    %5177 = vmatprep.subr.mxu0 0.0
    %v5178 = vand.u32 %v244, 4294901760
    %v5179 = vsub.f32 %v244, %v5178
    %v5180 = vand.u32 %v5179, 4294901760
    %v5181 = vsub.f32 %v5179, %v5180
    %v5182 = vand.u32 %v5181, 4294901760
    %5183 = vmatpush1.msra.mxu0 %v5182
    %5184 = vmatprep.subr.mxu0 0.0
    %v5185 = vand.u32 %v243, 4294901760
    %v5186 = vsub.f32 %v243, %v5185
    %v5187 = vand.u32 %v5186, 4294901760
    %v5188 = vsub.f32 %v5186, %v5187
    %v5189 = vand.u32 %v5188, 4294901760
    %5190 = vmatpush1.msra.mxu0 %v5189
    %5191 = vmatprep.subr.mxu0 0.0
    %v5192 = vand.u32 %v242, 4294901760
    %v5193 = vsub.f32 %v242, %v5192
    %v5194 = vand.u32 %v5193, 4294901760
    %v5195 = vsub.f32 %v5193, %v5194
    %v5196 = vand.u32 %v5195, 4294901760
    %5197 = vmatpush1.msra.mxu0 %v5196
    %5198 = vmatprep.subr.mxu0 0.0
    %v5199 = vand.u32 %v241, 4294901760
    %v5200 = vsub.f32 %v241, %v5199
    %v5201 = vand.u32 %v5200, 4294901760
    %v5202 = vsub.f32 %v5200, %v5201
    %v5203 = vand.u32 %v5202, 4294901760
    %5204 = vmatpush1.msra.mxu0 %v5203
    %5205 = vmatprep.subr.mxu0 0.0
    %v5206 = vand.u32 %v240, 4294901760
    %v5207 = vsub.f32 %v240, %v5206
    %v5208 = vand.u32 %v5207, 4294901760
    %v5209 = vsub.f32 %v5207, %v5208
    %v5210 = vand.u32 %v5209, 4294901760
    %5211 = vmatpush1.msra.mxu0 %v5210
    %5212 = vmatprep.subr.mxu0 0.0
    %v5213 = vand.u32 %v239, 4294901760
    %v5214 = vsub.f32 %v239, %v5213
    %v5215 = vand.u32 %v5214, 4294901760
    %v5216 = vsub.f32 %v5214, %v5215
    %v5217 = vand.u32 %v5216, 4294901760
    %5218 = vmatpush1.msra.mxu0 %v5217
    %5219 = vmatprep.subr.mxu0 0.0
    %v5220 = vand.u32 %v238, 4294901760
    %v5221 = vsub.f32 %v238, %v5220
    %v5222 = vand.u32 %v5221, 4294901760
    %v5223 = vsub.f32 %v5221, %v5222
    %v5224 = vand.u32 %v5223, 4294901760
    %5225 = vmatpush1.msra.mxu0 %v5224
    %5226 = vmatprep.subr.mxu0 0.0
    %v5227 = vand.u32 %v237, 4294901760
    %v5228 = vsub.f32 %v237, %v5227
    %v5229 = vand.u32 %v5228, 4294901760
    %v5230 = vsub.f32 %v5228, %v5229
    %v5231 = vand.u32 %v5230, 4294901760
    %5232 = vmatpush1.msra.mxu0 %v5231
    %5233 = vmatprep.subr.mxu0 0.0
    %v5234 = vand.u32 %v236, 4294901760
    %v5235 = vsub.f32 %v236, %v5234
    %v5236 = vand.u32 %v5235, 4294901760
    %v5237 = vsub.f32 %v5235, %v5236
    %v5238 = vand.u32 %v5237, 4294901760
    %5239 = vmatpush1.msra.mxu0 %v5238
    %5240 = vmatprep.subr.mxu0 0.0
    %v5241 = vand.u32 %v235, 4294901760
    %v5242 = vsub.f32 %v235, %v5241
    %v5243 = vand.u32 %v5242, 4294901760
    %v5244 = vsub.f32 %v5242, %v5243
    %v5245 = vand.u32 %v5244, 4294901760
    %5246 = vmatpush1.msra.mxu0 %v5245
    %5247 = vmatprep.subr.mxu0 0.0
    %v5248 = vand.u32 %v234, 4294901760
    %v5249 = vsub.f32 %v234, %v5248
    %v5250 = vand.u32 %v5249, 4294901760
    %v5251 = vsub.f32 %v5249, %v5250
    %v5252 = vand.u32 %v5251, 4294901760
    %5253 = vmatpush1.msra.mxu0 %v5252
    %5254 = vmatprep.subr.mxu0 0.0
    %v5255 = vand.u32 %v233, 4294901760
    %v5256 = vsub.f32 %v233, %v5255
    %v5257 = vand.u32 %v5256, 4294901760
    %v5258 = vsub.f32 %v5256, %v5257
    %v5259 = vand.u32 %v5258, 4294901760
    %5260 = vmatpush1.msra.mxu0 %v5259
    %5261 = vmatprep.subr.mxu0 0.0
    %v5262 = vand.u32 %v232, 4294901760
    %v5263 = vsub.f32 %v232, %v5262
    %v5264 = vand.u32 %v5263, 4294901760
    %v5265 = vsub.f32 %v5263, %v5264
    %v5266 = vand.u32 %v5265, 4294901760
    %5267 = vmatpush1.msra.mxu0 %v5266
    %5268 = vmatprep.subr.mxu0 0.0
    %v5269 = vand.u32 %v231, 4294901760
    %v5270 = vsub.f32 %v231, %v5269
    %v5271 = vand.u32 %v5270, 4294901760
    %v5272 = vsub.f32 %v5270, %v5271
    %v5273 = vand.u32 %v5272, 4294901760
    %5274 = vmatpush1.msra.mxu0 %v5273
    %5275 = vmatprep.subr.mxu0 0.0
    %v5276 = vand.u32 %v230, 4294901760
    %v5277 = vsub.f32 %v230, %v5276
    %v5278 = vand.u32 %v5277, 4294901760
    %v5279 = vsub.f32 %v5277, %v5278
    %v5280 = vand.u32 %v5279, 4294901760
    %5281 = vmatpush1.msra.mxu0 %v5280
    %5282 = vmatprep.subr.mxu0 0.0
    %v5283 = vand.u32 %v229, 4294901760
    %v5284 = vsub.f32 %v229, %v5283
    %v5285 = vand.u32 %v5284, 4294901760
    %v5286 = vsub.f32 %v5284, %v5285
    %v5287 = vand.u32 %v5286, 4294901760
    %5288 = vmatpush1.msra.mxu0 %v5287
    %5289 = vmatprep.subr.mxu0 0.0
    %v5290 = vand.u32 %v260, 4294901760
    %v5291 = vsub.f32 %v260, %v5290
    %v5292 = vand.u32 %v5291, 4294901760
    %v5293 = vsub.f32 %v5291, %v5292
    %v5294 = vand.u32 %v5293, 4294901760
    %5295 = vmatpush2.msra.mxu0 %v5294
    %5296 = vmatprep.subr.mxu0 0.0
    %v5297 = vand.u32 %v259, 4294901760
    %v5298 = vsub.f32 %v259, %v5297
    %v5299 = vand.u32 %v5298, 4294901760
    %v5300 = vsub.f32 %v5298, %v5299
    %v5301 = vand.u32 %v5300, 4294901760
    %5302 = vmatpush2.msra.mxu0 %v5301
    %5303 = vmatprep.subr.mxu0 0.0
    %v5304 = vand.u32 %v258, 4294901760
    %v5305 = vsub.f32 %v258, %v5304
    %v5306 = vand.u32 %v5305, 4294901760
    %v5307 = vsub.f32 %v5305, %v5306
    %v5308 = vand.u32 %v5307, 4294901760
    %5309 = vmatpush2.msra.mxu0 %v5308
    %5310 = vmatprep.subr.mxu0 0.0
    %v5311 = vand.u32 %v257, 4294901760
    %v5312 = vsub.f32 %v257, %v5311
    %v5313 = vand.u32 %v5312, 4294901760
    %v5314 = vsub.f32 %v5312, %v5313
    %v5315 = vand.u32 %v5314, 4294901760
    %5316 = vmatpush2.msra.mxu0 %v5315
    %5317 = vmatprep.subr.mxu0 0.0
    %v5318 = vand.u32 %v256, 4294901760
    %v5319 = vsub.f32 %v256, %v5318
    %v5320 = vand.u32 %v5319, 4294901760
    %v5321 = vsub.f32 %v5319, %v5320
    %v5322 = vand.u32 %v5321, 4294901760
    %5323 = vmatpush2.msra.mxu0 %v5322
    %5324 = vmatprep.subr.mxu0 0.0
    %v5325 = vand.u32 %v255, 4294901760
    %v5326 = vsub.f32 %v255, %v5325
    %v5327 = vand.u32 %v5326, 4294901760
    %v5328 = vsub.f32 %v5326, %v5327
    %v5329 = vand.u32 %v5328, 4294901760
    %5330 = vmatpush2.msra.mxu0 %v5329
    %5331 = vmatprep.subr.mxu0 0.0
    %v5332 = vand.u32 %v254, 4294901760
    %v5333 = vsub.f32 %v254, %v5332
    %v5334 = vand.u32 %v5333, 4294901760
    %v5335 = vsub.f32 %v5333, %v5334
    %v5336 = vand.u32 %v5335, 4294901760
    %5337 = vmatpush2.msra.mxu0 %v5336
    %5338 = vmatprep.subr.mxu0 0.0
    %v5339 = vand.u32 %v253, 4294901760
    %v5340 = vsub.f32 %v253, %v5339
    %v5341 = vand.u32 %v5340, 4294901760
    %v5342 = vsub.f32 %v5340, %v5341
    %v5343 = vand.u32 %v5342, 4294901760
    %5344 = vmatpush2.msra.mxu0 %v5343
    %5345 = vmatprep.subr.mxu0 0.0
    %v5346 = vand.u32 %v252, 4294901760
    %v5347 = vsub.f32 %v252, %v5346
    %v5348 = vand.u32 %v5347, 4294901760
    %v5349 = vsub.f32 %v5347, %v5348
    %v5350 = vand.u32 %v5349, 4294901760
    %5351 = vmatpush2.msra.mxu0 %v5350
    %5352 = vmatprep.subr.mxu0 0.0
    %v5353 = vand.u32 %v251, 4294901760
    %v5354 = vsub.f32 %v251, %v5353
    %v5355 = vand.u32 %v5354, 4294901760
    %v5356 = vsub.f32 %v5354, %v5355
    %v5357 = vand.u32 %v5356, 4294901760
    %5358 = vmatpush2.msra.mxu0 %v5357
    %5359 = vmatprep.subr.mxu0 0.0
    %v5360 = vand.u32 %v250, 4294901760
    %v5361 = vsub.f32 %v250, %v5360
    %v5362 = vand.u32 %v5361, 4294901760
    %v5363 = vsub.f32 %v5361, %v5362
    %v5364 = vand.u32 %v5363, 4294901760
    %5365 = vmatpush2.msra.mxu0 %v5364
    %5366 = vmatprep.subr.mxu0 0.0
    %v5367 = vand.u32 %v249, 4294901760
    %v5368 = vsub.f32 %v249, %v5367
    %v5369 = vand.u32 %v5368, 4294901760
    %v5370 = vsub.f32 %v5368, %v5369
    %v5371 = vand.u32 %v5370, 4294901760
    %5372 = vmatpush2.msra.mxu0 %v5371
    %5373 = vmatprep.subr.mxu0 0.0
    %v5374 = vand.u32 %v248, 4294901760
    %v5375 = vsub.f32 %v248, %v5374
    %v5376 = vand.u32 %v5375, 4294901760
    %v5377 = vsub.f32 %v5375, %v5376
    %v5378 = vand.u32 %v5377, 4294901760
    %5379 = vmatpush2.msra.mxu0 %v5378
    %5380 = vmatprep.subr.mxu0 0.0
    %v5381 = vand.u32 %v247, 4294901760
    %v5382 = vsub.f32 %v247, %v5381
    %v5383 = vand.u32 %v5382, 4294901760
    %v5384 = vsub.f32 %v5382, %v5383
    %v5385 = vand.u32 %v5384, 4294901760
    %5386 = vmatpush2.msra.mxu0 %v5385
    %5387 = vmatprep.subr.mxu0 0.0
    %v5388 = vand.u32 %v246, 4294901760
    %v5389 = vsub.f32 %v246, %v5388
    %v5390 = vand.u32 %v5389, 4294901760
    %v5391 = vsub.f32 %v5389, %v5390
    %v5392 = vand.u32 %v5391, 4294901760
    %5393 = vmatpush2.msra.mxu0 %v5392
    %5394 = vmatprep.subr.mxu0 0.0
    %v5395 = vand.u32 %v245, 4294901760
    %v5396 = vsub.f32 %v245, %v5395
    %v5397 = vand.u32 %v5396, 4294901760
    %v5398 = vsub.f32 %v5396, %v5397
    %v5399 = vand.u32 %v5398, 4294901760
    %5400 = vmatpush2.msra.mxu0 %v5399
    %v5401 = vand.u32 %v32, 4294901760
    %5402 = vmatprep.mubr.f32.mxu0 %v5401
    %v5403 = vand.u32 %v31, 4294901760
    %5404 = vmatmul.mubr.f32.gmra.mxu0 %v5403
    %v5405 = vpop.f32.mrf.mxu0
    %v5406 = vadd.f32 %v5159, %v5405
    %v5407 = vpop.f32.mrf.mxu0
    %v5408 = vand.u32 %v56, 4294901760
    %5409 = vmatprep.mubr.f32.mxu0 %v5408
    %v5410 = vand.u32 %v55, 4294901760
    %5411 = vmatmul.mubr.f32.gmra.mxu0 %v5410
    %v5412 = vpop.f32.mrf.mxu0
    %v5413 = vadd.f32 %v5174, %v5412
    %v5414 = vpop.f32.mrf.mxu0
    %5415 = vdwg.mxu0
    %5416 = vmatprep.subr.mxu0 0.0
    %v5417 = vand.u32 %v244, 4294901760
    %v5418 = vsub.f32 %v244, %v5417
    %5419 = vmatpush1.msra.mxu0 %v5418
    %5420 = vmatprep.subr.mxu0 0.0
    %v5421 = vand.u32 %v243, 4294901760
    %v5422 = vsub.f32 %v243, %v5421
    %5423 = vmatpush1.msra.mxu0 %v5422
    %5424 = vmatprep.subr.mxu0 0.0
    %v5425 = vand.u32 %v242, 4294901760
    %v5426 = vsub.f32 %v242, %v5425
    %5427 = vmatpush1.msra.mxu0 %v5426
    %5428 = vmatprep.subr.mxu0 0.0
    %v5429 = vand.u32 %v241, 4294901760
    %v5430 = vsub.f32 %v241, %v5429
    %5431 = vmatpush1.msra.mxu0 %v5430
    %5432 = vmatprep.subr.mxu0 0.0
    %v5433 = vand.u32 %v240, 4294901760
    %v5434 = vsub.f32 %v240, %v5433
    %5435 = vmatpush1.msra.mxu0 %v5434
    %5436 = vmatprep.subr.mxu0 0.0
    %v5437 = vand.u32 %v239, 4294901760
    %v5438 = vsub.f32 %v239, %v5437
    %5439 = vmatpush1.msra.mxu0 %v5438
    %5440 = vmatprep.subr.mxu0 0.0
    %v5441 = vand.u32 %v238, 4294901760
    %v5442 = vsub.f32 %v238, %v5441
    %5443 = vmatpush1.msra.mxu0 %v5442
    %5444 = vmatprep.subr.mxu0 0.0
    %v5445 = vand.u32 %v237, 4294901760
    %v5446 = vsub.f32 %v237, %v5445
    %5447 = vmatpush1.msra.mxu0 %v5446
    %5448 = vmatprep.subr.mxu0 0.0
    %v5449 = vand.u32 %v236, 4294901760
    %v5450 = vsub.f32 %v236, %v5449
    %5451 = vmatpush1.msra.mxu0 %v5450
    %5452 = vmatprep.subr.mxu0 0.0
    %v5453 = vand.u32 %v235, 4294901760
    %v5454 = vsub.f32 %v235, %v5453
    %5455 = vmatpush1.msra.mxu0 %v5454
    %5456 = vmatprep.subr.mxu0 0.0
    %v5457 = vand.u32 %v234, 4294901760
    %v5458 = vsub.f32 %v234, %v5457
    %5459 = vmatpush1.msra.mxu0 %v5458
    %5460 = vmatprep.subr.mxu0 0.0
    %v5461 = vand.u32 %v233, 4294901760
    %v5462 = vsub.f32 %v233, %v5461
    %5463 = vmatpush1.msra.mxu0 %v5462
    %5464 = vmatprep.subr.mxu0 0.0
    %v5465 = vand.u32 %v232, 4294901760
    %v5466 = vsub.f32 %v232, %v5465
    %5467 = vmatpush1.msra.mxu0 %v5466
    %5468 = vmatprep.subr.mxu0 0.0
    %v5469 = vand.u32 %v231, 4294901760
    %v5470 = vsub.f32 %v231, %v5469
    %5471 = vmatpush1.msra.mxu0 %v5470
    %5472 = vmatprep.subr.mxu0 0.0
    %v5473 = vand.u32 %v230, 4294901760
    %v5474 = vsub.f32 %v230, %v5473
    %5475 = vmatpush1.msra.mxu0 %v5474
    %5476 = vmatprep.subr.mxu0 0.0
    %v5477 = vand.u32 %v229, 4294901760
    %v5478 = vsub.f32 %v229, %v5477
    %5479 = vmatpush1.msra.mxu0 %v5478
    %5480 = vmatprep.subr.mxu0 0.0
    %v5481 = vand.u32 %v260, 4294901760
    %v5482 = vsub.f32 %v260, %v5481
    %5483 = vmatpush2.msra.mxu0 %v5482
    %5484 = vmatprep.subr.mxu0 0.0
    %v5485 = vand.u32 %v259, 4294901760
    %v5486 = vsub.f32 %v259, %v5485
    %5487 = vmatpush2.msra.mxu0 %v5486
    %5488 = vmatprep.subr.mxu0 0.0
    %v5489 = vand.u32 %v258, 4294901760
    %v5490 = vsub.f32 %v258, %v5489
    %5491 = vmatpush2.msra.mxu0 %v5490
    %5492 = vmatprep.subr.mxu0 0.0
    %v5493 = vand.u32 %v257, 4294901760
    %v5494 = vsub.f32 %v257, %v5493
    %5495 = vmatpush2.msra.mxu0 %v5494
    %5496 = vmatprep.subr.mxu0 0.0
    %v5497 = vand.u32 %v256, 4294901760
    %v5498 = vsub.f32 %v256, %v5497
    %5499 = vmatpush2.msra.mxu0 %v5498
    %5500 = vmatprep.subr.mxu0 0.0
    %v5501 = vand.u32 %v255, 4294901760
    %v5502 = vsub.f32 %v255, %v5501
    %5503 = vmatpush2.msra.mxu0 %v5502
    %5504 = vmatprep.subr.mxu0 0.0
    %v5505 = vand.u32 %v254, 4294901760
    %v5506 = vsub.f32 %v254, %v5505
    %5507 = vmatpush2.msra.mxu0 %v5506
    %5508 = vmatprep.subr.mxu0 0.0
    %v5509 = vand.u32 %v253, 4294901760
    %v5510 = vsub.f32 %v253, %v5509
    %5511 = vmatpush2.msra.mxu0 %v5510
    %5512 = vmatprep.subr.mxu0 0.0
    %v5513 = vand.u32 %v252, 4294901760
    %v5514 = vsub.f32 %v252, %v5513
    %5515 = vmatpush2.msra.mxu0 %v5514
    %5516 = vmatprep.subr.mxu0 0.0
    %v5517 = vand.u32 %v251, 4294901760
    %v5518 = vsub.f32 %v251, %v5517
    %5519 = vmatpush2.msra.mxu0 %v5518
    %5520 = vmatprep.subr.mxu0 0.0
    %v5521 = vand.u32 %v250, 4294901760
    %v5522 = vsub.f32 %v250, %v5521
    %5523 = vmatpush2.msra.mxu0 %v5522
    %5524 = vmatprep.subr.mxu0 0.0
    %v5525 = vand.u32 %v249, 4294901760
    %v5526 = vsub.f32 %v249, %v5525
    %5527 = vmatpush2.msra.mxu0 %v5526
    %5528 = vmatprep.subr.mxu0 0.0
    %v5529 = vand.u32 %v248, 4294901760
    %v5530 = vsub.f32 %v248, %v5529
    %5531 = vmatpush2.msra.mxu0 %v5530
    %5532 = vmatprep.subr.mxu0 0.0
    %v5533 = vand.u32 %v247, 4294901760
    %v5534 = vsub.f32 %v247, %v5533
    %5535 = vmatpush2.msra.mxu0 %v5534
    %5536 = vmatprep.subr.mxu0 0.0
    %v5537 = vand.u32 %v246, 4294901760
    %v5538 = vsub.f32 %v246, %v5537
    %5539 = vmatpush2.msra.mxu0 %v5538
    %5540 = vmatprep.subr.mxu0 0.0
    %v5541 = vand.u32 %v245, 4294901760
    %v5542 = vsub.f32 %v245, %v5541
    %5543 = vmatpush2.msra.mxu0 %v5542
    %v5544 = vand.u32 %v32, 4294901760
    %v5545 = vsub.f32 %v32, %v5544
    %5546 = vmatprep.mubr.f32.mxu0 %v5545
    %v5547 = vand.u32 %v31, 4294901760
    %v5548 = vsub.f32 %v31, %v5547
    %5549 = vmatmul.mubr.f32.gmra.mxu0 %v5548
    %v5550 = vpop.f32.mrf.mxu0
    %v5551 = vadd.f32 %v5406, %v5550
    %v5552 = vpop.f32.mrf.mxu0
    %v5553 = vand.u32 %v56, 4294901760
    %v5554 = vsub.f32 %v56, %v5553
    %5555 = vmatprep.mubr.f32.mxu0 %v5554
    %v5556 = vand.u32 %v55, 4294901760
    %v5557 = vsub.f32 %v55, %v5556
    %5558 = vmatmul.mubr.f32.gmra.mxu0 %v5557
    %v5559 = vpop.f32.mrf.mxu0
    %v5560 = vadd.f32 %v5413, %v5559
    %v5561 = vpop.f32.mrf.mxu0
    %5562 = vdwg.mxu0
    %5563 = vmatprep.subr.mxu0 0.0
    %v5564 = vand.u32 %v244, 4294901760
    %5565 = vmatpush1.msra.mxu0 %v5564
    %5566 = vmatprep.subr.mxu0 0.0
    %v5567 = vand.u32 %v243, 4294901760
    %5568 = vmatpush1.msra.mxu0 %v5567
    %5569 = vmatprep.subr.mxu0 0.0
    %v5570 = vand.u32 %v242, 4294901760
    %5571 = vmatpush1.msra.mxu0 %v5570
    %5572 = vmatprep.subr.mxu0 0.0
    %v5573 = vand.u32 %v241, 4294901760
    %5574 = vmatpush1.msra.mxu0 %v5573
    %5575 = vmatprep.subr.mxu0 0.0
    %v5576 = vand.u32 %v240, 4294901760
    %5577 = vmatpush1.msra.mxu0 %v5576
    %5578 = vmatprep.subr.mxu0 0.0
    %v5579 = vand.u32 %v239, 4294901760
    %5580 = vmatpush1.msra.mxu0 %v5579
    %5581 = vmatprep.subr.mxu0 0.0
    %v5582 = vand.u32 %v238, 4294901760
    %5583 = vmatpush1.msra.mxu0 %v5582
    %5584 = vmatprep.subr.mxu0 0.0
    %v5585 = vand.u32 %v237, 4294901760
    %5586 = vmatpush1.msra.mxu0 %v5585
    %5587 = vmatprep.subr.mxu0 0.0
    %v5588 = vand.u32 %v236, 4294901760
    %5589 = vmatpush1.msra.mxu0 %v5588
    %5590 = vmatprep.subr.mxu0 0.0
    %v5591 = vand.u32 %v235, 4294901760
    %5592 = vmatpush1.msra.mxu0 %v5591
    %5593 = vmatprep.subr.mxu0 0.0
    %v5594 = vand.u32 %v234, 4294901760
    %5595 = vmatpush1.msra.mxu0 %v5594
    %5596 = vmatprep.subr.mxu0 0.0
    %v5597 = vand.u32 %v233, 4294901760
    %5598 = vmatpush1.msra.mxu0 %v5597
    %5599 = vmatprep.subr.mxu0 0.0
    %v5600 = vand.u32 %v232, 4294901760
    %5601 = vmatpush1.msra.mxu0 %v5600
    %5602 = vmatprep.subr.mxu0 0.0
    %v5603 = vand.u32 %v231, 4294901760
    %5604 = vmatpush1.msra.mxu0 %v5603
    %5605 = vmatprep.subr.mxu0 0.0
    %v5606 = vand.u32 %v230, 4294901760
    %5607 = vmatpush1.msra.mxu0 %v5606
    %5608 = vmatprep.subr.mxu0 0.0
    %v5609 = vand.u32 %v229, 4294901760
    %5610 = vmatpush1.msra.mxu0 %v5609
    %5611 = vmatprep.subr.mxu0 0.0
    %v5612 = vand.u32 %v260, 4294901760
    %5613 = vmatpush2.msra.mxu0 %v5612
    %5614 = vmatprep.subr.mxu0 0.0
    %v5615 = vand.u32 %v259, 4294901760
    %5616 = vmatpush2.msra.mxu0 %v5615
    %5617 = vmatprep.subr.mxu0 0.0
    %v5618 = vand.u32 %v258, 4294901760
    %5619 = vmatpush2.msra.mxu0 %v5618
    %5620 = vmatprep.subr.mxu0 0.0
    %v5621 = vand.u32 %v257, 4294901760
    %5622 = vmatpush2.msra.mxu0 %v5621
    %5623 = vmatprep.subr.mxu0 0.0
    %v5624 = vand.u32 %v256, 4294901760
    %5625 = vmatpush2.msra.mxu0 %v5624
    %5626 = vmatprep.subr.mxu0 0.0
    %v5627 = vand.u32 %v255, 4294901760
    %5628 = vmatpush2.msra.mxu0 %v5627
    %5629 = vmatprep.subr.mxu0 0.0
    %v5630 = vand.u32 %v254, 4294901760
    %5631 = vmatpush2.msra.mxu0 %v5630
    %5632 = vmatprep.subr.mxu0 0.0
    %v5633 = vand.u32 %v253, 4294901760
    %5634 = vmatpush2.msra.mxu0 %v5633
    %5635 = vmatprep.subr.mxu0 0.0
    %v5636 = vand.u32 %v252, 4294901760
    %5637 = vmatpush2.msra.mxu0 %v5636
    %5638 = vmatprep.subr.mxu0 0.0
    %v5639 = vand.u32 %v251, 4294901760
    %5640 = vmatpush2.msra.mxu0 %v5639
    %5641 = vmatprep.subr.mxu0 0.0
    %v5642 = vand.u32 %v250, 4294901760
    %5643 = vmatpush2.msra.mxu0 %v5642
    %5644 = vmatprep.subr.mxu0 0.0
    %v5645 = vand.u32 %v249, 4294901760
    %5646 = vmatpush2.msra.mxu0 %v5645
    %5647 = vmatprep.subr.mxu0 0.0
    %v5648 = vand.u32 %v248, 4294901760
    %5649 = vmatpush2.msra.mxu0 %v5648
    %5650 = vmatprep.subr.mxu0 0.0
    %v5651 = vand.u32 %v247, 4294901760
    %5652 = vmatpush2.msra.mxu0 %v5651
    %5653 = vmatprep.subr.mxu0 0.0
    %v5654 = vand.u32 %v246, 4294901760
    %5655 = vmatpush2.msra.mxu0 %v5654
    %5656 = vmatprep.subr.mxu0 0.0
    %v5657 = vand.u32 %v245, 4294901760
    %5658 = vmatpush2.msra.mxu0 %v5657
    %v5659 = vand.u32 %v32, 4294901760
    %v5660 = vsub.f32 %v32, %v5659
    %v5661 = vand.u32 %v5660, 4294901760
    %5662 = vmatprep.mubr.f32.mxu0 %v5661
    %v5663 = vand.u32 %v31, 4294901760
    %v5664 = vsub.f32 %v31, %v5663
    %v5665 = vand.u32 %v5664, 4294901760
    %5666 = vmatmul.mubr.f32.gmra.mxu0 %v5665
    %v5667 = vpop.f32.mrf.mxu0
    %v5668 = vadd.f32 %v5551, %v5667
    %v5669 = vpop.f32.mrf.mxu0
    %v5670 = vand.u32 %v56, 4294901760
    %v5671 = vsub.f32 %v56, %v5670
    %v5672 = vand.u32 %v5671, 4294901760
    %5673 = vmatprep.mubr.f32.mxu0 %v5672
    %v5674 = vand.u32 %v55, 4294901760
    %v5675 = vsub.f32 %v55, %v5674
    %v5676 = vand.u32 %v5675, 4294901760
    %5677 = vmatmul.mubr.f32.gmra.mxu0 %v5676
    %v5678 = vpop.f32.mrf.mxu0
    %v5679 = vadd.f32 %v5560, %v5678
    %v5680 = vpop.f32.mrf.mxu0
    %5681 = vdwg.mxu0
    %5682 = vmatprep.subr.mxu0 0.0
    %v5683 = vand.u32 %v244, 4294901760
    %v5684 = vsub.f32 %v244, %v5683
    %v5685 = vand.u32 %v5684, 4294901760
    %5686 = vmatpush1.msra.mxu0 %v5685
    %5687 = vmatprep.subr.mxu0 0.0
    %v5688 = vand.u32 %v243, 4294901760
    %v5689 = vsub.f32 %v243, %v5688
    %v5690 = vand.u32 %v5689, 4294901760
    %5691 = vmatpush1.msra.mxu0 %v5690
    %5692 = vmatprep.subr.mxu0 0.0
    %v5693 = vand.u32 %v242, 4294901760
    %v5694 = vsub.f32 %v242, %v5693
    %v5695 = vand.u32 %v5694, 4294901760
    %5696 = vmatpush1.msra.mxu0 %v5695
    %5697 = vmatprep.subr.mxu0 0.0
    %v5698 = vand.u32 %v241, 4294901760
    %v5699 = vsub.f32 %v241, %v5698
    %v5700 = vand.u32 %v5699, 4294901760
    %5701 = vmatpush1.msra.mxu0 %v5700
    %5702 = vmatprep.subr.mxu0 0.0
    %v5703 = vand.u32 %v240, 4294901760
    %v5704 = vsub.f32 %v240, %v5703
    %v5705 = vand.u32 %v5704, 4294901760
    %5706 = vmatpush1.msra.mxu0 %v5705
    %5707 = vmatprep.subr.mxu0 0.0
    %v5708 = vand.u32 %v239, 4294901760
    %v5709 = vsub.f32 %v239, %v5708
    %v5710 = vand.u32 %v5709, 4294901760
    %5711 = vmatpush1.msra.mxu0 %v5710
    %5712 = vmatprep.subr.mxu0 0.0
    %v5713 = vand.u32 %v238, 4294901760
    %v5714 = vsub.f32 %v238, %v5713
    %v5715 = vand.u32 %v5714, 4294901760
    %5716 = vmatpush1.msra.mxu0 %v5715
    %5717 = vmatprep.subr.mxu0 0.0
    %v5718 = vand.u32 %v237, 4294901760
    %v5719 = vsub.f32 %v237, %v5718
    %v5720 = vand.u32 %v5719, 4294901760
    %5721 = vmatpush1.msra.mxu0 %v5720
    %5722 = vmatprep.subr.mxu0 0.0
    %v5723 = vand.u32 %v236, 4294901760
    %v5724 = vsub.f32 %v236, %v5723
    %v5725 = vand.u32 %v5724, 4294901760
    %5726 = vmatpush1.msra.mxu0 %v5725
    %5727 = vmatprep.subr.mxu0 0.0
    %v5728 = vand.u32 %v235, 4294901760
    %v5729 = vsub.f32 %v235, %v5728
    %v5730 = vand.u32 %v5729, 4294901760
    %5731 = vmatpush1.msra.mxu0 %v5730
    %5732 = vmatprep.subr.mxu0 0.0
    %v5733 = vand.u32 %v234, 4294901760
    %v5734 = vsub.f32 %v234, %v5733
    %v5735 = vand.u32 %v5734, 4294901760
    %5736 = vmatpush1.msra.mxu0 %v5735
    %5737 = vmatprep.subr.mxu0 0.0
    %v5738 = vand.u32 %v233, 4294901760
    %v5739 = vsub.f32 %v233, %v5738
    %v5740 = vand.u32 %v5739, 4294901760
    %5741 = vmatpush1.msra.mxu0 %v5740
    %5742 = vmatprep.subr.mxu0 0.0
    %v5743 = vand.u32 %v232, 4294901760
    %v5744 = vsub.f32 %v232, %v5743
    %v5745 = vand.u32 %v5744, 4294901760
    %5746 = vmatpush1.msra.mxu0 %v5745
    %5747 = vmatprep.subr.mxu0 0.0
    %v5748 = vand.u32 %v231, 4294901760
    %v5749 = vsub.f32 %v231, %v5748
    %v5750 = vand.u32 %v5749, 4294901760
    %5751 = vmatpush1.msra.mxu0 %v5750
    %5752 = vmatprep.subr.mxu0 0.0
    %v5753 = vand.u32 %v230, 4294901760
    %v5754 = vsub.f32 %v230, %v5753
    %v5755 = vand.u32 %v5754, 4294901760
    %5756 = vmatpush1.msra.mxu0 %v5755
    %5757 = vmatprep.subr.mxu0 0.0
    %v5758 = vand.u32 %v229, 4294901760
    %v5759 = vsub.f32 %v229, %v5758
    %v5760 = vand.u32 %v5759, 4294901760
    %5761 = vmatpush1.msra.mxu0 %v5760
    %5762 = vmatprep.subr.mxu0 0.0
    %v5763 = vand.u32 %v260, 4294901760
    %v5764 = vsub.f32 %v260, %v5763
    %v5765 = vand.u32 %v5764, 4294901760
    %5766 = vmatpush2.msra.mxu0 %v5765
    %5767 = vmatprep.subr.mxu0 0.0
    %v5768 = vand.u32 %v259, 4294901760
    %v5769 = vsub.f32 %v259, %v5768
    %v5770 = vand.u32 %v5769, 4294901760
    %5771 = vmatpush2.msra.mxu0 %v5770
    %5772 = vmatprep.subr.mxu0 0.0
    %v5773 = vand.u32 %v258, 4294901760
    %v5774 = vsub.f32 %v258, %v5773
    %v5775 = vand.u32 %v5774, 4294901760
    %5776 = vmatpush2.msra.mxu0 %v5775
    %5777 = vmatprep.subr.mxu0 0.0
    %v5778 = vand.u32 %v257, 4294901760
    %v5779 = vsub.f32 %v257, %v5778
    %v5780 = vand.u32 %v5779, 4294901760
    %5781 = vmatpush2.msra.mxu0 %v5780
    %5782 = vmatprep.subr.mxu0 0.0
    %v5783 = vand.u32 %v256, 4294901760
    %v5784 = vsub.f32 %v256, %v5783
    %v5785 = vand.u32 %v5784, 4294901760
    %5786 = vmatpush2.msra.mxu0 %v5785
    %5787 = vmatprep.subr.mxu0 0.0
    %v5788 = vand.u32 %v255, 4294901760
    %v5789 = vsub.f32 %v255, %v5788
    %v5790 = vand.u32 %v5789, 4294901760
    %5791 = vmatpush2.msra.mxu0 %v5790
    %5792 = vmatprep.subr.mxu0 0.0
    %v5793 = vand.u32 %v254, 4294901760
    %v5794 = vsub.f32 %v254, %v5793
    %v5795 = vand.u32 %v5794, 4294901760
    %5796 = vmatpush2.msra.mxu0 %v5795
    %5797 = vmatprep.subr.mxu0 0.0
    %v5798 = vand.u32 %v253, 4294901760
    %v5799 = vsub.f32 %v253, %v5798
    %v5800 = vand.u32 %v5799, 4294901760
    %5801 = vmatpush2.msra.mxu0 %v5800
    %5802 = vmatprep.subr.mxu0 0.0
    %v5803 = vand.u32 %v252, 4294901760
    %v5804 = vsub.f32 %v252, %v5803
    %v5805 = vand.u32 %v5804, 4294901760
    %5806 = vmatpush2.msra.mxu0 %v5805
    %5807 = vmatprep.subr.mxu0 0.0
    %v5808 = vand.u32 %v251, 4294901760
    %v5809 = vsub.f32 %v251, %v5808
    %v5810 = vand.u32 %v5809, 4294901760
    %5811 = vmatpush2.msra.mxu0 %v5810
    %5812 = vmatprep.subr.mxu0 0.0
    %v5813 = vand.u32 %v250, 4294901760
    %v5814 = vsub.f32 %v250, %v5813
    %v5815 = vand.u32 %v5814, 4294901760
    %5816 = vmatpush2.msra.mxu0 %v5815
    %5817 = vmatprep.subr.mxu0 0.0
    %v5818 = vand.u32 %v249, 4294901760
    %v5819 = vsub.f32 %v249, %v5818
    %v5820 = vand.u32 %v5819, 4294901760
    %5821 = vmatpush2.msra.mxu0 %v5820
    %5822 = vmatprep.subr.mxu0 0.0
    %v5823 = vand.u32 %v248, 4294901760
    %v5824 = vsub.f32 %v248, %v5823
    %v5825 = vand.u32 %v5824, 4294901760
    %5826 = vmatpush2.msra.mxu0 %v5825
    %5827 = vmatprep.subr.mxu0 0.0
    %v5828 = vand.u32 %v247, 4294901760
    %v5829 = vsub.f32 %v247, %v5828
    %v5830 = vand.u32 %v5829, 4294901760
    %5831 = vmatpush2.msra.mxu0 %v5830
    %5832 = vmatprep.subr.mxu0 0.0
    %v5833 = vand.u32 %v246, 4294901760
    %v5834 = vsub.f32 %v246, %v5833
    %v5835 = vand.u32 %v5834, 4294901760
    %5836 = vmatpush2.msra.mxu0 %v5835
    %5837 = vmatprep.subr.mxu0 0.0
    %v5838 = vand.u32 %v245, 4294901760
    %v5839 = vsub.f32 %v245, %v5838
    %v5840 = vand.u32 %v5839, 4294901760
    %5841 = vmatpush2.msra.mxu0 %v5840
    %v5842 = vand.u32 %v32, 4294901760
    %5843 = vmatprep.mubr.f32.mxu0 %v5842
    %v5844 = vand.u32 %v31, 4294901760
    %5845 = vmatmul.mubr.f32.gmra.mxu0 %v5844
    %v5846 = vpop.f32.mrf.mxu0
    %v5847 = vadd.f32 %v5668, %v5846
    %v5848 = vpop.f32.mrf.mxu0
    %v5849 = vand.u32 %v56, 4294901760
    %5850 = vmatprep.mubr.f32.mxu0 %v5849
    %v5851 = vand.u32 %v55, 4294901760
    %5852 = vmatmul.mubr.f32.gmra.mxu0 %v5851
    %v5853 = vpop.f32.mrf.mxu0
    %v5854 = vadd.f32 %v5679, %v5853
    %v5855 = vpop.f32.mrf.mxu0
    %5856 = vdwg.mxu0
    %5857 = vmatprep.subr.mxu0 0.0
    %v5858 = vand.u32 %v244, 4294901760
    %5859 = vmatpush1.msra.mxu0 %v5858
    %5860 = vmatprep.subr.mxu0 0.0
    %v5861 = vand.u32 %v243, 4294901760
    %5862 = vmatpush1.msra.mxu0 %v5861
    %5863 = vmatprep.subr.mxu0 0.0
    %v5864 = vand.u32 %v242, 4294901760
    %5865 = vmatpush1.msra.mxu0 %v5864
    %5866 = vmatprep.subr.mxu0 0.0
    %v5867 = vand.u32 %v241, 4294901760
    %5868 = vmatpush1.msra.mxu0 %v5867
    %5869 = vmatprep.subr.mxu0 0.0
    %v5870 = vand.u32 %v240, 4294901760
    %5871 = vmatpush1.msra.mxu0 %v5870
    %5872 = vmatprep.subr.mxu0 0.0
    %v5873 = vand.u32 %v239, 4294901760
    %5874 = vmatpush1.msra.mxu0 %v5873
    %5875 = vmatprep.subr.mxu0 0.0
    %v5876 = vand.u32 %v238, 4294901760
    %5877 = vmatpush1.msra.mxu0 %v5876
    %5878 = vmatprep.subr.mxu0 0.0
    %v5879 = vand.u32 %v237, 4294901760
    %5880 = vmatpush1.msra.mxu0 %v5879
    %5881 = vmatprep.subr.mxu0 0.0
    %v5882 = vand.u32 %v236, 4294901760
    %5883 = vmatpush1.msra.mxu0 %v5882
    %5884 = vmatprep.subr.mxu0 0.0
    %v5885 = vand.u32 %v235, 4294901760
    %5886 = vmatpush1.msra.mxu0 %v5885
    %5887 = vmatprep.subr.mxu0 0.0
    %v5888 = vand.u32 %v234, 4294901760
    %5889 = vmatpush1.msra.mxu0 %v5888
    %5890 = vmatprep.subr.mxu0 0.0
    %v5891 = vand.u32 %v233, 4294901760
    %5892 = vmatpush1.msra.mxu0 %v5891
    %5893 = vmatprep.subr.mxu0 0.0
    %v5894 = vand.u32 %v232, 4294901760
    %5895 = vmatpush1.msra.mxu0 %v5894
    %5896 = vmatprep.subr.mxu0 0.0
    %v5897 = vand.u32 %v231, 4294901760
    %5898 = vmatpush1.msra.mxu0 %v5897
    %5899 = vmatprep.subr.mxu0 0.0
    %v5900 = vand.u32 %v230, 4294901760
    %5901 = vmatpush1.msra.mxu0 %v5900
    %5902 = vmatprep.subr.mxu0 0.0
    %v5903 = vand.u32 %v229, 4294901760
    %5904 = vmatpush1.msra.mxu0 %v5903
    %5905 = vmatprep.subr.mxu0 0.0
    %v5906 = vand.u32 %v260, 4294901760
    %5907 = vmatpush2.msra.mxu0 %v5906
    %5908 = vmatprep.subr.mxu0 0.0
    %v5909 = vand.u32 %v259, 4294901760
    %5910 = vmatpush2.msra.mxu0 %v5909
    %5911 = vmatprep.subr.mxu0 0.0
    %v5912 = vand.u32 %v258, 4294901760
    %5913 = vmatpush2.msra.mxu0 %v5912
    %5914 = vmatprep.subr.mxu0 0.0
    %v5915 = vand.u32 %v257, 4294901760
    %5916 = vmatpush2.msra.mxu0 %v5915
    %5917 = vmatprep.subr.mxu0 0.0
    %v5918 = vand.u32 %v256, 4294901760
    %5919 = vmatpush2.msra.mxu0 %v5918
    %5920 = vmatprep.subr.mxu0 0.0
    %v5921 = vand.u32 %v255, 4294901760
    %5922 = vmatpush2.msra.mxu0 %v5921
    %5923 = vmatprep.subr.mxu0 0.0
    %v5924 = vand.u32 %v254, 4294901760
    %5925 = vmatpush2.msra.mxu0 %v5924
    %5926 = vmatprep.subr.mxu0 0.0
    %v5927 = vand.u32 %v253, 4294901760
    %5928 = vmatpush2.msra.mxu0 %v5927
    %5929 = vmatprep.subr.mxu0 0.0
    %v5930 = vand.u32 %v252, 4294901760
    %5931 = vmatpush2.msra.mxu0 %v5930
    %5932 = vmatprep.subr.mxu0 0.0
    %v5933 = vand.u32 %v251, 4294901760
    %5934 = vmatpush2.msra.mxu0 %v5933
    %5935 = vmatprep.subr.mxu0 0.0
    %v5936 = vand.u32 %v250, 4294901760
    %5937 = vmatpush2.msra.mxu0 %v5936
    %5938 = vmatprep.subr.mxu0 0.0
    %v5939 = vand.u32 %v249, 4294901760
    %5940 = vmatpush2.msra.mxu0 %v5939
    %5941 = vmatprep.subr.mxu0 0.0
    %v5942 = vand.u32 %v248, 4294901760
    %5943 = vmatpush2.msra.mxu0 %v5942
    %5944 = vmatprep.subr.mxu0 0.0
    %v5945 = vand.u32 %v247, 4294901760
    %5946 = vmatpush2.msra.mxu0 %v5945
    %5947 = vmatprep.subr.mxu0 0.0
    %v5948 = vand.u32 %v246, 4294901760
    %5949 = vmatpush2.msra.mxu0 %v5948
    %5950 = vmatprep.subr.mxu0 0.0
    %v5951 = vand.u32 %v245, 4294901760
    %5952 = vmatpush2.msra.mxu0 %v5951
    %v5953 = vand.u32 %v32, 4294901760
    %5954 = vmatprep.mubr.f32.mxu0 %v5953
    %v5955 = vand.u32 %v31, 4294901760
    %5956 = vmatmul.mubr.f32.gmra.mxu0 %v5955
    %v5957 = vpop.f32.mrf.mxu0
    %v5958 = vadd.f32 %v5847, %v5957
    %v5959 = vpop.f32.mrf.mxu0
    %v5960 = vand.u32 %v56, 4294901760
    %5961 = vmatprep.mubr.f32.mxu0 %v5960
    %v5962 = vand.u32 %v55, 4294901760
    %5963 = vmatmul.mubr.f32.gmra.mxu0 %v5962
    %v5964 = vpop.f32.mrf.mxu0
    %v5965 = vadd.f32 %v5854, %v5964
    %v5966 = vpop.f32.mrf.mxu0
    %5967 = vdwg.mxu0
    %5968 = vmatprep.subr.mxu0 0.0
    %v5969 = vand.u32 %v276, 4294901760
    %5970 = vmatpush1.msra.mxu0 %v5969
    %5971 = vmatprep.subr.mxu0 0.0
    %v5972 = vand.u32 %v275, 4294901760
    %5973 = vmatpush1.msra.mxu0 %v5972
    %5974 = vmatprep.subr.mxu0 0.0
    %v5975 = vand.u32 %v274, 4294901760
    %5976 = vmatpush1.msra.mxu0 %v5975
    %5977 = vmatprep.subr.mxu0 0.0
    %v5978 = vand.u32 %v273, 4294901760
    %5979 = vmatpush1.msra.mxu0 %v5978
    %5980 = vmatprep.subr.mxu0 0.0
    %v5981 = vand.u32 %v272, 4294901760
    %5982 = vmatpush1.msra.mxu0 %v5981
    %5983 = vmatprep.subr.mxu0 0.0
    %v5984 = vand.u32 %v271, 4294901760
    %5985 = vmatpush1.msra.mxu0 %v5984
    %5986 = vmatprep.subr.mxu0 0.0
    %v5987 = vand.u32 %v270, 4294901760
    %5988 = vmatpush1.msra.mxu0 %v5987
    %5989 = vmatprep.subr.mxu0 0.0
    %v5990 = vand.u32 %v269, 4294901760
    %5991 = vmatpush1.msra.mxu0 %v5990
    %5992 = vmatprep.subr.mxu0 0.0
    %v5993 = vand.u32 %v268, 4294901760
    %5994 = vmatpush1.msra.mxu0 %v5993
    %5995 = vmatprep.subr.mxu0 0.0
    %v5996 = vand.u32 %v267, 4294901760
    %5997 = vmatpush1.msra.mxu0 %v5996
    %5998 = vmatprep.subr.mxu0 0.0
    %v5999 = vand.u32 %v266, 4294901760
    %6000 = vmatpush1.msra.mxu0 %v5999
    %6001 = vmatprep.subr.mxu0 0.0
    %v6002 = vand.u32 %v265, 4294901760
    %6003 = vmatpush1.msra.mxu0 %v6002
    %6004 = vmatprep.subr.mxu0 0.0
    %v6005 = vand.u32 %v264, 4294901760
    %6006 = vmatpush1.msra.mxu0 %v6005
    %6007 = vmatprep.subr.mxu0 0.0
    %v6008 = vand.u32 %v263, 4294901760
    %6009 = vmatpush1.msra.mxu0 %v6008
    %6010 = vmatprep.subr.mxu0 0.0
    %v6011 = vand.u32 %v262, 4294901760
    %6012 = vmatpush1.msra.mxu0 %v6011
    %6013 = vmatprep.subr.mxu0 0.0
    %v6014 = vand.u32 %v261, 4294901760
    %6015 = vmatpush1.msra.mxu0 %v6014
    %6016 = vmatprep.subr.mxu0 0.0
    %v6017 = vand.u32 %v292, 4294901760
    %6018 = vmatpush2.msra.mxu0 %v6017
    %6019 = vmatprep.subr.mxu0 0.0
    %v6020 = vand.u32 %v291, 4294901760
    %6021 = vmatpush2.msra.mxu0 %v6020
    %6022 = vmatprep.subr.mxu0 0.0
    %v6023 = vand.u32 %v290, 4294901760
    %6024 = vmatpush2.msra.mxu0 %v6023
    %6025 = vmatprep.subr.mxu0 0.0
    %v6026 = vand.u32 %v289, 4294901760
    %6027 = vmatpush2.msra.mxu0 %v6026
    %6028 = vmatprep.subr.mxu0 0.0
    %v6029 = vand.u32 %v288, 4294901760
    %6030 = vmatpush2.msra.mxu0 %v6029
    %6031 = vmatprep.subr.mxu0 0.0
    %v6032 = vand.u32 %v287, 4294901760
    %6033 = vmatpush2.msra.mxu0 %v6032
    %6034 = vmatprep.subr.mxu0 0.0
    %v6035 = vand.u32 %v286, 4294901760
    %6036 = vmatpush2.msra.mxu0 %v6035
    %6037 = vmatprep.subr.mxu0 0.0
    %v6038 = vand.u32 %v285, 4294901760
    %6039 = vmatpush2.msra.mxu0 %v6038
    %6040 = vmatprep.subr.mxu0 0.0
    %v6041 = vand.u32 %v284, 4294901760
    %6042 = vmatpush2.msra.mxu0 %v6041
    %6043 = vmatprep.subr.mxu0 0.0
    %v6044 = vand.u32 %v283, 4294901760
    %6045 = vmatpush2.msra.mxu0 %v6044
    %6046 = vmatprep.subr.mxu0 0.0
    %v6047 = vand.u32 %v282, 4294901760
    %6048 = vmatpush2.msra.mxu0 %v6047
    %6049 = vmatprep.subr.mxu0 0.0
    %v6050 = vand.u32 %v281, 4294901760
    %6051 = vmatpush2.msra.mxu0 %v6050
    %6052 = vmatprep.subr.mxu0 0.0
    %v6053 = vand.u32 %v280, 4294901760
    %6054 = vmatpush2.msra.mxu0 %v6053
    %6055 = vmatprep.subr.mxu0 0.0
    %v6056 = vand.u32 %v279, 4294901760
    %6057 = vmatpush2.msra.mxu0 %v6056
    %6058 = vmatprep.subr.mxu0 0.0
    %v6059 = vand.u32 %v278, 4294901760
    %6060 = vmatpush2.msra.mxu0 %v6059
    %6061 = vmatprep.subr.mxu0 0.0
    %v6062 = vand.u32 %v277, 4294901760
    %6063 = vmatpush2.msra.mxu0 %v6062
    %v6064 = vand.u32 %v34, 4294901760
    %v6065 = vsub.f32 %v34, %v6064
    %v6066 = vand.u32 %v6065, 4294901760
    %v6067 = vsub.f32 %v6065, %v6066
    %v6068 = vand.u32 %v6067, 4294901760
    %6069 = vmatprep.mubr.f32.mxu0 %v6068
    %v6070 = vand.u32 %v33, 4294901760
    %v6071 = vsub.f32 %v33, %v6070
    %v6072 = vand.u32 %v6071, 4294901760
    %v6073 = vsub.f32 %v6071, %v6072
    %v6074 = vand.u32 %v6073, 4294901760
    %6075 = vmatmul.mubr.f32.gmra.mxu0 %v6074
    %v6076 = vpop.f32.mrf.mxu0
    %v6077 = vadd.f32 %v5958, %v6076
    %v6078 = vpop.f32.mrf.mxu0
    %v6079 = vand.u32 %v58, 4294901760
    %v6080 = vsub.f32 %v58, %v6079
    %v6081 = vand.u32 %v6080, 4294901760
    %v6082 = vsub.f32 %v6080, %v6081
    %v6083 = vand.u32 %v6082, 4294901760
    %6084 = vmatprep.mubr.f32.mxu0 %v6083
    %v6085 = vand.u32 %v57, 4294901760
    %v6086 = vsub.f32 %v57, %v6085
    %v6087 = vand.u32 %v6086, 4294901760
    %v6088 = vsub.f32 %v6086, %v6087
    %v6089 = vand.u32 %v6088, 4294901760
    %6090 = vmatmul.mubr.f32.gmra.mxu0 %v6089
    %v6091 = vpop.f32.mrf.mxu0
    %v6092 = vadd.f32 %v5965, %v6091
    %v6093 = vpop.f32.mrf.mxu0
    %6094 = vdwg.mxu0
    %6095 = vmatprep.subr.mxu0 0.0
    %v6096 = vand.u32 %v276, 4294901760
    %v6097 = vsub.f32 %v276, %v6096
    %v6098 = vand.u32 %v6097, 4294901760
    %v6099 = vsub.f32 %v6097, %v6098
    %v6100 = vand.u32 %v6099, 4294901760
    %6101 = vmatpush1.msra.mxu0 %v6100
    %6102 = vmatprep.subr.mxu0 0.0
    %v6103 = vand.u32 %v275, 4294901760
    %v6104 = vsub.f32 %v275, %v6103
    %v6105 = vand.u32 %v6104, 4294901760
    %v6106 = vsub.f32 %v6104, %v6105
    %v6107 = vand.u32 %v6106, 4294901760
    %6108 = vmatpush1.msra.mxu0 %v6107
    %6109 = vmatprep.subr.mxu0 0.0
    %v6110 = vand.u32 %v274, 4294901760
    %v6111 = vsub.f32 %v274, %v6110
    %v6112 = vand.u32 %v6111, 4294901760
    %v6113 = vsub.f32 %v6111, %v6112
    %v6114 = vand.u32 %v6113, 4294901760
    %6115 = vmatpush1.msra.mxu0 %v6114
    %6116 = vmatprep.subr.mxu0 0.0
    %v6117 = vand.u32 %v273, 4294901760
    %v6118 = vsub.f32 %v273, %v6117
    %v6119 = vand.u32 %v6118, 4294901760
    %v6120 = vsub.f32 %v6118, %v6119
    %v6121 = vand.u32 %v6120, 4294901760
    %6122 = vmatpush1.msra.mxu0 %v6121
    %6123 = vmatprep.subr.mxu0 0.0
    %v6124 = vand.u32 %v272, 4294901760
    %v6125 = vsub.f32 %v272, %v6124
    %v6126 = vand.u32 %v6125, 4294901760
    %v6127 = vsub.f32 %v6125, %v6126
    %v6128 = vand.u32 %v6127, 4294901760
    %6129 = vmatpush1.msra.mxu0 %v6128
    %6130 = vmatprep.subr.mxu0 0.0
    %v6131 = vand.u32 %v271, 4294901760
    %v6132 = vsub.f32 %v271, %v6131
    %v6133 = vand.u32 %v6132, 4294901760
    %v6134 = vsub.f32 %v6132, %v6133
    %v6135 = vand.u32 %v6134, 4294901760
    %6136 = vmatpush1.msra.mxu0 %v6135
    %6137 = vmatprep.subr.mxu0 0.0
    %v6138 = vand.u32 %v270, 4294901760
    %v6139 = vsub.f32 %v270, %v6138
    %v6140 = vand.u32 %v6139, 4294901760
    %v6141 = vsub.f32 %v6139, %v6140
    %v6142 = vand.u32 %v6141, 4294901760
    %6143 = vmatpush1.msra.mxu0 %v6142
    %6144 = vmatprep.subr.mxu0 0.0
    %v6145 = vand.u32 %v269, 4294901760
    %v6146 = vsub.f32 %v269, %v6145
    %v6147 = vand.u32 %v6146, 4294901760
    %v6148 = vsub.f32 %v6146, %v6147
    %v6149 = vand.u32 %v6148, 4294901760
    %6150 = vmatpush1.msra.mxu0 %v6149
    %6151 = vmatprep.subr.mxu0 0.0
    %v6152 = vand.u32 %v268, 4294901760
    %v6153 = vsub.f32 %v268, %v6152
    %v6154 = vand.u32 %v6153, 4294901760
    %v6155 = vsub.f32 %v6153, %v6154
    %v6156 = vand.u32 %v6155, 4294901760
    %6157 = vmatpush1.msra.mxu0 %v6156
    %6158 = vmatprep.subr.mxu0 0.0
    %v6159 = vand.u32 %v267, 4294901760
    %v6160 = vsub.f32 %v267, %v6159
    %v6161 = vand.u32 %v6160, 4294901760
    %v6162 = vsub.f32 %v6160, %v6161
    %v6163 = vand.u32 %v6162, 4294901760
    %6164 = vmatpush1.msra.mxu0 %v6163
    %6165 = vmatprep.subr.mxu0 0.0
    %v6166 = vand.u32 %v266, 4294901760
    %v6167 = vsub.f32 %v266, %v6166
    %v6168 = vand.u32 %v6167, 4294901760
    %v6169 = vsub.f32 %v6167, %v6168
    %v6170 = vand.u32 %v6169, 4294901760
    %6171 = vmatpush1.msra.mxu0 %v6170
    %6172 = vmatprep.subr.mxu0 0.0
    %v6173 = vand.u32 %v265, 4294901760
    %v6174 = vsub.f32 %v265, %v6173
    %v6175 = vand.u32 %v6174, 4294901760
    %v6176 = vsub.f32 %v6174, %v6175
    %v6177 = vand.u32 %v6176, 4294901760
    %6178 = vmatpush1.msra.mxu0 %v6177
    %6179 = vmatprep.subr.mxu0 0.0
    %v6180 = vand.u32 %v264, 4294901760
    %v6181 = vsub.f32 %v264, %v6180
    %v6182 = vand.u32 %v6181, 4294901760
    %v6183 = vsub.f32 %v6181, %v6182
    %v6184 = vand.u32 %v6183, 4294901760
    %6185 = vmatpush1.msra.mxu0 %v6184
    %6186 = vmatprep.subr.mxu0 0.0
    %v6187 = vand.u32 %v263, 4294901760
    %v6188 = vsub.f32 %v263, %v6187
    %v6189 = vand.u32 %v6188, 4294901760
    %v6190 = vsub.f32 %v6188, %v6189
    %v6191 = vand.u32 %v6190, 4294901760
    %6192 = vmatpush1.msra.mxu0 %v6191
    %6193 = vmatprep.subr.mxu0 0.0
    %v6194 = vand.u32 %v262, 4294901760
    %v6195 = vsub.f32 %v262, %v6194
    %v6196 = vand.u32 %v6195, 4294901760
    %v6197 = vsub.f32 %v6195, %v6196
    %v6198 = vand.u32 %v6197, 4294901760
    %6199 = vmatpush1.msra.mxu0 %v6198
    %6200 = vmatprep.subr.mxu0 0.0
    %v6201 = vand.u32 %v261, 4294901760
    %v6202 = vsub.f32 %v261, %v6201
    %v6203 = vand.u32 %v6202, 4294901760
    %v6204 = vsub.f32 %v6202, %v6203
    %v6205 = vand.u32 %v6204, 4294901760
    %6206 = vmatpush1.msra.mxu0 %v6205
    %6207 = vmatprep.subr.mxu0 0.0
    %v6208 = vand.u32 %v292, 4294901760
    %v6209 = vsub.f32 %v292, %v6208
    %v6210 = vand.u32 %v6209, 4294901760
    %v6211 = vsub.f32 %v6209, %v6210
    %v6212 = vand.u32 %v6211, 4294901760
    %6213 = vmatpush2.msra.mxu0 %v6212
    %6214 = vmatprep.subr.mxu0 0.0
    %v6215 = vand.u32 %v291, 4294901760
    %v6216 = vsub.f32 %v291, %v6215
    %v6217 = vand.u32 %v6216, 4294901760
    %v6218 = vsub.f32 %v6216, %v6217
    %v6219 = vand.u32 %v6218, 4294901760
    %6220 = vmatpush2.msra.mxu0 %v6219
    %6221 = vmatprep.subr.mxu0 0.0
    %v6222 = vand.u32 %v290, 4294901760
    %v6223 = vsub.f32 %v290, %v6222
    %v6224 = vand.u32 %v6223, 4294901760
    %v6225 = vsub.f32 %v6223, %v6224
    %v6226 = vand.u32 %v6225, 4294901760
    %6227 = vmatpush2.msra.mxu0 %v6226
    %6228 = vmatprep.subr.mxu0 0.0
    %v6229 = vand.u32 %v289, 4294901760
    %v6230 = vsub.f32 %v289, %v6229
    %v6231 = vand.u32 %v6230, 4294901760
    %v6232 = vsub.f32 %v6230, %v6231
    %v6233 = vand.u32 %v6232, 4294901760
    %6234 = vmatpush2.msra.mxu0 %v6233
    %6235 = vmatprep.subr.mxu0 0.0
    %v6236 = vand.u32 %v288, 4294901760
    %v6237 = vsub.f32 %v288, %v6236
    %v6238 = vand.u32 %v6237, 4294901760
    %v6239 = vsub.f32 %v6237, %v6238
    %v6240 = vand.u32 %v6239, 4294901760
    %6241 = vmatpush2.msra.mxu0 %v6240
    %6242 = vmatprep.subr.mxu0 0.0
    %v6243 = vand.u32 %v287, 4294901760
    %v6244 = vsub.f32 %v287, %v6243
    %v6245 = vand.u32 %v6244, 4294901760
    %v6246 = vsub.f32 %v6244, %v6245
    %v6247 = vand.u32 %v6246, 4294901760
    %6248 = vmatpush2.msra.mxu0 %v6247
    %6249 = vmatprep.subr.mxu0 0.0
    %v6250 = vand.u32 %v286, 4294901760
    %v6251 = vsub.f32 %v286, %v6250
    %v6252 = vand.u32 %v6251, 4294901760
    %v6253 = vsub.f32 %v6251, %v6252
    %v6254 = vand.u32 %v6253, 4294901760
    %6255 = vmatpush2.msra.mxu0 %v6254
    %6256 = vmatprep.subr.mxu0 0.0
    %v6257 = vand.u32 %v285, 4294901760
    %v6258 = vsub.f32 %v285, %v6257
    %v6259 = vand.u32 %v6258, 4294901760
    %v6260 = vsub.f32 %v6258, %v6259
    %v6261 = vand.u32 %v6260, 4294901760
    %6262 = vmatpush2.msra.mxu0 %v6261
    %6263 = vmatprep.subr.mxu0 0.0
    %v6264 = vand.u32 %v284, 4294901760
    %v6265 = vsub.f32 %v284, %v6264
    %v6266 = vand.u32 %v6265, 4294901760
    %v6267 = vsub.f32 %v6265, %v6266
    %v6268 = vand.u32 %v6267, 4294901760
    %6269 = vmatpush2.msra.mxu0 %v6268
    %6270 = vmatprep.subr.mxu0 0.0
    %v6271 = vand.u32 %v283, 4294901760
    %v6272 = vsub.f32 %v283, %v6271
    %v6273 = vand.u32 %v6272, 4294901760
    %v6274 = vsub.f32 %v6272, %v6273
    %v6275 = vand.u32 %v6274, 4294901760
    %6276 = vmatpush2.msra.mxu0 %v6275
    %6277 = vmatprep.subr.mxu0 0.0
    %v6278 = vand.u32 %v282, 4294901760
    %v6279 = vsub.f32 %v282, %v6278
    %v6280 = vand.u32 %v6279, 4294901760
    %v6281 = vsub.f32 %v6279, %v6280
    %v6282 = vand.u32 %v6281, 4294901760
    %6283 = vmatpush2.msra.mxu0 %v6282
    %6284 = vmatprep.subr.mxu0 0.0
    %v6285 = vand.u32 %v281, 4294901760
    %v6286 = vsub.f32 %v281, %v6285
    %v6287 = vand.u32 %v6286, 4294901760
    %v6288 = vsub.f32 %v6286, %v6287
    %v6289 = vand.u32 %v6288, 4294901760
    %6290 = vmatpush2.msra.mxu0 %v6289
    %6291 = vmatprep.subr.mxu0 0.0
    %v6292 = vand.u32 %v280, 4294901760
    %v6293 = vsub.f32 %v280, %v6292
    %v6294 = vand.u32 %v6293, 4294901760
    %v6295 = vsub.f32 %v6293, %v6294
    %v6296 = vand.u32 %v6295, 4294901760
    %6297 = vmatpush2.msra.mxu0 %v6296
    %6298 = vmatprep.subr.mxu0 0.0
    %v6299 = vand.u32 %v279, 4294901760
    %v6300 = vsub.f32 %v279, %v6299
    %v6301 = vand.u32 %v6300, 4294901760
    %v6302 = vsub.f32 %v6300, %v6301
    %v6303 = vand.u32 %v6302, 4294901760
    %6304 = vmatpush2.msra.mxu0 %v6303
    %6305 = vmatprep.subr.mxu0 0.0
    %v6306 = vand.u32 %v278, 4294901760
    %v6307 = vsub.f32 %v278, %v6306
    %v6308 = vand.u32 %v6307, 4294901760
    %v6309 = vsub.f32 %v6307, %v6308
    %v6310 = vand.u32 %v6309, 4294901760
    %6311 = vmatpush2.msra.mxu0 %v6310
    %6312 = vmatprep.subr.mxu0 0.0
    %v6313 = vand.u32 %v277, 4294901760
    %v6314 = vsub.f32 %v277, %v6313
    %v6315 = vand.u32 %v6314, 4294901760
    %v6316 = vsub.f32 %v6314, %v6315
    %v6317 = vand.u32 %v6316, 4294901760
    %6318 = vmatpush2.msra.mxu0 %v6317
    %v6319 = vand.u32 %v34, 4294901760
    %6320 = vmatprep.mubr.f32.mxu0 %v6319
    %v6321 = vand.u32 %v33, 4294901760
    %6322 = vmatmul.mubr.f32.gmra.mxu0 %v6321
    %v6323 = vpop.f32.mrf.mxu0
    %v6324 = vadd.f32 %v6077, %v6323
    %v6325 = vpop.f32.mrf.mxu0
    %v6326 = vand.u32 %v58, 4294901760
    %6327 = vmatprep.mubr.f32.mxu0 %v6326
    %v6328 = vand.u32 %v57, 4294901760
    %6329 = vmatmul.mubr.f32.gmra.mxu0 %v6328
    %v6330 = vpop.f32.mrf.mxu0
    %v6331 = vadd.f32 %v6092, %v6330
    %v6332 = vpop.f32.mrf.mxu0
    %6333 = vdwg.mxu0
    %6334 = vmatprep.subr.mxu0 0.0
    %v6335 = vand.u32 %v276, 4294901760
    %v6336 = vsub.f32 %v276, %v6335
    %6337 = vmatpush1.msra.mxu0 %v6336
    %6338 = vmatprep.subr.mxu0 0.0
    %v6339 = vand.u32 %v275, 4294901760
    %v6340 = vsub.f32 %v275, %v6339
    %6341 = vmatpush1.msra.mxu0 %v6340
    %6342 = vmatprep.subr.mxu0 0.0
    %v6343 = vand.u32 %v274, 4294901760
    %v6344 = vsub.f32 %v274, %v6343
    %6345 = vmatpush1.msra.mxu0 %v6344
    %6346 = vmatprep.subr.mxu0 0.0
    %v6347 = vand.u32 %v273, 4294901760
    %v6348 = vsub.f32 %v273, %v6347
    %6349 = vmatpush1.msra.mxu0 %v6348
    %6350 = vmatprep.subr.mxu0 0.0
    %v6351 = vand.u32 %v272, 4294901760
    %v6352 = vsub.f32 %v272, %v6351
    %6353 = vmatpush1.msra.mxu0 %v6352
    %6354 = vmatprep.subr.mxu0 0.0
    %v6355 = vand.u32 %v271, 4294901760
    %v6356 = vsub.f32 %v271, %v6355
    %6357 = vmatpush1.msra.mxu0 %v6356
    %6358 = vmatprep.subr.mxu0 0.0
    %v6359 = vand.u32 %v270, 4294901760
    %v6360 = vsub.f32 %v270, %v6359
    %6361 = vmatpush1.msra.mxu0 %v6360
    %6362 = vmatprep.subr.mxu0 0.0
    %v6363 = vand.u32 %v269, 4294901760
    %v6364 = vsub.f32 %v269, %v6363
    %6365 = vmatpush1.msra.mxu0 %v6364
    %6366 = vmatprep.subr.mxu0 0.0
    %v6367 = vand.u32 %v268, 4294901760
    %v6368 = vsub.f32 %v268, %v6367
    %6369 = vmatpush1.msra.mxu0 %v6368
    %6370 = vmatprep.subr.mxu0 0.0
    %v6371 = vand.u32 %v267, 4294901760
    %v6372 = vsub.f32 %v267, %v6371
    %6373 = vmatpush1.msra.mxu0 %v6372
    %6374 = vmatprep.subr.mxu0 0.0
    %v6375 = vand.u32 %v266, 4294901760
    %v6376 = vsub.f32 %v266, %v6375
    %6377 = vmatpush1.msra.mxu0 %v6376
    %6378 = vmatprep.subr.mxu0 0.0
    %v6379 = vand.u32 %v265, 4294901760
    %v6380 = vsub.f32 %v265, %v6379
    %6381 = vmatpush1.msra.mxu0 %v6380
    %6382 = vmatprep.subr.mxu0 0.0
    %v6383 = vand.u32 %v264, 4294901760
    %v6384 = vsub.f32 %v264, %v6383
    %6385 = vmatpush1.msra.mxu0 %v6384
    %6386 = vmatprep.subr.mxu0 0.0
    %v6387 = vand.u32 %v263, 4294901760
    %v6388 = vsub.f32 %v263, %v6387
    %6389 = vmatpush1.msra.mxu0 %v6388
    %6390 = vmatprep.subr.mxu0 0.0
    %v6391 = vand.u32 %v262, 4294901760
    %v6392 = vsub.f32 %v262, %v6391
    %6393 = vmatpush1.msra.mxu0 %v6392
    %6394 = vmatprep.subr.mxu0 0.0
    %v6395 = vand.u32 %v261, 4294901760
    %v6396 = vsub.f32 %v261, %v6395
    %6397 = vmatpush1.msra.mxu0 %v6396
    %6398 = vmatprep.subr.mxu0 0.0
    %v6399 = vand.u32 %v292, 4294901760
    %v6400 = vsub.f32 %v292, %v6399
    %6401 = vmatpush2.msra.mxu0 %v6400
    %6402 = vmatprep.subr.mxu0 0.0
    %v6403 = vand.u32 %v291, 4294901760
    %v6404 = vsub.f32 %v291, %v6403
    %6405 = vmatpush2.msra.mxu0 %v6404
    %6406 = vmatprep.subr.mxu0 0.0
    %v6407 = vand.u32 %v290, 4294901760
    %v6408 = vsub.f32 %v290, %v6407
    %6409 = vmatpush2.msra.mxu0 %v6408
    %6410 = vmatprep.subr.mxu0 0.0
    %v6411 = vand.u32 %v289, 4294901760
    %v6412 = vsub.f32 %v289, %v6411
    %6413 = vmatpush2.msra.mxu0 %v6412
    %6414 = vmatprep.subr.mxu0 0.0
    %v6415 = vand.u32 %v288, 4294901760
    %v6416 = vsub.f32 %v288, %v6415
    %6417 = vmatpush2.msra.mxu0 %v6416
    %6418 = vmatprep.subr.mxu0 0.0
    %v6419 = vand.u32 %v287, 4294901760
    %v6420 = vsub.f32 %v287, %v6419
    %6421 = vmatpush2.msra.mxu0 %v6420
    %6422 = vmatprep.subr.mxu0 0.0
    %v6423 = vand.u32 %v286, 4294901760
    %v6424 = vsub.f32 %v286, %v6423
    %6425 = vmatpush2.msra.mxu0 %v6424
    %6426 = vmatprep.subr.mxu0 0.0
    %v6427 = vand.u32 %v285, 4294901760
    %v6428 = vsub.f32 %v285, %v6427
    %6429 = vmatpush2.msra.mxu0 %v6428
    %6430 = vmatprep.subr.mxu0 0.0
    %v6431 = vand.u32 %v284, 4294901760
    %v6432 = vsub.f32 %v284, %v6431
    %6433 = vmatpush2.msra.mxu0 %v6432
    %6434 = vmatprep.subr.mxu0 0.0
    %v6435 = vand.u32 %v283, 4294901760
    %v6436 = vsub.f32 %v283, %v6435
    %6437 = vmatpush2.msra.mxu0 %v6436
    %6438 = vmatprep.subr.mxu0 0.0
    %v6439 = vand.u32 %v282, 4294901760
    %v6440 = vsub.f32 %v282, %v6439
    %6441 = vmatpush2.msra.mxu0 %v6440
    %6442 = vmatprep.subr.mxu0 0.0
    %v6443 = vand.u32 %v281, 4294901760
    %v6444 = vsub.f32 %v281, %v6443
    %6445 = vmatpush2.msra.mxu0 %v6444
    %6446 = vmatprep.subr.mxu0 0.0
    %v6447 = vand.u32 %v280, 4294901760
    %v6448 = vsub.f32 %v280, %v6447
    %6449 = vmatpush2.msra.mxu0 %v6448
    %6450 = vmatprep.subr.mxu0 0.0
    %v6451 = vand.u32 %v279, 4294901760
    %v6452 = vsub.f32 %v279, %v6451
    %6453 = vmatpush2.msra.mxu0 %v6452
    %6454 = vmatprep.subr.mxu0 0.0
    %v6455 = vand.u32 %v278, 4294901760
    %v6456 = vsub.f32 %v278, %v6455
    %6457 = vmatpush2.msra.mxu0 %v6456
    %6458 = vmatprep.subr.mxu0 0.0
    %v6459 = vand.u32 %v277, 4294901760
    %v6460 = vsub.f32 %v277, %v6459
    %6461 = vmatpush2.msra.mxu0 %v6460
    %v6462 = vand.u32 %v34, 4294901760
    %v6463 = vsub.f32 %v34, %v6462
    %6464 = vmatprep.mubr.f32.mxu0 %v6463
    %v6465 = vand.u32 %v33, 4294901760
    %v6466 = vsub.f32 %v33, %v6465
    %6467 = vmatmul.mubr.f32.gmra.mxu0 %v6466
    %v6468 = vpop.f32.mrf.mxu0
    %v6469 = vadd.f32 %v6324, %v6468
    %v6470 = vpop.f32.mrf.mxu0
    %v6471 = vand.u32 %v58, 4294901760
    %v6472 = vsub.f32 %v58, %v6471
    %6473 = vmatprep.mubr.f32.mxu0 %v6472
    %v6474 = vand.u32 %v57, 4294901760
    %v6475 = vsub.f32 %v57, %v6474
    %6476 = vmatmul.mubr.f32.gmra.mxu0 %v6475
    %v6477 = vpop.f32.mrf.mxu0
    %v6478 = vadd.f32 %v6331, %v6477
    %v6479 = vpop.f32.mrf.mxu0
    %6480 = vdwg.mxu0
    %6481 = vmatprep.subr.mxu0 0.0
    %v6482 = vand.u32 %v276, 4294901760
    %6483 = vmatpush1.msra.mxu0 %v6482
    %6484 = vmatprep.subr.mxu0 0.0
    %v6485 = vand.u32 %v275, 4294901760
    %6486 = vmatpush1.msra.mxu0 %v6485
    %6487 = vmatprep.subr.mxu0 0.0
    %v6488 = vand.u32 %v274, 4294901760
    %6489 = vmatpush1.msra.mxu0 %v6488
    %6490 = vmatprep.subr.mxu0 0.0
    %v6491 = vand.u32 %v273, 4294901760
    %6492 = vmatpush1.msra.mxu0 %v6491
    %6493 = vmatprep.subr.mxu0 0.0
    %v6494 = vand.u32 %v272, 4294901760
    %6495 = vmatpush1.msra.mxu0 %v6494
    %6496 = vmatprep.subr.mxu0 0.0
    %v6497 = vand.u32 %v271, 4294901760
    %6498 = vmatpush1.msra.mxu0 %v6497
    %6499 = vmatprep.subr.mxu0 0.0
    %v6500 = vand.u32 %v270, 4294901760
    %6501 = vmatpush1.msra.mxu0 %v6500
    %6502 = vmatprep.subr.mxu0 0.0
    %v6503 = vand.u32 %v269, 4294901760
    %6504 = vmatpush1.msra.mxu0 %v6503
    %6505 = vmatprep.subr.mxu0 0.0
    %v6506 = vand.u32 %v268, 4294901760
    %6507 = vmatpush1.msra.mxu0 %v6506
    %6508 = vmatprep.subr.mxu0 0.0
    %v6509 = vand.u32 %v267, 4294901760
    %6510 = vmatpush1.msra.mxu0 %v6509
    %6511 = vmatprep.subr.mxu0 0.0
    %v6512 = vand.u32 %v266, 4294901760
    %6513 = vmatpush1.msra.mxu0 %v6512
    %6514 = vmatprep.subr.mxu0 0.0
    %v6515 = vand.u32 %v265, 4294901760
    %6516 = vmatpush1.msra.mxu0 %v6515
    %6517 = vmatprep.subr.mxu0 0.0
    %v6518 = vand.u32 %v264, 4294901760
    %6519 = vmatpush1.msra.mxu0 %v6518
    %6520 = vmatprep.subr.mxu0 0.0
    %v6521 = vand.u32 %v263, 4294901760
    %6522 = vmatpush1.msra.mxu0 %v6521
    %6523 = vmatprep.subr.mxu0 0.0
    %v6524 = vand.u32 %v262, 4294901760
    %6525 = vmatpush1.msra.mxu0 %v6524
    %6526 = vmatprep.subr.mxu0 0.0
    %v6527 = vand.u32 %v261, 4294901760
    %6528 = vmatpush1.msra.mxu0 %v6527
    %6529 = vmatprep.subr.mxu0 0.0
    %v6530 = vand.u32 %v292, 4294901760
    %6531 = vmatpush2.msra.mxu0 %v6530
    %6532 = vmatprep.subr.mxu0 0.0
    %v6533 = vand.u32 %v291, 4294901760
    %6534 = vmatpush2.msra.mxu0 %v6533
    %6535 = vmatprep.subr.mxu0 0.0
    %v6536 = vand.u32 %v290, 4294901760
    %6537 = vmatpush2.msra.mxu0 %v6536
    %6538 = vmatprep.subr.mxu0 0.0
    %v6539 = vand.u32 %v289, 4294901760
    %6540 = vmatpush2.msra.mxu0 %v6539
    %6541 = vmatprep.subr.mxu0 0.0
    %v6542 = vand.u32 %v288, 4294901760
    %6543 = vmatpush2.msra.mxu0 %v6542
    %6544 = vmatprep.subr.mxu0 0.0
    %v6545 = vand.u32 %v287, 4294901760
    %6546 = vmatpush2.msra.mxu0 %v6545
    %6547 = vmatprep.subr.mxu0 0.0
    %v6548 = vand.u32 %v286, 4294901760
    %6549 = vmatpush2.msra.mxu0 %v6548
    %6550 = vmatprep.subr.mxu0 0.0
    %v6551 = vand.u32 %v285, 4294901760
    %6552 = vmatpush2.msra.mxu0 %v6551
    %6553 = vmatprep.subr.mxu0 0.0
    %v6554 = vand.u32 %v284, 4294901760
    %6555 = vmatpush2.msra.mxu0 %v6554
    %6556 = vmatprep.subr.mxu0 0.0
    %v6557 = vand.u32 %v283, 4294901760
    %6558 = vmatpush2.msra.mxu0 %v6557
    %6559 = vmatprep.subr.mxu0 0.0
    %v6560 = vand.u32 %v282, 4294901760
    %6561 = vmatpush2.msra.mxu0 %v6560
    %6562 = vmatprep.subr.mxu0 0.0
    %v6563 = vand.u32 %v281, 4294901760
    %6564 = vmatpush2.msra.mxu0 %v6563
    %6565 = vmatprep.subr.mxu0 0.0
    %v6566 = vand.u32 %v280, 4294901760
    %6567 = vmatpush2.msra.mxu0 %v6566
    %6568 = vmatprep.subr.mxu0 0.0
    %v6569 = vand.u32 %v279, 4294901760
    %6570 = vmatpush2.msra.mxu0 %v6569
    %6571 = vmatprep.subr.mxu0 0.0
    %v6572 = vand.u32 %v278, 4294901760
    %6573 = vmatpush2.msra.mxu0 %v6572
    %6574 = vmatprep.subr.mxu0 0.0
    %v6575 = vand.u32 %v277, 4294901760
    %6576 = vmatpush2.msra.mxu0 %v6575
    %v6577 = vand.u32 %v34, 4294901760
    %v6578 = vsub.f32 %v34, %v6577
    %v6579 = vand.u32 %v6578, 4294901760
    %6580 = vmatprep.mubr.f32.mxu0 %v6579
    %v6581 = vand.u32 %v33, 4294901760
    %v6582 = vsub.f32 %v33, %v6581
    %v6583 = vand.u32 %v6582, 4294901760
    %6584 = vmatmul.mubr.f32.gmra.mxu0 %v6583
    %v6585 = vpop.f32.mrf.mxu0
    %v6586 = vadd.f32 %v6469, %v6585
    %v6587 = vpop.f32.mrf.mxu0
    %v6588 = vand.u32 %v58, 4294901760
    %v6589 = vsub.f32 %v58, %v6588
    %v6590 = vand.u32 %v6589, 4294901760
    %6591 = vmatprep.mubr.f32.mxu0 %v6590
    %v6592 = vand.u32 %v57, 4294901760
    %v6593 = vsub.f32 %v57, %v6592
    %v6594 = vand.u32 %v6593, 4294901760
    %6595 = vmatmul.mubr.f32.gmra.mxu0 %v6594
    %v6596 = vpop.f32.mrf.mxu0
    %v6597 = vadd.f32 %v6478, %v6596
    %v6598 = vpop.f32.mrf.mxu0
    %6599 = vdwg.mxu0
    %6600 = vmatprep.subr.mxu0 0.0
    %v6601 = vand.u32 %v276, 4294901760
    %v6602 = vsub.f32 %v276, %v6601
    %v6603 = vand.u32 %v6602, 4294901760
    %6604 = vmatpush1.msra.mxu0 %v6603
    %6605 = vmatprep.subr.mxu0 0.0
    %v6606 = vand.u32 %v275, 4294901760
    %v6607 = vsub.f32 %v275, %v6606
    %v6608 = vand.u32 %v6607, 4294901760
    %6609 = vmatpush1.msra.mxu0 %v6608
    %6610 = vmatprep.subr.mxu0 0.0
    %v6611 = vand.u32 %v274, 4294901760
    %v6612 = vsub.f32 %v274, %v6611
    %v6613 = vand.u32 %v6612, 4294901760
    %6614 = vmatpush1.msra.mxu0 %v6613
    %6615 = vmatprep.subr.mxu0 0.0
    %v6616 = vand.u32 %v273, 4294901760
    %v6617 = vsub.f32 %v273, %v6616
    %v6618 = vand.u32 %v6617, 4294901760
    %6619 = vmatpush1.msra.mxu0 %v6618
    %6620 = vmatprep.subr.mxu0 0.0
    %v6621 = vand.u32 %v272, 4294901760
    %v6622 = vsub.f32 %v272, %v6621
    %v6623 = vand.u32 %v6622, 4294901760
    %6624 = vmatpush1.msra.mxu0 %v6623
    %6625 = vmatprep.subr.mxu0 0.0
    %v6626 = vand.u32 %v271, 4294901760
    %v6627 = vsub.f32 %v271, %v6626
    %v6628 = vand.u32 %v6627, 4294901760
    %6629 = vmatpush1.msra.mxu0 %v6628
    %6630 = vmatprep.subr.mxu0 0.0
    %v6631 = vand.u32 %v270, 4294901760
    %v6632 = vsub.f32 %v270, %v6631
    %v6633 = vand.u32 %v6632, 4294901760
    %6634 = vmatpush1.msra.mxu0 %v6633
    %6635 = vmatprep.subr.mxu0 0.0
    %v6636 = vand.u32 %v269, 4294901760
    %v6637 = vsub.f32 %v269, %v6636
    %v6638 = vand.u32 %v6637, 4294901760
    %6639 = vmatpush1.msra.mxu0 %v6638
    %6640 = vmatprep.subr.mxu0 0.0
    %v6641 = vand.u32 %v268, 4294901760
    %v6642 = vsub.f32 %v268, %v6641
    %v6643 = vand.u32 %v6642, 4294901760
    %6644 = vmatpush1.msra.mxu0 %v6643
    %6645 = vmatprep.subr.mxu0 0.0
    %v6646 = vand.u32 %v267, 4294901760
    %v6647 = vsub.f32 %v267, %v6646
    %v6648 = vand.u32 %v6647, 4294901760
    %6649 = vmatpush1.msra.mxu0 %v6648
    %6650 = vmatprep.subr.mxu0 0.0
    %v6651 = vand.u32 %v266, 4294901760
    %v6652 = vsub.f32 %v266, %v6651
    %v6653 = vand.u32 %v6652, 4294901760
    %6654 = vmatpush1.msra.mxu0 %v6653
    %6655 = vmatprep.subr.mxu0 0.0
    %v6656 = vand.u32 %v265, 4294901760
    %v6657 = vsub.f32 %v265, %v6656
    %v6658 = vand.u32 %v6657, 4294901760
    %6659 = vmatpush1.msra.mxu0 %v6658
    %6660 = vmatprep.subr.mxu0 0.0
    %v6661 = vand.u32 %v264, 4294901760
    %v6662 = vsub.f32 %v264, %v6661
    %v6663 = vand.u32 %v6662, 4294901760
    %6664 = vmatpush1.msra.mxu0 %v6663
    %6665 = vmatprep.subr.mxu0 0.0
    %v6666 = vand.u32 %v263, 4294901760
    %v6667 = vsub.f32 %v263, %v6666
    %v6668 = vand.u32 %v6667, 4294901760
    %6669 = vmatpush1.msra.mxu0 %v6668
    %6670 = vmatprep.subr.mxu0 0.0
    %v6671 = vand.u32 %v262, 4294901760
    %v6672 = vsub.f32 %v262, %v6671
    %v6673 = vand.u32 %v6672, 4294901760
    %6674 = vmatpush1.msra.mxu0 %v6673
    %6675 = vmatprep.subr.mxu0 0.0
    %v6676 = vand.u32 %v261, 4294901760
    %v6677 = vsub.f32 %v261, %v6676
    %v6678 = vand.u32 %v6677, 4294901760
    %6679 = vmatpush1.msra.mxu0 %v6678
    %6680 = vmatprep.subr.mxu0 0.0
    %v6681 = vand.u32 %v292, 4294901760
    %v6682 = vsub.f32 %v292, %v6681
    %v6683 = vand.u32 %v6682, 4294901760
    %6684 = vmatpush2.msra.mxu0 %v6683
    %6685 = vmatprep.subr.mxu0 0.0
    %v6686 = vand.u32 %v291, 4294901760
    %v6687 = vsub.f32 %v291, %v6686
    %v6688 = vand.u32 %v6687, 4294901760
    %6689 = vmatpush2.msra.mxu0 %v6688
    %6690 = vmatprep.subr.mxu0 0.0
    %v6691 = vand.u32 %v290, 4294901760
    %v6692 = vsub.f32 %v290, %v6691
    %v6693 = vand.u32 %v6692, 4294901760
    %6694 = vmatpush2.msra.mxu0 %v6693
    %6695 = vmatprep.subr.mxu0 0.0
    %v6696 = vand.u32 %v289, 4294901760
    %v6697 = vsub.f32 %v289, %v6696
    %v6698 = vand.u32 %v6697, 4294901760
    %6699 = vmatpush2.msra.mxu0 %v6698
    %6700 = vmatprep.subr.mxu0 0.0
    %v6701 = vand.u32 %v288, 4294901760
    %v6702 = vsub.f32 %v288, %v6701
    %v6703 = vand.u32 %v6702, 4294901760
    %6704 = vmatpush2.msra.mxu0 %v6703
    %6705 = vmatprep.subr.mxu0 0.0
    %v6706 = vand.u32 %v287, 4294901760
    %v6707 = vsub.f32 %v287, %v6706
    %v6708 = vand.u32 %v6707, 4294901760
    %6709 = vmatpush2.msra.mxu0 %v6708
    %6710 = vmatprep.subr.mxu0 0.0
    %v6711 = vand.u32 %v286, 4294901760
    %v6712 = vsub.f32 %v286, %v6711
    %v6713 = vand.u32 %v6712, 4294901760
    %6714 = vmatpush2.msra.mxu0 %v6713
    %6715 = vmatprep.subr.mxu0 0.0
    %v6716 = vand.u32 %v285, 4294901760
    %v6717 = vsub.f32 %v285, %v6716
    %v6718 = vand.u32 %v6717, 4294901760
    %6719 = vmatpush2.msra.mxu0 %v6718
    %6720 = vmatprep.subr.mxu0 0.0
    %v6721 = vand.u32 %v284, 4294901760
    %v6722 = vsub.f32 %v284, %v6721
    %v6723 = vand.u32 %v6722, 4294901760
    %6724 = vmatpush2.msra.mxu0 %v6723
    %6725 = vmatprep.subr.mxu0 0.0
    %v6726 = vand.u32 %v283, 4294901760
    %v6727 = vsub.f32 %v283, %v6726
    %v6728 = vand.u32 %v6727, 4294901760
    %6729 = vmatpush2.msra.mxu0 %v6728
    %6730 = vmatprep.subr.mxu0 0.0
    %v6731 = vand.u32 %v282, 4294901760
    %v6732 = vsub.f32 %v282, %v6731
    %v6733 = vand.u32 %v6732, 4294901760
    %6734 = vmatpush2.msra.mxu0 %v6733
    %6735 = vmatprep.subr.mxu0 0.0
    %v6736 = vand.u32 %v281, 4294901760
    %v6737 = vsub.f32 %v281, %v6736
    %v6738 = vand.u32 %v6737, 4294901760
    %6739 = vmatpush2.msra.mxu0 %v6738
    %6740 = vmatprep.subr.mxu0 0.0
    %v6741 = vand.u32 %v280, 4294901760
    %v6742 = vsub.f32 %v280, %v6741
    %v6743 = vand.u32 %v6742, 4294901760
    %6744 = vmatpush2.msra.mxu0 %v6743
    %6745 = vmatprep.subr.mxu0 0.0
    %v6746 = vand.u32 %v279, 4294901760
    %v6747 = vsub.f32 %v279, %v6746
    %v6748 = vand.u32 %v6747, 4294901760
    %6749 = vmatpush2.msra.mxu0 %v6748
    %6750 = vmatprep.subr.mxu0 0.0
    %v6751 = vand.u32 %v278, 4294901760
    %v6752 = vsub.f32 %v278, %v6751
    %v6753 = vand.u32 %v6752, 4294901760
    %6754 = vmatpush2.msra.mxu0 %v6753
    %6755 = vmatprep.subr.mxu0 0.0
    %v6756 = vand.u32 %v277, 4294901760
    %v6757 = vsub.f32 %v277, %v6756
    %v6758 = vand.u32 %v6757, 4294901760
    %6759 = vmatpush2.msra.mxu0 %v6758
    %v6760 = vand.u32 %v34, 4294901760
    %6761 = vmatprep.mubr.f32.mxu0 %v6760
    %v6762 = vand.u32 %v33, 4294901760
    %6763 = vmatmul.mubr.f32.gmra.mxu0 %v6762
    %v6764 = vpop.f32.mrf.mxu0
    %v6765 = vadd.f32 %v6586, %v6764
    %v6766 = vpop.f32.mrf.mxu0
    %v6767 = vand.u32 %v58, 4294901760
    %6768 = vmatprep.mubr.f32.mxu0 %v6767
    %v6769 = vand.u32 %v57, 4294901760
    %6770 = vmatmul.mubr.f32.gmra.mxu0 %v6769
    %v6771 = vpop.f32.mrf.mxu0
    %v6772 = vadd.f32 %v6597, %v6771
    %v6773 = vpop.f32.mrf.mxu0
    %6774 = vdwg.mxu0
    %6775 = vmatprep.subr.mxu0 0.0
    %v6776 = vand.u32 %v276, 4294901760
    %6777 = vmatpush1.msra.mxu0 %v6776
    %6778 = vmatprep.subr.mxu0 0.0
    %v6779 = vand.u32 %v275, 4294901760
    %6780 = vmatpush1.msra.mxu0 %v6779
    %6781 = vmatprep.subr.mxu0 0.0
    %v6782 = vand.u32 %v274, 4294901760
    %6783 = vmatpush1.msra.mxu0 %v6782
    %6784 = vmatprep.subr.mxu0 0.0
    %v6785 = vand.u32 %v273, 4294901760
    %6786 = vmatpush1.msra.mxu0 %v6785
    %6787 = vmatprep.subr.mxu0 0.0
    %v6788 = vand.u32 %v272, 4294901760
    %6789 = vmatpush1.msra.mxu0 %v6788
    %6790 = vmatprep.subr.mxu0 0.0
    %v6791 = vand.u32 %v271, 4294901760
    %6792 = vmatpush1.msra.mxu0 %v6791
    %6793 = vmatprep.subr.mxu0 0.0
    %v6794 = vand.u32 %v270, 4294901760
    %6795 = vmatpush1.msra.mxu0 %v6794
    %6796 = vmatprep.subr.mxu0 0.0
    %v6797 = vand.u32 %v269, 4294901760
    %6798 = vmatpush1.msra.mxu0 %v6797
    %6799 = vmatprep.subr.mxu0 0.0
    %v6800 = vand.u32 %v268, 4294901760
    %6801 = vmatpush1.msra.mxu0 %v6800
    %6802 = vmatprep.subr.mxu0 0.0
    %v6803 = vand.u32 %v267, 4294901760
    %6804 = vmatpush1.msra.mxu0 %v6803
    %6805 = vmatprep.subr.mxu0 0.0
    %v6806 = vand.u32 %v266, 4294901760
    %6807 = vmatpush1.msra.mxu0 %v6806
    %6808 = vmatprep.subr.mxu0 0.0
    %v6809 = vand.u32 %v265, 4294901760
    %6810 = vmatpush1.msra.mxu0 %v6809
    %6811 = vmatprep.subr.mxu0 0.0
    %v6812 = vand.u32 %v264, 4294901760
    %6813 = vmatpush1.msra.mxu0 %v6812
    %6814 = vmatprep.subr.mxu0 0.0
    %v6815 = vand.u32 %v263, 4294901760
    %6816 = vmatpush1.msra.mxu0 %v6815
    %6817 = vmatprep.subr.mxu0 0.0
    %v6818 = vand.u32 %v262, 4294901760
    %6819 = vmatpush1.msra.mxu0 %v6818
    %6820 = vmatprep.subr.mxu0 0.0
    %v6821 = vand.u32 %v261, 4294901760
    %6822 = vmatpush1.msra.mxu0 %v6821
    %6823 = vmatprep.subr.mxu0 0.0
    %v6824 = vand.u32 %v292, 4294901760
    %6825 = vmatpush2.msra.mxu0 %v6824
    %6826 = vmatprep.subr.mxu0 0.0
    %v6827 = vand.u32 %v291, 4294901760
    %6828 = vmatpush2.msra.mxu0 %v6827
    %6829 = vmatprep.subr.mxu0 0.0
    %v6830 = vand.u32 %v290, 4294901760
    %6831 = vmatpush2.msra.mxu0 %v6830
    %6832 = vmatprep.subr.mxu0 0.0
    %v6833 = vand.u32 %v289, 4294901760
    %6834 = vmatpush2.msra.mxu0 %v6833
    %6835 = vmatprep.subr.mxu0 0.0
    %v6836 = vand.u32 %v288, 4294901760
    %6837 = vmatpush2.msra.mxu0 %v6836
    %6838 = vmatprep.subr.mxu0 0.0
    %v6839 = vand.u32 %v287, 4294901760
    %6840 = vmatpush2.msra.mxu0 %v6839
    %6841 = vmatprep.subr.mxu0 0.0
    %v6842 = vand.u32 %v286, 4294901760
    %6843 = vmatpush2.msra.mxu0 %v6842
    %6844 = vmatprep.subr.mxu0 0.0
    %v6845 = vand.u32 %v285, 4294901760
    %6846 = vmatpush2.msra.mxu0 %v6845
    %6847 = vmatprep.subr.mxu0 0.0
    %v6848 = vand.u32 %v284, 4294901760
    %6849 = vmatpush2.msra.mxu0 %v6848
    %6850 = vmatprep.subr.mxu0 0.0
    %v6851 = vand.u32 %v283, 4294901760
    %6852 = vmatpush2.msra.mxu0 %v6851
    %6853 = vmatprep.subr.mxu0 0.0
    %v6854 = vand.u32 %v282, 4294901760
    %6855 = vmatpush2.msra.mxu0 %v6854
    %6856 = vmatprep.subr.mxu0 0.0
    %v6857 = vand.u32 %v281, 4294901760
    %6858 = vmatpush2.msra.mxu0 %v6857
    %6859 = vmatprep.subr.mxu0 0.0
    %v6860 = vand.u32 %v280, 4294901760
    %6861 = vmatpush2.msra.mxu0 %v6860
    %6862 = vmatprep.subr.mxu0 0.0
    %v6863 = vand.u32 %v279, 4294901760
    %6864 = vmatpush2.msra.mxu0 %v6863
    %6865 = vmatprep.subr.mxu0 0.0
    %v6866 = vand.u32 %v278, 4294901760
    %6867 = vmatpush2.msra.mxu0 %v6866
    %6868 = vmatprep.subr.mxu0 0.0
    %v6869 = vand.u32 %v277, 4294901760
    %6870 = vmatpush2.msra.mxu0 %v6869
    %v6871 = vand.u32 %v34, 4294901760
    %6872 = vmatprep.mubr.f32.mxu0 %v6871
    %v6873 = vand.u32 %v33, 4294901760
    %6874 = vmatmul.mubr.f32.gmra.mxu0 %v6873
    %v6875 = vpop.f32.mrf.mxu0
    %v6876 = vadd.f32 %v6765, %v6875
    %v6877 = vpop.f32.mrf.mxu0
    %v6878 = vand.u32 %v58, 4294901760
    %6879 = vmatprep.mubr.f32.mxu0 %v6878
    %v6880 = vand.u32 %v57, 4294901760
    %6881 = vmatmul.mubr.f32.gmra.mxu0 %v6880
    %v6882 = vpop.f32.mrf.mxu0
    %v6883 = vadd.f32 %v6772, %v6882
    %v6884 = vpop.f32.mrf.mxu0
    %6885 = vdwg.mxu0
    %6886 = vmatprep.subr.mxu0 0.0
    %v6887 = vand.u32 %v308, 4294901760
    %6888 = vmatpush1.msra.mxu0 %v6887
    %6889 = vmatprep.subr.mxu0 0.0
    %v6890 = vand.u32 %v307, 4294901760
    %6891 = vmatpush1.msra.mxu0 %v6890
    %6892 = vmatprep.subr.mxu0 0.0
    %v6893 = vand.u32 %v306, 4294901760
    %6894 = vmatpush1.msra.mxu0 %v6893
    %6895 = vmatprep.subr.mxu0 0.0
    %v6896 = vand.u32 %v305, 4294901760
    %6897 = vmatpush1.msra.mxu0 %v6896
    %6898 = vmatprep.subr.mxu0 0.0
    %v6899 = vand.u32 %v304, 4294901760
    %6900 = vmatpush1.msra.mxu0 %v6899
    %6901 = vmatprep.subr.mxu0 0.0
    %v6902 = vand.u32 %v303, 4294901760
    %6903 = vmatpush1.msra.mxu0 %v6902
    %6904 = vmatprep.subr.mxu0 0.0
    %v6905 = vand.u32 %v302, 4294901760
    %6906 = vmatpush1.msra.mxu0 %v6905
    %6907 = vmatprep.subr.mxu0 0.0
    %v6908 = vand.u32 %v301, 4294901760
    %6909 = vmatpush1.msra.mxu0 %v6908
    %6910 = vmatprep.subr.mxu0 0.0
    %v6911 = vand.u32 %v300, 4294901760
    %6912 = vmatpush1.msra.mxu0 %v6911
    %6913 = vmatprep.subr.mxu0 0.0
    %v6914 = vand.u32 %v299, 4294901760
    %6915 = vmatpush1.msra.mxu0 %v6914
    %6916 = vmatprep.subr.mxu0 0.0
    %v6917 = vand.u32 %v298, 4294901760
    %6918 = vmatpush1.msra.mxu0 %v6917
    %6919 = vmatprep.subr.mxu0 0.0
    %v6920 = vand.u32 %v297, 4294901760
    %6921 = vmatpush1.msra.mxu0 %v6920
    %6922 = vmatprep.subr.mxu0 0.0
    %v6923 = vand.u32 %v296, 4294901760
    %6924 = vmatpush1.msra.mxu0 %v6923
    %6925 = vmatprep.subr.mxu0 0.0
    %v6926 = vand.u32 %v295, 4294901760
    %6927 = vmatpush1.msra.mxu0 %v6926
    %6928 = vmatprep.subr.mxu0 0.0
    %v6929 = vand.u32 %v294, 4294901760
    %6930 = vmatpush1.msra.mxu0 %v6929
    %6931 = vmatprep.subr.mxu0 0.0
    %v6932 = vand.u32 %v293, 4294901760
    %6933 = vmatpush1.msra.mxu0 %v6932
    %6934 = vmatprep.subr.mxu0 0.0
    %v6935 = vand.u32 %v324, 4294901760
    %6936 = vmatpush2.msra.mxu0 %v6935
    %6937 = vmatprep.subr.mxu0 0.0
    %v6938 = vand.u32 %v323, 4294901760
    %6939 = vmatpush2.msra.mxu0 %v6938
    %6940 = vmatprep.subr.mxu0 0.0
    %v6941 = vand.u32 %v322, 4294901760
    %6942 = vmatpush2.msra.mxu0 %v6941
    %6943 = vmatprep.subr.mxu0 0.0
    %v6944 = vand.u32 %v321, 4294901760
    %6945 = vmatpush2.msra.mxu0 %v6944
    %6946 = vmatprep.subr.mxu0 0.0
    %v6947 = vand.u32 %v320, 4294901760
    %6948 = vmatpush2.msra.mxu0 %v6947
    %6949 = vmatprep.subr.mxu0 0.0
    %v6950 = vand.u32 %v319, 4294901760
    %6951 = vmatpush2.msra.mxu0 %v6950
    %6952 = vmatprep.subr.mxu0 0.0
    %v6953 = vand.u32 %v318, 4294901760
    %6954 = vmatpush2.msra.mxu0 %v6953
    %6955 = vmatprep.subr.mxu0 0.0
    %v6956 = vand.u32 %v317, 4294901760
    %6957 = vmatpush2.msra.mxu0 %v6956
    %6958 = vmatprep.subr.mxu0 0.0
    %v6959 = vand.u32 %v316, 4294901760
    %6960 = vmatpush2.msra.mxu0 %v6959
    %6961 = vmatprep.subr.mxu0 0.0
    %v6962 = vand.u32 %v315, 4294901760
    %6963 = vmatpush2.msra.mxu0 %v6962
    %6964 = vmatprep.subr.mxu0 0.0
    %v6965 = vand.u32 %v314, 4294901760
    %6966 = vmatpush2.msra.mxu0 %v6965
    %6967 = vmatprep.subr.mxu0 0.0
    %v6968 = vand.u32 %v313, 4294901760
    %6969 = vmatpush2.msra.mxu0 %v6968
    %6970 = vmatprep.subr.mxu0 0.0
    %v6971 = vand.u32 %v312, 4294901760
    %6972 = vmatpush2.msra.mxu0 %v6971
    %6973 = vmatprep.subr.mxu0 0.0
    %v6974 = vand.u32 %v311, 4294901760
    %6975 = vmatpush2.msra.mxu0 %v6974
    %6976 = vmatprep.subr.mxu0 0.0
    %v6977 = vand.u32 %v310, 4294901760
    %6978 = vmatpush2.msra.mxu0 %v6977
    %6979 = vmatprep.subr.mxu0 0.0
    %v6980 = vand.u32 %v309, 4294901760
    %6981 = vmatpush2.msra.mxu0 %v6980
    %v6982 = vand.u32 %v36, 4294901760
    %v6983 = vsub.f32 %v36, %v6982
    %v6984 = vand.u32 %v6983, 4294901760
    %v6985 = vsub.f32 %v6983, %v6984
    %v6986 = vand.u32 %v6985, 4294901760
    %6987 = vmatprep.mubr.f32.mxu0 %v6986
    %v6988 = vand.u32 %v35, 4294901760
    %v6989 = vsub.f32 %v35, %v6988
    %v6990 = vand.u32 %v6989, 4294901760
    %v6991 = vsub.f32 %v6989, %v6990
    %v6992 = vand.u32 %v6991, 4294901760
    %6993 = vmatmul.mubr.f32.gmra.mxu0 %v6992
    %v6994 = vpop.f32.mrf.mxu0
    %v6995 = vadd.f32 %v6876, %v6994
    %v6996 = vpop.f32.mrf.mxu0
    %v6997 = vand.u32 %v60, 4294901760
    %v6998 = vsub.f32 %v60, %v6997
    %v6999 = vand.u32 %v6998, 4294901760
    %v7000 = vsub.f32 %v6998, %v6999
    %v7001 = vand.u32 %v7000, 4294901760
    %7002 = vmatprep.mubr.f32.mxu0 %v7001
    %v7003 = vand.u32 %v59, 4294901760
    %v7004 = vsub.f32 %v59, %v7003
    %v7005 = vand.u32 %v7004, 4294901760
    %v7006 = vsub.f32 %v7004, %v7005
    %v7007 = vand.u32 %v7006, 4294901760
    %7008 = vmatmul.mubr.f32.gmra.mxu0 %v7007
    %v7009 = vpop.f32.mrf.mxu0
    %v7010 = vadd.f32 %v6883, %v7009
    %v7011 = vpop.f32.mrf.mxu0
    %7012 = vdwg.mxu0
    %7013 = vmatprep.subr.mxu0 0.0
    %v7014 = vand.u32 %v308, 4294901760
    %v7015 = vsub.f32 %v308, %v7014
    %v7016 = vand.u32 %v7015, 4294901760
    %v7017 = vsub.f32 %v7015, %v7016
    %v7018 = vand.u32 %v7017, 4294901760
    %7019 = vmatpush1.msra.mxu0 %v7018
    %7020 = vmatprep.subr.mxu0 0.0
    %v7021 = vand.u32 %v307, 4294901760
    %v7022 = vsub.f32 %v307, %v7021
    %v7023 = vand.u32 %v7022, 4294901760
    %v7024 = vsub.f32 %v7022, %v7023
    %v7025 = vand.u32 %v7024, 4294901760
    %7026 = vmatpush1.msra.mxu0 %v7025
    %7027 = vmatprep.subr.mxu0 0.0
    %v7028 = vand.u32 %v306, 4294901760
    %v7029 = vsub.f32 %v306, %v7028
    %v7030 = vand.u32 %v7029, 4294901760
    %v7031 = vsub.f32 %v7029, %v7030
    %v7032 = vand.u32 %v7031, 4294901760
    %7033 = vmatpush1.msra.mxu0 %v7032
    %7034 = vmatprep.subr.mxu0 0.0
    %v7035 = vand.u32 %v305, 4294901760
    %v7036 = vsub.f32 %v305, %v7035
    %v7037 = vand.u32 %v7036, 4294901760
    %v7038 = vsub.f32 %v7036, %v7037
    %v7039 = vand.u32 %v7038, 4294901760
    %7040 = vmatpush1.msra.mxu0 %v7039
    %7041 = vmatprep.subr.mxu0 0.0
    %v7042 = vand.u32 %v304, 4294901760
    %v7043 = vsub.f32 %v304, %v7042
    %v7044 = vand.u32 %v7043, 4294901760
    %v7045 = vsub.f32 %v7043, %v7044
    %v7046 = vand.u32 %v7045, 4294901760
    %7047 = vmatpush1.msra.mxu0 %v7046
    %7048 = vmatprep.subr.mxu0 0.0
    %v7049 = vand.u32 %v303, 4294901760
    %v7050 = vsub.f32 %v303, %v7049
    %v7051 = vand.u32 %v7050, 4294901760
    %v7052 = vsub.f32 %v7050, %v7051
    %v7053 = vand.u32 %v7052, 4294901760
    %7054 = vmatpush1.msra.mxu0 %v7053
    %7055 = vmatprep.subr.mxu0 0.0
    %v7056 = vand.u32 %v302, 4294901760
    %v7057 = vsub.f32 %v302, %v7056
    %v7058 = vand.u32 %v7057, 4294901760
    %v7059 = vsub.f32 %v7057, %v7058
    %v7060 = vand.u32 %v7059, 4294901760
    %7061 = vmatpush1.msra.mxu0 %v7060
    %7062 = vmatprep.subr.mxu0 0.0
    %v7063 = vand.u32 %v301, 4294901760
    %v7064 = vsub.f32 %v301, %v7063
    %v7065 = vand.u32 %v7064, 4294901760
    %v7066 = vsub.f32 %v7064, %v7065
    %v7067 = vand.u32 %v7066, 4294901760
    %7068 = vmatpush1.msra.mxu0 %v7067
    %7069 = vmatprep.subr.mxu0 0.0
    %v7070 = vand.u32 %v300, 4294901760
    %v7071 = vsub.f32 %v300, %v7070
    %v7072 = vand.u32 %v7071, 4294901760
    %v7073 = vsub.f32 %v7071, %v7072
    %v7074 = vand.u32 %v7073, 4294901760
    %7075 = vmatpush1.msra.mxu0 %v7074
    %7076 = vmatprep.subr.mxu0 0.0
    %v7077 = vand.u32 %v299, 4294901760
    %v7078 = vsub.f32 %v299, %v7077
    %v7079 = vand.u32 %v7078, 4294901760
    %v7080 = vsub.f32 %v7078, %v7079
    %v7081 = vand.u32 %v7080, 4294901760
    %7082 = vmatpush1.msra.mxu0 %v7081
    %7083 = vmatprep.subr.mxu0 0.0
    %v7084 = vand.u32 %v298, 4294901760
    %v7085 = vsub.f32 %v298, %v7084
    %v7086 = vand.u32 %v7085, 4294901760
    %v7087 = vsub.f32 %v7085, %v7086
    %v7088 = vand.u32 %v7087, 4294901760
    %7089 = vmatpush1.msra.mxu0 %v7088
    %7090 = vmatprep.subr.mxu0 0.0
    %v7091 = vand.u32 %v297, 4294901760
    %v7092 = vsub.f32 %v297, %v7091
    %v7093 = vand.u32 %v7092, 4294901760
    %v7094 = vsub.f32 %v7092, %v7093
    %v7095 = vand.u32 %v7094, 4294901760
    %7096 = vmatpush1.msra.mxu0 %v7095
    %7097 = vmatprep.subr.mxu0 0.0
    %v7098 = vand.u32 %v296, 4294901760
    %v7099 = vsub.f32 %v296, %v7098
    %v7100 = vand.u32 %v7099, 4294901760
    %v7101 = vsub.f32 %v7099, %v7100
    %v7102 = vand.u32 %v7101, 4294901760
    %7103 = vmatpush1.msra.mxu0 %v7102
    %7104 = vmatprep.subr.mxu0 0.0
    %v7105 = vand.u32 %v295, 4294901760
    %v7106 = vsub.f32 %v295, %v7105
    %v7107 = vand.u32 %v7106, 4294901760
    %v7108 = vsub.f32 %v7106, %v7107
    %v7109 = vand.u32 %v7108, 4294901760
    %7110 = vmatpush1.msra.mxu0 %v7109
    %7111 = vmatprep.subr.mxu0 0.0
    %v7112 = vand.u32 %v294, 4294901760
    %v7113 = vsub.f32 %v294, %v7112
    %v7114 = vand.u32 %v7113, 4294901760
    %v7115 = vsub.f32 %v7113, %v7114
    %v7116 = vand.u32 %v7115, 4294901760
    %7117 = vmatpush1.msra.mxu0 %v7116
    %7118 = vmatprep.subr.mxu0 0.0
    %v7119 = vand.u32 %v293, 4294901760
    %v7120 = vsub.f32 %v293, %v7119
    %v7121 = vand.u32 %v7120, 4294901760
    %v7122 = vsub.f32 %v7120, %v7121
    %v7123 = vand.u32 %v7122, 4294901760
    %7124 = vmatpush1.msra.mxu0 %v7123
    %7125 = vmatprep.subr.mxu0 0.0
    %v7126 = vand.u32 %v324, 4294901760
    %v7127 = vsub.f32 %v324, %v7126
    %v7128 = vand.u32 %v7127, 4294901760
    %v7129 = vsub.f32 %v7127, %v7128
    %v7130 = vand.u32 %v7129, 4294901760
    %7131 = vmatpush2.msra.mxu0 %v7130
    %7132 = vmatprep.subr.mxu0 0.0
    %v7133 = vand.u32 %v323, 4294901760
    %v7134 = vsub.f32 %v323, %v7133
    %v7135 = vand.u32 %v7134, 4294901760
    %v7136 = vsub.f32 %v7134, %v7135
    %v7137 = vand.u32 %v7136, 4294901760
    %7138 = vmatpush2.msra.mxu0 %v7137
    %7139 = vmatprep.subr.mxu0 0.0
    %v7140 = vand.u32 %v322, 4294901760
    %v7141 = vsub.f32 %v322, %v7140
    %v7142 = vand.u32 %v7141, 4294901760
    %v7143 = vsub.f32 %v7141, %v7142
    %v7144 = vand.u32 %v7143, 4294901760
    %7145 = vmatpush2.msra.mxu0 %v7144
    %7146 = vmatprep.subr.mxu0 0.0
    %v7147 = vand.u32 %v321, 4294901760
    %v7148 = vsub.f32 %v321, %v7147
    %v7149 = vand.u32 %v7148, 4294901760
    %v7150 = vsub.f32 %v7148, %v7149
    %v7151 = vand.u32 %v7150, 4294901760
    %7152 = vmatpush2.msra.mxu0 %v7151
    %7153 = vmatprep.subr.mxu0 0.0
    %v7154 = vand.u32 %v320, 4294901760
    %v7155 = vsub.f32 %v320, %v7154
    %v7156 = vand.u32 %v7155, 4294901760
    %v7157 = vsub.f32 %v7155, %v7156
    %v7158 = vand.u32 %v7157, 4294901760
    %7159 = vmatpush2.msra.mxu0 %v7158
    %7160 = vmatprep.subr.mxu0 0.0
    %v7161 = vand.u32 %v319, 4294901760
    %v7162 = vsub.f32 %v319, %v7161
    %v7163 = vand.u32 %v7162, 4294901760
    %v7164 = vsub.f32 %v7162, %v7163
    %v7165 = vand.u32 %v7164, 4294901760
    %7166 = vmatpush2.msra.mxu0 %v7165
    %7167 = vmatprep.subr.mxu0 0.0
    %v7168 = vand.u32 %v318, 4294901760
    %v7169 = vsub.f32 %v318, %v7168
    %v7170 = vand.u32 %v7169, 4294901760
    %v7171 = vsub.f32 %v7169, %v7170
    %v7172 = vand.u32 %v7171, 4294901760
    %7173 = vmatpush2.msra.mxu0 %v7172
    %7174 = vmatprep.subr.mxu0 0.0
    %v7175 = vand.u32 %v317, 4294901760
    %v7176 = vsub.f32 %v317, %v7175
    %v7177 = vand.u32 %v7176, 4294901760
    %v7178 = vsub.f32 %v7176, %v7177
    %v7179 = vand.u32 %v7178, 4294901760
    %7180 = vmatpush2.msra.mxu0 %v7179
    %7181 = vmatprep.subr.mxu0 0.0
    %v7182 = vand.u32 %v316, 4294901760
    %v7183 = vsub.f32 %v316, %v7182
    %v7184 = vand.u32 %v7183, 4294901760
    %v7185 = vsub.f32 %v7183, %v7184
    %v7186 = vand.u32 %v7185, 4294901760
    %7187 = vmatpush2.msra.mxu0 %v7186
    %7188 = vmatprep.subr.mxu0 0.0
    %v7189 = vand.u32 %v315, 4294901760
    %v7190 = vsub.f32 %v315, %v7189
    %v7191 = vand.u32 %v7190, 4294901760
    %v7192 = vsub.f32 %v7190, %v7191
    %v7193 = vand.u32 %v7192, 4294901760
    %7194 = vmatpush2.msra.mxu0 %v7193
    %7195 = vmatprep.subr.mxu0 0.0
    %v7196 = vand.u32 %v314, 4294901760
    %v7197 = vsub.f32 %v314, %v7196
    %v7198 = vand.u32 %v7197, 4294901760
    %v7199 = vsub.f32 %v7197, %v7198
    %v7200 = vand.u32 %v7199, 4294901760
    %7201 = vmatpush2.msra.mxu0 %v7200
    %7202 = vmatprep.subr.mxu0 0.0
    %v7203 = vand.u32 %v313, 4294901760
    %v7204 = vsub.f32 %v313, %v7203
    %v7205 = vand.u32 %v7204, 4294901760
    %v7206 = vsub.f32 %v7204, %v7205
    %v7207 = vand.u32 %v7206, 4294901760
    %7208 = vmatpush2.msra.mxu0 %v7207
    %7209 = vmatprep.subr.mxu0 0.0
    %v7210 = vand.u32 %v312, 4294901760
    %v7211 = vsub.f32 %v312, %v7210
    %v7212 = vand.u32 %v7211, 4294901760
    %v7213 = vsub.f32 %v7211, %v7212
    %v7214 = vand.u32 %v7213, 4294901760
    %7215 = vmatpush2.msra.mxu0 %v7214
    %7216 = vmatprep.subr.mxu0 0.0
    %v7217 = vand.u32 %v311, 4294901760
    %v7218 = vsub.f32 %v311, %v7217
    %v7219 = vand.u32 %v7218, 4294901760
    %v7220 = vsub.f32 %v7218, %v7219
    %v7221 = vand.u32 %v7220, 4294901760
    %7222 = vmatpush2.msra.mxu0 %v7221
    %7223 = vmatprep.subr.mxu0 0.0
    %v7224 = vand.u32 %v310, 4294901760
    %v7225 = vsub.f32 %v310, %v7224
    %v7226 = vand.u32 %v7225, 4294901760
    %v7227 = vsub.f32 %v7225, %v7226
    %v7228 = vand.u32 %v7227, 4294901760
    %7229 = vmatpush2.msra.mxu0 %v7228
    %7230 = vmatprep.subr.mxu0 0.0
    %v7231 = vand.u32 %v309, 4294901760
    %v7232 = vsub.f32 %v309, %v7231
    %v7233 = vand.u32 %v7232, 4294901760
    %v7234 = vsub.f32 %v7232, %v7233
    %v7235 = vand.u32 %v7234, 4294901760
    %7236 = vmatpush2.msra.mxu0 %v7235
    %v7237 = vand.u32 %v36, 4294901760
    %7238 = vmatprep.mubr.f32.mxu0 %v7237
    %v7239 = vand.u32 %v35, 4294901760
    %7240 = vmatmul.mubr.f32.gmra.mxu0 %v7239
    %v7241 = vpop.f32.mrf.mxu0
    %v7242 = vadd.f32 %v6995, %v7241
    %v7243 = vpop.f32.mrf.mxu0
    %v7244 = vand.u32 %v60, 4294901760
    %7245 = vmatprep.mubr.f32.mxu0 %v7244
    %v7246 = vand.u32 %v59, 4294901760
    %7247 = vmatmul.mubr.f32.gmra.mxu0 %v7246
    %v7248 = vpop.f32.mrf.mxu0
    %v7249 = vadd.f32 %v7010, %v7248
    %v7250 = vpop.f32.mrf.mxu0
    %7251 = vdwg.mxu0
    %7252 = vmatprep.subr.mxu0 0.0
    %v7253 = vand.u32 %v308, 4294901760
    %v7254 = vsub.f32 %v308, %v7253
    %7255 = vmatpush1.msra.mxu0 %v7254
    %7256 = vmatprep.subr.mxu0 0.0
    %v7257 = vand.u32 %v307, 4294901760
    %v7258 = vsub.f32 %v307, %v7257
    %7259 = vmatpush1.msra.mxu0 %v7258
    %7260 = vmatprep.subr.mxu0 0.0
    %v7261 = vand.u32 %v306, 4294901760
    %v7262 = vsub.f32 %v306, %v7261
    %7263 = vmatpush1.msra.mxu0 %v7262
    %7264 = vmatprep.subr.mxu0 0.0
    %v7265 = vand.u32 %v305, 4294901760
    %v7266 = vsub.f32 %v305, %v7265
    %7267 = vmatpush1.msra.mxu0 %v7266
    %7268 = vmatprep.subr.mxu0 0.0
    %v7269 = vand.u32 %v304, 4294901760
    %v7270 = vsub.f32 %v304, %v7269
    %7271 = vmatpush1.msra.mxu0 %v7270
    %7272 = vmatprep.subr.mxu0 0.0
    %v7273 = vand.u32 %v303, 4294901760
    %v7274 = vsub.f32 %v303, %v7273
    %7275 = vmatpush1.msra.mxu0 %v7274
    %7276 = vmatprep.subr.mxu0 0.0
    %v7277 = vand.u32 %v302, 4294901760
    %v7278 = vsub.f32 %v302, %v7277
    %7279 = vmatpush1.msra.mxu0 %v7278
    %7280 = vmatprep.subr.mxu0 0.0
    %v7281 = vand.u32 %v301, 4294901760
    %v7282 = vsub.f32 %v301, %v7281
    %7283 = vmatpush1.msra.mxu0 %v7282
    %7284 = vmatprep.subr.mxu0 0.0
    %v7285 = vand.u32 %v300, 4294901760
    %v7286 = vsub.f32 %v300, %v7285
    %7287 = vmatpush1.msra.mxu0 %v7286
    %7288 = vmatprep.subr.mxu0 0.0
    %v7289 = vand.u32 %v299, 4294901760
    %v7290 = vsub.f32 %v299, %v7289
    %7291 = vmatpush1.msra.mxu0 %v7290
    %7292 = vmatprep.subr.mxu0 0.0
    %v7293 = vand.u32 %v298, 4294901760
    %v7294 = vsub.f32 %v298, %v7293
    %7295 = vmatpush1.msra.mxu0 %v7294
    %7296 = vmatprep.subr.mxu0 0.0
    %v7297 = vand.u32 %v297, 4294901760
    %v7298 = vsub.f32 %v297, %v7297
    %7299 = vmatpush1.msra.mxu0 %v7298
    %7300 = vmatprep.subr.mxu0 0.0
    %v7301 = vand.u32 %v296, 4294901760
    %v7302 = vsub.f32 %v296, %v7301
    %7303 = vmatpush1.msra.mxu0 %v7302
    %7304 = vmatprep.subr.mxu0 0.0
    %v7305 = vand.u32 %v295, 4294901760
    %v7306 = vsub.f32 %v295, %v7305
    %7307 = vmatpush1.msra.mxu0 %v7306
    %7308 = vmatprep.subr.mxu0 0.0
    %v7309 = vand.u32 %v294, 4294901760
    %v7310 = vsub.f32 %v294, %v7309
    %7311 = vmatpush1.msra.mxu0 %v7310
    %7312 = vmatprep.subr.mxu0 0.0
    %v7313 = vand.u32 %v293, 4294901760
    %v7314 = vsub.f32 %v293, %v7313
    %7315 = vmatpush1.msra.mxu0 %v7314
    %7316 = vmatprep.subr.mxu0 0.0
    %v7317 = vand.u32 %v324, 4294901760
    %v7318 = vsub.f32 %v324, %v7317
    %7319 = vmatpush2.msra.mxu0 %v7318
    %7320 = vmatprep.subr.mxu0 0.0
    %v7321 = vand.u32 %v323, 4294901760
    %v7322 = vsub.f32 %v323, %v7321
    %7323 = vmatpush2.msra.mxu0 %v7322
    %7324 = vmatprep.subr.mxu0 0.0
    %v7325 = vand.u32 %v322, 4294901760
    %v7326 = vsub.f32 %v322, %v7325
    %7327 = vmatpush2.msra.mxu0 %v7326
    %7328 = vmatprep.subr.mxu0 0.0
    %v7329 = vand.u32 %v321, 4294901760
    %v7330 = vsub.f32 %v321, %v7329
    %7331 = vmatpush2.msra.mxu0 %v7330
    %7332 = vmatprep.subr.mxu0 0.0
    %v7333 = vand.u32 %v320, 4294901760
    %v7334 = vsub.f32 %v320, %v7333
    %7335 = vmatpush2.msra.mxu0 %v7334
    %7336 = vmatprep.subr.mxu0 0.0
    %v7337 = vand.u32 %v319, 4294901760
    %v7338 = vsub.f32 %v319, %v7337
    %7339 = vmatpush2.msra.mxu0 %v7338
    %7340 = vmatprep.subr.mxu0 0.0
    %v7341 = vand.u32 %v318, 4294901760
    %v7342 = vsub.f32 %v318, %v7341
    %7343 = vmatpush2.msra.mxu0 %v7342
    %7344 = vmatprep.subr.mxu0 0.0
    %v7345 = vand.u32 %v317, 4294901760
    %v7346 = vsub.f32 %v317, %v7345
    %7347 = vmatpush2.msra.mxu0 %v7346
    %7348 = vmatprep.subr.mxu0 0.0
    %v7349 = vand.u32 %v316, 4294901760
    %v7350 = vsub.f32 %v316, %v7349
    %7351 = vmatpush2.msra.mxu0 %v7350
    %7352 = vmatprep.subr.mxu0 0.0
    %v7353 = vand.u32 %v315, 4294901760
    %v7354 = vsub.f32 %v315, %v7353
    %7355 = vmatpush2.msra.mxu0 %v7354
    %7356 = vmatprep.subr.mxu0 0.0
    %v7357 = vand.u32 %v314, 4294901760
    %v7358 = vsub.f32 %v314, %v7357
    %7359 = vmatpush2.msra.mxu0 %v7358
    %7360 = vmatprep.subr.mxu0 0.0
    %v7361 = vand.u32 %v313, 4294901760
    %v7362 = vsub.f32 %v313, %v7361
    %7363 = vmatpush2.msra.mxu0 %v7362
    %7364 = vmatprep.subr.mxu0 0.0
    %v7365 = vand.u32 %v312, 4294901760
    %v7366 = vsub.f32 %v312, %v7365
    %7367 = vmatpush2.msra.mxu0 %v7366
    %7368 = vmatprep.subr.mxu0 0.0
    %v7369 = vand.u32 %v311, 4294901760
    %v7370 = vsub.f32 %v311, %v7369
    %7371 = vmatpush2.msra.mxu0 %v7370
    %7372 = vmatprep.subr.mxu0 0.0
    %v7373 = vand.u32 %v310, 4294901760
    %v7374 = vsub.f32 %v310, %v7373
    %7375 = vmatpush2.msra.mxu0 %v7374
    %7376 = vmatprep.subr.mxu0 0.0
    %v7377 = vand.u32 %v309, 4294901760
    %v7378 = vsub.f32 %v309, %v7377
    %7379 = vmatpush2.msra.mxu0 %v7378
    %v7380 = vand.u32 %v36, 4294901760
    %v7381 = vsub.f32 %v36, %v7380
    %7382 = vmatprep.mubr.f32.mxu0 %v7381
    %v7383 = vand.u32 %v35, 4294901760
    %v7384 = vsub.f32 %v35, %v7383
    %7385 = vmatmul.mubr.f32.gmra.mxu0 %v7384
    %v7386 = vpop.f32.mrf.mxu0
    %v7387 = vadd.f32 %v7242, %v7386
    %v7388 = vpop.f32.mrf.mxu0
    %v7389 = vand.u32 %v60, 4294901760
    %v7390 = vsub.f32 %v60, %v7389
    %7391 = vmatprep.mubr.f32.mxu0 %v7390
    %v7392 = vand.u32 %v59, 4294901760
    %v7393 = vsub.f32 %v59, %v7392
    %7394 = vmatmul.mubr.f32.gmra.mxu0 %v7393
    %v7395 = vpop.f32.mrf.mxu0
    %v7396 = vadd.f32 %v7249, %v7395
    %v7397 = vpop.f32.mrf.mxu0
    %7398 = vdwg.mxu0
    %7399 = vmatprep.subr.mxu0 0.0
    %v7400 = vand.u32 %v308, 4294901760
    %7401 = vmatpush1.msra.mxu0 %v7400
    %7402 = vmatprep.subr.mxu0 0.0
    %v7403 = vand.u32 %v307, 4294901760
    %7404 = vmatpush1.msra.mxu0 %v7403
    %7405 = vmatprep.subr.mxu0 0.0
    %v7406 = vand.u32 %v306, 4294901760
    %7407 = vmatpush1.msra.mxu0 %v7406
    %7408 = vmatprep.subr.mxu0 0.0
    %v7409 = vand.u32 %v305, 4294901760
    %7410 = vmatpush1.msra.mxu0 %v7409
    %7411 = vmatprep.subr.mxu0 0.0
    %v7412 = vand.u32 %v304, 4294901760
    %7413 = vmatpush1.msra.mxu0 %v7412
    %7414 = vmatprep.subr.mxu0 0.0
    %v7415 = vand.u32 %v303, 4294901760
    %7416 = vmatpush1.msra.mxu0 %v7415
    %7417 = vmatprep.subr.mxu0 0.0
    %v7418 = vand.u32 %v302, 4294901760
    %7419 = vmatpush1.msra.mxu0 %v7418
    %7420 = vmatprep.subr.mxu0 0.0
    %v7421 = vand.u32 %v301, 4294901760
    %7422 = vmatpush1.msra.mxu0 %v7421
    %7423 = vmatprep.subr.mxu0 0.0
    %v7424 = vand.u32 %v300, 4294901760
    %7425 = vmatpush1.msra.mxu0 %v7424
    %7426 = vmatprep.subr.mxu0 0.0
    %v7427 = vand.u32 %v299, 4294901760
    %7428 = vmatpush1.msra.mxu0 %v7427
    %7429 = vmatprep.subr.mxu0 0.0
    %v7430 = vand.u32 %v298, 4294901760
    %7431 = vmatpush1.msra.mxu0 %v7430
    %7432 = vmatprep.subr.mxu0 0.0
    %v7433 = vand.u32 %v297, 4294901760
    %7434 = vmatpush1.msra.mxu0 %v7433
    %7435 = vmatprep.subr.mxu0 0.0
    %v7436 = vand.u32 %v296, 4294901760
    %7437 = vmatpush1.msra.mxu0 %v7436
    %7438 = vmatprep.subr.mxu0 0.0
    %v7439 = vand.u32 %v295, 4294901760
    %7440 = vmatpush1.msra.mxu0 %v7439
    %7441 = vmatprep.subr.mxu0 0.0
    %v7442 = vand.u32 %v294, 4294901760
    %7443 = vmatpush1.msra.mxu0 %v7442
    %7444 = vmatprep.subr.mxu0 0.0
    %v7445 = vand.u32 %v293, 4294901760
    %7446 = vmatpush1.msra.mxu0 %v7445
    %7447 = vmatprep.subr.mxu0 0.0
    %v7448 = vand.u32 %v324, 4294901760
    %7449 = vmatpush2.msra.mxu0 %v7448
    %7450 = vmatprep.subr.mxu0 0.0
    %v7451 = vand.u32 %v323, 4294901760
    %7452 = vmatpush2.msra.mxu0 %v7451
    %7453 = vmatprep.subr.mxu0 0.0
    %v7454 = vand.u32 %v322, 4294901760
    %7455 = vmatpush2.msra.mxu0 %v7454
    %7456 = vmatprep.subr.mxu0 0.0
    %v7457 = vand.u32 %v321, 4294901760
    %7458 = vmatpush2.msra.mxu0 %v7457
    %7459 = vmatprep.subr.mxu0 0.0
    %v7460 = vand.u32 %v320, 4294901760
    %7461 = vmatpush2.msra.mxu0 %v7460
    %7462 = vmatprep.subr.mxu0 0.0
    %v7463 = vand.u32 %v319, 4294901760
    %7464 = vmatpush2.msra.mxu0 %v7463
    %7465 = vmatprep.subr.mxu0 0.0
    %v7466 = vand.u32 %v318, 4294901760
    %7467 = vmatpush2.msra.mxu0 %v7466
    %7468 = vmatprep.subr.mxu0 0.0
    %v7469 = vand.u32 %v317, 4294901760
    %7470 = vmatpush2.msra.mxu0 %v7469
    %7471 = vmatprep.subr.mxu0 0.0
    %v7472 = vand.u32 %v316, 4294901760
    %7473 = vmatpush2.msra.mxu0 %v7472
    %7474 = vmatprep.subr.mxu0 0.0
    %v7475 = vand.u32 %v315, 4294901760
    %7476 = vmatpush2.msra.mxu0 %v7475
    %7477 = vmatprep.subr.mxu0 0.0
    %v7478 = vand.u32 %v314, 4294901760
    %7479 = vmatpush2.msra.mxu0 %v7478
    %7480 = vmatprep.subr.mxu0 0.0
    %v7481 = vand.u32 %v313, 4294901760
    %7482 = vmatpush2.msra.mxu0 %v7481
    %7483 = vmatprep.subr.mxu0 0.0
    %v7484 = vand.u32 %v312, 4294901760
    %7485 = vmatpush2.msra.mxu0 %v7484
    %7486 = vmatprep.subr.mxu0 0.0
    %v7487 = vand.u32 %v311, 4294901760
    %7488 = vmatpush2.msra.mxu0 %v7487
    %7489 = vmatprep.subr.mxu0 0.0
    %v7490 = vand.u32 %v310, 4294901760
    %7491 = vmatpush2.msra.mxu0 %v7490
    %7492 = vmatprep.subr.mxu0 0.0
    %v7493 = vand.u32 %v309, 4294901760
    %7494 = vmatpush2.msra.mxu0 %v7493
    %v7495 = vand.u32 %v36, 4294901760
    %v7496 = vsub.f32 %v36, %v7495
    %v7497 = vand.u32 %v7496, 4294901760
    %7498 = vmatprep.mubr.f32.mxu0 %v7497
    %v7499 = vand.u32 %v35, 4294901760
    %v7500 = vsub.f32 %v35, %v7499
    %v7501 = vand.u32 %v7500, 4294901760
    %7502 = vmatmul.mubr.f32.gmra.mxu0 %v7501
    %v7503 = vpop.f32.mrf.mxu0
    %v7504 = vadd.f32 %v7387, %v7503
    %v7505 = vpop.f32.mrf.mxu0
    %v7506 = vand.u32 %v60, 4294901760
    %v7507 = vsub.f32 %v60, %v7506
    %v7508 = vand.u32 %v7507, 4294901760
    %7509 = vmatprep.mubr.f32.mxu0 %v7508
    %v7510 = vand.u32 %v59, 4294901760
    %v7511 = vsub.f32 %v59, %v7510
    %v7512 = vand.u32 %v7511, 4294901760
    %7513 = vmatmul.mubr.f32.gmra.mxu0 %v7512
    %v7514 = vpop.f32.mrf.mxu0
    %v7515 = vadd.f32 %v7396, %v7514
    %v7516 = vpop.f32.mrf.mxu0
    %7517 = vdwg.mxu0
    %7518 = vmatprep.subr.mxu0 0.0
    %v7519 = vand.u32 %v308, 4294901760
    %v7520 = vsub.f32 %v308, %v7519
    %v7521 = vand.u32 %v7520, 4294901760
    %7522 = vmatpush1.msra.mxu0 %v7521
    %7523 = vmatprep.subr.mxu0 0.0
    %v7524 = vand.u32 %v307, 4294901760
    %v7525 = vsub.f32 %v307, %v7524
    %v7526 = vand.u32 %v7525, 4294901760
    %7527 = vmatpush1.msra.mxu0 %v7526
    %7528 = vmatprep.subr.mxu0 0.0
    %v7529 = vand.u32 %v306, 4294901760
    %v7530 = vsub.f32 %v306, %v7529
    %v7531 = vand.u32 %v7530, 4294901760
    %7532 = vmatpush1.msra.mxu0 %v7531
    %7533 = vmatprep.subr.mxu0 0.0
    %v7534 = vand.u32 %v305, 4294901760
    %v7535 = vsub.f32 %v305, %v7534
    %v7536 = vand.u32 %v7535, 4294901760
    %7537 = vmatpush1.msra.mxu0 %v7536
    %7538 = vmatprep.subr.mxu0 0.0
    %v7539 = vand.u32 %v304, 4294901760
    %v7540 = vsub.f32 %v304, %v7539
    %v7541 = vand.u32 %v7540, 4294901760
    %7542 = vmatpush1.msra.mxu0 %v7541
    %7543 = vmatprep.subr.mxu0 0.0
    %v7544 = vand.u32 %v303, 4294901760
    %v7545 = vsub.f32 %v303, %v7544
    %v7546 = vand.u32 %v7545, 4294901760
    %7547 = vmatpush1.msra.mxu0 %v7546
    %7548 = vmatprep.subr.mxu0 0.0
    %v7549 = vand.u32 %v302, 4294901760
    %v7550 = vsub.f32 %v302, %v7549
    %v7551 = vand.u32 %v7550, 4294901760
    %7552 = vmatpush1.msra.mxu0 %v7551
    %7553 = vmatprep.subr.mxu0 0.0
    %v7554 = vand.u32 %v301, 4294901760
    %v7555 = vsub.f32 %v301, %v7554
    %v7556 = vand.u32 %v7555, 4294901760
    %7557 = vmatpush1.msra.mxu0 %v7556
    %7558 = vmatprep.subr.mxu0 0.0
    %v7559 = vand.u32 %v300, 4294901760
    %v7560 = vsub.f32 %v300, %v7559
    %v7561 = vand.u32 %v7560, 4294901760
    %7562 = vmatpush1.msra.mxu0 %v7561
    %7563 = vmatprep.subr.mxu0 0.0
    %v7564 = vand.u32 %v299, 4294901760
    %v7565 = vsub.f32 %v299, %v7564
    %v7566 = vand.u32 %v7565, 4294901760
    %7567 = vmatpush1.msra.mxu0 %v7566
    %7568 = vmatprep.subr.mxu0 0.0
    %v7569 = vand.u32 %v298, 4294901760
    %v7570 = vsub.f32 %v298, %v7569
    %v7571 = vand.u32 %v7570, 4294901760
    %7572 = vmatpush1.msra.mxu0 %v7571
    %7573 = vmatprep.subr.mxu0 0.0
    %v7574 = vand.u32 %v297, 4294901760
    %v7575 = vsub.f32 %v297, %v7574
    %v7576 = vand.u32 %v7575, 4294901760
    %7577 = vmatpush1.msra.mxu0 %v7576
    %7578 = vmatprep.subr.mxu0 0.0
    %v7579 = vand.u32 %v296, 4294901760
    %v7580 = vsub.f32 %v296, %v7579
    %v7581 = vand.u32 %v7580, 4294901760
    %7582 = vmatpush1.msra.mxu0 %v7581
    %7583 = vmatprep.subr.mxu0 0.0
    %v7584 = vand.u32 %v295, 4294901760
    %v7585 = vsub.f32 %v295, %v7584
    %v7586 = vand.u32 %v7585, 4294901760
    %7587 = vmatpush1.msra.mxu0 %v7586
    %7588 = vmatprep.subr.mxu0 0.0
    %v7589 = vand.u32 %v294, 4294901760
    %v7590 = vsub.f32 %v294, %v7589
    %v7591 = vand.u32 %v7590, 4294901760
    %7592 = vmatpush1.msra.mxu0 %v7591
    %7593 = vmatprep.subr.mxu0 0.0
    %v7594 = vand.u32 %v293, 4294901760
    %v7595 = vsub.f32 %v293, %v7594
    %v7596 = vand.u32 %v7595, 4294901760
    %7597 = vmatpush1.msra.mxu0 %v7596
    %7598 = vmatprep.subr.mxu0 0.0
    %v7599 = vand.u32 %v324, 4294901760
    %v7600 = vsub.f32 %v324, %v7599
    %v7601 = vand.u32 %v7600, 4294901760
    %7602 = vmatpush2.msra.mxu0 %v7601
    %7603 = vmatprep.subr.mxu0 0.0
    %v7604 = vand.u32 %v323, 4294901760
    %v7605 = vsub.f32 %v323, %v7604
    %v7606 = vand.u32 %v7605, 4294901760
    %7607 = vmatpush2.msra.mxu0 %v7606
    %7608 = vmatprep.subr.mxu0 0.0
    %v7609 = vand.u32 %v322, 4294901760
    %v7610 = vsub.f32 %v322, %v7609
    %v7611 = vand.u32 %v7610, 4294901760
    %7612 = vmatpush2.msra.mxu0 %v7611
    %7613 = vmatprep.subr.mxu0 0.0
    %v7614 = vand.u32 %v321, 4294901760
    %v7615 = vsub.f32 %v321, %v7614
    %v7616 = vand.u32 %v7615, 4294901760
    %7617 = vmatpush2.msra.mxu0 %v7616
    %7618 = vmatprep.subr.mxu0 0.0
    %v7619 = vand.u32 %v320, 4294901760
    %v7620 = vsub.f32 %v320, %v7619
    %v7621 = vand.u32 %v7620, 4294901760
    %7622 = vmatpush2.msra.mxu0 %v7621
    %7623 = vmatprep.subr.mxu0 0.0
    %v7624 = vand.u32 %v319, 4294901760
    %v7625 = vsub.f32 %v319, %v7624
    %v7626 = vand.u32 %v7625, 4294901760
    %7627 = vmatpush2.msra.mxu0 %v7626
    %7628 = vmatprep.subr.mxu0 0.0
    %v7629 = vand.u32 %v318, 4294901760
    %v7630 = vsub.f32 %v318, %v7629
    %v7631 = vand.u32 %v7630, 4294901760
    %7632 = vmatpush2.msra.mxu0 %v7631
    %7633 = vmatprep.subr.mxu0 0.0
    %v7634 = vand.u32 %v317, 4294901760
    %v7635 = vsub.f32 %v317, %v7634
    %v7636 = vand.u32 %v7635, 4294901760
    %7637 = vmatpush2.msra.mxu0 %v7636
    %7638 = vmatprep.subr.mxu0 0.0
    %v7639 = vand.u32 %v316, 4294901760
    %v7640 = vsub.f32 %v316, %v7639
    %v7641 = vand.u32 %v7640, 4294901760
    %7642 = vmatpush2.msra.mxu0 %v7641
    %7643 = vmatprep.subr.mxu0 0.0
    %v7644 = vand.u32 %v315, 4294901760
    %v7645 = vsub.f32 %v315, %v7644
    %v7646 = vand.u32 %v7645, 4294901760
    %7647 = vmatpush2.msra.mxu0 %v7646
    %7648 = vmatprep.subr.mxu0 0.0
    %v7649 = vand.u32 %v314, 4294901760
    %v7650 = vsub.f32 %v314, %v7649
    %v7651 = vand.u32 %v7650, 4294901760
    %7652 = vmatpush2.msra.mxu0 %v7651
    %7653 = vmatprep.subr.mxu0 0.0
    %v7654 = vand.u32 %v313, 4294901760
    %v7655 = vsub.f32 %v313, %v7654
    %v7656 = vand.u32 %v7655, 4294901760
    %7657 = vmatpush2.msra.mxu0 %v7656
    %7658 = vmatprep.subr.mxu0 0.0
    %v7659 = vand.u32 %v312, 4294901760
    %v7660 = vsub.f32 %v312, %v7659
    %v7661 = vand.u32 %v7660, 4294901760
    %7662 = vmatpush2.msra.mxu0 %v7661
    %7663 = vmatprep.subr.mxu0 0.0
    %v7664 = vand.u32 %v311, 4294901760
    %v7665 = vsub.f32 %v311, %v7664
    %v7666 = vand.u32 %v7665, 4294901760
    %7667 = vmatpush2.msra.mxu0 %v7666
    %7668 = vmatprep.subr.mxu0 0.0
    %v7669 = vand.u32 %v310, 4294901760
    %v7670 = vsub.f32 %v310, %v7669
    %v7671 = vand.u32 %v7670, 4294901760
    %7672 = vmatpush2.msra.mxu0 %v7671
    %7673 = vmatprep.subr.mxu0 0.0
    %v7674 = vand.u32 %v309, 4294901760
    %v7675 = vsub.f32 %v309, %v7674
    %v7676 = vand.u32 %v7675, 4294901760
    %7677 = vmatpush2.msra.mxu0 %v7676
    %v7678 = vand.u32 %v36, 4294901760
    %7679 = vmatprep.mubr.f32.mxu0 %v7678
    %v7680 = vand.u32 %v35, 4294901760
    %7681 = vmatmul.mubr.f32.gmra.mxu0 %v7680
    %v7682 = vpop.f32.mrf.mxu0
    %v7683 = vadd.f32 %v7504, %v7682
    %v7684 = vpop.f32.mrf.mxu0
    %v7685 = vand.u32 %v60, 4294901760
    %7686 = vmatprep.mubr.f32.mxu0 %v7685
    %v7687 = vand.u32 %v59, 4294901760
    %7688 = vmatmul.mubr.f32.gmra.mxu0 %v7687
    %v7689 = vpop.f32.mrf.mxu0
    %v7690 = vadd.f32 %v7515, %v7689
    %v7691 = vpop.f32.mrf.mxu0
    %7692 = vdwg.mxu0
    %7693 = vmatprep.subr.mxu0 0.0
    %v7694 = vand.u32 %v308, 4294901760
    %7695 = vmatpush1.msra.mxu0 %v7694
    %7696 = vmatprep.subr.mxu0 0.0
    %v7697 = vand.u32 %v307, 4294901760
    %7698 = vmatpush1.msra.mxu0 %v7697
    %7699 = vmatprep.subr.mxu0 0.0
    %v7700 = vand.u32 %v306, 4294901760
    %7701 = vmatpush1.msra.mxu0 %v7700
    %7702 = vmatprep.subr.mxu0 0.0
    %v7703 = vand.u32 %v305, 4294901760
    %7704 = vmatpush1.msra.mxu0 %v7703
    %7705 = vmatprep.subr.mxu0 0.0
    %v7706 = vand.u32 %v304, 4294901760
    %7707 = vmatpush1.msra.mxu0 %v7706
    %7708 = vmatprep.subr.mxu0 0.0
    %v7709 = vand.u32 %v303, 4294901760
    %7710 = vmatpush1.msra.mxu0 %v7709
    %7711 = vmatprep.subr.mxu0 0.0
    %v7712 = vand.u32 %v302, 4294901760
    %7713 = vmatpush1.msra.mxu0 %v7712
    %7714 = vmatprep.subr.mxu0 0.0
    %v7715 = vand.u32 %v301, 4294901760
    %7716 = vmatpush1.msra.mxu0 %v7715
    %7717 = vmatprep.subr.mxu0 0.0
    %v7718 = vand.u32 %v300, 4294901760
    %7719 = vmatpush1.msra.mxu0 %v7718
    %7720 = vmatprep.subr.mxu0 0.0
    %v7721 = vand.u32 %v299, 4294901760
    %7722 = vmatpush1.msra.mxu0 %v7721
    %7723 = vmatprep.subr.mxu0 0.0
    %v7724 = vand.u32 %v298, 4294901760
    %7725 = vmatpush1.msra.mxu0 %v7724
    %7726 = vmatprep.subr.mxu0 0.0
    %v7727 = vand.u32 %v297, 4294901760
    %7728 = vmatpush1.msra.mxu0 %v7727
    %7729 = vmatprep.subr.mxu0 0.0
    %v7730 = vand.u32 %v296, 4294901760
    %7731 = vmatpush1.msra.mxu0 %v7730
    %7732 = vmatprep.subr.mxu0 0.0
    %v7733 = vand.u32 %v295, 4294901760
    %7734 = vmatpush1.msra.mxu0 %v7733
    %7735 = vmatprep.subr.mxu0 0.0
    %v7736 = vand.u32 %v294, 4294901760
    %7737 = vmatpush1.msra.mxu0 %v7736
    %7738 = vmatprep.subr.mxu0 0.0
    %v7739 = vand.u32 %v293, 4294901760
    %7740 = vmatpush1.msra.mxu0 %v7739
    %7741 = vmatprep.subr.mxu0 0.0
    %v7742 = vand.u32 %v324, 4294901760
    %7743 = vmatpush2.msra.mxu0 %v7742
    %7744 = vmatprep.subr.mxu0 0.0
    %v7745 = vand.u32 %v323, 4294901760
    %7746 = vmatpush2.msra.mxu0 %v7745
    %7747 = vmatprep.subr.mxu0 0.0
    %v7748 = vand.u32 %v322, 4294901760
    %7749 = vmatpush2.msra.mxu0 %v7748
    %7750 = vmatprep.subr.mxu0 0.0
    %v7751 = vand.u32 %v321, 4294901760
    %7752 = vmatpush2.msra.mxu0 %v7751
    %7753 = vmatprep.subr.mxu0 0.0
    %v7754 = vand.u32 %v320, 4294901760
    %7755 = vmatpush2.msra.mxu0 %v7754
    %7756 = vmatprep.subr.mxu0 0.0
    %v7757 = vand.u32 %v319, 4294901760
    %7758 = vmatpush2.msra.mxu0 %v7757
    %7759 = vmatprep.subr.mxu0 0.0
    %v7760 = vand.u32 %v318, 4294901760
    %7761 = vmatpush2.msra.mxu0 %v7760
    %7762 = vmatprep.subr.mxu0 0.0
    %v7763 = vand.u32 %v317, 4294901760
    %7764 = vmatpush2.msra.mxu0 %v7763
    %7765 = vmatprep.subr.mxu0 0.0
    %v7766 = vand.u32 %v316, 4294901760
    %7767 = vmatpush2.msra.mxu0 %v7766
    %7768 = vmatprep.subr.mxu0 0.0
    %v7769 = vand.u32 %v315, 4294901760
    %7770 = vmatpush2.msra.mxu0 %v7769
    %7771 = vmatprep.subr.mxu0 0.0
    %v7772 = vand.u32 %v314, 4294901760
    %7773 = vmatpush2.msra.mxu0 %v7772
    %7774 = vmatprep.subr.mxu0 0.0
    %v7775 = vand.u32 %v313, 4294901760
    %7776 = vmatpush2.msra.mxu0 %v7775
    %7777 = vmatprep.subr.mxu0 0.0
    %v7778 = vand.u32 %v312, 4294901760
    %7779 = vmatpush2.msra.mxu0 %v7778
    %7780 = vmatprep.subr.mxu0 0.0
    %v7781 = vand.u32 %v311, 4294901760
    %7782 = vmatpush2.msra.mxu0 %v7781
    %7783 = vmatprep.subr.mxu0 0.0
    %v7784 = vand.u32 %v310, 4294901760
    %7785 = vmatpush2.msra.mxu0 %v7784
    %7786 = vmatprep.subr.mxu0 0.0
    %v7787 = vand.u32 %v309, 4294901760
    %7788 = vmatpush2.msra.mxu0 %v7787
    %v7789 = vand.u32 %v36, 4294901760
    %7790 = vmatprep.mubr.f32.mxu0 %v7789
    %v7791 = vand.u32 %v35, 4294901760
    %7792 = vmatmul.mubr.f32.gmra.mxu0 %v7791
    %v7793 = vpop.f32.mrf.mxu0
    %v7794 = vadd.f32 %v7683, %v7793
    %v7795 = vpop.f32.mrf.mxu0
    %v7796 = vand.u32 %v60, 4294901760
    %7797 = vmatprep.mubr.f32.mxu0 %v7796
    %v7798 = vand.u32 %v59, 4294901760
    %7799 = vmatmul.mubr.f32.gmra.mxu0 %v7798
    %v7800 = vpop.f32.mrf.mxu0
    %v7801 = vadd.f32 %v7690, %v7800
    %v7802 = vpop.f32.mrf.mxu0
    %7803 = vdwg.mxu0
    %7804 = vmatprep.subr.mxu0 0.0
    %v7805 = vand.u32 %v340, 4294901760
    %7806 = vmatpush1.msra.mxu0 %v7805
    %7807 = vmatprep.subr.mxu0 0.0
    %v7808 = vand.u32 %v339, 4294901760
    %7809 = vmatpush1.msra.mxu0 %v7808
    %7810 = vmatprep.subr.mxu0 0.0
    %v7811 = vand.u32 %v338, 4294901760
    %7812 = vmatpush1.msra.mxu0 %v7811
    %7813 = vmatprep.subr.mxu0 0.0
    %v7814 = vand.u32 %v337, 4294901760
    %7815 = vmatpush1.msra.mxu0 %v7814
    %7816 = vmatprep.subr.mxu0 0.0
    %v7817 = vand.u32 %v336, 4294901760
    %7818 = vmatpush1.msra.mxu0 %v7817
    %7819 = vmatprep.subr.mxu0 0.0
    %v7820 = vand.u32 %v335, 4294901760
    %7821 = vmatpush1.msra.mxu0 %v7820
    %7822 = vmatprep.subr.mxu0 0.0
    %v7823 = vand.u32 %v334, 4294901760
    %7824 = vmatpush1.msra.mxu0 %v7823
    %7825 = vmatprep.subr.mxu0 0.0
    %v7826 = vand.u32 %v333, 4294901760
    %7827 = vmatpush1.msra.mxu0 %v7826
    %7828 = vmatprep.subr.mxu0 0.0
    %v7829 = vand.u32 %v332, 4294901760
    %7830 = vmatpush1.msra.mxu0 %v7829
    %7831 = vmatprep.subr.mxu0 0.0
    %v7832 = vand.u32 %v331, 4294901760
    %7833 = vmatpush1.msra.mxu0 %v7832
    %7834 = vmatprep.subr.mxu0 0.0
    %v7835 = vand.u32 %v330, 4294901760
    %7836 = vmatpush1.msra.mxu0 %v7835
    %7837 = vmatprep.subr.mxu0 0.0
    %v7838 = vand.u32 %v329, 4294901760
    %7839 = vmatpush1.msra.mxu0 %v7838
    %7840 = vmatprep.subr.mxu0 0.0
    %v7841 = vand.u32 %v328, 4294901760
    %7842 = vmatpush1.msra.mxu0 %v7841
    %7843 = vmatprep.subr.mxu0 0.0
    %v7844 = vand.u32 %v327, 4294901760
    %7845 = vmatpush1.msra.mxu0 %v7844
    %7846 = vmatprep.subr.mxu0 0.0
    %v7847 = vand.u32 %v326, 4294901760
    %7848 = vmatpush1.msra.mxu0 %v7847
    %7849 = vmatprep.subr.mxu0 0.0
    %v7850 = vand.u32 %v325, 4294901760
    %7851 = vmatpush1.msra.mxu0 %v7850
    %7852 = vmatprep.subr.mxu0 0.0
    %v7853 = vand.u32 %v356, 4294901760
    %7854 = vmatpush2.msra.mxu0 %v7853
    %7855 = vmatprep.subr.mxu0 0.0
    %v7856 = vand.u32 %v355, 4294901760
    %7857 = vmatpush2.msra.mxu0 %v7856
    %7858 = vmatprep.subr.mxu0 0.0
    %v7859 = vand.u32 %v354, 4294901760
    %7860 = vmatpush2.msra.mxu0 %v7859
    %7861 = vmatprep.subr.mxu0 0.0
    %v7862 = vand.u32 %v353, 4294901760
    %7863 = vmatpush2.msra.mxu0 %v7862
    %7864 = vmatprep.subr.mxu0 0.0
    %v7865 = vand.u32 %v352, 4294901760
    %7866 = vmatpush2.msra.mxu0 %v7865
    %7867 = vmatprep.subr.mxu0 0.0
    %v7868 = vand.u32 %v351, 4294901760
    %7869 = vmatpush2.msra.mxu0 %v7868
    %7870 = vmatprep.subr.mxu0 0.0
    %v7871 = vand.u32 %v350, 4294901760
    %7872 = vmatpush2.msra.mxu0 %v7871
    %7873 = vmatprep.subr.mxu0 0.0
    %v7874 = vand.u32 %v349, 4294901760
    %7875 = vmatpush2.msra.mxu0 %v7874
    %7876 = vmatprep.subr.mxu0 0.0
    %v7877 = vand.u32 %v348, 4294901760
    %7878 = vmatpush2.msra.mxu0 %v7877
    %7879 = vmatprep.subr.mxu0 0.0
    %v7880 = vand.u32 %v347, 4294901760
    %7881 = vmatpush2.msra.mxu0 %v7880
    %7882 = vmatprep.subr.mxu0 0.0
    %v7883 = vand.u32 %v346, 4294901760
    %7884 = vmatpush2.msra.mxu0 %v7883
    %7885 = vmatprep.subr.mxu0 0.0
    %v7886 = vand.u32 %v345, 4294901760
    %7887 = vmatpush2.msra.mxu0 %v7886
    %7888 = vmatprep.subr.mxu0 0.0
    %v7889 = vand.u32 %v344, 4294901760
    %7890 = vmatpush2.msra.mxu0 %v7889
    %7891 = vmatprep.subr.mxu0 0.0
    %v7892 = vand.u32 %v343, 4294901760
    %7893 = vmatpush2.msra.mxu0 %v7892
    %7894 = vmatprep.subr.mxu0 0.0
    %v7895 = vand.u32 %v342, 4294901760
    %7896 = vmatpush2.msra.mxu0 %v7895
    %7897 = vmatprep.subr.mxu0 0.0
    %v7898 = vand.u32 %v341, 4294901760
    %7899 = vmatpush2.msra.mxu0 %v7898
    %v7900 = vand.u32 %v38, 4294901760
    %v7901 = vsub.f32 %v38, %v7900
    %v7902 = vand.u32 %v7901, 4294901760
    %v7903 = vsub.f32 %v7901, %v7902
    %v7904 = vand.u32 %v7903, 4294901760
    %7905 = vmatprep.mubr.f32.mxu0 %v7904
    %v7906 = vand.u32 %v37, 4294901760
    %v7907 = vsub.f32 %v37, %v7906
    %v7908 = vand.u32 %v7907, 4294901760
    %v7909 = vsub.f32 %v7907, %v7908
    %v7910 = vand.u32 %v7909, 4294901760
    %7911 = vmatmul.mubr.f32.gmra.mxu0 %v7910
    %v7912 = vpop.f32.mrf.mxu0
    %v7913 = vadd.f32 %v7794, %v7912
    %v7914 = vpop.f32.mrf.mxu0
    %v7915 = vand.u32 %v62, 4294901760
    %v7916 = vsub.f32 %v62, %v7915
    %v7917 = vand.u32 %v7916, 4294901760
    %v7918 = vsub.f32 %v7916, %v7917
    %v7919 = vand.u32 %v7918, 4294901760
    %7920 = vmatprep.mubr.f32.mxu0 %v7919
    %v7921 = vand.u32 %v61, 4294901760
    %v7922 = vsub.f32 %v61, %v7921
    %v7923 = vand.u32 %v7922, 4294901760
    %v7924 = vsub.f32 %v7922, %v7923
    %v7925 = vand.u32 %v7924, 4294901760
    %7926 = vmatmul.mubr.f32.gmra.mxu0 %v7925
    %v7927 = vpop.f32.mrf.mxu0
    %v7928 = vadd.f32 %v7801, %v7927
    %v7929 = vpop.f32.mrf.mxu0
    %7930 = vdwg.mxu0
    %7931 = vmatprep.subr.mxu0 0.0
    %v7932 = vand.u32 %v340, 4294901760
    %v7933 = vsub.f32 %v340, %v7932
    %v7934 = vand.u32 %v7933, 4294901760
    %v7935 = vsub.f32 %v7933, %v7934
    %v7936 = vand.u32 %v7935, 4294901760
    %7937 = vmatpush1.msra.mxu0 %v7936
    %7938 = vmatprep.subr.mxu0 0.0
    %v7939 = vand.u32 %v339, 4294901760
    %v7940 = vsub.f32 %v339, %v7939
    %v7941 = vand.u32 %v7940, 4294901760
    %v7942 = vsub.f32 %v7940, %v7941
    %v7943 = vand.u32 %v7942, 4294901760
    %7944 = vmatpush1.msra.mxu0 %v7943
    %7945 = vmatprep.subr.mxu0 0.0
    %v7946 = vand.u32 %v338, 4294901760
    %v7947 = vsub.f32 %v338, %v7946
    %v7948 = vand.u32 %v7947, 4294901760
    %v7949 = vsub.f32 %v7947, %v7948
    %v7950 = vand.u32 %v7949, 4294901760
    %7951 = vmatpush1.msra.mxu0 %v7950
    %7952 = vmatprep.subr.mxu0 0.0
    %v7953 = vand.u32 %v337, 4294901760
    %v7954 = vsub.f32 %v337, %v7953
    %v7955 = vand.u32 %v7954, 4294901760
    %v7956 = vsub.f32 %v7954, %v7955
    %v7957 = vand.u32 %v7956, 4294901760
    %7958 = vmatpush1.msra.mxu0 %v7957
    %7959 = vmatprep.subr.mxu0 0.0
    %v7960 = vand.u32 %v336, 4294901760
    %v7961 = vsub.f32 %v336, %v7960
    %v7962 = vand.u32 %v7961, 4294901760
    %v7963 = vsub.f32 %v7961, %v7962
    %v7964 = vand.u32 %v7963, 4294901760
    %7965 = vmatpush1.msra.mxu0 %v7964
    %7966 = vmatprep.subr.mxu0 0.0
    %v7967 = vand.u32 %v335, 4294901760
    %v7968 = vsub.f32 %v335, %v7967
    %v7969 = vand.u32 %v7968, 4294901760
    %v7970 = vsub.f32 %v7968, %v7969
    %v7971 = vand.u32 %v7970, 4294901760
    %7972 = vmatpush1.msra.mxu0 %v7971
    %7973 = vmatprep.subr.mxu0 0.0
    %v7974 = vand.u32 %v334, 4294901760
    %v7975 = vsub.f32 %v334, %v7974
    %v7976 = vand.u32 %v7975, 4294901760
    %v7977 = vsub.f32 %v7975, %v7976
    %v7978 = vand.u32 %v7977, 4294901760
    %7979 = vmatpush1.msra.mxu0 %v7978
    %7980 = vmatprep.subr.mxu0 0.0
    %v7981 = vand.u32 %v333, 4294901760
    %v7982 = vsub.f32 %v333, %v7981
    %v7983 = vand.u32 %v7982, 4294901760
    %v7984 = vsub.f32 %v7982, %v7983
    %v7985 = vand.u32 %v7984, 4294901760
    %7986 = vmatpush1.msra.mxu0 %v7985
    %7987 = vmatprep.subr.mxu0 0.0
    %v7988 = vand.u32 %v332, 4294901760
    %v7989 = vsub.f32 %v332, %v7988
    %v7990 = vand.u32 %v7989, 4294901760
    %v7991 = vsub.f32 %v7989, %v7990
    %v7992 = vand.u32 %v7991, 4294901760
    %7993 = vmatpush1.msra.mxu0 %v7992
    %7994 = vmatprep.subr.mxu0 0.0
    %v7995 = vand.u32 %v331, 4294901760
    %v7996 = vsub.f32 %v331, %v7995
    %v7997 = vand.u32 %v7996, 4294901760
    %v7998 = vsub.f32 %v7996, %v7997
    %v7999 = vand.u32 %v7998, 4294901760
    %8000 = vmatpush1.msra.mxu0 %v7999
    %8001 = vmatprep.subr.mxu0 0.0
    %v8002 = vand.u32 %v330, 4294901760
    %v8003 = vsub.f32 %v330, %v8002
    %v8004 = vand.u32 %v8003, 4294901760
    %v8005 = vsub.f32 %v8003, %v8004
    %v8006 = vand.u32 %v8005, 4294901760
    %8007 = vmatpush1.msra.mxu0 %v8006
    %8008 = vmatprep.subr.mxu0 0.0
    %v8009 = vand.u32 %v329, 4294901760
    %v8010 = vsub.f32 %v329, %v8009
    %v8011 = vand.u32 %v8010, 4294901760
    %v8012 = vsub.f32 %v8010, %v8011
    %v8013 = vand.u32 %v8012, 4294901760
    %8014 = vmatpush1.msra.mxu0 %v8013
    %8015 = vmatprep.subr.mxu0 0.0
    %v8016 = vand.u32 %v328, 4294901760
    %v8017 = vsub.f32 %v328, %v8016
    %v8018 = vand.u32 %v8017, 4294901760
    %v8019 = vsub.f32 %v8017, %v8018
    %v8020 = vand.u32 %v8019, 4294901760
    %8021 = vmatpush1.msra.mxu0 %v8020
    %8022 = vmatprep.subr.mxu0 0.0
    %v8023 = vand.u32 %v327, 4294901760
    %v8024 = vsub.f32 %v327, %v8023
    %v8025 = vand.u32 %v8024, 4294901760
    %v8026 = vsub.f32 %v8024, %v8025
    %v8027 = vand.u32 %v8026, 4294901760
    %8028 = vmatpush1.msra.mxu0 %v8027
    %8029 = vmatprep.subr.mxu0 0.0
    %v8030 = vand.u32 %v326, 4294901760
    %v8031 = vsub.f32 %v326, %v8030
    %v8032 = vand.u32 %v8031, 4294901760
    %v8033 = vsub.f32 %v8031, %v8032
    %v8034 = vand.u32 %v8033, 4294901760
    %8035 = vmatpush1.msra.mxu0 %v8034
    %8036 = vmatprep.subr.mxu0 0.0
    %v8037 = vand.u32 %v325, 4294901760
    %v8038 = vsub.f32 %v325, %v8037
    %v8039 = vand.u32 %v8038, 4294901760
    %v8040 = vsub.f32 %v8038, %v8039
    %v8041 = vand.u32 %v8040, 4294901760
    %8042 = vmatpush1.msra.mxu0 %v8041
    %8043 = vmatprep.subr.mxu0 0.0
    %v8044 = vand.u32 %v356, 4294901760
    %v8045 = vsub.f32 %v356, %v8044
    %v8046 = vand.u32 %v8045, 4294901760
    %v8047 = vsub.f32 %v8045, %v8046
    %v8048 = vand.u32 %v8047, 4294901760
    %8049 = vmatpush2.msra.mxu0 %v8048
    %8050 = vmatprep.subr.mxu0 0.0
    %v8051 = vand.u32 %v355, 4294901760
    %v8052 = vsub.f32 %v355, %v8051
    %v8053 = vand.u32 %v8052, 4294901760
    %v8054 = vsub.f32 %v8052, %v8053
    %v8055 = vand.u32 %v8054, 4294901760
    %8056 = vmatpush2.msra.mxu0 %v8055
    %8057 = vmatprep.subr.mxu0 0.0
    %v8058 = vand.u32 %v354, 4294901760
    %v8059 = vsub.f32 %v354, %v8058
    %v8060 = vand.u32 %v8059, 4294901760
    %v8061 = vsub.f32 %v8059, %v8060
    %v8062 = vand.u32 %v8061, 4294901760
    %8063 = vmatpush2.msra.mxu0 %v8062
    %8064 = vmatprep.subr.mxu0 0.0
    %v8065 = vand.u32 %v353, 4294901760
    %v8066 = vsub.f32 %v353, %v8065
    %v8067 = vand.u32 %v8066, 4294901760
    %v8068 = vsub.f32 %v8066, %v8067
    %v8069 = vand.u32 %v8068, 4294901760
    %8070 = vmatpush2.msra.mxu0 %v8069
    %8071 = vmatprep.subr.mxu0 0.0
    %v8072 = vand.u32 %v352, 4294901760
    %v8073 = vsub.f32 %v352, %v8072
    %v8074 = vand.u32 %v8073, 4294901760
    %v8075 = vsub.f32 %v8073, %v8074
    %v8076 = vand.u32 %v8075, 4294901760
    %8077 = vmatpush2.msra.mxu0 %v8076
    %8078 = vmatprep.subr.mxu0 0.0
    %v8079 = vand.u32 %v351, 4294901760
    %v8080 = vsub.f32 %v351, %v8079
    %v8081 = vand.u32 %v8080, 4294901760
    %v8082 = vsub.f32 %v8080, %v8081
    %v8083 = vand.u32 %v8082, 4294901760
    %8084 = vmatpush2.msra.mxu0 %v8083
    %8085 = vmatprep.subr.mxu0 0.0
    %v8086 = vand.u32 %v350, 4294901760
    %v8087 = vsub.f32 %v350, %v8086
    %v8088 = vand.u32 %v8087, 4294901760
    %v8089 = vsub.f32 %v8087, %v8088
    %v8090 = vand.u32 %v8089, 4294901760
    %8091 = vmatpush2.msra.mxu0 %v8090
    %8092 = vmatprep.subr.mxu0 0.0
    %v8093 = vand.u32 %v349, 4294901760
    %v8094 = vsub.f32 %v349, %v8093
    %v8095 = vand.u32 %v8094, 4294901760
    %v8096 = vsub.f32 %v8094, %v8095
    %v8097 = vand.u32 %v8096, 4294901760
    %8098 = vmatpush2.msra.mxu0 %v8097
    %8099 = vmatprep.subr.mxu0 0.0
    %v8100 = vand.u32 %v348, 4294901760
    %v8101 = vsub.f32 %v348, %v8100
    %v8102 = vand.u32 %v8101, 4294901760
    %v8103 = vsub.f32 %v8101, %v8102
    %v8104 = vand.u32 %v8103, 4294901760
    %8105 = vmatpush2.msra.mxu0 %v8104
    %8106 = vmatprep.subr.mxu0 0.0
    %v8107 = vand.u32 %v347, 4294901760
    %v8108 = vsub.f32 %v347, %v8107
    %v8109 = vand.u32 %v8108, 4294901760
    %v8110 = vsub.f32 %v8108, %v8109
    %v8111 = vand.u32 %v8110, 4294901760
    %8112 = vmatpush2.msra.mxu0 %v8111
    %8113 = vmatprep.subr.mxu0 0.0
    %v8114 = vand.u32 %v346, 4294901760
    %v8115 = vsub.f32 %v346, %v8114
    %v8116 = vand.u32 %v8115, 4294901760
    %v8117 = vsub.f32 %v8115, %v8116
    %v8118 = vand.u32 %v8117, 4294901760
    %8119 = vmatpush2.msra.mxu0 %v8118
    %8120 = vmatprep.subr.mxu0 0.0
    %v8121 = vand.u32 %v345, 4294901760
    %v8122 = vsub.f32 %v345, %v8121
    %v8123 = vand.u32 %v8122, 4294901760
    %v8124 = vsub.f32 %v8122, %v8123
    %v8125 = vand.u32 %v8124, 4294901760
    %8126 = vmatpush2.msra.mxu0 %v8125
    %8127 = vmatprep.subr.mxu0 0.0
    %v8128 = vand.u32 %v344, 4294901760
    %v8129 = vsub.f32 %v344, %v8128
    %v8130 = vand.u32 %v8129, 4294901760
    %v8131 = vsub.f32 %v8129, %v8130
    %v8132 = vand.u32 %v8131, 4294901760
    %8133 = vmatpush2.msra.mxu0 %v8132
    %8134 = vmatprep.subr.mxu0 0.0
    %v8135 = vand.u32 %v343, 4294901760
    %v8136 = vsub.f32 %v343, %v8135
    %v8137 = vand.u32 %v8136, 4294901760
    %v8138 = vsub.f32 %v8136, %v8137
    %v8139 = vand.u32 %v8138, 4294901760
    %8140 = vmatpush2.msra.mxu0 %v8139
    %8141 = vmatprep.subr.mxu0 0.0
    %v8142 = vand.u32 %v342, 4294901760
    %v8143 = vsub.f32 %v342, %v8142
    %v8144 = vand.u32 %v8143, 4294901760
    %v8145 = vsub.f32 %v8143, %v8144
    %v8146 = vand.u32 %v8145, 4294901760
    %8147 = vmatpush2.msra.mxu0 %v8146
    %8148 = vmatprep.subr.mxu0 0.0
    %v8149 = vand.u32 %v341, 4294901760
    %v8150 = vsub.f32 %v341, %v8149
    %v8151 = vand.u32 %v8150, 4294901760
    %v8152 = vsub.f32 %v8150, %v8151
    %v8153 = vand.u32 %v8152, 4294901760
    %8154 = vmatpush2.msra.mxu0 %v8153
    %v8155 = vand.u32 %v38, 4294901760
    %8156 = vmatprep.mubr.f32.mxu0 %v8155
    %v8157 = vand.u32 %v37, 4294901760
    %8158 = vmatmul.mubr.f32.gmra.mxu0 %v8157
    %v8159 = vpop.f32.mrf.mxu0
    %v8160 = vadd.f32 %v7913, %v8159
    %v8161 = vpop.f32.mrf.mxu0
    %v8162 = vand.u32 %v62, 4294901760
    %8163 = vmatprep.mubr.f32.mxu0 %v8162
    %v8164 = vand.u32 %v61, 4294901760
    %8165 = vmatmul.mubr.f32.gmra.mxu0 %v8164
    %v8166 = vpop.f32.mrf.mxu0
    %v8167 = vadd.f32 %v7928, %v8166
    %v8168 = vpop.f32.mrf.mxu0
    %8169 = vdwg.mxu0
    %8170 = vmatprep.subr.mxu0 0.0
    %v8171 = vand.u32 %v340, 4294901760
    %v8172 = vsub.f32 %v340, %v8171
    %8173 = vmatpush1.msra.mxu0 %v8172
    %8174 = vmatprep.subr.mxu0 0.0
    %v8175 = vand.u32 %v339, 4294901760
    %v8176 = vsub.f32 %v339, %v8175
    %8177 = vmatpush1.msra.mxu0 %v8176
    %8178 = vmatprep.subr.mxu0 0.0
    %v8179 = vand.u32 %v338, 4294901760
    %v8180 = vsub.f32 %v338, %v8179
    %8181 = vmatpush1.msra.mxu0 %v8180
    %8182 = vmatprep.subr.mxu0 0.0
    %v8183 = vand.u32 %v337, 4294901760
    %v8184 = vsub.f32 %v337, %v8183
    %8185 = vmatpush1.msra.mxu0 %v8184
    %8186 = vmatprep.subr.mxu0 0.0
    %v8187 = vand.u32 %v336, 4294901760
    %v8188 = vsub.f32 %v336, %v8187
    %8189 = vmatpush1.msra.mxu0 %v8188
    %8190 = vmatprep.subr.mxu0 0.0
    %v8191 = vand.u32 %v335, 4294901760
    %v8192 = vsub.f32 %v335, %v8191
    %8193 = vmatpush1.msra.mxu0 %v8192
    %8194 = vmatprep.subr.mxu0 0.0
    %v8195 = vand.u32 %v334, 4294901760
    %v8196 = vsub.f32 %v334, %v8195
    %8197 = vmatpush1.msra.mxu0 %v8196
    %8198 = vmatprep.subr.mxu0 0.0
    %v8199 = vand.u32 %v333, 4294901760
    %v8200 = vsub.f32 %v333, %v8199
    %8201 = vmatpush1.msra.mxu0 %v8200
    %8202 = vmatprep.subr.mxu0 0.0
    %v8203 = vand.u32 %v332, 4294901760
    %v8204 = vsub.f32 %v332, %v8203
    %8205 = vmatpush1.msra.mxu0 %v8204
    %8206 = vmatprep.subr.mxu0 0.0
    %v8207 = vand.u32 %v331, 4294901760
    %v8208 = vsub.f32 %v331, %v8207
    %8209 = vmatpush1.msra.mxu0 %v8208
    %8210 = vmatprep.subr.mxu0 0.0
    %v8211 = vand.u32 %v330, 4294901760
    %v8212 = vsub.f32 %v330, %v8211
    %8213 = vmatpush1.msra.mxu0 %v8212
    %8214 = vmatprep.subr.mxu0 0.0
    %v8215 = vand.u32 %v329, 4294901760
    %v8216 = vsub.f32 %v329, %v8215
    %8217 = vmatpush1.msra.mxu0 %v8216
    %8218 = vmatprep.subr.mxu0 0.0
    %v8219 = vand.u32 %v328, 4294901760
    %v8220 = vsub.f32 %v328, %v8219
    %8221 = vmatpush1.msra.mxu0 %v8220
    %8222 = vmatprep.subr.mxu0 0.0
    %v8223 = vand.u32 %v327, 4294901760
    %v8224 = vsub.f32 %v327, %v8223
    %8225 = vmatpush1.msra.mxu0 %v8224
    %8226 = vmatprep.subr.mxu0 0.0
    %v8227 = vand.u32 %v326, 4294901760
    %v8228 = vsub.f32 %v326, %v8227
    %8229 = vmatpush1.msra.mxu0 %v8228
    %8230 = vmatprep.subr.mxu0 0.0
    %v8231 = vand.u32 %v325, 4294901760
    %v8232 = vsub.f32 %v325, %v8231
    %8233 = vmatpush1.msra.mxu0 %v8232
    %8234 = vmatprep.subr.mxu0 0.0
    %v8235 = vand.u32 %v356, 4294901760
    %v8236 = vsub.f32 %v356, %v8235
    %8237 = vmatpush2.msra.mxu0 %v8236
    %8238 = vmatprep.subr.mxu0 0.0
    %v8239 = vand.u32 %v355, 4294901760
    %v8240 = vsub.f32 %v355, %v8239
    %8241 = vmatpush2.msra.mxu0 %v8240
    %8242 = vmatprep.subr.mxu0 0.0
    %v8243 = vand.u32 %v354, 4294901760
    %v8244 = vsub.f32 %v354, %v8243
    %8245 = vmatpush2.msra.mxu0 %v8244
    %8246 = vmatprep.subr.mxu0 0.0
    %v8247 = vand.u32 %v353, 4294901760
    %v8248 = vsub.f32 %v353, %v8247
    %8249 = vmatpush2.msra.mxu0 %v8248
    %8250 = vmatprep.subr.mxu0 0.0
    %v8251 = vand.u32 %v352, 4294901760
    %v8252 = vsub.f32 %v352, %v8251
    %8253 = vmatpush2.msra.mxu0 %v8252
    %8254 = vmatprep.subr.mxu0 0.0
    %v8255 = vand.u32 %v351, 4294901760
    %v8256 = vsub.f32 %v351, %v8255
    %8257 = vmatpush2.msra.mxu0 %v8256
    %8258 = vmatprep.subr.mxu0 0.0
    %v8259 = vand.u32 %v350, 4294901760
    %v8260 = vsub.f32 %v350, %v8259
    %8261 = vmatpush2.msra.mxu0 %v8260
    %8262 = vmatprep.subr.mxu0 0.0
    %v8263 = vand.u32 %v349, 4294901760
    %v8264 = vsub.f32 %v349, %v8263
    %8265 = vmatpush2.msra.mxu0 %v8264
    %8266 = vmatprep.subr.mxu0 0.0
    %v8267 = vand.u32 %v348, 4294901760
    %v8268 = vsub.f32 %v348, %v8267
    %8269 = vmatpush2.msra.mxu0 %v8268
    %8270 = vmatprep.subr.mxu0 0.0
    %v8271 = vand.u32 %v347, 4294901760
    %v8272 = vsub.f32 %v347, %v8271
    %8273 = vmatpush2.msra.mxu0 %v8272
    %8274 = vmatprep.subr.mxu0 0.0
    %v8275 = vand.u32 %v346, 4294901760
    %v8276 = vsub.f32 %v346, %v8275
    %8277 = vmatpush2.msra.mxu0 %v8276
    %8278 = vmatprep.subr.mxu0 0.0
    %v8279 = vand.u32 %v345, 4294901760
    %v8280 = vsub.f32 %v345, %v8279
    %8281 = vmatpush2.msra.mxu0 %v8280
    %8282 = vmatprep.subr.mxu0 0.0
    %v8283 = vand.u32 %v344, 4294901760
    %v8284 = vsub.f32 %v344, %v8283
    %8285 = vmatpush2.msra.mxu0 %v8284
    %8286 = vmatprep.subr.mxu0 0.0
    %v8287 = vand.u32 %v343, 4294901760
    %v8288 = vsub.f32 %v343, %v8287
    %8289 = vmatpush2.msra.mxu0 %v8288
    %8290 = vmatprep.subr.mxu0 0.0
    %v8291 = vand.u32 %v342, 4294901760
    %v8292 = vsub.f32 %v342, %v8291
    %8293 = vmatpush2.msra.mxu0 %v8292
    %8294 = vmatprep.subr.mxu0 0.0
    %v8295 = vand.u32 %v341, 4294901760
    %v8296 = vsub.f32 %v341, %v8295
    %8297 = vmatpush2.msra.mxu0 %v8296
    %v8298 = vand.u32 %v38, 4294901760
    %v8299 = vsub.f32 %v38, %v8298
    %8300 = vmatprep.mubr.f32.mxu0 %v8299
    %v8301 = vand.u32 %v37, 4294901760
    %v8302 = vsub.f32 %v37, %v8301
    %8303 = vmatmul.mubr.f32.gmra.mxu0 %v8302
    %v8304 = vpop.f32.mrf.mxu0
    %v8305 = vadd.f32 %v8160, %v8304
    %v8306 = vpop.f32.mrf.mxu0
    %v8307 = vand.u32 %v62, 4294901760
    %v8308 = vsub.f32 %v62, %v8307
    %8309 = vmatprep.mubr.f32.mxu0 %v8308
    %v8310 = vand.u32 %v61, 4294901760
    %v8311 = vsub.f32 %v61, %v8310
    %8312 = vmatmul.mubr.f32.gmra.mxu0 %v8311
    %v8313 = vpop.f32.mrf.mxu0
    %v8314 = vadd.f32 %v8167, %v8313
    %v8315 = vpop.f32.mrf.mxu0
    %8316 = vdwg.mxu0
    %8317 = vmatprep.subr.mxu0 0.0
    %v8318 = vand.u32 %v340, 4294901760
    %8319 = vmatpush1.msra.mxu0 %v8318
    %8320 = vmatprep.subr.mxu0 0.0
    %v8321 = vand.u32 %v339, 4294901760
    %8322 = vmatpush1.msra.mxu0 %v8321
    %8323 = vmatprep.subr.mxu0 0.0
    %v8324 = vand.u32 %v338, 4294901760
    %8325 = vmatpush1.msra.mxu0 %v8324
    %8326 = vmatprep.subr.mxu0 0.0
    %v8327 = vand.u32 %v337, 4294901760
    %8328 = vmatpush1.msra.mxu0 %v8327
    %8329 = vmatprep.subr.mxu0 0.0
    %v8330 = vand.u32 %v336, 4294901760
    %8331 = vmatpush1.msra.mxu0 %v8330
    %8332 = vmatprep.subr.mxu0 0.0
    %v8333 = vand.u32 %v335, 4294901760
    %8334 = vmatpush1.msra.mxu0 %v8333
    %8335 = vmatprep.subr.mxu0 0.0
    %v8336 = vand.u32 %v334, 4294901760
    %8337 = vmatpush1.msra.mxu0 %v8336
    %8338 = vmatprep.subr.mxu0 0.0
    %v8339 = vand.u32 %v333, 4294901760
    %8340 = vmatpush1.msra.mxu0 %v8339
    %8341 = vmatprep.subr.mxu0 0.0
    %v8342 = vand.u32 %v332, 4294901760
    %8343 = vmatpush1.msra.mxu0 %v8342
    %8344 = vmatprep.subr.mxu0 0.0
    %v8345 = vand.u32 %v331, 4294901760
    %8346 = vmatpush1.msra.mxu0 %v8345
    %8347 = vmatprep.subr.mxu0 0.0
    %v8348 = vand.u32 %v330, 4294901760
    %8349 = vmatpush1.msra.mxu0 %v8348
    %8350 = vmatprep.subr.mxu0 0.0
    %v8351 = vand.u32 %v329, 4294901760
    %8352 = vmatpush1.msra.mxu0 %v8351
    %8353 = vmatprep.subr.mxu0 0.0
    %v8354 = vand.u32 %v328, 4294901760
    %8355 = vmatpush1.msra.mxu0 %v8354
    %8356 = vmatprep.subr.mxu0 0.0
    %v8357 = vand.u32 %v327, 4294901760
    %8358 = vmatpush1.msra.mxu0 %v8357
    %8359 = vmatprep.subr.mxu0 0.0
    %v8360 = vand.u32 %v326, 4294901760
    %8361 = vmatpush1.msra.mxu0 %v8360
    %8362 = vmatprep.subr.mxu0 0.0
    %v8363 = vand.u32 %v325, 4294901760
    %8364 = vmatpush1.msra.mxu0 %v8363
    %8365 = vmatprep.subr.mxu0 0.0
    %v8366 = vand.u32 %v356, 4294901760
    %8367 = vmatpush2.msra.mxu0 %v8366
    %8368 = vmatprep.subr.mxu0 0.0
    %v8369 = vand.u32 %v355, 4294901760
    %8370 = vmatpush2.msra.mxu0 %v8369
    %8371 = vmatprep.subr.mxu0 0.0
    %v8372 = vand.u32 %v354, 4294901760
    %8373 = vmatpush2.msra.mxu0 %v8372
    %8374 = vmatprep.subr.mxu0 0.0
    %v8375 = vand.u32 %v353, 4294901760
    %8376 = vmatpush2.msra.mxu0 %v8375
    %8377 = vmatprep.subr.mxu0 0.0
    %v8378 = vand.u32 %v352, 4294901760
    %8379 = vmatpush2.msra.mxu0 %v8378
    %8380 = vmatprep.subr.mxu0 0.0
    %v8381 = vand.u32 %v351, 4294901760
    %8382 = vmatpush2.msra.mxu0 %v8381
    %8383 = vmatprep.subr.mxu0 0.0
    %v8384 = vand.u32 %v350, 4294901760
    %8385 = vmatpush2.msra.mxu0 %v8384
    %8386 = vmatprep.subr.mxu0 0.0
    %v8387 = vand.u32 %v349, 4294901760
    %8388 = vmatpush2.msra.mxu0 %v8387
    %8389 = vmatprep.subr.mxu0 0.0
    %v8390 = vand.u32 %v348, 4294901760
    %8391 = vmatpush2.msra.mxu0 %v8390
    %8392 = vmatprep.subr.mxu0 0.0
    %v8393 = vand.u32 %v347, 4294901760
    %8394 = vmatpush2.msra.mxu0 %v8393
    %8395 = vmatprep.subr.mxu0 0.0
    %v8396 = vand.u32 %v346, 4294901760
    %8397 = vmatpush2.msra.mxu0 %v8396
    %8398 = vmatprep.subr.mxu0 0.0
    %v8399 = vand.u32 %v345, 4294901760
    %8400 = vmatpush2.msra.mxu0 %v8399
    %8401 = vmatprep.subr.mxu0 0.0
    %v8402 = vand.u32 %v344, 4294901760
    %8403 = vmatpush2.msra.mxu0 %v8402
    %8404 = vmatprep.subr.mxu0 0.0
    %v8405 = vand.u32 %v343, 4294901760
    %8406 = vmatpush2.msra.mxu0 %v8405
    %8407 = vmatprep.subr.mxu0 0.0
    %v8408 = vand.u32 %v342, 4294901760
    %8409 = vmatpush2.msra.mxu0 %v8408
    %8410 = vmatprep.subr.mxu0 0.0
    %v8411 = vand.u32 %v341, 4294901760
    %8412 = vmatpush2.msra.mxu0 %v8411
    %v8413 = vand.u32 %v38, 4294901760
    %v8414 = vsub.f32 %v38, %v8413
    %v8415 = vand.u32 %v8414, 4294901760
    %8416 = vmatprep.mubr.f32.mxu0 %v8415
    %v8417 = vand.u32 %v37, 4294901760
    %v8418 = vsub.f32 %v37, %v8417
    %v8419 = vand.u32 %v8418, 4294901760
    %8420 = vmatmul.mubr.f32.gmra.mxu0 %v8419
    %v8421 = vpop.f32.mrf.mxu0
    %v8422 = vadd.f32 %v8305, %v8421
    %v8423 = vpop.f32.mrf.mxu0
    %v8424 = vand.u32 %v62, 4294901760
    %v8425 = vsub.f32 %v62, %v8424
    %v8426 = vand.u32 %v8425, 4294901760
    %8427 = vmatprep.mubr.f32.mxu0 %v8426
    %v8428 = vand.u32 %v61, 4294901760
    %v8429 = vsub.f32 %v61, %v8428
    %v8430 = vand.u32 %v8429, 4294901760
    %8431 = vmatmul.mubr.f32.gmra.mxu0 %v8430
    %v8432 = vpop.f32.mrf.mxu0
    %v8433 = vadd.f32 %v8314, %v8432
    %v8434 = vpop.f32.mrf.mxu0
    %8435 = vdwg.mxu0
    %8436 = vmatprep.subr.mxu0 0.0
    %v8437 = vand.u32 %v340, 4294901760
    %v8438 = vsub.f32 %v340, %v8437
    %v8439 = vand.u32 %v8438, 4294901760
    %8440 = vmatpush1.msra.mxu0 %v8439
    %8441 = vmatprep.subr.mxu0 0.0
    %v8442 = vand.u32 %v339, 4294901760
    %v8443 = vsub.f32 %v339, %v8442
    %v8444 = vand.u32 %v8443, 4294901760
    %8445 = vmatpush1.msra.mxu0 %v8444
    %8446 = vmatprep.subr.mxu0 0.0
    %v8447 = vand.u32 %v338, 4294901760
    %v8448 = vsub.f32 %v338, %v8447
    %v8449 = vand.u32 %v8448, 4294901760
    %8450 = vmatpush1.msra.mxu0 %v8449
    %8451 = vmatprep.subr.mxu0 0.0
    %v8452 = vand.u32 %v337, 4294901760
    %v8453 = vsub.f32 %v337, %v8452
    %v8454 = vand.u32 %v8453, 4294901760
    %8455 = vmatpush1.msra.mxu0 %v8454
    %8456 = vmatprep.subr.mxu0 0.0
    %v8457 = vand.u32 %v336, 4294901760
    %v8458 = vsub.f32 %v336, %v8457
    %v8459 = vand.u32 %v8458, 4294901760
    %8460 = vmatpush1.msra.mxu0 %v8459
    %8461 = vmatprep.subr.mxu0 0.0
    %v8462 = vand.u32 %v335, 4294901760
    %v8463 = vsub.f32 %v335, %v8462
    %v8464 = vand.u32 %v8463, 4294901760
    %8465 = vmatpush1.msra.mxu0 %v8464
    %8466 = vmatprep.subr.mxu0 0.0
    %v8467 = vand.u32 %v334, 4294901760
    %v8468 = vsub.f32 %v334, %v8467
    %v8469 = vand.u32 %v8468, 4294901760
    %8470 = vmatpush1.msra.mxu0 %v8469
    %8471 = vmatprep.subr.mxu0 0.0
    %v8472 = vand.u32 %v333, 4294901760
    %v8473 = vsub.f32 %v333, %v8472
    %v8474 = vand.u32 %v8473, 4294901760
    %8475 = vmatpush1.msra.mxu0 %v8474
    %8476 = vmatprep.subr.mxu0 0.0
    %v8477 = vand.u32 %v332, 4294901760
    %v8478 = vsub.f32 %v332, %v8477
    %v8479 = vand.u32 %v8478, 4294901760
    %8480 = vmatpush1.msra.mxu0 %v8479
    %8481 = vmatprep.subr.mxu0 0.0
    %v8482 = vand.u32 %v331, 4294901760
    %v8483 = vsub.f32 %v331, %v8482
    %v8484 = vand.u32 %v8483, 4294901760
    %8485 = vmatpush1.msra.mxu0 %v8484
    %8486 = vmatprep.subr.mxu0 0.0
    %v8487 = vand.u32 %v330, 4294901760
    %v8488 = vsub.f32 %v330, %v8487
    %v8489 = vand.u32 %v8488, 4294901760
    %8490 = vmatpush1.msra.mxu0 %v8489
    %8491 = vmatprep.subr.mxu0 0.0
    %v8492 = vand.u32 %v329, 4294901760
    %v8493 = vsub.f32 %v329, %v8492
    %v8494 = vand.u32 %v8493, 4294901760
    %8495 = vmatpush1.msra.mxu0 %v8494
    %8496 = vmatprep.subr.mxu0 0.0
    %v8497 = vand.u32 %v328, 4294901760
    %v8498 = vsub.f32 %v328, %v8497
    %v8499 = vand.u32 %v8498, 4294901760
    %8500 = vmatpush1.msra.mxu0 %v8499
    %8501 = vmatprep.subr.mxu0 0.0
    %v8502 = vand.u32 %v327, 4294901760
    %v8503 = vsub.f32 %v327, %v8502
    %v8504 = vand.u32 %v8503, 4294901760
    %8505 = vmatpush1.msra.mxu0 %v8504
    %8506 = vmatprep.subr.mxu0 0.0
    %v8507 = vand.u32 %v326, 4294901760
    %v8508 = vsub.f32 %v326, %v8507
    %v8509 = vand.u32 %v8508, 4294901760
    %8510 = vmatpush1.msra.mxu0 %v8509
    %8511 = vmatprep.subr.mxu0 0.0
    %v8512 = vand.u32 %v325, 4294901760
    %v8513 = vsub.f32 %v325, %v8512
    %v8514 = vand.u32 %v8513, 4294901760
    %8515 = vmatpush1.msra.mxu0 %v8514
    %8516 = vmatprep.subr.mxu0 0.0
    %v8517 = vand.u32 %v356, 4294901760
    %v8518 = vsub.f32 %v356, %v8517
    %v8519 = vand.u32 %v8518, 4294901760
    %8520 = vmatpush2.msra.mxu0 %v8519
    %8521 = vmatprep.subr.mxu0 0.0
    %v8522 = vand.u32 %v355, 4294901760
    %v8523 = vsub.f32 %v355, %v8522
    %v8524 = vand.u32 %v8523, 4294901760
    %8525 = vmatpush2.msra.mxu0 %v8524
    %8526 = vmatprep.subr.mxu0 0.0
    %v8527 = vand.u32 %v354, 4294901760
    %v8528 = vsub.f32 %v354, %v8527
    %v8529 = vand.u32 %v8528, 4294901760
    %8530 = vmatpush2.msra.mxu0 %v8529
    %8531 = vmatprep.subr.mxu0 0.0
    %v8532 = vand.u32 %v353, 4294901760
    %v8533 = vsub.f32 %v353, %v8532
    %v8534 = vand.u32 %v8533, 4294901760
    %8535 = vmatpush2.msra.mxu0 %v8534
    %8536 = vmatprep.subr.mxu0 0.0
    %v8537 = vand.u32 %v352, 4294901760
    %v8538 = vsub.f32 %v352, %v8537
    %v8539 = vand.u32 %v8538, 4294901760
    %8540 = vmatpush2.msra.mxu0 %v8539
    %8541 = vmatprep.subr.mxu0 0.0
    %v8542 = vand.u32 %v351, 4294901760
    %v8543 = vsub.f32 %v351, %v8542
    %v8544 = vand.u32 %v8543, 4294901760
    %8545 = vmatpush2.msra.mxu0 %v8544
    %8546 = vmatprep.subr.mxu0 0.0
    %v8547 = vand.u32 %v350, 4294901760
    %v8548 = vsub.f32 %v350, %v8547
    %v8549 = vand.u32 %v8548, 4294901760
    %8550 = vmatpush2.msra.mxu0 %v8549
    %8551 = vmatprep.subr.mxu0 0.0
    %v8552 = vand.u32 %v349, 4294901760
    %v8553 = vsub.f32 %v349, %v8552
    %v8554 = vand.u32 %v8553, 4294901760
    %8555 = vmatpush2.msra.mxu0 %v8554
    %8556 = vmatprep.subr.mxu0 0.0
    %v8557 = vand.u32 %v348, 4294901760
    %v8558 = vsub.f32 %v348, %v8557
    %v8559 = vand.u32 %v8558, 4294901760
    %8560 = vmatpush2.msra.mxu0 %v8559
    %8561 = vmatprep.subr.mxu0 0.0
    %v8562 = vand.u32 %v347, 4294901760
    %v8563 = vsub.f32 %v347, %v8562
    %v8564 = vand.u32 %v8563, 4294901760
    %8565 = vmatpush2.msra.mxu0 %v8564
    %8566 = vmatprep.subr.mxu0 0.0
    %v8567 = vand.u32 %v346, 4294901760
    %v8568 = vsub.f32 %v346, %v8567
    %v8569 = vand.u32 %v8568, 4294901760
    %8570 = vmatpush2.msra.mxu0 %v8569
    %8571 = vmatprep.subr.mxu0 0.0
    %v8572 = vand.u32 %v345, 4294901760
    %v8573 = vsub.f32 %v345, %v8572
    %v8574 = vand.u32 %v8573, 4294901760
    %8575 = vmatpush2.msra.mxu0 %v8574
    %8576 = vmatprep.subr.mxu0 0.0
    %v8577 = vand.u32 %v344, 4294901760
    %v8578 = vsub.f32 %v344, %v8577
    %v8579 = vand.u32 %v8578, 4294901760
    %8580 = vmatpush2.msra.mxu0 %v8579
    %8581 = vmatprep.subr.mxu0 0.0
    %v8582 = vand.u32 %v343, 4294901760
    %v8583 = vsub.f32 %v343, %v8582
    %v8584 = vand.u32 %v8583, 4294901760
    %8585 = vmatpush2.msra.mxu0 %v8584
    %8586 = vmatprep.subr.mxu0 0.0
    %v8587 = vand.u32 %v342, 4294901760
    %v8588 = vsub.f32 %v342, %v8587
    %v8589 = vand.u32 %v8588, 4294901760
    %8590 = vmatpush2.msra.mxu0 %v8589
    %8591 = vmatprep.subr.mxu0 0.0
    %v8592 = vand.u32 %v341, 4294901760
    %v8593 = vsub.f32 %v341, %v8592
    %v8594 = vand.u32 %v8593, 4294901760
    %8595 = vmatpush2.msra.mxu0 %v8594
    %v8596 = vand.u32 %v38, 4294901760
    %8597 = vmatprep.mubr.f32.mxu0 %v8596
    %v8598 = vand.u32 %v37, 4294901760
    %8599 = vmatmul.mubr.f32.gmra.mxu0 %v8598
    %v8600 = vpop.f32.mrf.mxu0
    %v8601 = vadd.f32 %v8422, %v8600
    %v8602 = vpop.f32.mrf.mxu0
    %v8603 = vand.u32 %v62, 4294901760
    %8604 = vmatprep.mubr.f32.mxu0 %v8603
    %v8605 = vand.u32 %v61, 4294901760
    %8606 = vmatmul.mubr.f32.gmra.mxu0 %v8605
    %v8607 = vpop.f32.mrf.mxu0
    %v8608 = vadd.f32 %v8433, %v8607
    %v8609 = vpop.f32.mrf.mxu0
    %8610 = vdwg.mxu0
    %8611 = vmatprep.subr.mxu0 0.0
    %v8612 = vand.u32 %v340, 4294901760
    %8613 = vmatpush1.msra.mxu0 %v8612
    %8614 = vmatprep.subr.mxu0 0.0
    %v8615 = vand.u32 %v339, 4294901760
    %8616 = vmatpush1.msra.mxu0 %v8615
    %8617 = vmatprep.subr.mxu0 0.0
    %v8618 = vand.u32 %v338, 4294901760
    %8619 = vmatpush1.msra.mxu0 %v8618
    %8620 = vmatprep.subr.mxu0 0.0
    %v8621 = vand.u32 %v337, 4294901760
    %8622 = vmatpush1.msra.mxu0 %v8621
    %8623 = vmatprep.subr.mxu0 0.0
    %v8624 = vand.u32 %v336, 4294901760
    %8625 = vmatpush1.msra.mxu0 %v8624
    %8626 = vmatprep.subr.mxu0 0.0
    %v8627 = vand.u32 %v335, 4294901760
    %8628 = vmatpush1.msra.mxu0 %v8627
    %8629 = vmatprep.subr.mxu0 0.0
    %v8630 = vand.u32 %v334, 4294901760
    %8631 = vmatpush1.msra.mxu0 %v8630
    %8632 = vmatprep.subr.mxu0 0.0
    %v8633 = vand.u32 %v333, 4294901760
    %8634 = vmatpush1.msra.mxu0 %v8633
    %8635 = vmatprep.subr.mxu0 0.0
    %v8636 = vand.u32 %v332, 4294901760
    %8637 = vmatpush1.msra.mxu0 %v8636
    %8638 = vmatprep.subr.mxu0 0.0
    %v8639 = vand.u32 %v331, 4294901760
    %8640 = vmatpush1.msra.mxu0 %v8639
    %8641 = vmatprep.subr.mxu0 0.0
    %v8642 = vand.u32 %v330, 4294901760
    %8643 = vmatpush1.msra.mxu0 %v8642
    %8644 = vmatprep.subr.mxu0 0.0
    %v8645 = vand.u32 %v329, 4294901760
    %8646 = vmatpush1.msra.mxu0 %v8645
    %8647 = vmatprep.subr.mxu0 0.0
    %v8648 = vand.u32 %v328, 4294901760
    %8649 = vmatpush1.msra.mxu0 %v8648
    %8650 = vmatprep.subr.mxu0 0.0
    %v8651 = vand.u32 %v327, 4294901760
    %8652 = vmatpush1.msra.mxu0 %v8651
    %8653 = vmatprep.subr.mxu0 0.0
    %v8654 = vand.u32 %v326, 4294901760
    %8655 = vmatpush1.msra.mxu0 %v8654
    %8656 = vmatprep.subr.mxu0 0.0
    %v8657 = vand.u32 %v325, 4294901760
    %8658 = vmatpush1.msra.mxu0 %v8657
    %8659 = vmatprep.subr.mxu0 0.0
    %v8660 = vand.u32 %v356, 4294901760
    %8661 = vmatpush2.msra.mxu0 %v8660
    %8662 = vmatprep.subr.mxu0 0.0
    %v8663 = vand.u32 %v355, 4294901760
    %8664 = vmatpush2.msra.mxu0 %v8663
    %8665 = vmatprep.subr.mxu0 0.0
    %v8666 = vand.u32 %v354, 4294901760
    %8667 = vmatpush2.msra.mxu0 %v8666
    %8668 = vmatprep.subr.mxu0 0.0
    %v8669 = vand.u32 %v353, 4294901760
    %8670 = vmatpush2.msra.mxu0 %v8669
    %8671 = vmatprep.subr.mxu0 0.0
    %v8672 = vand.u32 %v352, 4294901760
    %8673 = vmatpush2.msra.mxu0 %v8672
    %8674 = vmatprep.subr.mxu0 0.0
    %v8675 = vand.u32 %v351, 4294901760
    %8676 = vmatpush2.msra.mxu0 %v8675
    %8677 = vmatprep.subr.mxu0 0.0
    %v8678 = vand.u32 %v350, 4294901760
    %8679 = vmatpush2.msra.mxu0 %v8678
    %8680 = vmatprep.subr.mxu0 0.0
    %v8681 = vand.u32 %v349, 4294901760
    %8682 = vmatpush2.msra.mxu0 %v8681
    %8683 = vmatprep.subr.mxu0 0.0
    %v8684 = vand.u32 %v348, 4294901760
    %8685 = vmatpush2.msra.mxu0 %v8684
    %8686 = vmatprep.subr.mxu0 0.0
    %v8687 = vand.u32 %v347, 4294901760
    %8688 = vmatpush2.msra.mxu0 %v8687
    %8689 = vmatprep.subr.mxu0 0.0
    %v8690 = vand.u32 %v346, 4294901760
    %8691 = vmatpush2.msra.mxu0 %v8690
    %8692 = vmatprep.subr.mxu0 0.0
    %v8693 = vand.u32 %v345, 4294901760
    %8694 = vmatpush2.msra.mxu0 %v8693
    %8695 = vmatprep.subr.mxu0 0.0
    %v8696 = vand.u32 %v344, 4294901760
    %8697 = vmatpush2.msra.mxu0 %v8696
    %8698 = vmatprep.subr.mxu0 0.0
    %v8699 = vand.u32 %v343, 4294901760
    %8700 = vmatpush2.msra.mxu0 %v8699
    %8701 = vmatprep.subr.mxu0 0.0
    %v8702 = vand.u32 %v342, 4294901760
    %8703 = vmatpush2.msra.mxu0 %v8702
    %8704 = vmatprep.subr.mxu0 0.0
    %v8705 = vand.u32 %v341, 4294901760
    %8706 = vmatpush2.msra.mxu0 %v8705
    %v8707 = vand.u32 %v38, 4294901760
    %8708 = vmatprep.mubr.f32.mxu0 %v8707
    %v8709 = vand.u32 %v37, 4294901760
    %8710 = vmatmul.mubr.f32.gmra.mxu0 %v8709
    %v8711 = vpop.f32.mrf.mxu0
    %v8712 = vadd.f32 %v8601, %v8711
    %v8713 = vpop.f32.mrf.mxu0
    %v8714 = vand.u32 %v62, 4294901760
    %8715 = vmatprep.mubr.f32.mxu0 %v8714
    %v8716 = vand.u32 %v61, 4294901760
    %8717 = vmatmul.mubr.f32.gmra.mxu0 %v8716
    %v8718 = vpop.f32.mrf.mxu0
    %v8719 = vadd.f32 %v8608, %v8718
    %v8720 = vpop.f32.mrf.mxu0
    %8721 = vdwg.mxu0
    %8722 = vmatprep.subr.mxu0 0.0
    %v8723 = vand.u32 %v372, 4294901760
    %8724 = vmatpush1.msra.mxu0 %v8723
    %8725 = vmatprep.subr.mxu0 0.0
    %v8726 = vand.u32 %v371, 4294901760
    %8727 = vmatpush1.msra.mxu0 %v8726
    %8728 = vmatprep.subr.mxu0 0.0
    %v8729 = vand.u32 %v370, 4294901760
    %8730 = vmatpush1.msra.mxu0 %v8729
    %8731 = vmatprep.subr.mxu0 0.0
    %v8732 = vand.u32 %v369, 4294901760
    %8733 = vmatpush1.msra.mxu0 %v8732
    %8734 = vmatprep.subr.mxu0 0.0
    %v8735 = vand.u32 %v368, 4294901760
    %8736 = vmatpush1.msra.mxu0 %v8735
    %8737 = vmatprep.subr.mxu0 0.0
    %v8738 = vand.u32 %v367, 4294901760
    %8739 = vmatpush1.msra.mxu0 %v8738
    %8740 = vmatprep.subr.mxu0 0.0
    %v8741 = vand.u32 %v366, 4294901760
    %8742 = vmatpush1.msra.mxu0 %v8741
    %8743 = vmatprep.subr.mxu0 0.0
    %v8744 = vand.u32 %v365, 4294901760
    %8745 = vmatpush1.msra.mxu0 %v8744
    %8746 = vmatprep.subr.mxu0 0.0
    %v8747 = vand.u32 %v364, 4294901760
    %8748 = vmatpush1.msra.mxu0 %v8747
    %8749 = vmatprep.subr.mxu0 0.0
    %v8750 = vand.u32 %v363, 4294901760
    %8751 = vmatpush1.msra.mxu0 %v8750
    %8752 = vmatprep.subr.mxu0 0.0
    %v8753 = vand.u32 %v362, 4294901760
    %8754 = vmatpush1.msra.mxu0 %v8753
    %8755 = vmatprep.subr.mxu0 0.0
    %v8756 = vand.u32 %v361, 4294901760
    %8757 = vmatpush1.msra.mxu0 %v8756
    %8758 = vmatprep.subr.mxu0 0.0
    %v8759 = vand.u32 %v360, 4294901760
    %8760 = vmatpush1.msra.mxu0 %v8759
    %8761 = vmatprep.subr.mxu0 0.0
    %v8762 = vand.u32 %v359, 4294901760
    %8763 = vmatpush1.msra.mxu0 %v8762
    %8764 = vmatprep.subr.mxu0 0.0
    %v8765 = vand.u32 %v358, 4294901760
    %8766 = vmatpush1.msra.mxu0 %v8765
    %8767 = vmatprep.subr.mxu0 0.0
    %v8768 = vand.u32 %v357, 4294901760
    %8769 = vmatpush1.msra.mxu0 %v8768
    %8770 = vmatprep.subr.mxu0 0.0
    %v8771 = vand.u32 %v388, 4294901760
    %8772 = vmatpush2.msra.mxu0 %v8771
    %8773 = vmatprep.subr.mxu0 0.0
    %v8774 = vand.u32 %v387, 4294901760
    %8775 = vmatpush2.msra.mxu0 %v8774
    %8776 = vmatprep.subr.mxu0 0.0
    %v8777 = vand.u32 %v386, 4294901760
    %8778 = vmatpush2.msra.mxu0 %v8777
    %8779 = vmatprep.subr.mxu0 0.0
    %v8780 = vand.u32 %v385, 4294901760
    %8781 = vmatpush2.msra.mxu0 %v8780
    %8782 = vmatprep.subr.mxu0 0.0
    %v8783 = vand.u32 %v384, 4294901760
    %8784 = vmatpush2.msra.mxu0 %v8783
    %8785 = vmatprep.subr.mxu0 0.0
    %v8786 = vand.u32 %v383, 4294901760
    %8787 = vmatpush2.msra.mxu0 %v8786
    %8788 = vmatprep.subr.mxu0 0.0
    %v8789 = vand.u32 %v382, 4294901760
    %8790 = vmatpush2.msra.mxu0 %v8789
    %8791 = vmatprep.subr.mxu0 0.0
    %v8792 = vand.u32 %v381, 4294901760
    %8793 = vmatpush2.msra.mxu0 %v8792
    %8794 = vmatprep.subr.mxu0 0.0
    %v8795 = vand.u32 %v380, 4294901760
    %8796 = vmatpush2.msra.mxu0 %v8795
    %8797 = vmatprep.subr.mxu0 0.0
    %v8798 = vand.u32 %v379, 4294901760
    %8799 = vmatpush2.msra.mxu0 %v8798
    %8800 = vmatprep.subr.mxu0 0.0
    %v8801 = vand.u32 %v378, 4294901760
    %8802 = vmatpush2.msra.mxu0 %v8801
    %8803 = vmatprep.subr.mxu0 0.0
    %v8804 = vand.u32 %v377, 4294901760
    %8805 = vmatpush2.msra.mxu0 %v8804
    %8806 = vmatprep.subr.mxu0 0.0
    %v8807 = vand.u32 %v376, 4294901760
    %8808 = vmatpush2.msra.mxu0 %v8807
    %8809 = vmatprep.subr.mxu0 0.0
    %v8810 = vand.u32 %v375, 4294901760
    %8811 = vmatpush2.msra.mxu0 %v8810
    %8812 = vmatprep.subr.mxu0 0.0
    %v8813 = vand.u32 %v374, 4294901760
    %8814 = vmatpush2.msra.mxu0 %v8813
    %8815 = vmatprep.subr.mxu0 0.0
    %v8816 = vand.u32 %v373, 4294901760
    %8817 = vmatpush2.msra.mxu0 %v8816
    %v8818 = vand.u32 %v40, 4294901760
    %v8819 = vsub.f32 %v40, %v8818
    %v8820 = vand.u32 %v8819, 4294901760
    %v8821 = vsub.f32 %v8819, %v8820
    %v8822 = vand.u32 %v8821, 4294901760
    %8823 = vmatprep.mubr.f32.mxu0 %v8822
    %v8824 = vand.u32 %v39, 4294901760
    %v8825 = vsub.f32 %v39, %v8824
    %v8826 = vand.u32 %v8825, 4294901760
    %v8827 = vsub.f32 %v8825, %v8826
    %v8828 = vand.u32 %v8827, 4294901760
    %8829 = vmatmul.mubr.f32.gmra.mxu0 %v8828
    %v8830 = vpop.f32.mrf.mxu0
    %v8831 = vadd.f32 %v8712, %v8830
    %v8832 = vpop.f32.mrf.mxu0
    %v8833 = vand.u32 %v64, 4294901760
    %v8834 = vsub.f32 %v64, %v8833
    %v8835 = vand.u32 %v8834, 4294901760
    %v8836 = vsub.f32 %v8834, %v8835
    %v8837 = vand.u32 %v8836, 4294901760
    %8838 = vmatprep.mubr.f32.mxu0 %v8837
    %v8839 = vand.u32 %v63, 4294901760
    %v8840 = vsub.f32 %v63, %v8839
    %v8841 = vand.u32 %v8840, 4294901760
    %v8842 = vsub.f32 %v8840, %v8841
    %v8843 = vand.u32 %v8842, 4294901760
    %8844 = vmatmul.mubr.f32.gmra.mxu0 %v8843
    %v8845 = vpop.f32.mrf.mxu0
    %v8846 = vadd.f32 %v8719, %v8845
    %v8847 = vpop.f32.mrf.mxu0
    %8848 = vdwg.mxu0
    %8849 = vmatprep.subr.mxu0 0.0
    %v8850 = vand.u32 %v372, 4294901760
    %v8851 = vsub.f32 %v372, %v8850
    %v8852 = vand.u32 %v8851, 4294901760
    %v8853 = vsub.f32 %v8851, %v8852
    %v8854 = vand.u32 %v8853, 4294901760
    %8855 = vmatpush1.msra.mxu0 %v8854
    %8856 = vmatprep.subr.mxu0 0.0
    %v8857 = vand.u32 %v371, 4294901760
    %v8858 = vsub.f32 %v371, %v8857
    %v8859 = vand.u32 %v8858, 4294901760
    %v8860 = vsub.f32 %v8858, %v8859
    %v8861 = vand.u32 %v8860, 4294901760
    %8862 = vmatpush1.msra.mxu0 %v8861
    %8863 = vmatprep.subr.mxu0 0.0
    %v8864 = vand.u32 %v370, 4294901760
    %v8865 = vsub.f32 %v370, %v8864
    %v8866 = vand.u32 %v8865, 4294901760
    %v8867 = vsub.f32 %v8865, %v8866
    %v8868 = vand.u32 %v8867, 4294901760
    %8869 = vmatpush1.msra.mxu0 %v8868
    %8870 = vmatprep.subr.mxu0 0.0
    %v8871 = vand.u32 %v369, 4294901760
    %v8872 = vsub.f32 %v369, %v8871
    %v8873 = vand.u32 %v8872, 4294901760
    %v8874 = vsub.f32 %v8872, %v8873
    %v8875 = vand.u32 %v8874, 4294901760
    %8876 = vmatpush1.msra.mxu0 %v8875
    %8877 = vmatprep.subr.mxu0 0.0
    %v8878 = vand.u32 %v368, 4294901760
    %v8879 = vsub.f32 %v368, %v8878
    %v8880 = vand.u32 %v8879, 4294901760
    %v8881 = vsub.f32 %v8879, %v8880
    %v8882 = vand.u32 %v8881, 4294901760
    %8883 = vmatpush1.msra.mxu0 %v8882
    %8884 = vmatprep.subr.mxu0 0.0
    %v8885 = vand.u32 %v367, 4294901760
    %v8886 = vsub.f32 %v367, %v8885
    %v8887 = vand.u32 %v8886, 4294901760
    %v8888 = vsub.f32 %v8886, %v8887
    %v8889 = vand.u32 %v8888, 4294901760
    %8890 = vmatpush1.msra.mxu0 %v8889
    %8891 = vmatprep.subr.mxu0 0.0
    %v8892 = vand.u32 %v366, 4294901760
    %v8893 = vsub.f32 %v366, %v8892
    %v8894 = vand.u32 %v8893, 4294901760
    %v8895 = vsub.f32 %v8893, %v8894
    %v8896 = vand.u32 %v8895, 4294901760
    %8897 = vmatpush1.msra.mxu0 %v8896
    %8898 = vmatprep.subr.mxu0 0.0
    %v8899 = vand.u32 %v365, 4294901760
    %v8900 = vsub.f32 %v365, %v8899
    %v8901 = vand.u32 %v8900, 4294901760
    %v8902 = vsub.f32 %v8900, %v8901
    %v8903 = vand.u32 %v8902, 4294901760
    %8904 = vmatpush1.msra.mxu0 %v8903
    %8905 = vmatprep.subr.mxu0 0.0
    %v8906 = vand.u32 %v364, 4294901760
    %v8907 = vsub.f32 %v364, %v8906
    %v8908 = vand.u32 %v8907, 4294901760
    %v8909 = vsub.f32 %v8907, %v8908
    %v8910 = vand.u32 %v8909, 4294901760
    %8911 = vmatpush1.msra.mxu0 %v8910
    %8912 = vmatprep.subr.mxu0 0.0
    %v8913 = vand.u32 %v363, 4294901760
    %v8914 = vsub.f32 %v363, %v8913
    %v8915 = vand.u32 %v8914, 4294901760
    %v8916 = vsub.f32 %v8914, %v8915
    %v8917 = vand.u32 %v8916, 4294901760
    %8918 = vmatpush1.msra.mxu0 %v8917
    %8919 = vmatprep.subr.mxu0 0.0
    %v8920 = vand.u32 %v362, 4294901760
    %v8921 = vsub.f32 %v362, %v8920
    %v8922 = vand.u32 %v8921, 4294901760
    %v8923 = vsub.f32 %v8921, %v8922
    %v8924 = vand.u32 %v8923, 4294901760
    %8925 = vmatpush1.msra.mxu0 %v8924
    %8926 = vmatprep.subr.mxu0 0.0
    %v8927 = vand.u32 %v361, 4294901760
    %v8928 = vsub.f32 %v361, %v8927
    %v8929 = vand.u32 %v8928, 4294901760
    %v8930 = vsub.f32 %v8928, %v8929
    %v8931 = vand.u32 %v8930, 4294901760
    %8932 = vmatpush1.msra.mxu0 %v8931
    %8933 = vmatprep.subr.mxu0 0.0
    %v8934 = vand.u32 %v360, 4294901760
    %v8935 = vsub.f32 %v360, %v8934
    %v8936 = vand.u32 %v8935, 4294901760
    %v8937 = vsub.f32 %v8935, %v8936
    %v8938 = vand.u32 %v8937, 4294901760
    %8939 = vmatpush1.msra.mxu0 %v8938
    %8940 = vmatprep.subr.mxu0 0.0
    %v8941 = vand.u32 %v359, 4294901760
    %v8942 = vsub.f32 %v359, %v8941
    %v8943 = vand.u32 %v8942, 4294901760
    %v8944 = vsub.f32 %v8942, %v8943
    %v8945 = vand.u32 %v8944, 4294901760
    %8946 = vmatpush1.msra.mxu0 %v8945
    %8947 = vmatprep.subr.mxu0 0.0
    %v8948 = vand.u32 %v358, 4294901760
    %v8949 = vsub.f32 %v358, %v8948
    %v8950 = vand.u32 %v8949, 4294901760
    %v8951 = vsub.f32 %v8949, %v8950
    %v8952 = vand.u32 %v8951, 4294901760
    %8953 = vmatpush1.msra.mxu0 %v8952
    %8954 = vmatprep.subr.mxu0 0.0
    %v8955 = vand.u32 %v357, 4294901760
    %v8956 = vsub.f32 %v357, %v8955
    %v8957 = vand.u32 %v8956, 4294901760
    %v8958 = vsub.f32 %v8956, %v8957
    %v8959 = vand.u32 %v8958, 4294901760
    %8960 = vmatpush1.msra.mxu0 %v8959
    %8961 = vmatprep.subr.mxu0 0.0
    %v8962 = vand.u32 %v388, 4294901760
    %v8963 = vsub.f32 %v388, %v8962
    %v8964 = vand.u32 %v8963, 4294901760
    %v8965 = vsub.f32 %v8963, %v8964
    %v8966 = vand.u32 %v8965, 4294901760
    %8967 = vmatpush2.msra.mxu0 %v8966
    %8968 = vmatprep.subr.mxu0 0.0
    %v8969 = vand.u32 %v387, 4294901760
    %v8970 = vsub.f32 %v387, %v8969
    %v8971 = vand.u32 %v8970, 4294901760
    %v8972 = vsub.f32 %v8970, %v8971
    %v8973 = vand.u32 %v8972, 4294901760
    %8974 = vmatpush2.msra.mxu0 %v8973
    %8975 = vmatprep.subr.mxu0 0.0
    %v8976 = vand.u32 %v386, 4294901760
    %v8977 = vsub.f32 %v386, %v8976
    %v8978 = vand.u32 %v8977, 4294901760
    %v8979 = vsub.f32 %v8977, %v8978
    %v8980 = vand.u32 %v8979, 4294901760
    %8981 = vmatpush2.msra.mxu0 %v8980
    %8982 = vmatprep.subr.mxu0 0.0
    %v8983 = vand.u32 %v385, 4294901760
    %v8984 = vsub.f32 %v385, %v8983
    %v8985 = vand.u32 %v8984, 4294901760
    %v8986 = vsub.f32 %v8984, %v8985
    %v8987 = vand.u32 %v8986, 4294901760
    %8988 = vmatpush2.msra.mxu0 %v8987
    %8989 = vmatprep.subr.mxu0 0.0
    %v8990 = vand.u32 %v384, 4294901760
    %v8991 = vsub.f32 %v384, %v8990
    %v8992 = vand.u32 %v8991, 4294901760
    %v8993 = vsub.f32 %v8991, %v8992
    %v8994 = vand.u32 %v8993, 4294901760
    %8995 = vmatpush2.msra.mxu0 %v8994
    %8996 = vmatprep.subr.mxu0 0.0
    %v8997 = vand.u32 %v383, 4294901760
    %v8998 = vsub.f32 %v383, %v8997
    %v8999 = vand.u32 %v8998, 4294901760
    %v9000 = vsub.f32 %v8998, %v8999
    %v9001 = vand.u32 %v9000, 4294901760
    %9002 = vmatpush2.msra.mxu0 %v9001
    %9003 = vmatprep.subr.mxu0 0.0
    %v9004 = vand.u32 %v382, 4294901760
    %v9005 = vsub.f32 %v382, %v9004
    %v9006 = vand.u32 %v9005, 4294901760
    %v9007 = vsub.f32 %v9005, %v9006
    %v9008 = vand.u32 %v9007, 4294901760
    %9009 = vmatpush2.msra.mxu0 %v9008
    %9010 = vmatprep.subr.mxu0 0.0
    %v9011 = vand.u32 %v381, 4294901760
    %v9012 = vsub.f32 %v381, %v9011
    %v9013 = vand.u32 %v9012, 4294901760
    %v9014 = vsub.f32 %v9012, %v9013
    %v9015 = vand.u32 %v9014, 4294901760
    %9016 = vmatpush2.msra.mxu0 %v9015
    %9017 = vmatprep.subr.mxu0 0.0
    %v9018 = vand.u32 %v380, 4294901760
    %v9019 = vsub.f32 %v380, %v9018
    %v9020 = vand.u32 %v9019, 4294901760
    %v9021 = vsub.f32 %v9019, %v9020
    %v9022 = vand.u32 %v9021, 4294901760
    %9023 = vmatpush2.msra.mxu0 %v9022
    %9024 = vmatprep.subr.mxu0 0.0
    %v9025 = vand.u32 %v379, 4294901760
    %v9026 = vsub.f32 %v379, %v9025
    %v9027 = vand.u32 %v9026, 4294901760
    %v9028 = vsub.f32 %v9026, %v9027
    %v9029 = vand.u32 %v9028, 4294901760
    %9030 = vmatpush2.msra.mxu0 %v9029
    %9031 = vmatprep.subr.mxu0 0.0
    %v9032 = vand.u32 %v378, 4294901760
    %v9033 = vsub.f32 %v378, %v9032
    %v9034 = vand.u32 %v9033, 4294901760
    %v9035 = vsub.f32 %v9033, %v9034
    %v9036 = vand.u32 %v9035, 4294901760
    %9037 = vmatpush2.msra.mxu0 %v9036
    %9038 = vmatprep.subr.mxu0 0.0
    %v9039 = vand.u32 %v377, 4294901760
    %v9040 = vsub.f32 %v377, %v9039
    %v9041 = vand.u32 %v9040, 4294901760
    %v9042 = vsub.f32 %v9040, %v9041
    %v9043 = vand.u32 %v9042, 4294901760
    %9044 = vmatpush2.msra.mxu0 %v9043
    %9045 = vmatprep.subr.mxu0 0.0
    %v9046 = vand.u32 %v376, 4294901760
    %v9047 = vsub.f32 %v376, %v9046
    %v9048 = vand.u32 %v9047, 4294901760
    %v9049 = vsub.f32 %v9047, %v9048
    %v9050 = vand.u32 %v9049, 4294901760
    %9051 = vmatpush2.msra.mxu0 %v9050
    %9052 = vmatprep.subr.mxu0 0.0
    %v9053 = vand.u32 %v375, 4294901760
    %v9054 = vsub.f32 %v375, %v9053
    %v9055 = vand.u32 %v9054, 4294901760
    %v9056 = vsub.f32 %v9054, %v9055
    %v9057 = vand.u32 %v9056, 4294901760
    %9058 = vmatpush2.msra.mxu0 %v9057
    %9059 = vmatprep.subr.mxu0 0.0
    %v9060 = vand.u32 %v374, 4294901760
    %v9061 = vsub.f32 %v374, %v9060
    %v9062 = vand.u32 %v9061, 4294901760
    %v9063 = vsub.f32 %v9061, %v9062
    %v9064 = vand.u32 %v9063, 4294901760
    %9065 = vmatpush2.msra.mxu0 %v9064
    %9066 = vmatprep.subr.mxu0 0.0
    %v9067 = vand.u32 %v373, 4294901760
    %v9068 = vsub.f32 %v373, %v9067
    %v9069 = vand.u32 %v9068, 4294901760
    %v9070 = vsub.f32 %v9068, %v9069
    %v9071 = vand.u32 %v9070, 4294901760
    %9072 = vmatpush2.msra.mxu0 %v9071
    %v9073 = vand.u32 %v40, 4294901760
    %9074 = vmatprep.mubr.f32.mxu0 %v9073
    %v9075 = vand.u32 %v39, 4294901760
    %9076 = vmatmul.mubr.f32.gmra.mxu0 %v9075
    %v9077 = vpop.f32.mrf.mxu0
    %v9078 = vadd.f32 %v8831, %v9077
    %v9079 = vpop.f32.mrf.mxu0
    %v9080 = vand.u32 %v64, 4294901760
    %9081 = vmatprep.mubr.f32.mxu0 %v9080
    %v9082 = vand.u32 %v63, 4294901760
    %9083 = vmatmul.mubr.f32.gmra.mxu0 %v9082
    %v9084 = vpop.f32.mrf.mxu0
    %v9085 = vadd.f32 %v8846, %v9084
    %v9086 = vpop.f32.mrf.mxu0
    %9087 = vdwg.mxu0
    %9088 = vmatprep.subr.mxu0 0.0
    %v9089 = vand.u32 %v372, 4294901760
    %v9090 = vsub.f32 %v372, %v9089
    %9091 = vmatpush1.msra.mxu0 %v9090
    %9092 = vmatprep.subr.mxu0 0.0
    %v9093 = vand.u32 %v371, 4294901760
    %v9094 = vsub.f32 %v371, %v9093
    %9095 = vmatpush1.msra.mxu0 %v9094
    %9096 = vmatprep.subr.mxu0 0.0
    %v9097 = vand.u32 %v370, 4294901760
    %v9098 = vsub.f32 %v370, %v9097
    %9099 = vmatpush1.msra.mxu0 %v9098
    %9100 = vmatprep.subr.mxu0 0.0
    %v9101 = vand.u32 %v369, 4294901760
    %v9102 = vsub.f32 %v369, %v9101
    %9103 = vmatpush1.msra.mxu0 %v9102
    %9104 = vmatprep.subr.mxu0 0.0
    %v9105 = vand.u32 %v368, 4294901760
    %v9106 = vsub.f32 %v368, %v9105
    %9107 = vmatpush1.msra.mxu0 %v9106
    %9108 = vmatprep.subr.mxu0 0.0
    %v9109 = vand.u32 %v367, 4294901760
    %v9110 = vsub.f32 %v367, %v9109
    %9111 = vmatpush1.msra.mxu0 %v9110
    %9112 = vmatprep.subr.mxu0 0.0
    %v9113 = vand.u32 %v366, 4294901760
    %v9114 = vsub.f32 %v366, %v9113
    %9115 = vmatpush1.msra.mxu0 %v9114
    %9116 = vmatprep.subr.mxu0 0.0
    %v9117 = vand.u32 %v365, 4294901760
    %v9118 = vsub.f32 %v365, %v9117
    %9119 = vmatpush1.msra.mxu0 %v9118
    %9120 = vmatprep.subr.mxu0 0.0
    %v9121 = vand.u32 %v364, 4294901760
    %v9122 = vsub.f32 %v364, %v9121
    %9123 = vmatpush1.msra.mxu0 %v9122
    %9124 = vmatprep.subr.mxu0 0.0
    %v9125 = vand.u32 %v363, 4294901760
    %v9126 = vsub.f32 %v363, %v9125
    %9127 = vmatpush1.msra.mxu0 %v9126
    %9128 = vmatprep.subr.mxu0 0.0
    %v9129 = vand.u32 %v362, 4294901760
    %v9130 = vsub.f32 %v362, %v9129
    %9131 = vmatpush1.msra.mxu0 %v9130
    %9132 = vmatprep.subr.mxu0 0.0
    %v9133 = vand.u32 %v361, 4294901760
    %v9134 = vsub.f32 %v361, %v9133
    %9135 = vmatpush1.msra.mxu0 %v9134
    %9136 = vmatprep.subr.mxu0 0.0
    %v9137 = vand.u32 %v360, 4294901760
    %v9138 = vsub.f32 %v360, %v9137
    %9139 = vmatpush1.msra.mxu0 %v9138
    %9140 = vmatprep.subr.mxu0 0.0
    %v9141 = vand.u32 %v359, 4294901760
    %v9142 = vsub.f32 %v359, %v9141
    %9143 = vmatpush1.msra.mxu0 %v9142
    %9144 = vmatprep.subr.mxu0 0.0
    %v9145 = vand.u32 %v358, 4294901760
    %v9146 = vsub.f32 %v358, %v9145
    %9147 = vmatpush1.msra.mxu0 %v9146
    %9148 = vmatprep.subr.mxu0 0.0
    %v9149 = vand.u32 %v357, 4294901760
    %v9150 = vsub.f32 %v357, %v9149
    %9151 = vmatpush1.msra.mxu0 %v9150
    %9152 = vmatprep.subr.mxu0 0.0
    %v9153 = vand.u32 %v388, 4294901760
    %v9154 = vsub.f32 %v388, %v9153
    %9155 = vmatpush2.msra.mxu0 %v9154
    %9156 = vmatprep.subr.mxu0 0.0
    %v9157 = vand.u32 %v387, 4294901760
    %v9158 = vsub.f32 %v387, %v9157
    %9159 = vmatpush2.msra.mxu0 %v9158
    %9160 = vmatprep.subr.mxu0 0.0
    %v9161 = vand.u32 %v386, 4294901760
    %v9162 = vsub.f32 %v386, %v9161
    %9163 = vmatpush2.msra.mxu0 %v9162
    %9164 = vmatprep.subr.mxu0 0.0
    %v9165 = vand.u32 %v385, 4294901760
    %v9166 = vsub.f32 %v385, %v9165
    %9167 = vmatpush2.msra.mxu0 %v9166
    %9168 = vmatprep.subr.mxu0 0.0
    %v9169 = vand.u32 %v384, 4294901760
    %v9170 = vsub.f32 %v384, %v9169
    %9171 = vmatpush2.msra.mxu0 %v9170
    %9172 = vmatprep.subr.mxu0 0.0
    %v9173 = vand.u32 %v383, 4294901760
    %v9174 = vsub.f32 %v383, %v9173
    %9175 = vmatpush2.msra.mxu0 %v9174
    %9176 = vmatprep.subr.mxu0 0.0
    %v9177 = vand.u32 %v382, 4294901760
    %v9178 = vsub.f32 %v382, %v9177
    %9179 = vmatpush2.msra.mxu0 %v9178
    %9180 = vmatprep.subr.mxu0 0.0
    %v9181 = vand.u32 %v381, 4294901760
    %v9182 = vsub.f32 %v381, %v9181
    %9183 = vmatpush2.msra.mxu0 %v9182
    %9184 = vmatprep.subr.mxu0 0.0
    %v9185 = vand.u32 %v380, 4294901760
    %v9186 = vsub.f32 %v380, %v9185
    %9187 = vmatpush2.msra.mxu0 %v9186
    %9188 = vmatprep.subr.mxu0 0.0
    %v9189 = vand.u32 %v379, 4294901760
    %v9190 = vsub.f32 %v379, %v9189
    %9191 = vmatpush2.msra.mxu0 %v9190
    %9192 = vmatprep.subr.mxu0 0.0
    %v9193 = vand.u32 %v378, 4294901760
    %v9194 = vsub.f32 %v378, %v9193
    %9195 = vmatpush2.msra.mxu0 %v9194
    %9196 = vmatprep.subr.mxu0 0.0
    %v9197 = vand.u32 %v377, 4294901760
    %v9198 = vsub.f32 %v377, %v9197
    %9199 = vmatpush2.msra.mxu0 %v9198
    %9200 = vmatprep.subr.mxu0 0.0
    %v9201 = vand.u32 %v376, 4294901760
    %v9202 = vsub.f32 %v376, %v9201
    %9203 = vmatpush2.msra.mxu0 %v9202
    %9204 = vmatprep.subr.mxu0 0.0
    %v9205 = vand.u32 %v375, 4294901760
    %v9206 = vsub.f32 %v375, %v9205
    %9207 = vmatpush2.msra.mxu0 %v9206
    %9208 = vmatprep.subr.mxu0 0.0
    %v9209 = vand.u32 %v374, 4294901760
    %v9210 = vsub.f32 %v374, %v9209
    %9211 = vmatpush2.msra.mxu0 %v9210
    %9212 = vmatprep.subr.mxu0 0.0
    %v9213 = vand.u32 %v373, 4294901760
    %v9214 = vsub.f32 %v373, %v9213
    %9215 = vmatpush2.msra.mxu0 %v9214
    %v9216 = vand.u32 %v40, 4294901760
    %v9217 = vsub.f32 %v40, %v9216
    %9218 = vmatprep.mubr.f32.mxu0 %v9217
    %v9219 = vand.u32 %v39, 4294901760
    %v9220 = vsub.f32 %v39, %v9219
    %9221 = vmatmul.mubr.f32.gmra.mxu0 %v9220
    %v9222 = vpop.f32.mrf.mxu0
    %v9223 = vadd.f32 %v9078, %v9222
    %v9224 = vpop.f32.mrf.mxu0
    %v9225 = vand.u32 %v64, 4294901760
    %v9226 = vsub.f32 %v64, %v9225
    %9227 = vmatprep.mubr.f32.mxu0 %v9226
    %v9228 = vand.u32 %v63, 4294901760
    %v9229 = vsub.f32 %v63, %v9228
    %9230 = vmatmul.mubr.f32.gmra.mxu0 %v9229
    %v9231 = vpop.f32.mrf.mxu0
    %v9232 = vadd.f32 %v9085, %v9231
    %v9233 = vpop.f32.mrf.mxu0
    %9234 = vdwg.mxu0
    %9235 = vmatprep.subr.mxu0 0.0
    %v9236 = vand.u32 %v372, 4294901760
    %9237 = vmatpush1.msra.mxu0 %v9236
    %9238 = vmatprep.subr.mxu0 0.0
    %v9239 = vand.u32 %v371, 4294901760
    %9240 = vmatpush1.msra.mxu0 %v9239
    %9241 = vmatprep.subr.mxu0 0.0
    %v9242 = vand.u32 %v370, 4294901760
    %9243 = vmatpush1.msra.mxu0 %v9242
    %9244 = vmatprep.subr.mxu0 0.0
    %v9245 = vand.u32 %v369, 4294901760
    %9246 = vmatpush1.msra.mxu0 %v9245
    %9247 = vmatprep.subr.mxu0 0.0
    %v9248 = vand.u32 %v368, 4294901760
    %9249 = vmatpush1.msra.mxu0 %v9248
    %9250 = vmatprep.subr.mxu0 0.0
    %v9251 = vand.u32 %v367, 4294901760
    %9252 = vmatpush1.msra.mxu0 %v9251
    %9253 = vmatprep.subr.mxu0 0.0
    %v9254 = vand.u32 %v366, 4294901760
    %9255 = vmatpush1.msra.mxu0 %v9254
    %9256 = vmatprep.subr.mxu0 0.0
    %v9257 = vand.u32 %v365, 4294901760
    %9258 = vmatpush1.msra.mxu0 %v9257
    %9259 = vmatprep.subr.mxu0 0.0
    %v9260 = vand.u32 %v364, 4294901760
    %9261 = vmatpush1.msra.mxu0 %v9260
    %9262 = vmatprep.subr.mxu0 0.0
    %v9263 = vand.u32 %v363, 4294901760
    %9264 = vmatpush1.msra.mxu0 %v9263
    %9265 = vmatprep.subr.mxu0 0.0
    %v9266 = vand.u32 %v362, 4294901760
    %9267 = vmatpush1.msra.mxu0 %v9266
    %9268 = vmatprep.subr.mxu0 0.0
    %v9269 = vand.u32 %v361, 4294901760
    %9270 = vmatpush1.msra.mxu0 %v9269
    %9271 = vmatprep.subr.mxu0 0.0
    %v9272 = vand.u32 %v360, 4294901760
    %9273 = vmatpush1.msra.mxu0 %v9272
    %9274 = vmatprep.subr.mxu0 0.0
    %v9275 = vand.u32 %v359, 4294901760
    %9276 = vmatpush1.msra.mxu0 %v9275
    %9277 = vmatprep.subr.mxu0 0.0
    %v9278 = vand.u32 %v358, 4294901760
    %9279 = vmatpush1.msra.mxu0 %v9278
    %9280 = vmatprep.subr.mxu0 0.0
    %v9281 = vand.u32 %v357, 4294901760
    %9282 = vmatpush1.msra.mxu0 %v9281
    %9283 = vmatprep.subr.mxu0 0.0
    %v9284 = vand.u32 %v388, 4294901760
    %9285 = vmatpush2.msra.mxu0 %v9284
    %9286 = vmatprep.subr.mxu0 0.0
    %v9287 = vand.u32 %v387, 4294901760
    %9288 = vmatpush2.msra.mxu0 %v9287
    %9289 = vmatprep.subr.mxu0 0.0
    %v9290 = vand.u32 %v386, 4294901760
    %9291 = vmatpush2.msra.mxu0 %v9290
    %9292 = vmatprep.subr.mxu0 0.0
    %v9293 = vand.u32 %v385, 4294901760
    %9294 = vmatpush2.msra.mxu0 %v9293
    %9295 = vmatprep.subr.mxu0 0.0
    %v9296 = vand.u32 %v384, 4294901760
    %9297 = vmatpush2.msra.mxu0 %v9296
    %9298 = vmatprep.subr.mxu0 0.0
    %v9299 = vand.u32 %v383, 4294901760
    %9300 = vmatpush2.msra.mxu0 %v9299
    %9301 = vmatprep.subr.mxu0 0.0
    %v9302 = vand.u32 %v382, 4294901760
    %9303 = vmatpush2.msra.mxu0 %v9302
    %9304 = vmatprep.subr.mxu0 0.0
    %v9305 = vand.u32 %v381, 4294901760
    %9306 = vmatpush2.msra.mxu0 %v9305
    %9307 = vmatprep.subr.mxu0 0.0
    %v9308 = vand.u32 %v380, 4294901760
    %9309 = vmatpush2.msra.mxu0 %v9308
    %9310 = vmatprep.subr.mxu0 0.0
    %v9311 = vand.u32 %v379, 4294901760
    %9312 = vmatpush2.msra.mxu0 %v9311
    %9313 = vmatprep.subr.mxu0 0.0
    %v9314 = vand.u32 %v378, 4294901760
    %9315 = vmatpush2.msra.mxu0 %v9314
    %9316 = vmatprep.subr.mxu0 0.0
    %v9317 = vand.u32 %v377, 4294901760
    %9318 = vmatpush2.msra.mxu0 %v9317
    %9319 = vmatprep.subr.mxu0 0.0
    %v9320 = vand.u32 %v376, 4294901760
    %9321 = vmatpush2.msra.mxu0 %v9320
    %9322 = vmatprep.subr.mxu0 0.0
    %v9323 = vand.u32 %v375, 4294901760
    %9324 = vmatpush2.msra.mxu0 %v9323
    %9325 = vmatprep.subr.mxu0 0.0
    %v9326 = vand.u32 %v374, 4294901760
    %9327 = vmatpush2.msra.mxu0 %v9326
    %9328 = vmatprep.subr.mxu0 0.0
    %v9329 = vand.u32 %v373, 4294901760
    %9330 = vmatpush2.msra.mxu0 %v9329
    %v9331 = vand.u32 %v40, 4294901760
    %v9332 = vsub.f32 %v40, %v9331
    %v9333 = vand.u32 %v9332, 4294901760
    %9334 = vmatprep.mubr.f32.mxu0 %v9333
    %v9335 = vand.u32 %v39, 4294901760
    %v9336 = vsub.f32 %v39, %v9335
    %v9337 = vand.u32 %v9336, 4294901760
    %9338 = vmatmul.mubr.f32.gmra.mxu0 %v9337
    %v9339 = vpop.f32.mrf.mxu0
    %v9340 = vadd.f32 %v9223, %v9339
    %v9341 = vpop.f32.mrf.mxu0
    %v9342 = vand.u32 %v64, 4294901760
    %v9343 = vsub.f32 %v64, %v9342
    %v9344 = vand.u32 %v9343, 4294901760
    %9345 = vmatprep.mubr.f32.mxu0 %v9344
    %v9346 = vand.u32 %v63, 4294901760
    %v9347 = vsub.f32 %v63, %v9346
    %v9348 = vand.u32 %v9347, 4294901760
    %9349 = vmatmul.mubr.f32.gmra.mxu0 %v9348
    %v9350 = vpop.f32.mrf.mxu0
    %v9351 = vadd.f32 %v9232, %v9350
    %v9352 = vpop.f32.mrf.mxu0
    %9353 = vdwg.mxu0
    %9354 = vmatprep.subr.mxu0 0.0
    %v9355 = vand.u32 %v372, 4294901760
    %v9356 = vsub.f32 %v372, %v9355
    %v9357 = vand.u32 %v9356, 4294901760
    %9358 = vmatpush1.msra.mxu0 %v9357
    %9359 = vmatprep.subr.mxu0 0.0
    %v9360 = vand.u32 %v371, 4294901760
    %v9361 = vsub.f32 %v371, %v9360
    %v9362 = vand.u32 %v9361, 4294901760
    %9363 = vmatpush1.msra.mxu0 %v9362
    %9364 = vmatprep.subr.mxu0 0.0
    %v9365 = vand.u32 %v370, 4294901760
    %v9366 = vsub.f32 %v370, %v9365
    %v9367 = vand.u32 %v9366, 4294901760
    %9368 = vmatpush1.msra.mxu0 %v9367
    %9369 = vmatprep.subr.mxu0 0.0
    %v9370 = vand.u32 %v369, 4294901760
    %v9371 = vsub.f32 %v369, %v9370
    %v9372 = vand.u32 %v9371, 4294901760
    %9373 = vmatpush1.msra.mxu0 %v9372
    %9374 = vmatprep.subr.mxu0 0.0
    %v9375 = vand.u32 %v368, 4294901760
    %v9376 = vsub.f32 %v368, %v9375
    %v9377 = vand.u32 %v9376, 4294901760
    %9378 = vmatpush1.msra.mxu0 %v9377
    %9379 = vmatprep.subr.mxu0 0.0
    %v9380 = vand.u32 %v367, 4294901760
    %v9381 = vsub.f32 %v367, %v9380
    %v9382 = vand.u32 %v9381, 4294901760
    %9383 = vmatpush1.msra.mxu0 %v9382
    %9384 = vmatprep.subr.mxu0 0.0
    %v9385 = vand.u32 %v366, 4294901760
    %v9386 = vsub.f32 %v366, %v9385
    %v9387 = vand.u32 %v9386, 4294901760
    %9388 = vmatpush1.msra.mxu0 %v9387
    %9389 = vmatprep.subr.mxu0 0.0
    %v9390 = vand.u32 %v365, 4294901760
    %v9391 = vsub.f32 %v365, %v9390
    %v9392 = vand.u32 %v9391, 4294901760
    %9393 = vmatpush1.msra.mxu0 %v9392
    %9394 = vmatprep.subr.mxu0 0.0
    %v9395 = vand.u32 %v364, 4294901760
    %v9396 = vsub.f32 %v364, %v9395
    %v9397 = vand.u32 %v9396, 4294901760
    %9398 = vmatpush1.msra.mxu0 %v9397
    %9399 = vmatprep.subr.mxu0 0.0
    %v9400 = vand.u32 %v363, 4294901760
    %v9401 = vsub.f32 %v363, %v9400
    %v9402 = vand.u32 %v9401, 4294901760
    %9403 = vmatpush1.msra.mxu0 %v9402
    %9404 = vmatprep.subr.mxu0 0.0
    %v9405 = vand.u32 %v362, 4294901760
    %v9406 = vsub.f32 %v362, %v9405
    %v9407 = vand.u32 %v9406, 4294901760
    %9408 = vmatpush1.msra.mxu0 %v9407
    %9409 = vmatprep.subr.mxu0 0.0
    %v9410 = vand.u32 %v361, 4294901760
    %v9411 = vsub.f32 %v361, %v9410
    %v9412 = vand.u32 %v9411, 4294901760
    %9413 = vmatpush1.msra.mxu0 %v9412
    %9414 = vmatprep.subr.mxu0 0.0
    %v9415 = vand.u32 %v360, 4294901760
    %v9416 = vsub.f32 %v360, %v9415
    %v9417 = vand.u32 %v9416, 4294901760
    %9418 = vmatpush1.msra.mxu0 %v9417
    %9419 = vmatprep.subr.mxu0 0.0
    %v9420 = vand.u32 %v359, 4294901760
    %v9421 = vsub.f32 %v359, %v9420
    %v9422 = vand.u32 %v9421, 4294901760
    %9423 = vmatpush1.msra.mxu0 %v9422
    %9424 = vmatprep.subr.mxu0 0.0
    %v9425 = vand.u32 %v358, 4294901760
    %v9426 = vsub.f32 %v358, %v9425
    %v9427 = vand.u32 %v9426, 4294901760
    %9428 = vmatpush1.msra.mxu0 %v9427
    %9429 = vmatprep.subr.mxu0 0.0
    %v9430 = vand.u32 %v357, 4294901760
    %v9431 = vsub.f32 %v357, %v9430
    %v9432 = vand.u32 %v9431, 4294901760
    %9433 = vmatpush1.msra.mxu0 %v9432
    %9434 = vmatprep.subr.mxu0 0.0
    %v9435 = vand.u32 %v388, 4294901760
    %v9436 = vsub.f32 %v388, %v9435
    %v9437 = vand.u32 %v9436, 4294901760
    %9438 = vmatpush2.msra.mxu0 %v9437
    %9439 = vmatprep.subr.mxu0 0.0
    %v9440 = vand.u32 %v387, 4294901760
    %v9441 = vsub.f32 %v387, %v9440
    %v9442 = vand.u32 %v9441, 4294901760
    %9443 = vmatpush2.msra.mxu0 %v9442
    %9444 = vmatprep.subr.mxu0 0.0
    %v9445 = vand.u32 %v386, 4294901760
    %v9446 = vsub.f32 %v386, %v9445
    %v9447 = vand.u32 %v9446, 4294901760
    %9448 = vmatpush2.msra.mxu0 %v9447
    %9449 = vmatprep.subr.mxu0 0.0
    %v9450 = vand.u32 %v385, 4294901760
    %v9451 = vsub.f32 %v385, %v9450
    %v9452 = vand.u32 %v9451, 4294901760
    %9453 = vmatpush2.msra.mxu0 %v9452
    %9454 = vmatprep.subr.mxu0 0.0
    %v9455 = vand.u32 %v384, 4294901760
    %v9456 = vsub.f32 %v384, %v9455
    %v9457 = vand.u32 %v9456, 4294901760
    %9458 = vmatpush2.msra.mxu0 %v9457
    %9459 = vmatprep.subr.mxu0 0.0
    %v9460 = vand.u32 %v383, 4294901760
    %v9461 = vsub.f32 %v383, %v9460
    %v9462 = vand.u32 %v9461, 4294901760
    %9463 = vmatpush2.msra.mxu0 %v9462
    %9464 = vmatprep.subr.mxu0 0.0
    %v9465 = vand.u32 %v382, 4294901760
    %v9466 = vsub.f32 %v382, %v9465
    %v9467 = vand.u32 %v9466, 4294901760
    %9468 = vmatpush2.msra.mxu0 %v9467
    %9469 = vmatprep.subr.mxu0 0.0
    %v9470 = vand.u32 %v381, 4294901760
    %v9471 = vsub.f32 %v381, %v9470
    %v9472 = vand.u32 %v9471, 4294901760
    %9473 = vmatpush2.msra.mxu0 %v9472
    %9474 = vmatprep.subr.mxu0 0.0
    %v9475 = vand.u32 %v380, 4294901760
    %v9476 = vsub.f32 %v380, %v9475
    %v9477 = vand.u32 %v9476, 4294901760
    %9478 = vmatpush2.msra.mxu0 %v9477
    %9479 = vmatprep.subr.mxu0 0.0
    %v9480 = vand.u32 %v379, 4294901760
    %v9481 = vsub.f32 %v379, %v9480
    %v9482 = vand.u32 %v9481, 4294901760
    %9483 = vmatpush2.msra.mxu0 %v9482
    %9484 = vmatprep.subr.mxu0 0.0
    %v9485 = vand.u32 %v378, 4294901760
    %v9486 = vsub.f32 %v378, %v9485
    %v9487 = vand.u32 %v9486, 4294901760
    %9488 = vmatpush2.msra.mxu0 %v9487
    %9489 = vmatprep.subr.mxu0 0.0
    %v9490 = vand.u32 %v377, 4294901760
    %v9491 = vsub.f32 %v377, %v9490
    %v9492 = vand.u32 %v9491, 4294901760
    %9493 = vmatpush2.msra.mxu0 %v9492
    %9494 = vmatprep.subr.mxu0 0.0
    %v9495 = vand.u32 %v376, 4294901760
    %v9496 = vsub.f32 %v376, %v9495
    %v9497 = vand.u32 %v9496, 4294901760
    %9498 = vmatpush2.msra.mxu0 %v9497
    %9499 = vmatprep.subr.mxu0 0.0
    %v9500 = vand.u32 %v375, 4294901760
    %v9501 = vsub.f32 %v375, %v9500
    %v9502 = vand.u32 %v9501, 4294901760
    %9503 = vmatpush2.msra.mxu0 %v9502
    %9504 = vmatprep.subr.mxu0 0.0
    %v9505 = vand.u32 %v374, 4294901760
    %v9506 = vsub.f32 %v374, %v9505
    %v9507 = vand.u32 %v9506, 4294901760
    %9508 = vmatpush2.msra.mxu0 %v9507
    %9509 = vmatprep.subr.mxu0 0.0
    %v9510 = vand.u32 %v373, 4294901760
    %v9511 = vsub.f32 %v373, %v9510
    %v9512 = vand.u32 %v9511, 4294901760
    %9513 = vmatpush2.msra.mxu0 %v9512
    %v9514 = vand.u32 %v40, 4294901760
    %9515 = vmatprep.mubr.f32.mxu0 %v9514
    %v9516 = vand.u32 %v39, 4294901760
    %9517 = vmatmul.mubr.f32.gmra.mxu0 %v9516
    %v9518 = vpop.f32.mrf.mxu0
    %v9519 = vadd.f32 %v9340, %v9518
    %v9520 = vpop.f32.mrf.mxu0
    %v9521 = vand.u32 %v64, 4294901760
    %9522 = vmatprep.mubr.f32.mxu0 %v9521
    %v9523 = vand.u32 %v63, 4294901760
    %9524 = vmatmul.mubr.f32.gmra.mxu0 %v9523
    %v9525 = vpop.f32.mrf.mxu0
    %v9526 = vadd.f32 %v9351, %v9525
    %v9527 = vpop.f32.mrf.mxu0
    %9528 = vdwg.mxu0
    %9529 = vmatprep.subr.mxu0 0.0
    %v9530 = vand.u32 %v372, 4294901760
    %9531 = vmatpush1.msra.mxu0 %v9530
    %9532 = vmatprep.subr.mxu0 0.0
    %v9533 = vand.u32 %v371, 4294901760
    %9534 = vmatpush1.msra.mxu0 %v9533
    %9535 = vmatprep.subr.mxu0 0.0
    %v9536 = vand.u32 %v370, 4294901760
    %9537 = vmatpush1.msra.mxu0 %v9536
    %9538 = vmatprep.subr.mxu0 0.0
    %v9539 = vand.u32 %v369, 4294901760
    %9540 = vmatpush1.msra.mxu0 %v9539
    %9541 = vmatprep.subr.mxu0 0.0
    %v9542 = vand.u32 %v368, 4294901760
    %9543 = vmatpush1.msra.mxu0 %v9542
    %9544 = vmatprep.subr.mxu0 0.0
    %v9545 = vand.u32 %v367, 4294901760
    %9546 = vmatpush1.msra.mxu0 %v9545
    %9547 = vmatprep.subr.mxu0 0.0
    %v9548 = vand.u32 %v366, 4294901760
    %9549 = vmatpush1.msra.mxu0 %v9548
    %9550 = vmatprep.subr.mxu0 0.0
    %v9551 = vand.u32 %v365, 4294901760
    %9552 = vmatpush1.msra.mxu0 %v9551
    %9553 = vmatprep.subr.mxu0 0.0
    %v9554 = vand.u32 %v364, 4294901760
    %9555 = vmatpush1.msra.mxu0 %v9554
    %9556 = vmatprep.subr.mxu0 0.0
    %v9557 = vand.u32 %v363, 4294901760
    %9558 = vmatpush1.msra.mxu0 %v9557
    %9559 = vmatprep.subr.mxu0 0.0
    %v9560 = vand.u32 %v362, 4294901760
    %9561 = vmatpush1.msra.mxu0 %v9560
    %9562 = vmatprep.subr.mxu0 0.0
    %v9563 = vand.u32 %v361, 4294901760
    %9564 = vmatpush1.msra.mxu0 %v9563
    %9565 = vmatprep.subr.mxu0 0.0
    %v9566 = vand.u32 %v360, 4294901760
    %9567 = vmatpush1.msra.mxu0 %v9566
    %9568 = vmatprep.subr.mxu0 0.0
    %v9569 = vand.u32 %v359, 4294901760
    %9570 = vmatpush1.msra.mxu0 %v9569
    %9571 = vmatprep.subr.mxu0 0.0
    %v9572 = vand.u32 %v358, 4294901760
    %9573 = vmatpush1.msra.mxu0 %v9572
    %9574 = vmatprep.subr.mxu0 0.0
    %v9575 = vand.u32 %v357, 4294901760
    %9576 = vmatpush1.msra.mxu0 %v9575
    %9577 = vmatprep.subr.mxu0 0.0
    %v9578 = vand.u32 %v388, 4294901760
    %9579 = vmatpush2.msra.mxu0 %v9578
    %9580 = vmatprep.subr.mxu0 0.0
    %v9581 = vand.u32 %v387, 4294901760
    %9582 = vmatpush2.msra.mxu0 %v9581
    %9583 = vmatprep.subr.mxu0 0.0
    %v9584 = vand.u32 %v386, 4294901760
    %9585 = vmatpush2.msra.mxu0 %v9584
    %9586 = vmatprep.subr.mxu0 0.0
    %v9587 = vand.u32 %v385, 4294901760
    %9588 = vmatpush2.msra.mxu0 %v9587
    %9589 = vmatprep.subr.mxu0 0.0
    %v9590 = vand.u32 %v384, 4294901760
    %9591 = vmatpush2.msra.mxu0 %v9590
    %9592 = vmatprep.subr.mxu0 0.0
    %v9593 = vand.u32 %v383, 4294901760
    %9594 = vmatpush2.msra.mxu0 %v9593
    %9595 = vmatprep.subr.mxu0 0.0
    %v9596 = vand.u32 %v382, 4294901760
    %9597 = vmatpush2.msra.mxu0 %v9596
    %9598 = vmatprep.subr.mxu0 0.0
    %v9599 = vand.u32 %v381, 4294901760
    %9600 = vmatpush2.msra.mxu0 %v9599
    %9601 = vmatprep.subr.mxu0 0.0
    %v9602 = vand.u32 %v380, 4294901760
    %9603 = vmatpush2.msra.mxu0 %v9602
    %9604 = vmatprep.subr.mxu0 0.0
    %v9605 = vand.u32 %v379, 4294901760
    %9606 = vmatpush2.msra.mxu0 %v9605
    %9607 = vmatprep.subr.mxu0 0.0
    %v9608 = vand.u32 %v378, 4294901760
    %9609 = vmatpush2.msra.mxu0 %v9608
    %9610 = vmatprep.subr.mxu0 0.0
    %v9611 = vand.u32 %v377, 4294901760
    %9612 = vmatpush2.msra.mxu0 %v9611
    %9613 = vmatprep.subr.mxu0 0.0
    %v9614 = vand.u32 %v376, 4294901760
    %9615 = vmatpush2.msra.mxu0 %v9614
    %9616 = vmatprep.subr.mxu0 0.0
    %v9617 = vand.u32 %v375, 4294901760
    %9618 = vmatpush2.msra.mxu0 %v9617
    %9619 = vmatprep.subr.mxu0 0.0
    %v9620 = vand.u32 %v374, 4294901760
    %9621 = vmatpush2.msra.mxu0 %v9620
    %9622 = vmatprep.subr.mxu0 0.0
    %v9623 = vand.u32 %v373, 4294901760
    %9624 = vmatpush2.msra.mxu0 %v9623
    %v9625 = vand.u32 %v40, 4294901760
    %9626 = vmatprep.mubr.f32.mxu0 %v9625
    %v9627 = vand.u32 %v39, 4294901760
    %9628 = vmatmul.mubr.f32.gmra.mxu0 %v9627
    %v9629 = vpop.f32.mrf.mxu0
    %v9630 = vadd.f32 %v9519, %v9629
    %v9631 = vpop.f32.mrf.mxu0
    %v9632 = vand.u32 %v64, 4294901760
    %9633 = vmatprep.mubr.f32.mxu0 %v9632
    %v9634 = vand.u32 %v63, 4294901760
    %9635 = vmatmul.mubr.f32.gmra.mxu0 %v9634
    %v9636 = vpop.f32.mrf.mxu0
    %v9637 = vadd.f32 %v9526, %v9636
    %v9638 = vpop.f32.mrf.mxu0
    %9639 = vdwg.mxu0
    %9640 = vmatprep.subr.mxu0 0.0
    %v9641 = vand.u32 %v404, 4294901760
    %9642 = vmatpush1.msra.mxu0 %v9641
    %9643 = vmatprep.subr.mxu0 0.0
    %v9644 = vand.u32 %v403, 4294901760
    %9645 = vmatpush1.msra.mxu0 %v9644
    %9646 = vmatprep.subr.mxu0 0.0
    %v9647 = vand.u32 %v402, 4294901760
    %9648 = vmatpush1.msra.mxu0 %v9647
    %9649 = vmatprep.subr.mxu0 0.0
    %v9650 = vand.u32 %v401, 4294901760
    %9651 = vmatpush1.msra.mxu0 %v9650
    %9652 = vmatprep.subr.mxu0 0.0
    %v9653 = vand.u32 %v400, 4294901760
    %9654 = vmatpush1.msra.mxu0 %v9653
    %9655 = vmatprep.subr.mxu0 0.0
    %v9656 = vand.u32 %v399, 4294901760
    %9657 = vmatpush1.msra.mxu0 %v9656
    %9658 = vmatprep.subr.mxu0 0.0
    %v9659 = vand.u32 %v398, 4294901760
    %9660 = vmatpush1.msra.mxu0 %v9659
    %9661 = vmatprep.subr.mxu0 0.0
    %v9662 = vand.u32 %v397, 4294901760
    %9663 = vmatpush1.msra.mxu0 %v9662
    %9664 = vmatprep.subr.mxu0 0.0
    %v9665 = vand.u32 %v396, 4294901760
    %9666 = vmatpush1.msra.mxu0 %v9665
    %9667 = vmatprep.subr.mxu0 0.0
    %v9668 = vand.u32 %v395, 4294901760
    %9669 = vmatpush1.msra.mxu0 %v9668
    %9670 = vmatprep.subr.mxu0 0.0
    %v9671 = vand.u32 %v394, 4294901760
    %9672 = vmatpush1.msra.mxu0 %v9671
    %9673 = vmatprep.subr.mxu0 0.0
    %v9674 = vand.u32 %v393, 4294901760
    %9675 = vmatpush1.msra.mxu0 %v9674
    %9676 = vmatprep.subr.mxu0 0.0
    %v9677 = vand.u32 %v392, 4294901760
    %9678 = vmatpush1.msra.mxu0 %v9677
    %9679 = vmatprep.subr.mxu0 0.0
    %v9680 = vand.u32 %v391, 4294901760
    %9681 = vmatpush1.msra.mxu0 %v9680
    %9682 = vmatprep.subr.mxu0 0.0
    %v9683 = vand.u32 %v390, 4294901760
    %9684 = vmatpush1.msra.mxu0 %v9683
    %9685 = vmatprep.subr.mxu0 0.0
    %v9686 = vand.u32 %v389, 4294901760
    %9687 = vmatpush1.msra.mxu0 %v9686
    %9688 = vmatprep.subr.mxu0 0.0
    %v9689 = vand.u32 %v420, 4294901760
    %9690 = vmatpush2.msra.mxu0 %v9689
    %9691 = vmatprep.subr.mxu0 0.0
    %v9692 = vand.u32 %v419, 4294901760
    %9693 = vmatpush2.msra.mxu0 %v9692
    %9694 = vmatprep.subr.mxu0 0.0
    %v9695 = vand.u32 %v418, 4294901760
    %9696 = vmatpush2.msra.mxu0 %v9695
    %9697 = vmatprep.subr.mxu0 0.0
    %v9698 = vand.u32 %v417, 4294901760
    %9699 = vmatpush2.msra.mxu0 %v9698
    %9700 = vmatprep.subr.mxu0 0.0
    %v9701 = vand.u32 %v416, 4294901760
    %9702 = vmatpush2.msra.mxu0 %v9701
    %9703 = vmatprep.subr.mxu0 0.0
    %v9704 = vand.u32 %v415, 4294901760
    %9705 = vmatpush2.msra.mxu0 %v9704
    %9706 = vmatprep.subr.mxu0 0.0
    %v9707 = vand.u32 %v414, 4294901760
    %9708 = vmatpush2.msra.mxu0 %v9707
    %9709 = vmatprep.subr.mxu0 0.0
    %v9710 = vand.u32 %v413, 4294901760
    %9711 = vmatpush2.msra.mxu0 %v9710
    %9712 = vmatprep.subr.mxu0 0.0
    %v9713 = vand.u32 %v412, 4294901760
    %9714 = vmatpush2.msra.mxu0 %v9713
    %9715 = vmatprep.subr.mxu0 0.0
    %v9716 = vand.u32 %v411, 4294901760
    %9717 = vmatpush2.msra.mxu0 %v9716
    %9718 = vmatprep.subr.mxu0 0.0
    %v9719 = vand.u32 %v410, 4294901760
    %9720 = vmatpush2.msra.mxu0 %v9719
    %9721 = vmatprep.subr.mxu0 0.0
    %v9722 = vand.u32 %v409, 4294901760
    %9723 = vmatpush2.msra.mxu0 %v9722
    %9724 = vmatprep.subr.mxu0 0.0
    %v9725 = vand.u32 %v408, 4294901760
    %9726 = vmatpush2.msra.mxu0 %v9725
    %9727 = vmatprep.subr.mxu0 0.0
    %v9728 = vand.u32 %v407, 4294901760
    %9729 = vmatpush2.msra.mxu0 %v9728
    %9730 = vmatprep.subr.mxu0 0.0
    %v9731 = vand.u32 %v406, 4294901760
    %9732 = vmatpush2.msra.mxu0 %v9731
    %9733 = vmatprep.subr.mxu0 0.0
    %v9734 = vand.u32 %v405, 4294901760
    %9735 = vmatpush2.msra.mxu0 %v9734
    %v9736 = vand.u32 %v42, 4294901760
    %v9737 = vsub.f32 %v42, %v9736
    %v9738 = vand.u32 %v9737, 4294901760
    %v9739 = vsub.f32 %v9737, %v9738
    %v9740 = vand.u32 %v9739, 4294901760
    %9741 = vmatprep.mubr.f32.mxu0 %v9740
    %v9742 = vand.u32 %v41, 4294901760
    %v9743 = vsub.f32 %v41, %v9742
    %v9744 = vand.u32 %v9743, 4294901760
    %v9745 = vsub.f32 %v9743, %v9744
    %v9746 = vand.u32 %v9745, 4294901760
    %9747 = vmatmul.mubr.f32.gmra.mxu0 %v9746
    %v9748 = vpop.f32.mrf.mxu0
    %v9749 = vadd.f32 %v9630, %v9748
    %v9750 = vpop.f32.mrf.mxu0
    %v9751 = vand.u32 %v66, 4294901760
    %v9752 = vsub.f32 %v66, %v9751
    %v9753 = vand.u32 %v9752, 4294901760
    %v9754 = vsub.f32 %v9752, %v9753
    %v9755 = vand.u32 %v9754, 4294901760
    %9756 = vmatprep.mubr.f32.mxu0 %v9755
    %v9757 = vand.u32 %v65, 4294901760
    %v9758 = vsub.f32 %v65, %v9757
    %v9759 = vand.u32 %v9758, 4294901760
    %v9760 = vsub.f32 %v9758, %v9759
    %v9761 = vand.u32 %v9760, 4294901760
    %9762 = vmatmul.mubr.f32.gmra.mxu0 %v9761
    %v9763 = vpop.f32.mrf.mxu0
    %v9764 = vadd.f32 %v9637, %v9763
    %v9765 = vpop.f32.mrf.mxu0
    %9766 = vdwg.mxu0
    %9767 = vmatprep.subr.mxu0 0.0
    %v9768 = vand.u32 %v404, 4294901760
    %v9769 = vsub.f32 %v404, %v9768
    %v9770 = vand.u32 %v9769, 4294901760
    %v9771 = vsub.f32 %v9769, %v9770
    %v9772 = vand.u32 %v9771, 4294901760
    %9773 = vmatpush1.msra.mxu0 %v9772
    %9774 = vmatprep.subr.mxu0 0.0
    %v9775 = vand.u32 %v403, 4294901760
    %v9776 = vsub.f32 %v403, %v9775
    %v9777 = vand.u32 %v9776, 4294901760
    %v9778 = vsub.f32 %v9776, %v9777
    %v9779 = vand.u32 %v9778, 4294901760
    %9780 = vmatpush1.msra.mxu0 %v9779
    %9781 = vmatprep.subr.mxu0 0.0
    %v9782 = vand.u32 %v402, 4294901760
    %v9783 = vsub.f32 %v402, %v9782
    %v9784 = vand.u32 %v9783, 4294901760
    %v9785 = vsub.f32 %v9783, %v9784
    %v9786 = vand.u32 %v9785, 4294901760
    %9787 = vmatpush1.msra.mxu0 %v9786
    %9788 = vmatprep.subr.mxu0 0.0
    %v9789 = vand.u32 %v401, 4294901760
    %v9790 = vsub.f32 %v401, %v9789
    %v9791 = vand.u32 %v9790, 4294901760
    %v9792 = vsub.f32 %v9790, %v9791
    %v9793 = vand.u32 %v9792, 4294901760
    %9794 = vmatpush1.msra.mxu0 %v9793
    %9795 = vmatprep.subr.mxu0 0.0
    %v9796 = vand.u32 %v400, 4294901760
    %v9797 = vsub.f32 %v400, %v9796
    %v9798 = vand.u32 %v9797, 4294901760
    %v9799 = vsub.f32 %v9797, %v9798
    %v9800 = vand.u32 %v9799, 4294901760
    %9801 = vmatpush1.msra.mxu0 %v9800
    %9802 = vmatprep.subr.mxu0 0.0
    %v9803 = vand.u32 %v399, 4294901760
    %v9804 = vsub.f32 %v399, %v9803
    %v9805 = vand.u32 %v9804, 4294901760
    %v9806 = vsub.f32 %v9804, %v9805
    %v9807 = vand.u32 %v9806, 4294901760
    %9808 = vmatpush1.msra.mxu0 %v9807
    %9809 = vmatprep.subr.mxu0 0.0
    %v9810 = vand.u32 %v398, 4294901760
    %v9811 = vsub.f32 %v398, %v9810
    %v9812 = vand.u32 %v9811, 4294901760
    %v9813 = vsub.f32 %v9811, %v9812
    %v9814 = vand.u32 %v9813, 4294901760
    %9815 = vmatpush1.msra.mxu0 %v9814
    %9816 = vmatprep.subr.mxu0 0.0
    %v9817 = vand.u32 %v397, 4294901760
    %v9818 = vsub.f32 %v397, %v9817
    %v9819 = vand.u32 %v9818, 4294901760
    %v9820 = vsub.f32 %v9818, %v9819
    %v9821 = vand.u32 %v9820, 4294901760
    %9822 = vmatpush1.msra.mxu0 %v9821
    %9823 = vmatprep.subr.mxu0 0.0
    %v9824 = vand.u32 %v396, 4294901760
    %v9825 = vsub.f32 %v396, %v9824
    %v9826 = vand.u32 %v9825, 4294901760
    %v9827 = vsub.f32 %v9825, %v9826
    %v9828 = vand.u32 %v9827, 4294901760
    %9829 = vmatpush1.msra.mxu0 %v9828
    %9830 = vmatprep.subr.mxu0 0.0
    %v9831 = vand.u32 %v395, 4294901760
    %v9832 = vsub.f32 %v395, %v9831
    %v9833 = vand.u32 %v9832, 4294901760
    %v9834 = vsub.f32 %v9832, %v9833
    %v9835 = vand.u32 %v9834, 4294901760
    %9836 = vmatpush1.msra.mxu0 %v9835
    %9837 = vmatprep.subr.mxu0 0.0
    %v9838 = vand.u32 %v394, 4294901760
    %v9839 = vsub.f32 %v394, %v9838
    %v9840 = vand.u32 %v9839, 4294901760
    %v9841 = vsub.f32 %v9839, %v9840
    %v9842 = vand.u32 %v9841, 4294901760
    %9843 = vmatpush1.msra.mxu0 %v9842
    %9844 = vmatprep.subr.mxu0 0.0
    %v9845 = vand.u32 %v393, 4294901760
    %v9846 = vsub.f32 %v393, %v9845
    %v9847 = vand.u32 %v9846, 4294901760
    %v9848 = vsub.f32 %v9846, %v9847
    %v9849 = vand.u32 %v9848, 4294901760
    %9850 = vmatpush1.msra.mxu0 %v9849
    %9851 = vmatprep.subr.mxu0 0.0
    %v9852 = vand.u32 %v392, 4294901760
    %v9853 = vsub.f32 %v392, %v9852
    %v9854 = vand.u32 %v9853, 4294901760
    %v9855 = vsub.f32 %v9853, %v9854
    %v9856 = vand.u32 %v9855, 4294901760
    %9857 = vmatpush1.msra.mxu0 %v9856
    %9858 = vmatprep.subr.mxu0 0.0
    %v9859 = vand.u32 %v391, 4294901760
    %v9860 = vsub.f32 %v391, %v9859
    %v9861 = vand.u32 %v9860, 4294901760
    %v9862 = vsub.f32 %v9860, %v9861
    %v9863 = vand.u32 %v9862, 4294901760
    %9864 = vmatpush1.msra.mxu0 %v9863
    %9865 = vmatprep.subr.mxu0 0.0
    %v9866 = vand.u32 %v390, 4294901760
    %v9867 = vsub.f32 %v390, %v9866
    %v9868 = vand.u32 %v9867, 4294901760
    %v9869 = vsub.f32 %v9867, %v9868
    %v9870 = vand.u32 %v9869, 4294901760
    %9871 = vmatpush1.msra.mxu0 %v9870
    %9872 = vmatprep.subr.mxu0 0.0
    %v9873 = vand.u32 %v389, 4294901760
    %v9874 = vsub.f32 %v389, %v9873
    %v9875 = vand.u32 %v9874, 4294901760
    %v9876 = vsub.f32 %v9874, %v9875
    %v9877 = vand.u32 %v9876, 4294901760
    %9878 = vmatpush1.msra.mxu0 %v9877
    %9879 = vmatprep.subr.mxu0 0.0
    %v9880 = vand.u32 %v420, 4294901760
    %v9881 = vsub.f32 %v420, %v9880
    %v9882 = vand.u32 %v9881, 4294901760
    %v9883 = vsub.f32 %v9881, %v9882
    %v9884 = vand.u32 %v9883, 4294901760
    %9885 = vmatpush2.msra.mxu0 %v9884
    %9886 = vmatprep.subr.mxu0 0.0
    %v9887 = vand.u32 %v419, 4294901760
    %v9888 = vsub.f32 %v419, %v9887
    %v9889 = vand.u32 %v9888, 4294901760
    %v9890 = vsub.f32 %v9888, %v9889
    %v9891 = vand.u32 %v9890, 4294901760
    %9892 = vmatpush2.msra.mxu0 %v9891
    %9893 = vmatprep.subr.mxu0 0.0
    %v9894 = vand.u32 %v418, 4294901760
    %v9895 = vsub.f32 %v418, %v9894
    %v9896 = vand.u32 %v9895, 4294901760
    %v9897 = vsub.f32 %v9895, %v9896
    %v9898 = vand.u32 %v9897, 4294901760
    %9899 = vmatpush2.msra.mxu0 %v9898
    %9900 = vmatprep.subr.mxu0 0.0
    %v9901 = vand.u32 %v417, 4294901760
    %v9902 = vsub.f32 %v417, %v9901
    %v9903 = vand.u32 %v9902, 4294901760
    %v9904 = vsub.f32 %v9902, %v9903
    %v9905 = vand.u32 %v9904, 4294901760
    %9906 = vmatpush2.msra.mxu0 %v9905
    %9907 = vmatprep.subr.mxu0 0.0
    %v9908 = vand.u32 %v416, 4294901760
    %v9909 = vsub.f32 %v416, %v9908
    %v9910 = vand.u32 %v9909, 4294901760
    %v9911 = vsub.f32 %v9909, %v9910
    %v9912 = vand.u32 %v9911, 4294901760
    %9913 = vmatpush2.msra.mxu0 %v9912
    %9914 = vmatprep.subr.mxu0 0.0
    %v9915 = vand.u32 %v415, 4294901760
    %v9916 = vsub.f32 %v415, %v9915
    %v9917 = vand.u32 %v9916, 4294901760
    %v9918 = vsub.f32 %v9916, %v9917
    %v9919 = vand.u32 %v9918, 4294901760
    %9920 = vmatpush2.msra.mxu0 %v9919
    %9921 = vmatprep.subr.mxu0 0.0
    %v9922 = vand.u32 %v414, 4294901760
    %v9923 = vsub.f32 %v414, %v9922
    %v9924 = vand.u32 %v9923, 4294901760
    %v9925 = vsub.f32 %v9923, %v9924
    %v9926 = vand.u32 %v9925, 4294901760
    %9927 = vmatpush2.msra.mxu0 %v9926
    %9928 = vmatprep.subr.mxu0 0.0
    %v9929 = vand.u32 %v413, 4294901760
    %v9930 = vsub.f32 %v413, %v9929
    %v9931 = vand.u32 %v9930, 4294901760
    %v9932 = vsub.f32 %v9930, %v9931
    %v9933 = vand.u32 %v9932, 4294901760
    %9934 = vmatpush2.msra.mxu0 %v9933
    %9935 = vmatprep.subr.mxu0 0.0
    %v9936 = vand.u32 %v412, 4294901760
    %v9937 = vsub.f32 %v412, %v9936
    %v9938 = vand.u32 %v9937, 4294901760
    %v9939 = vsub.f32 %v9937, %v9938
    %v9940 = vand.u32 %v9939, 4294901760
    %9941 = vmatpush2.msra.mxu0 %v9940
    %9942 = vmatprep.subr.mxu0 0.0
    %v9943 = vand.u32 %v411, 4294901760
    %v9944 = vsub.f32 %v411, %v9943
    %v9945 = vand.u32 %v9944, 4294901760
    %v9946 = vsub.f32 %v9944, %v9945
    %v9947 = vand.u32 %v9946, 4294901760
    %9948 = vmatpush2.msra.mxu0 %v9947
    %9949 = vmatprep.subr.mxu0 0.0
    %v9950 = vand.u32 %v410, 4294901760
    %v9951 = vsub.f32 %v410, %v9950
    %v9952 = vand.u32 %v9951, 4294901760
    %v9953 = vsub.f32 %v9951, %v9952
    %v9954 = vand.u32 %v9953, 4294901760
    %9955 = vmatpush2.msra.mxu0 %v9954
    %9956 = vmatprep.subr.mxu0 0.0
    %v9957 = vand.u32 %v409, 4294901760
    %v9958 = vsub.f32 %v409, %v9957
    %v9959 = vand.u32 %v9958, 4294901760
    %v9960 = vsub.f32 %v9958, %v9959
    %v9961 = vand.u32 %v9960, 4294901760
    %9962 = vmatpush2.msra.mxu0 %v9961
    %9963 = vmatprep.subr.mxu0 0.0
    %v9964 = vand.u32 %v408, 4294901760
    %v9965 = vsub.f32 %v408, %v9964
    %v9966 = vand.u32 %v9965, 4294901760
    %v9967 = vsub.f32 %v9965, %v9966
    %v9968 = vand.u32 %v9967, 4294901760
    %9969 = vmatpush2.msra.mxu0 %v9968
    %9970 = vmatprep.subr.mxu0 0.0
    %v9971 = vand.u32 %v407, 4294901760
    %v9972 = vsub.f32 %v407, %v9971
    %v9973 = vand.u32 %v9972, 4294901760
    %v9974 = vsub.f32 %v9972, %v9973
    %v9975 = vand.u32 %v9974, 4294901760
    %9976 = vmatpush2.msra.mxu0 %v9975
    %9977 = vmatprep.subr.mxu0 0.0
    %v9978 = vand.u32 %v406, 4294901760
    %v9979 = vsub.f32 %v406, %v9978
    %v9980 = vand.u32 %v9979, 4294901760
    %v9981 = vsub.f32 %v9979, %v9980
    %v9982 = vand.u32 %v9981, 4294901760
    %9983 = vmatpush2.msra.mxu0 %v9982
    %9984 = vmatprep.subr.mxu0 0.0
    %v9985 = vand.u32 %v405, 4294901760
    %v9986 = vsub.f32 %v405, %v9985
    %v9987 = vand.u32 %v9986, 4294901760
    %v9988 = vsub.f32 %v9986, %v9987
    %v9989 = vand.u32 %v9988, 4294901760
    %9990 = vmatpush2.msra.mxu0 %v9989
    %v9991 = vand.u32 %v42, 4294901760
    %9992 = vmatprep.mubr.f32.mxu0 %v9991
    %v9993 = vand.u32 %v41, 4294901760
    %9994 = vmatmul.mubr.f32.gmra.mxu0 %v9993
    %v9995 = vpop.f32.mrf.mxu0
    %v9996 = vadd.f32 %v9749, %v9995
    %v9997 = vpop.f32.mrf.mxu0
    %v9998 = vand.u32 %v66, 4294901760
    %9999 = vmatprep.mubr.f32.mxu0 %v9998
    %v10000 = vand.u32 %v65, 4294901760
    %10001 = vmatmul.mubr.f32.gmra.mxu0 %v10000
    %v10002 = vpop.f32.mrf.mxu0
    %v10003 = vadd.f32 %v9764, %v10002
    %v10004 = vpop.f32.mrf.mxu0
    %10005 = vdwg.mxu0
    %10006 = vmatprep.subr.mxu0 0.0
    %v10007 = vand.u32 %v404, 4294901760
    %v10008 = vsub.f32 %v404, %v10007
    %10009 = vmatpush1.msra.mxu0 %v10008
    %10010 = vmatprep.subr.mxu0 0.0
    %v10011 = vand.u32 %v403, 4294901760
    %v10012 = vsub.f32 %v403, %v10011
    %10013 = vmatpush1.msra.mxu0 %v10012
    %10014 = vmatprep.subr.mxu0 0.0
    %v10015 = vand.u32 %v402, 4294901760
    %v10016 = vsub.f32 %v402, %v10015
    %10017 = vmatpush1.msra.mxu0 %v10016
    %10018 = vmatprep.subr.mxu0 0.0
    %v10019 = vand.u32 %v401, 4294901760
    %v10020 = vsub.f32 %v401, %v10019
    %10021 = vmatpush1.msra.mxu0 %v10020
    %10022 = vmatprep.subr.mxu0 0.0
    %v10023 = vand.u32 %v400, 4294901760
    %v10024 = vsub.f32 %v400, %v10023
    %10025 = vmatpush1.msra.mxu0 %v10024
    %10026 = vmatprep.subr.mxu0 0.0
    %v10027 = vand.u32 %v399, 4294901760
    %v10028 = vsub.f32 %v399, %v10027
    %10029 = vmatpush1.msra.mxu0 %v10028
    %10030 = vmatprep.subr.mxu0 0.0
    %v10031 = vand.u32 %v398, 4294901760
    %v10032 = vsub.f32 %v398, %v10031
    %10033 = vmatpush1.msra.mxu0 %v10032
    %10034 = vmatprep.subr.mxu0 0.0
    %v10035 = vand.u32 %v397, 4294901760
    %v10036 = vsub.f32 %v397, %v10035
    %10037 = vmatpush1.msra.mxu0 %v10036
    %10038 = vmatprep.subr.mxu0 0.0
    %v10039 = vand.u32 %v396, 4294901760
    %v10040 = vsub.f32 %v396, %v10039
    %10041 = vmatpush1.msra.mxu0 %v10040
    %10042 = vmatprep.subr.mxu0 0.0
    %v10043 = vand.u32 %v395, 4294901760
    %v10044 = vsub.f32 %v395, %v10043
    %10045 = vmatpush1.msra.mxu0 %v10044
    %10046 = vmatprep.subr.mxu0 0.0
    %v10047 = vand.u32 %v394, 4294901760
    %v10048 = vsub.f32 %v394, %v10047
    %10049 = vmatpush1.msra.mxu0 %v10048
    %10050 = vmatprep.subr.mxu0 0.0
    %v10051 = vand.u32 %v393, 4294901760
    %v10052 = vsub.f32 %v393, %v10051
    %10053 = vmatpush1.msra.mxu0 %v10052
    %10054 = vmatprep.subr.mxu0 0.0
    %v10055 = vand.u32 %v392, 4294901760
    %v10056 = vsub.f32 %v392, %v10055
    %10057 = vmatpush1.msra.mxu0 %v10056
    %10058 = vmatprep.subr.mxu0 0.0
    %v10059 = vand.u32 %v391, 4294901760
    %v10060 = vsub.f32 %v391, %v10059
    %10061 = vmatpush1.msra.mxu0 %v10060
    %10062 = vmatprep.subr.mxu0 0.0
    %v10063 = vand.u32 %v390, 4294901760
    %v10064 = vsub.f32 %v390, %v10063
    %10065 = vmatpush1.msra.mxu0 %v10064
    %10066 = vmatprep.subr.mxu0 0.0
    %v10067 = vand.u32 %v389, 4294901760
    %v10068 = vsub.f32 %v389, %v10067
    %10069 = vmatpush1.msra.mxu0 %v10068
    %10070 = vmatprep.subr.mxu0 0.0
    %v10071 = vand.u32 %v420, 4294901760
    %v10072 = vsub.f32 %v420, %v10071
    %10073 = vmatpush2.msra.mxu0 %v10072
    %10074 = vmatprep.subr.mxu0 0.0
    %v10075 = vand.u32 %v419, 4294901760
    %v10076 = vsub.f32 %v419, %v10075
    %10077 = vmatpush2.msra.mxu0 %v10076
    %10078 = vmatprep.subr.mxu0 0.0
    %v10079 = vand.u32 %v418, 4294901760
    %v10080 = vsub.f32 %v418, %v10079
    %10081 = vmatpush2.msra.mxu0 %v10080
    %10082 = vmatprep.subr.mxu0 0.0
    %v10083 = vand.u32 %v417, 4294901760
    %v10084 = vsub.f32 %v417, %v10083
    %10085 = vmatpush2.msra.mxu0 %v10084
    %10086 = vmatprep.subr.mxu0 0.0
    %v10087 = vand.u32 %v416, 4294901760
    %v10088 = vsub.f32 %v416, %v10087
    %10089 = vmatpush2.msra.mxu0 %v10088
    %10090 = vmatprep.subr.mxu0 0.0
    %v10091 = vand.u32 %v415, 4294901760
    %v10092 = vsub.f32 %v415, %v10091
    %10093 = vmatpush2.msra.mxu0 %v10092
    %10094 = vmatprep.subr.mxu0 0.0
    %v10095 = vand.u32 %v414, 4294901760
    %v10096 = vsub.f32 %v414, %v10095
    %10097 = vmatpush2.msra.mxu0 %v10096
    %10098 = vmatprep.subr.mxu0 0.0
    %v10099 = vand.u32 %v413, 4294901760
    %v10100 = vsub.f32 %v413, %v10099
    %10101 = vmatpush2.msra.mxu0 %v10100
    %10102 = vmatprep.subr.mxu0 0.0
    %v10103 = vand.u32 %v412, 4294901760
    %v10104 = vsub.f32 %v412, %v10103
    %10105 = vmatpush2.msra.mxu0 %v10104
    %10106 = vmatprep.subr.mxu0 0.0
    %v10107 = vand.u32 %v411, 4294901760
    %v10108 = vsub.f32 %v411, %v10107
    %10109 = vmatpush2.msra.mxu0 %v10108
    %10110 = vmatprep.subr.mxu0 0.0
    %v10111 = vand.u32 %v410, 4294901760
    %v10112 = vsub.f32 %v410, %v10111
    %10113 = vmatpush2.msra.mxu0 %v10112
    %10114 = vmatprep.subr.mxu0 0.0
    %v10115 = vand.u32 %v409, 4294901760
    %v10116 = vsub.f32 %v409, %v10115
    %10117 = vmatpush2.msra.mxu0 %v10116
    %10118 = vmatprep.subr.mxu0 0.0
    %v10119 = vand.u32 %v408, 4294901760
    %v10120 = vsub.f32 %v408, %v10119
    %10121 = vmatpush2.msra.mxu0 %v10120
    %10122 = vmatprep.subr.mxu0 0.0
    %v10123 = vand.u32 %v407, 4294901760
    %v10124 = vsub.f32 %v407, %v10123
    %10125 = vmatpush2.msra.mxu0 %v10124
    %10126 = vmatprep.subr.mxu0 0.0
    %v10127 = vand.u32 %v406, 4294901760
    %v10128 = vsub.f32 %v406, %v10127
    %10129 = vmatpush2.msra.mxu0 %v10128
    %10130 = vmatprep.subr.mxu0 0.0
    %v10131 = vand.u32 %v405, 4294901760
    %v10132 = vsub.f32 %v405, %v10131
    %10133 = vmatpush2.msra.mxu0 %v10132
    %v10134 = vand.u32 %v42, 4294901760
    %v10135 = vsub.f32 %v42, %v10134
    %10136 = vmatprep.mubr.f32.mxu0 %v10135
    %v10137 = vand.u32 %v41, 4294901760
    %v10138 = vsub.f32 %v41, %v10137
    %10139 = vmatmul.mubr.f32.gmra.mxu0 %v10138
    %v10140 = vpop.f32.mrf.mxu0
    %v10141 = vadd.f32 %v9996, %v10140
    %v10142 = vpop.f32.mrf.mxu0
    %v10143 = vand.u32 %v66, 4294901760
    %v10144 = vsub.f32 %v66, %v10143
    %10145 = vmatprep.mubr.f32.mxu0 %v10144
    %v10146 = vand.u32 %v65, 4294901760
    %v10147 = vsub.f32 %v65, %v10146
    %10148 = vmatmul.mubr.f32.gmra.mxu0 %v10147
    %v10149 = vpop.f32.mrf.mxu0
    %v10150 = vadd.f32 %v10003, %v10149
    %v10151 = vpop.f32.mrf.mxu0
    %10152 = vdwg.mxu0
    %10153 = vmatprep.subr.mxu0 0.0
    %v10154 = vand.u32 %v404, 4294901760
    %10155 = vmatpush1.msra.mxu0 %v10154
    %10156 = vmatprep.subr.mxu0 0.0
    %v10157 = vand.u32 %v403, 4294901760
    %10158 = vmatpush1.msra.mxu0 %v10157
    %10159 = vmatprep.subr.mxu0 0.0
    %v10160 = vand.u32 %v402, 4294901760
    %10161 = vmatpush1.msra.mxu0 %v10160
    %10162 = vmatprep.subr.mxu0 0.0
    %v10163 = vand.u32 %v401, 4294901760
    %10164 = vmatpush1.msra.mxu0 %v10163
    %10165 = vmatprep.subr.mxu0 0.0
    %v10166 = vand.u32 %v400, 4294901760
    %10167 = vmatpush1.msra.mxu0 %v10166
    %10168 = vmatprep.subr.mxu0 0.0
    %v10169 = vand.u32 %v399, 4294901760
    %10170 = vmatpush1.msra.mxu0 %v10169
    %10171 = vmatprep.subr.mxu0 0.0
    %v10172 = vand.u32 %v398, 4294901760
    %10173 = vmatpush1.msra.mxu0 %v10172
    %10174 = vmatprep.subr.mxu0 0.0
    %v10175 = vand.u32 %v397, 4294901760
    %10176 = vmatpush1.msra.mxu0 %v10175
    %10177 = vmatprep.subr.mxu0 0.0
    %v10178 = vand.u32 %v396, 4294901760
    %10179 = vmatpush1.msra.mxu0 %v10178
    %10180 = vmatprep.subr.mxu0 0.0
    %v10181 = vand.u32 %v395, 4294901760
    %10182 = vmatpush1.msra.mxu0 %v10181
    %10183 = vmatprep.subr.mxu0 0.0
    %v10184 = vand.u32 %v394, 4294901760
    %10185 = vmatpush1.msra.mxu0 %v10184
    %10186 = vmatprep.subr.mxu0 0.0
    %v10187 = vand.u32 %v393, 4294901760
    %10188 = vmatpush1.msra.mxu0 %v10187
    %10189 = vmatprep.subr.mxu0 0.0
    %v10190 = vand.u32 %v392, 4294901760
    %10191 = vmatpush1.msra.mxu0 %v10190
    %10192 = vmatprep.subr.mxu0 0.0
    %v10193 = vand.u32 %v391, 4294901760
    %10194 = vmatpush1.msra.mxu0 %v10193
    %10195 = vmatprep.subr.mxu0 0.0
    %v10196 = vand.u32 %v390, 4294901760
    %10197 = vmatpush1.msra.mxu0 %v10196
    %10198 = vmatprep.subr.mxu0 0.0
    %v10199 = vand.u32 %v389, 4294901760
    %10200 = vmatpush1.msra.mxu0 %v10199
    %10201 = vmatprep.subr.mxu0 0.0
    %v10202 = vand.u32 %v420, 4294901760
    %10203 = vmatpush2.msra.mxu0 %v10202
    %10204 = vmatprep.subr.mxu0 0.0
    %v10205 = vand.u32 %v419, 4294901760
    %10206 = vmatpush2.msra.mxu0 %v10205
    %10207 = vmatprep.subr.mxu0 0.0
    %v10208 = vand.u32 %v418, 4294901760
    %10209 = vmatpush2.msra.mxu0 %v10208
    %10210 = vmatprep.subr.mxu0 0.0
    %v10211 = vand.u32 %v417, 4294901760
    %10212 = vmatpush2.msra.mxu0 %v10211
    %10213 = vmatprep.subr.mxu0 0.0
    %v10214 = vand.u32 %v416, 4294901760
    %10215 = vmatpush2.msra.mxu0 %v10214
    %10216 = vmatprep.subr.mxu0 0.0
    %v10217 = vand.u32 %v415, 4294901760
    %10218 = vmatpush2.msra.mxu0 %v10217
    %10219 = vmatprep.subr.mxu0 0.0
    %v10220 = vand.u32 %v414, 4294901760
    %10221 = vmatpush2.msra.mxu0 %v10220
    %10222 = vmatprep.subr.mxu0 0.0
    %v10223 = vand.u32 %v413, 4294901760
    %10224 = vmatpush2.msra.mxu0 %v10223
    %10225 = vmatprep.subr.mxu0 0.0
    %v10226 = vand.u32 %v412, 4294901760
    %10227 = vmatpush2.msra.mxu0 %v10226
    %10228 = vmatprep.subr.mxu0 0.0
    %v10229 = vand.u32 %v411, 4294901760
    %10230 = vmatpush2.msra.mxu0 %v10229
    %10231 = vmatprep.subr.mxu0 0.0
    %v10232 = vand.u32 %v410, 4294901760
    %10233 = vmatpush2.msra.mxu0 %v10232
    %10234 = vmatprep.subr.mxu0 0.0
    %v10235 = vand.u32 %v409, 4294901760
    %10236 = vmatpush2.msra.mxu0 %v10235
    %10237 = vmatprep.subr.mxu0 0.0
    %v10238 = vand.u32 %v408, 4294901760
    %10239 = vmatpush2.msra.mxu0 %v10238
    %10240 = vmatprep.subr.mxu0 0.0
    %v10241 = vand.u32 %v407, 4294901760
    %10242 = vmatpush2.msra.mxu0 %v10241
    %10243 = vmatprep.subr.mxu0 0.0
    %v10244 = vand.u32 %v406, 4294901760
    %10245 = vmatpush2.msra.mxu0 %v10244
    %10246 = vmatprep.subr.mxu0 0.0
    %v10247 = vand.u32 %v405, 4294901760
    %10248 = vmatpush2.msra.mxu0 %v10247
    %v10249 = vand.u32 %v42, 4294901760
    %v10250 = vsub.f32 %v42, %v10249
    %v10251 = vand.u32 %v10250, 4294901760
    %10252 = vmatprep.mubr.f32.mxu0 %v10251
    %v10253 = vand.u32 %v41, 4294901760
    %v10254 = vsub.f32 %v41, %v10253
    %v10255 = vand.u32 %v10254, 4294901760
    %10256 = vmatmul.mubr.f32.gmra.mxu0 %v10255
    %v10257 = vpop.f32.mrf.mxu0
    %v10258 = vadd.f32 %v10141, %v10257
    %v10259 = vpop.f32.mrf.mxu0
    %v10260 = vand.u32 %v66, 4294901760
    %v10261 = vsub.f32 %v66, %v10260
    %v10262 = vand.u32 %v10261, 4294901760
    %10263 = vmatprep.mubr.f32.mxu0 %v10262
    %v10264 = vand.u32 %v65, 4294901760
    %v10265 = vsub.f32 %v65, %v10264
    %v10266 = vand.u32 %v10265, 4294901760
    %10267 = vmatmul.mubr.f32.gmra.mxu0 %v10266
    %v10268 = vpop.f32.mrf.mxu0
    %v10269 = vadd.f32 %v10150, %v10268
    %v10270 = vpop.f32.mrf.mxu0
    %10271 = vdwg.mxu0
    %10272 = vmatprep.subr.mxu0 0.0
    %v10273 = vand.u32 %v404, 4294901760
    %v10274 = vsub.f32 %v404, %v10273
    %v10275 = vand.u32 %v10274, 4294901760
    %10276 = vmatpush1.msra.mxu0 %v10275
    %10277 = vmatprep.subr.mxu0 0.0
    %v10278 = vand.u32 %v403, 4294901760
    %v10279 = vsub.f32 %v403, %v10278
    %v10280 = vand.u32 %v10279, 4294901760
    %10281 = vmatpush1.msra.mxu0 %v10280
    %10282 = vmatprep.subr.mxu0 0.0
    %v10283 = vand.u32 %v402, 4294901760
    %v10284 = vsub.f32 %v402, %v10283
    %v10285 = vand.u32 %v10284, 4294901760
    %10286 = vmatpush1.msra.mxu0 %v10285
    %10287 = vmatprep.subr.mxu0 0.0
    %v10288 = vand.u32 %v401, 4294901760
    %v10289 = vsub.f32 %v401, %v10288
    %v10290 = vand.u32 %v10289, 4294901760
    %10291 = vmatpush1.msra.mxu0 %v10290
    %10292 = vmatprep.subr.mxu0 0.0
    %v10293 = vand.u32 %v400, 4294901760
    %v10294 = vsub.f32 %v400, %v10293
    %v10295 = vand.u32 %v10294, 4294901760
    %10296 = vmatpush1.msra.mxu0 %v10295
    %10297 = vmatprep.subr.mxu0 0.0
    %v10298 = vand.u32 %v399, 4294901760
    %v10299 = vsub.f32 %v399, %v10298
    %v10300 = vand.u32 %v10299, 4294901760
    %10301 = vmatpush1.msra.mxu0 %v10300
    %10302 = vmatprep.subr.mxu0 0.0
    %v10303 = vand.u32 %v398, 4294901760
    %v10304 = vsub.f32 %v398, %v10303
    %v10305 = vand.u32 %v10304, 4294901760
    %10306 = vmatpush1.msra.mxu0 %v10305
    %10307 = vmatprep.subr.mxu0 0.0
    %v10308 = vand.u32 %v397, 4294901760
    %v10309 = vsub.f32 %v397, %v10308
    %v10310 = vand.u32 %v10309, 4294901760
    %10311 = vmatpush1.msra.mxu0 %v10310
    %10312 = vmatprep.subr.mxu0 0.0
    %v10313 = vand.u32 %v396, 4294901760
    %v10314 = vsub.f32 %v396, %v10313
    %v10315 = vand.u32 %v10314, 4294901760
    %10316 = vmatpush1.msra.mxu0 %v10315
    %10317 = vmatprep.subr.mxu0 0.0
    %v10318 = vand.u32 %v395, 4294901760
    %v10319 = vsub.f32 %v395, %v10318
    %v10320 = vand.u32 %v10319, 4294901760
    %10321 = vmatpush1.msra.mxu0 %v10320
    %10322 = vmatprep.subr.mxu0 0.0
    %v10323 = vand.u32 %v394, 4294901760
    %v10324 = vsub.f32 %v394, %v10323
    %v10325 = vand.u32 %v10324, 4294901760
    %10326 = vmatpush1.msra.mxu0 %v10325
    %10327 = vmatprep.subr.mxu0 0.0
    %v10328 = vand.u32 %v393, 4294901760
    %v10329 = vsub.f32 %v393, %v10328
    %v10330 = vand.u32 %v10329, 4294901760
    %10331 = vmatpush1.msra.mxu0 %v10330
    %10332 = vmatprep.subr.mxu0 0.0
    %v10333 = vand.u32 %v392, 4294901760
    %v10334 = vsub.f32 %v392, %v10333
    %v10335 = vand.u32 %v10334, 4294901760
    %10336 = vmatpush1.msra.mxu0 %v10335
    %10337 = vmatprep.subr.mxu0 0.0
    %v10338 = vand.u32 %v391, 4294901760
    %v10339 = vsub.f32 %v391, %v10338
    %v10340 = vand.u32 %v10339, 4294901760
    %10341 = vmatpush1.msra.mxu0 %v10340
    %10342 = vmatprep.subr.mxu0 0.0
    %v10343 = vand.u32 %v390, 4294901760
    %v10344 = vsub.f32 %v390, %v10343
    %v10345 = vand.u32 %v10344, 4294901760
    %10346 = vmatpush1.msra.mxu0 %v10345
    %10347 = vmatprep.subr.mxu0 0.0
    %v10348 = vand.u32 %v389, 4294901760
    %v10349 = vsub.f32 %v389, %v10348
    %v10350 = vand.u32 %v10349, 4294901760
    %10351 = vmatpush1.msra.mxu0 %v10350
    %10352 = vmatprep.subr.mxu0 0.0
    %v10353 = vand.u32 %v420, 4294901760
    %v10354 = vsub.f32 %v420, %v10353
    %v10355 = vand.u32 %v10354, 4294901760
    %10356 = vmatpush2.msra.mxu0 %v10355
    %10357 = vmatprep.subr.mxu0 0.0
    %v10358 = vand.u32 %v419, 4294901760
    %v10359 = vsub.f32 %v419, %v10358
    %v10360 = vand.u32 %v10359, 4294901760
    %10361 = vmatpush2.msra.mxu0 %v10360
    %10362 = vmatprep.subr.mxu0 0.0
    %v10363 = vand.u32 %v418, 4294901760
    %v10364 = vsub.f32 %v418, %v10363
    %v10365 = vand.u32 %v10364, 4294901760
    %10366 = vmatpush2.msra.mxu0 %v10365
    %10367 = vmatprep.subr.mxu0 0.0
    %v10368 = vand.u32 %v417, 4294901760
    %v10369 = vsub.f32 %v417, %v10368
    %v10370 = vand.u32 %v10369, 4294901760
    %10371 = vmatpush2.msra.mxu0 %v10370
    %10372 = vmatprep.subr.mxu0 0.0
    %v10373 = vand.u32 %v416, 4294901760
    %v10374 = vsub.f32 %v416, %v10373
    %v10375 = vand.u32 %v10374, 4294901760
    %10376 = vmatpush2.msra.mxu0 %v10375
    %10377 = vmatprep.subr.mxu0 0.0
    %v10378 = vand.u32 %v415, 4294901760
    %v10379 = vsub.f32 %v415, %v10378
    %v10380 = vand.u32 %v10379, 4294901760
    %10381 = vmatpush2.msra.mxu0 %v10380
    %10382 = vmatprep.subr.mxu0 0.0
    %v10383 = vand.u32 %v414, 4294901760
    %v10384 = vsub.f32 %v414, %v10383
    %v10385 = vand.u32 %v10384, 4294901760
    %10386 = vmatpush2.msra.mxu0 %v10385
    %10387 = vmatprep.subr.mxu0 0.0
    %v10388 = vand.u32 %v413, 4294901760
    %v10389 = vsub.f32 %v413, %v10388
    %v10390 = vand.u32 %v10389, 4294901760
    %10391 = vmatpush2.msra.mxu0 %v10390
    %10392 = vmatprep.subr.mxu0 0.0
    %v10393 = vand.u32 %v412, 4294901760
    %v10394 = vsub.f32 %v412, %v10393
    %v10395 = vand.u32 %v10394, 4294901760
    %10396 = vmatpush2.msra.mxu0 %v10395
    %10397 = vmatprep.subr.mxu0 0.0
    %v10398 = vand.u32 %v411, 4294901760
    %v10399 = vsub.f32 %v411, %v10398
    %v10400 = vand.u32 %v10399, 4294901760
    %10401 = vmatpush2.msra.mxu0 %v10400
    %10402 = vmatprep.subr.mxu0 0.0
    %v10403 = vand.u32 %v410, 4294901760
    %v10404 = vsub.f32 %v410, %v10403
    %v10405 = vand.u32 %v10404, 4294901760
    %10406 = vmatpush2.msra.mxu0 %v10405
    %10407 = vmatprep.subr.mxu0 0.0
    %v10408 = vand.u32 %v409, 4294901760
    %v10409 = vsub.f32 %v409, %v10408
    %v10410 = vand.u32 %v10409, 4294901760
    %10411 = vmatpush2.msra.mxu0 %v10410
    %10412 = vmatprep.subr.mxu0 0.0
    %v10413 = vand.u32 %v408, 4294901760
    %v10414 = vsub.f32 %v408, %v10413
    %v10415 = vand.u32 %v10414, 4294901760
    %10416 = vmatpush2.msra.mxu0 %v10415
    %10417 = vmatprep.subr.mxu0 0.0
    %v10418 = vand.u32 %v407, 4294901760
    %v10419 = vsub.f32 %v407, %v10418
    %v10420 = vand.u32 %v10419, 4294901760
    %10421 = vmatpush2.msra.mxu0 %v10420
    %10422 = vmatprep.subr.mxu0 0.0
    %v10423 = vand.u32 %v406, 4294901760
    %v10424 = vsub.f32 %v406, %v10423
    %v10425 = vand.u32 %v10424, 4294901760
    %10426 = vmatpush2.msra.mxu0 %v10425
    %10427 = vmatprep.subr.mxu0 0.0
    %v10428 = vand.u32 %v405, 4294901760
    %v10429 = vsub.f32 %v405, %v10428
    %v10430 = vand.u32 %v10429, 4294901760
    %10431 = vmatpush2.msra.mxu0 %v10430
    %v10432 = vand.u32 %v42, 4294901760
    %10433 = vmatprep.mubr.f32.mxu0 %v10432
    %v10434 = vand.u32 %v41, 4294901760
    %10435 = vmatmul.mubr.f32.gmra.mxu0 %v10434
    %v10436 = vpop.f32.mrf.mxu0
    %v10437 = vadd.f32 %v10258, %v10436
    %v10438 = vpop.f32.mrf.mxu0
    %v10439 = vand.u32 %v66, 4294901760
    %10440 = vmatprep.mubr.f32.mxu0 %v10439
    %v10441 = vand.u32 %v65, 4294901760
    %10442 = vmatmul.mubr.f32.gmra.mxu0 %v10441
    %v10443 = vpop.f32.mrf.mxu0
    %v10444 = vadd.f32 %v10269, %v10443
    %v10445 = vpop.f32.mrf.mxu0
    %10446 = vdwg.mxu0
    %10447 = vmatprep.subr.mxu0 0.0
    %v10448 = vand.u32 %v404, 4294901760
    %10449 = vmatpush1.msra.mxu0 %v10448
    %10450 = vmatprep.subr.mxu0 0.0
    %v10451 = vand.u32 %v403, 4294901760
    %10452 = vmatpush1.msra.mxu0 %v10451
    %10453 = vmatprep.subr.mxu0 0.0
    %v10454 = vand.u32 %v402, 4294901760
    %10455 = vmatpush1.msra.mxu0 %v10454
    %10456 = vmatprep.subr.mxu0 0.0
    %v10457 = vand.u32 %v401, 4294901760
    %10458 = vmatpush1.msra.mxu0 %v10457
    %10459 = vmatprep.subr.mxu0 0.0
    %v10460 = vand.u32 %v400, 4294901760
    %10461 = vmatpush1.msra.mxu0 %v10460
    %10462 = vmatprep.subr.mxu0 0.0
    %v10463 = vand.u32 %v399, 4294901760
    %10464 = vmatpush1.msra.mxu0 %v10463
    %10465 = vmatprep.subr.mxu0 0.0
    %v10466 = vand.u32 %v398, 4294901760
    %10467 = vmatpush1.msra.mxu0 %v10466
    %10468 = vmatprep.subr.mxu0 0.0
    %v10469 = vand.u32 %v397, 4294901760
    %10470 = vmatpush1.msra.mxu0 %v10469
    %10471 = vmatprep.subr.mxu0 0.0
    %v10472 = vand.u32 %v396, 4294901760
    %10473 = vmatpush1.msra.mxu0 %v10472
    %10474 = vmatprep.subr.mxu0 0.0
    %v10475 = vand.u32 %v395, 4294901760
    %10476 = vmatpush1.msra.mxu0 %v10475
    %10477 = vmatprep.subr.mxu0 0.0
    %v10478 = vand.u32 %v394, 4294901760
    %10479 = vmatpush1.msra.mxu0 %v10478
    %10480 = vmatprep.subr.mxu0 0.0
    %v10481 = vand.u32 %v393, 4294901760
    %10482 = vmatpush1.msra.mxu0 %v10481
    %10483 = vmatprep.subr.mxu0 0.0
    %v10484 = vand.u32 %v392, 4294901760
    %10485 = vmatpush1.msra.mxu0 %v10484
    %10486 = vmatprep.subr.mxu0 0.0
    %v10487 = vand.u32 %v391, 4294901760
    %10488 = vmatpush1.msra.mxu0 %v10487
    %10489 = vmatprep.subr.mxu0 0.0
    %v10490 = vand.u32 %v390, 4294901760
    %10491 = vmatpush1.msra.mxu0 %v10490
    %10492 = vmatprep.subr.mxu0 0.0
    %v10493 = vand.u32 %v389, 4294901760
    %10494 = vmatpush1.msra.mxu0 %v10493
    %10495 = vmatprep.subr.mxu0 0.0
    %v10496 = vand.u32 %v420, 4294901760
    %10497 = vmatpush2.msra.mxu0 %v10496
    %10498 = vmatprep.subr.mxu0 0.0
    %v10499 = vand.u32 %v419, 4294901760
    %10500 = vmatpush2.msra.mxu0 %v10499
    %10501 = vmatprep.subr.mxu0 0.0
    %v10502 = vand.u32 %v418, 4294901760
    %10503 = vmatpush2.msra.mxu0 %v10502
    %10504 = vmatprep.subr.mxu0 0.0
    %v10505 = vand.u32 %v417, 4294901760
    %10506 = vmatpush2.msra.mxu0 %v10505
    %10507 = vmatprep.subr.mxu0 0.0
    %v10508 = vand.u32 %v416, 4294901760
    %10509 = vmatpush2.msra.mxu0 %v10508
    %10510 = vmatprep.subr.mxu0 0.0
    %v10511 = vand.u32 %v415, 4294901760
    %10512 = vmatpush2.msra.mxu0 %v10511
    %10513 = vmatprep.subr.mxu0 0.0
    %v10514 = vand.u32 %v414, 4294901760
    %10515 = vmatpush2.msra.mxu0 %v10514
    %10516 = vmatprep.subr.mxu0 0.0
    %v10517 = vand.u32 %v413, 4294901760
    %10518 = vmatpush2.msra.mxu0 %v10517
    %10519 = vmatprep.subr.mxu0 0.0
    %v10520 = vand.u32 %v412, 4294901760
    %10521 = vmatpush2.msra.mxu0 %v10520
    %10522 = vmatprep.subr.mxu0 0.0
    %v10523 = vand.u32 %v411, 4294901760
    %10524 = vmatpush2.msra.mxu0 %v10523
    %10525 = vmatprep.subr.mxu0 0.0
    %v10526 = vand.u32 %v410, 4294901760
    %10527 = vmatpush2.msra.mxu0 %v10526
    %10528 = vmatprep.subr.mxu0 0.0
    %v10529 = vand.u32 %v409, 4294901760
    %10530 = vmatpush2.msra.mxu0 %v10529
    %10531 = vmatprep.subr.mxu0 0.0
    %v10532 = vand.u32 %v408, 4294901760
    %10533 = vmatpush2.msra.mxu0 %v10532
    %10534 = vmatprep.subr.mxu0 0.0
    %v10535 = vand.u32 %v407, 4294901760
    %10536 = vmatpush2.msra.mxu0 %v10535
    %10537 = vmatprep.subr.mxu0 0.0
    %v10538 = vand.u32 %v406, 4294901760
    %10539 = vmatpush2.msra.mxu0 %v10538
    %10540 = vmatprep.subr.mxu0 0.0
    %v10541 = vand.u32 %v405, 4294901760
    %10542 = vmatpush2.msra.mxu0 %v10541
    %v10543 = vand.u32 %v42, 4294901760
    %10544 = vmatprep.mubr.f32.mxu0 %v10543
    %v10545 = vand.u32 %v41, 4294901760
    %10546 = vmatmul.mubr.f32.gmra.mxu0 %v10545
    %v10547 = vpop.f32.mrf.mxu0
    %v10548 = vadd.f32 %v10437, %v10547
    %v10549 = vpop.f32.mrf.mxu0
    %v10550 = vand.u32 %v66, 4294901760
    %10551 = vmatprep.mubr.f32.mxu0 %v10550
    %v10552 = vand.u32 %v65, 4294901760
    %10553 = vmatmul.mubr.f32.gmra.mxu0 %v10552
    %v10554 = vpop.f32.mrf.mxu0
    %v10555 = vadd.f32 %v10444, %v10554
    %v10556 = vpop.f32.mrf.mxu0
    %10557 = vdwg.mxu0
    %10558 = vmatprep.subr.mxu0 0.0
    %v10559 = vand.u32 %v436, 4294901760
    %10560 = vmatpush1.msra.mxu0 %v10559
    %10561 = vmatprep.subr.mxu0 0.0
    %v10562 = vand.u32 %v435, 4294901760
    %10563 = vmatpush1.msra.mxu0 %v10562
    %10564 = vmatprep.subr.mxu0 0.0
    %v10565 = vand.u32 %v434, 4294901760
    %10566 = vmatpush1.msra.mxu0 %v10565
    %10567 = vmatprep.subr.mxu0 0.0
    %v10568 = vand.u32 %v433, 4294901760
    %10569 = vmatpush1.msra.mxu0 %v10568
    %10570 = vmatprep.subr.mxu0 0.0
    %v10571 = vand.u32 %v432, 4294901760
    %10572 = vmatpush1.msra.mxu0 %v10571
    %10573 = vmatprep.subr.mxu0 0.0
    %v10574 = vand.u32 %v431, 4294901760
    %10575 = vmatpush1.msra.mxu0 %v10574
    %10576 = vmatprep.subr.mxu0 0.0
    %v10577 = vand.u32 %v430, 4294901760
    %10578 = vmatpush1.msra.mxu0 %v10577
    %10579 = vmatprep.subr.mxu0 0.0
    %v10580 = vand.u32 %v429, 4294901760
    %10581 = vmatpush1.msra.mxu0 %v10580
    %10582 = vmatprep.subr.mxu0 0.0
    %v10583 = vand.u32 %v428, 4294901760
    %10584 = vmatpush1.msra.mxu0 %v10583
    %10585 = vmatprep.subr.mxu0 0.0
    %v10586 = vand.u32 %v427, 4294901760
    %10587 = vmatpush1.msra.mxu0 %v10586
    %10588 = vmatprep.subr.mxu0 0.0
    %v10589 = vand.u32 %v426, 4294901760
    %10590 = vmatpush1.msra.mxu0 %v10589
    %10591 = vmatprep.subr.mxu0 0.0
    %v10592 = vand.u32 %v425, 4294901760
    %10593 = vmatpush1.msra.mxu0 %v10592
    %10594 = vmatprep.subr.mxu0 0.0
    %v10595 = vand.u32 %v424, 4294901760
    %10596 = vmatpush1.msra.mxu0 %v10595
    %10597 = vmatprep.subr.mxu0 0.0
    %v10598 = vand.u32 %v423, 4294901760
    %10599 = vmatpush1.msra.mxu0 %v10598
    %10600 = vmatprep.subr.mxu0 0.0
    %v10601 = vand.u32 %v422, 4294901760
    %10602 = vmatpush1.msra.mxu0 %v10601
    %10603 = vmatprep.subr.mxu0 0.0
    %v10604 = vand.u32 %v421, 4294901760
    %10605 = vmatpush1.msra.mxu0 %v10604
    %10606 = vmatprep.subr.mxu0 0.0
    %v10607 = vand.u32 %v452, 4294901760
    %10608 = vmatpush2.msra.mxu0 %v10607
    %10609 = vmatprep.subr.mxu0 0.0
    %v10610 = vand.u32 %v451, 4294901760
    %10611 = vmatpush2.msra.mxu0 %v10610
    %10612 = vmatprep.subr.mxu0 0.0
    %v10613 = vand.u32 %v450, 4294901760
    %10614 = vmatpush2.msra.mxu0 %v10613
    %10615 = vmatprep.subr.mxu0 0.0
    %v10616 = vand.u32 %v449, 4294901760
    %10617 = vmatpush2.msra.mxu0 %v10616
    %10618 = vmatprep.subr.mxu0 0.0
    %v10619 = vand.u32 %v448, 4294901760
    %10620 = vmatpush2.msra.mxu0 %v10619
    %10621 = vmatprep.subr.mxu0 0.0
    %v10622 = vand.u32 %v447, 4294901760
    %10623 = vmatpush2.msra.mxu0 %v10622
    %10624 = vmatprep.subr.mxu0 0.0
    %v10625 = vand.u32 %v446, 4294901760
    %10626 = vmatpush2.msra.mxu0 %v10625
    %10627 = vmatprep.subr.mxu0 0.0
    %v10628 = vand.u32 %v445, 4294901760
    %10629 = vmatpush2.msra.mxu0 %v10628
    %10630 = vmatprep.subr.mxu0 0.0
    %v10631 = vand.u32 %v444, 4294901760
    %10632 = vmatpush2.msra.mxu0 %v10631
    %10633 = vmatprep.subr.mxu0 0.0
    %v10634 = vand.u32 %v443, 4294901760
    %10635 = vmatpush2.msra.mxu0 %v10634
    %10636 = vmatprep.subr.mxu0 0.0
    %v10637 = vand.u32 %v442, 4294901760
    %10638 = vmatpush2.msra.mxu0 %v10637
    %10639 = vmatprep.subr.mxu0 0.0
    %v10640 = vand.u32 %v441, 4294901760
    %10641 = vmatpush2.msra.mxu0 %v10640
    %10642 = vmatprep.subr.mxu0 0.0
    %v10643 = vand.u32 %v440, 4294901760
    %10644 = vmatpush2.msra.mxu0 %v10643
    %10645 = vmatprep.subr.mxu0 0.0
    %v10646 = vand.u32 %v439, 4294901760
    %10647 = vmatpush2.msra.mxu0 %v10646
    %10648 = vmatprep.subr.mxu0 0.0
    %v10649 = vand.u32 %v438, 4294901760
    %10650 = vmatpush2.msra.mxu0 %v10649
    %10651 = vmatprep.subr.mxu0 0.0
    %v10652 = vand.u32 %v437, 4294901760
    %10653 = vmatpush2.msra.mxu0 %v10652
    %v10654 = vand.u32 %v44, 4294901760
    %v10655 = vsub.f32 %v44, %v10654
    %v10656 = vand.u32 %v10655, 4294901760
    %v10657 = vsub.f32 %v10655, %v10656
    %v10658 = vand.u32 %v10657, 4294901760
    %10659 = vmatprep.mubr.f32.mxu0 %v10658
    %v10660 = vand.u32 %v43, 4294901760
    %v10661 = vsub.f32 %v43, %v10660
    %v10662 = vand.u32 %v10661, 4294901760
    %v10663 = vsub.f32 %v10661, %v10662
    %v10664 = vand.u32 %v10663, 4294901760
    %10665 = vmatmul.mubr.f32.gmra.mxu0 %v10664
    %v10666 = vpop.f32.mrf.mxu0
    %v10667 = vadd.f32 %v10548, %v10666
    %v10668 = vpop.f32.mrf.mxu0
    %v10669 = vand.u32 %v68, 4294901760
    %v10670 = vsub.f32 %v68, %v10669
    %v10671 = vand.u32 %v10670, 4294901760
    %v10672 = vsub.f32 %v10670, %v10671
    %v10673 = vand.u32 %v10672, 4294901760
    %10674 = vmatprep.mubr.f32.mxu0 %v10673
    %v10675 = vand.u32 %v67, 4294901760
    %v10676 = vsub.f32 %v67, %v10675
    %v10677 = vand.u32 %v10676, 4294901760
    %v10678 = vsub.f32 %v10676, %v10677
    %v10679 = vand.u32 %v10678, 4294901760
    %10680 = vmatmul.mubr.f32.gmra.mxu0 %v10679
    %v10681 = vpop.f32.mrf.mxu0
    %v10682 = vadd.f32 %v10555, %v10681
    %v10683 = vpop.f32.mrf.mxu0
    %10684 = vdwg.mxu0
    %10685 = vmatprep.subr.mxu0 0.0
    %v10686 = vand.u32 %v436, 4294901760
    %v10687 = vsub.f32 %v436, %v10686
    %v10688 = vand.u32 %v10687, 4294901760
    %v10689 = vsub.f32 %v10687, %v10688
    %v10690 = vand.u32 %v10689, 4294901760
    %10691 = vmatpush1.msra.mxu0 %v10690
    %10692 = vmatprep.subr.mxu0 0.0
    %v10693 = vand.u32 %v435, 4294901760
    %v10694 = vsub.f32 %v435, %v10693
    %v10695 = vand.u32 %v10694, 4294901760
    %v10696 = vsub.f32 %v10694, %v10695
    %v10697 = vand.u32 %v10696, 4294901760
    %10698 = vmatpush1.msra.mxu0 %v10697
    %10699 = vmatprep.subr.mxu0 0.0
    %v10700 = vand.u32 %v434, 4294901760
    %v10701 = vsub.f32 %v434, %v10700
    %v10702 = vand.u32 %v10701, 4294901760
    %v10703 = vsub.f32 %v10701, %v10702
    %v10704 = vand.u32 %v10703, 4294901760
    %10705 = vmatpush1.msra.mxu0 %v10704
    %10706 = vmatprep.subr.mxu0 0.0
    %v10707 = vand.u32 %v433, 4294901760
    %v10708 = vsub.f32 %v433, %v10707
    %v10709 = vand.u32 %v10708, 4294901760
    %v10710 = vsub.f32 %v10708, %v10709
    %v10711 = vand.u32 %v10710, 4294901760
    %10712 = vmatpush1.msra.mxu0 %v10711
    %10713 = vmatprep.subr.mxu0 0.0
    %v10714 = vand.u32 %v432, 4294901760
    %v10715 = vsub.f32 %v432, %v10714
    %v10716 = vand.u32 %v10715, 4294901760
    %v10717 = vsub.f32 %v10715, %v10716
    %v10718 = vand.u32 %v10717, 4294901760
    %10719 = vmatpush1.msra.mxu0 %v10718
    %10720 = vmatprep.subr.mxu0 0.0
    %v10721 = vand.u32 %v431, 4294901760
    %v10722 = vsub.f32 %v431, %v10721
    %v10723 = vand.u32 %v10722, 4294901760
    %v10724 = vsub.f32 %v10722, %v10723
    %v10725 = vand.u32 %v10724, 4294901760
    %10726 = vmatpush1.msra.mxu0 %v10725
    %10727 = vmatprep.subr.mxu0 0.0
    %v10728 = vand.u32 %v430, 4294901760
    %v10729 = vsub.f32 %v430, %v10728
    %v10730 = vand.u32 %v10729, 4294901760
    %v10731 = vsub.f32 %v10729, %v10730
    %v10732 = vand.u32 %v10731, 4294901760
    %10733 = vmatpush1.msra.mxu0 %v10732
    %10734 = vmatprep.subr.mxu0 0.0
    %v10735 = vand.u32 %v429, 4294901760
    %v10736 = vsub.f32 %v429, %v10735
    %v10737 = vand.u32 %v10736, 4294901760
    %v10738 = vsub.f32 %v10736, %v10737
    %v10739 = vand.u32 %v10738, 4294901760
    %10740 = vmatpush1.msra.mxu0 %v10739
    %10741 = vmatprep.subr.mxu0 0.0
    %v10742 = vand.u32 %v428, 4294901760
    %v10743 = vsub.f32 %v428, %v10742
    %v10744 = vand.u32 %v10743, 4294901760
    %v10745 = vsub.f32 %v10743, %v10744
    %v10746 = vand.u32 %v10745, 4294901760
    %10747 = vmatpush1.msra.mxu0 %v10746
    %10748 = vmatprep.subr.mxu0 0.0
    %v10749 = vand.u32 %v427, 4294901760
    %v10750 = vsub.f32 %v427, %v10749
    %v10751 = vand.u32 %v10750, 4294901760
    %v10752 = vsub.f32 %v10750, %v10751
    %v10753 = vand.u32 %v10752, 4294901760
    %10754 = vmatpush1.msra.mxu0 %v10753
    %10755 = vmatprep.subr.mxu0 0.0
    %v10756 = vand.u32 %v426, 4294901760
    %v10757 = vsub.f32 %v426, %v10756
    %v10758 = vand.u32 %v10757, 4294901760
    %v10759 = vsub.f32 %v10757, %v10758
    %v10760 = vand.u32 %v10759, 4294901760
    %10761 = vmatpush1.msra.mxu0 %v10760
    %10762 = vmatprep.subr.mxu0 0.0
    %v10763 = vand.u32 %v425, 4294901760
    %v10764 = vsub.f32 %v425, %v10763
    %v10765 = vand.u32 %v10764, 4294901760
    %v10766 = vsub.f32 %v10764, %v10765
    %v10767 = vand.u32 %v10766, 4294901760
    %10768 = vmatpush1.msra.mxu0 %v10767
    %10769 = vmatprep.subr.mxu0 0.0
    %v10770 = vand.u32 %v424, 4294901760
    %v10771 = vsub.f32 %v424, %v10770
    %v10772 = vand.u32 %v10771, 4294901760
    %v10773 = vsub.f32 %v10771, %v10772
    %v10774 = vand.u32 %v10773, 4294901760
    %10775 = vmatpush1.msra.mxu0 %v10774
    %10776 = vmatprep.subr.mxu0 0.0
    %v10777 = vand.u32 %v423, 4294901760
    %v10778 = vsub.f32 %v423, %v10777
    %v10779 = vand.u32 %v10778, 4294901760
    %v10780 = vsub.f32 %v10778, %v10779
    %v10781 = vand.u32 %v10780, 4294901760
    %10782 = vmatpush1.msra.mxu0 %v10781
    %10783 = vmatprep.subr.mxu0 0.0
    %v10784 = vand.u32 %v422, 4294901760
    %v10785 = vsub.f32 %v422, %v10784
    %v10786 = vand.u32 %v10785, 4294901760
    %v10787 = vsub.f32 %v10785, %v10786
    %v10788 = vand.u32 %v10787, 4294901760
    %10789 = vmatpush1.msra.mxu0 %v10788
    %10790 = vmatprep.subr.mxu0 0.0
    %v10791 = vand.u32 %v421, 4294901760
    %v10792 = vsub.f32 %v421, %v10791
    %v10793 = vand.u32 %v10792, 4294901760
    %v10794 = vsub.f32 %v10792, %v10793
    %v10795 = vand.u32 %v10794, 4294901760
    %10796 = vmatpush1.msra.mxu0 %v10795
    %10797 = vmatprep.subr.mxu0 0.0
    %v10798 = vand.u32 %v452, 4294901760
    %v10799 = vsub.f32 %v452, %v10798
    %v10800 = vand.u32 %v10799, 4294901760
    %v10801 = vsub.f32 %v10799, %v10800
    %v10802 = vand.u32 %v10801, 4294901760
    %10803 = vmatpush2.msra.mxu0 %v10802
    %10804 = vmatprep.subr.mxu0 0.0
    %v10805 = vand.u32 %v451, 4294901760
    %v10806 = vsub.f32 %v451, %v10805
    %v10807 = vand.u32 %v10806, 4294901760
    %v10808 = vsub.f32 %v10806, %v10807
    %v10809 = vand.u32 %v10808, 4294901760
    %10810 = vmatpush2.msra.mxu0 %v10809
    %10811 = vmatprep.subr.mxu0 0.0
    %v10812 = vand.u32 %v450, 4294901760
    %v10813 = vsub.f32 %v450, %v10812
    %v10814 = vand.u32 %v10813, 4294901760
    %v10815 = vsub.f32 %v10813, %v10814
    %v10816 = vand.u32 %v10815, 4294901760
    %10817 = vmatpush2.msra.mxu0 %v10816
    %10818 = vmatprep.subr.mxu0 0.0
    %v10819 = vand.u32 %v449, 4294901760
    %v10820 = vsub.f32 %v449, %v10819
    %v10821 = vand.u32 %v10820, 4294901760
    %v10822 = vsub.f32 %v10820, %v10821
    %v10823 = vand.u32 %v10822, 4294901760
    %10824 = vmatpush2.msra.mxu0 %v10823
    %10825 = vmatprep.subr.mxu0 0.0
    %v10826 = vand.u32 %v448, 4294901760
    %v10827 = vsub.f32 %v448, %v10826
    %v10828 = vand.u32 %v10827, 4294901760
    %v10829 = vsub.f32 %v10827, %v10828
    %v10830 = vand.u32 %v10829, 4294901760
    %10831 = vmatpush2.msra.mxu0 %v10830
    %10832 = vmatprep.subr.mxu0 0.0
    %v10833 = vand.u32 %v447, 4294901760
    %v10834 = vsub.f32 %v447, %v10833
    %v10835 = vand.u32 %v10834, 4294901760
    %v10836 = vsub.f32 %v10834, %v10835
    %v10837 = vand.u32 %v10836, 4294901760
    %10838 = vmatpush2.msra.mxu0 %v10837
    %10839 = vmatprep.subr.mxu0 0.0
    %v10840 = vand.u32 %v446, 4294901760
    %v10841 = vsub.f32 %v446, %v10840
    %v10842 = vand.u32 %v10841, 4294901760
    %v10843 = vsub.f32 %v10841, %v10842
    %v10844 = vand.u32 %v10843, 4294901760
    %10845 = vmatpush2.msra.mxu0 %v10844
    %10846 = vmatprep.subr.mxu0 0.0
    %v10847 = vand.u32 %v445, 4294901760
    %v10848 = vsub.f32 %v445, %v10847
    %v10849 = vand.u32 %v10848, 4294901760
    %v10850 = vsub.f32 %v10848, %v10849
    %v10851 = vand.u32 %v10850, 4294901760
    %10852 = vmatpush2.msra.mxu0 %v10851
    %10853 = vmatprep.subr.mxu0 0.0
    %v10854 = vand.u32 %v444, 4294901760
    %v10855 = vsub.f32 %v444, %v10854
    %v10856 = vand.u32 %v10855, 4294901760
    %v10857 = vsub.f32 %v10855, %v10856
    %v10858 = vand.u32 %v10857, 4294901760
    %10859 = vmatpush2.msra.mxu0 %v10858
    %10860 = vmatprep.subr.mxu0 0.0
    %v10861 = vand.u32 %v443, 4294901760
    %v10862 = vsub.f32 %v443, %v10861
    %v10863 = vand.u32 %v10862, 4294901760
    %v10864 = vsub.f32 %v10862, %v10863
    %v10865 = vand.u32 %v10864, 4294901760
    %10866 = vmatpush2.msra.mxu0 %v10865
    %10867 = vmatprep.subr.mxu0 0.0
    %v10868 = vand.u32 %v442, 4294901760
    %v10869 = vsub.f32 %v442, %v10868
    %v10870 = vand.u32 %v10869, 4294901760
    %v10871 = vsub.f32 %v10869, %v10870
    %v10872 = vand.u32 %v10871, 4294901760
    %10873 = vmatpush2.msra.mxu0 %v10872
    %10874 = vmatprep.subr.mxu0 0.0
    %v10875 = vand.u32 %v441, 4294901760
    %v10876 = vsub.f32 %v441, %v10875
    %v10877 = vand.u32 %v10876, 4294901760
    %v10878 = vsub.f32 %v10876, %v10877
    %v10879 = vand.u32 %v10878, 4294901760
    %10880 = vmatpush2.msra.mxu0 %v10879
    %10881 = vmatprep.subr.mxu0 0.0
    %v10882 = vand.u32 %v440, 4294901760
    %v10883 = vsub.f32 %v440, %v10882
    %v10884 = vand.u32 %v10883, 4294901760
    %v10885 = vsub.f32 %v10883, %v10884
    %v10886 = vand.u32 %v10885, 4294901760
    %10887 = vmatpush2.msra.mxu0 %v10886
    %10888 = vmatprep.subr.mxu0 0.0
    %v10889 = vand.u32 %v439, 4294901760
    %v10890 = vsub.f32 %v439, %v10889
    %v10891 = vand.u32 %v10890, 4294901760
    %v10892 = vsub.f32 %v10890, %v10891
    %v10893 = vand.u32 %v10892, 4294901760
    %10894 = vmatpush2.msra.mxu0 %v10893
    %10895 = vmatprep.subr.mxu0 0.0
    %v10896 = vand.u32 %v438, 4294901760
    %v10897 = vsub.f32 %v438, %v10896
    %v10898 = vand.u32 %v10897, 4294901760
    %v10899 = vsub.f32 %v10897, %v10898
    %v10900 = vand.u32 %v10899, 4294901760
    %10901 = vmatpush2.msra.mxu0 %v10900
    %10902 = vmatprep.subr.mxu0 0.0
    %v10903 = vand.u32 %v437, 4294901760
    %v10904 = vsub.f32 %v437, %v10903
    %v10905 = vand.u32 %v10904, 4294901760
    %v10906 = vsub.f32 %v10904, %v10905
    %v10907 = vand.u32 %v10906, 4294901760
    %10908 = vmatpush2.msra.mxu0 %v10907
    %v10909 = vand.u32 %v44, 4294901760
    %10910 = vmatprep.mubr.f32.mxu0 %v10909
    %v10911 = vand.u32 %v43, 4294901760
    %10912 = vmatmul.mubr.f32.gmra.mxu0 %v10911
    %v10913 = vpop.f32.mrf.mxu0
    %v10914 = vadd.f32 %v10667, %v10913
    %v10915 = vpop.f32.mrf.mxu0
    %v10916 = vand.u32 %v68, 4294901760
    %10917 = vmatprep.mubr.f32.mxu0 %v10916
    %v10918 = vand.u32 %v67, 4294901760
    %10919 = vmatmul.mubr.f32.gmra.mxu0 %v10918
    %v10920 = vpop.f32.mrf.mxu0
    %v10921 = vadd.f32 %v10682, %v10920
    %v10922 = vpop.f32.mrf.mxu0
    %10923 = vdwg.mxu0
    %10924 = vmatprep.subr.mxu0 0.0
    %v10925 = vand.u32 %v436, 4294901760
    %v10926 = vsub.f32 %v436, %v10925
    %10927 = vmatpush1.msra.mxu0 %v10926
    %10928 = vmatprep.subr.mxu0 0.0
    %v10929 = vand.u32 %v435, 4294901760
    %v10930 = vsub.f32 %v435, %v10929
    %10931 = vmatpush1.msra.mxu0 %v10930
    %10932 = vmatprep.subr.mxu0 0.0
    %v10933 = vand.u32 %v434, 4294901760
    %v10934 = vsub.f32 %v434, %v10933
    %10935 = vmatpush1.msra.mxu0 %v10934
    %10936 = vmatprep.subr.mxu0 0.0
    %v10937 = vand.u32 %v433, 4294901760
    %v10938 = vsub.f32 %v433, %v10937
    %10939 = vmatpush1.msra.mxu0 %v10938
    %10940 = vmatprep.subr.mxu0 0.0
    %v10941 = vand.u32 %v432, 4294901760
    %v10942 = vsub.f32 %v432, %v10941
    %10943 = vmatpush1.msra.mxu0 %v10942
    %10944 = vmatprep.subr.mxu0 0.0
    %v10945 = vand.u32 %v431, 4294901760
    %v10946 = vsub.f32 %v431, %v10945
    %10947 = vmatpush1.msra.mxu0 %v10946
    %10948 = vmatprep.subr.mxu0 0.0
    %v10949 = vand.u32 %v430, 4294901760
    %v10950 = vsub.f32 %v430, %v10949
    %10951 = vmatpush1.msra.mxu0 %v10950
    %10952 = vmatprep.subr.mxu0 0.0
    %v10953 = vand.u32 %v429, 4294901760
    %v10954 = vsub.f32 %v429, %v10953
    %10955 = vmatpush1.msra.mxu0 %v10954
    %10956 = vmatprep.subr.mxu0 0.0
    %v10957 = vand.u32 %v428, 4294901760
    %v10958 = vsub.f32 %v428, %v10957
    %10959 = vmatpush1.msra.mxu0 %v10958
    %10960 = vmatprep.subr.mxu0 0.0
    %v10961 = vand.u32 %v427, 4294901760
    %v10962 = vsub.f32 %v427, %v10961
    %10963 = vmatpush1.msra.mxu0 %v10962
    %10964 = vmatprep.subr.mxu0 0.0
    %v10965 = vand.u32 %v426, 4294901760
    %v10966 = vsub.f32 %v426, %v10965
    %10967 = vmatpush1.msra.mxu0 %v10966
    %10968 = vmatprep.subr.mxu0 0.0
    %v10969 = vand.u32 %v425, 4294901760
    %v10970 = vsub.f32 %v425, %v10969
    %10971 = vmatpush1.msra.mxu0 %v10970
    %10972 = vmatprep.subr.mxu0 0.0
    %v10973 = vand.u32 %v424, 4294901760
    %v10974 = vsub.f32 %v424, %v10973
    %10975 = vmatpush1.msra.mxu0 %v10974
    %10976 = vmatprep.subr.mxu0 0.0
    %v10977 = vand.u32 %v423, 4294901760
    %v10978 = vsub.f32 %v423, %v10977
    %10979 = vmatpush1.msra.mxu0 %v10978
    %10980 = vmatprep.subr.mxu0 0.0
    %v10981 = vand.u32 %v422, 4294901760
    %v10982 = vsub.f32 %v422, %v10981
    %10983 = vmatpush1.msra.mxu0 %v10982
    %10984 = vmatprep.subr.mxu0 0.0
    %v10985 = vand.u32 %v421, 4294901760
    %v10986 = vsub.f32 %v421, %v10985
    %10987 = vmatpush1.msra.mxu0 %v10986
    %10988 = vmatprep.subr.mxu0 0.0
    %v10989 = vand.u32 %v452, 4294901760
    %v10990 = vsub.f32 %v452, %v10989
    %10991 = vmatpush2.msra.mxu0 %v10990
    %10992 = vmatprep.subr.mxu0 0.0
    %v10993 = vand.u32 %v451, 4294901760
    %v10994 = vsub.f32 %v451, %v10993
    %10995 = vmatpush2.msra.mxu0 %v10994
    %10996 = vmatprep.subr.mxu0 0.0
    %v10997 = vand.u32 %v450, 4294901760
    %v10998 = vsub.f32 %v450, %v10997
    %10999 = vmatpush2.msra.mxu0 %v10998
    %11000 = vmatprep.subr.mxu0 0.0
    %v11001 = vand.u32 %v449, 4294901760
    %v11002 = vsub.f32 %v449, %v11001
    %11003 = vmatpush2.msra.mxu0 %v11002
    %11004 = vmatprep.subr.mxu0 0.0
    %v11005 = vand.u32 %v448, 4294901760
    %v11006 = vsub.f32 %v448, %v11005
    %11007 = vmatpush2.msra.mxu0 %v11006
    %11008 = vmatprep.subr.mxu0 0.0
    %v11009 = vand.u32 %v447, 4294901760
    %v11010 = vsub.f32 %v447, %v11009
    %11011 = vmatpush2.msra.mxu0 %v11010
    %11012 = vmatprep.subr.mxu0 0.0
    %v11013 = vand.u32 %v446, 4294901760
    %v11014 = vsub.f32 %v446, %v11013
    %11015 = vmatpush2.msra.mxu0 %v11014
    %11016 = vmatprep.subr.mxu0 0.0
    %v11017 = vand.u32 %v445, 4294901760
    %v11018 = vsub.f32 %v445, %v11017
    %11019 = vmatpush2.msra.mxu0 %v11018
    %11020 = vmatprep.subr.mxu0 0.0
    %v11021 = vand.u32 %v444, 4294901760
    %v11022 = vsub.f32 %v444, %v11021
    %11023 = vmatpush2.msra.mxu0 %v11022
    %11024 = vmatprep.subr.mxu0 0.0
    %v11025 = vand.u32 %v443, 4294901760
    %v11026 = vsub.f32 %v443, %v11025
    %11027 = vmatpush2.msra.mxu0 %v11026
    %11028 = vmatprep.subr.mxu0 0.0
    %v11029 = vand.u32 %v442, 4294901760
    %v11030 = vsub.f32 %v442, %v11029
    %11031 = vmatpush2.msra.mxu0 %v11030
    %11032 = vmatprep.subr.mxu0 0.0
    %v11033 = vand.u32 %v441, 4294901760
    %v11034 = vsub.f32 %v441, %v11033
    %11035 = vmatpush2.msra.mxu0 %v11034
    %11036 = vmatprep.subr.mxu0 0.0
    %v11037 = vand.u32 %v440, 4294901760
    %v11038 = vsub.f32 %v440, %v11037
    %11039 = vmatpush2.msra.mxu0 %v11038
    %11040 = vmatprep.subr.mxu0 0.0
    %v11041 = vand.u32 %v439, 4294901760
    %v11042 = vsub.f32 %v439, %v11041
    %11043 = vmatpush2.msra.mxu0 %v11042
    %11044 = vmatprep.subr.mxu0 0.0
    %v11045 = vand.u32 %v438, 4294901760
    %v11046 = vsub.f32 %v438, %v11045
    %11047 = vmatpush2.msra.mxu0 %v11046
    %11048 = vmatprep.subr.mxu0 0.0
    %v11049 = vand.u32 %v437, 4294901760
    %v11050 = vsub.f32 %v437, %v11049
    %11051 = vmatpush2.msra.mxu0 %v11050
    %v11052 = vand.u32 %v44, 4294901760
    %v11053 = vsub.f32 %v44, %v11052
    %11054 = vmatprep.mubr.f32.mxu0 %v11053
    %v11055 = vand.u32 %v43, 4294901760
    %v11056 = vsub.f32 %v43, %v11055
    %11057 = vmatmul.mubr.f32.gmra.mxu0 %v11056
    %v11058 = vpop.f32.mrf.mxu0
    %v11059 = vadd.f32 %v10914, %v11058
    %v11060 = vpop.f32.mrf.mxu0
    %v11061 = vand.u32 %v68, 4294901760
    %v11062 = vsub.f32 %v68, %v11061
    %11063 = vmatprep.mubr.f32.mxu0 %v11062
    %v11064 = vand.u32 %v67, 4294901760
    %v11065 = vsub.f32 %v67, %v11064
    %11066 = vmatmul.mubr.f32.gmra.mxu0 %v11065
    %v11067 = vpop.f32.mrf.mxu0
    %v11068 = vadd.f32 %v10921, %v11067
    %v11069 = vpop.f32.mrf.mxu0
    %11070 = vdwg.mxu0
    %11071 = vmatprep.subr.mxu0 0.0
    %v11072 = vand.u32 %v436, 4294901760
    %11073 = vmatpush1.msra.mxu0 %v11072
    %11074 = vmatprep.subr.mxu0 0.0
    %v11075 = vand.u32 %v435, 4294901760
    %11076 = vmatpush1.msra.mxu0 %v11075
    %11077 = vmatprep.subr.mxu0 0.0
    %v11078 = vand.u32 %v434, 4294901760
    %11079 = vmatpush1.msra.mxu0 %v11078
    %11080 = vmatprep.subr.mxu0 0.0
    %v11081 = vand.u32 %v433, 4294901760
    %11082 = vmatpush1.msra.mxu0 %v11081
    %11083 = vmatprep.subr.mxu0 0.0
    %v11084 = vand.u32 %v432, 4294901760
    %11085 = vmatpush1.msra.mxu0 %v11084
    %11086 = vmatprep.subr.mxu0 0.0
    %v11087 = vand.u32 %v431, 4294901760
    %11088 = vmatpush1.msra.mxu0 %v11087
    %11089 = vmatprep.subr.mxu0 0.0
    %v11090 = vand.u32 %v430, 4294901760
    %11091 = vmatpush1.msra.mxu0 %v11090
    %11092 = vmatprep.subr.mxu0 0.0
    %v11093 = vand.u32 %v429, 4294901760
    %11094 = vmatpush1.msra.mxu0 %v11093
    %11095 = vmatprep.subr.mxu0 0.0
    %v11096 = vand.u32 %v428, 4294901760
    %11097 = vmatpush1.msra.mxu0 %v11096
    %11098 = vmatprep.subr.mxu0 0.0
    %v11099 = vand.u32 %v427, 4294901760
    %11100 = vmatpush1.msra.mxu0 %v11099
    %11101 = vmatprep.subr.mxu0 0.0
    %v11102 = vand.u32 %v426, 4294901760
    %11103 = vmatpush1.msra.mxu0 %v11102
    %11104 = vmatprep.subr.mxu0 0.0
    %v11105 = vand.u32 %v425, 4294901760
    %11106 = vmatpush1.msra.mxu0 %v11105
    %11107 = vmatprep.subr.mxu0 0.0
    %v11108 = vand.u32 %v424, 4294901760
    %11109 = vmatpush1.msra.mxu0 %v11108
    %11110 = vmatprep.subr.mxu0 0.0
    %v11111 = vand.u32 %v423, 4294901760
    %11112 = vmatpush1.msra.mxu0 %v11111
    %11113 = vmatprep.subr.mxu0 0.0
    %v11114 = vand.u32 %v422, 4294901760
    %11115 = vmatpush1.msra.mxu0 %v11114
    %11116 = vmatprep.subr.mxu0 0.0
    %v11117 = vand.u32 %v421, 4294901760
    %11118 = vmatpush1.msra.mxu0 %v11117
    %11119 = vmatprep.subr.mxu0 0.0
    %v11120 = vand.u32 %v452, 4294901760
    %11121 = vmatpush2.msra.mxu0 %v11120
    %11122 = vmatprep.subr.mxu0 0.0
    %v11123 = vand.u32 %v451, 4294901760
    %11124 = vmatpush2.msra.mxu0 %v11123
    %11125 = vmatprep.subr.mxu0 0.0
    %v11126 = vand.u32 %v450, 4294901760
    %11127 = vmatpush2.msra.mxu0 %v11126
    %11128 = vmatprep.subr.mxu0 0.0
    %v11129 = vand.u32 %v449, 4294901760
    %11130 = vmatpush2.msra.mxu0 %v11129
    %11131 = vmatprep.subr.mxu0 0.0
    %v11132 = vand.u32 %v448, 4294901760
    %11133 = vmatpush2.msra.mxu0 %v11132
    %11134 = vmatprep.subr.mxu0 0.0
    %v11135 = vand.u32 %v447, 4294901760
    %11136 = vmatpush2.msra.mxu0 %v11135
    %11137 = vmatprep.subr.mxu0 0.0
    %v11138 = vand.u32 %v446, 4294901760
    %11139 = vmatpush2.msra.mxu0 %v11138
    %11140 = vmatprep.subr.mxu0 0.0
    %v11141 = vand.u32 %v445, 4294901760
    %11142 = vmatpush2.msra.mxu0 %v11141
    %11143 = vmatprep.subr.mxu0 0.0
    %v11144 = vand.u32 %v444, 4294901760
    %11145 = vmatpush2.msra.mxu0 %v11144
    %11146 = vmatprep.subr.mxu0 0.0
    %v11147 = vand.u32 %v443, 4294901760
    %11148 = vmatpush2.msra.mxu0 %v11147
    %11149 = vmatprep.subr.mxu0 0.0
    %v11150 = vand.u32 %v442, 4294901760
    %11151 = vmatpush2.msra.mxu0 %v11150
    %11152 = vmatprep.subr.mxu0 0.0
    %v11153 = vand.u32 %v441, 4294901760
    %11154 = vmatpush2.msra.mxu0 %v11153
    %11155 = vmatprep.subr.mxu0 0.0
    %v11156 = vand.u32 %v440, 4294901760
    %11157 = vmatpush2.msra.mxu0 %v11156
    %11158 = vmatprep.subr.mxu0 0.0
    %v11159 = vand.u32 %v439, 4294901760
    %11160 = vmatpush2.msra.mxu0 %v11159
    %11161 = vmatprep.subr.mxu0 0.0
    %v11162 = vand.u32 %v438, 4294901760
    %11163 = vmatpush2.msra.mxu0 %v11162
    %11164 = vmatprep.subr.mxu0 0.0
    %v11165 = vand.u32 %v437, 4294901760
    %11166 = vmatpush2.msra.mxu0 %v11165
    %v11167 = vand.u32 %v44, 4294901760
    %v11168 = vsub.f32 %v44, %v11167
    %v11169 = vand.u32 %v11168, 4294901760
    %11170 = vmatprep.mubr.f32.mxu0 %v11169
    %v11171 = vand.u32 %v43, 4294901760
    %v11172 = vsub.f32 %v43, %v11171
    %v11173 = vand.u32 %v11172, 4294901760
    %11174 = vmatmul.mubr.f32.gmra.mxu0 %v11173
    %v11175 = vpop.f32.mrf.mxu0
    %v11176 = vadd.f32 %v11059, %v11175
    %v11177 = vpop.f32.mrf.mxu0
    %v11178 = vand.u32 %v68, 4294901760
    %v11179 = vsub.f32 %v68, %v11178
    %v11180 = vand.u32 %v11179, 4294901760
    %11181 = vmatprep.mubr.f32.mxu0 %v11180
    %v11182 = vand.u32 %v67, 4294901760
    %v11183 = vsub.f32 %v67, %v11182
    %v11184 = vand.u32 %v11183, 4294901760
    %11185 = vmatmul.mubr.f32.gmra.mxu0 %v11184
    %v11186 = vpop.f32.mrf.mxu0
    %v11187 = vadd.f32 %v11068, %v11186
    %v11188 = vpop.f32.mrf.mxu0
    %11189 = vdwg.mxu0
    %11190 = vmatprep.subr.mxu0 0.0
    %v11191 = vand.u32 %v436, 4294901760
    %v11192 = vsub.f32 %v436, %v11191
    %v11193 = vand.u32 %v11192, 4294901760
    %11194 = vmatpush1.msra.mxu0 %v11193
    %11195 = vmatprep.subr.mxu0 0.0
    %v11196 = vand.u32 %v435, 4294901760
    %v11197 = vsub.f32 %v435, %v11196
    %v11198 = vand.u32 %v11197, 4294901760
    %11199 = vmatpush1.msra.mxu0 %v11198
    %11200 = vmatprep.subr.mxu0 0.0
    %v11201 = vand.u32 %v434, 4294901760
    %v11202 = vsub.f32 %v434, %v11201
    %v11203 = vand.u32 %v11202, 4294901760
    %11204 = vmatpush1.msra.mxu0 %v11203
    %11205 = vmatprep.subr.mxu0 0.0
    %v11206 = vand.u32 %v433, 4294901760
    %v11207 = vsub.f32 %v433, %v11206
    %v11208 = vand.u32 %v11207, 4294901760
    %11209 = vmatpush1.msra.mxu0 %v11208
    %11210 = vmatprep.subr.mxu0 0.0
    %v11211 = vand.u32 %v432, 4294901760
    %v11212 = vsub.f32 %v432, %v11211
    %v11213 = vand.u32 %v11212, 4294901760
    %11214 = vmatpush1.msra.mxu0 %v11213
    %11215 = vmatprep.subr.mxu0 0.0
    %v11216 = vand.u32 %v431, 4294901760
    %v11217 = vsub.f32 %v431, %v11216
    %v11218 = vand.u32 %v11217, 4294901760
    %11219 = vmatpush1.msra.mxu0 %v11218
    %11220 = vmatprep.subr.mxu0 0.0
    %v11221 = vand.u32 %v430, 4294901760
    %v11222 = vsub.f32 %v430, %v11221
    %v11223 = vand.u32 %v11222, 4294901760
    %11224 = vmatpush1.msra.mxu0 %v11223
    %11225 = vmatprep.subr.mxu0 0.0
    %v11226 = vand.u32 %v429, 4294901760
    %v11227 = vsub.f32 %v429, %v11226
    %v11228 = vand.u32 %v11227, 4294901760
    %11229 = vmatpush1.msra.mxu0 %v11228
    %11230 = vmatprep.subr.mxu0 0.0
    %v11231 = vand.u32 %v428, 4294901760
    %v11232 = vsub.f32 %v428, %v11231
    %v11233 = vand.u32 %v11232, 4294901760
    %11234 = vmatpush1.msra.mxu0 %v11233
    %11235 = vmatprep.subr.mxu0 0.0
    %v11236 = vand.u32 %v427, 4294901760
    %v11237 = vsub.f32 %v427, %v11236
    %v11238 = vand.u32 %v11237, 4294901760
    %11239 = vmatpush1.msra.mxu0 %v11238
    %11240 = vmatprep.subr.mxu0 0.0
    %v11241 = vand.u32 %v426, 4294901760
    %v11242 = vsub.f32 %v426, %v11241
    %v11243 = vand.u32 %v11242, 4294901760
    %11244 = vmatpush1.msra.mxu0 %v11243
    %11245 = vmatprep.subr.mxu0 0.0
    %v11246 = vand.u32 %v425, 4294901760
    %v11247 = vsub.f32 %v425, %v11246
    %v11248 = vand.u32 %v11247, 4294901760
    %11249 = vmatpush1.msra.mxu0 %v11248
    %11250 = vmatprep.subr.mxu0 0.0
    %v11251 = vand.u32 %v424, 4294901760
    %v11252 = vsub.f32 %v424, %v11251
    %v11253 = vand.u32 %v11252, 4294901760
    %11254 = vmatpush1.msra.mxu0 %v11253
    %11255 = vmatprep.subr.mxu0 0.0
    %v11256 = vand.u32 %v423, 4294901760
    %v11257 = vsub.f32 %v423, %v11256
    %v11258 = vand.u32 %v11257, 4294901760
    %11259 = vmatpush1.msra.mxu0 %v11258
    %11260 = vmatprep.subr.mxu0 0.0
    %v11261 = vand.u32 %v422, 4294901760
    %v11262 = vsub.f32 %v422, %v11261
    %v11263 = vand.u32 %v11262, 4294901760
    %11264 = vmatpush1.msra.mxu0 %v11263
    %11265 = vmatprep.subr.mxu0 0.0
    %v11266 = vand.u32 %v421, 4294901760
    %v11267 = vsub.f32 %v421, %v11266
    %v11268 = vand.u32 %v11267, 4294901760
    %11269 = vmatpush1.msra.mxu0 %v11268
    %11270 = vmatprep.subr.mxu0 0.0
    %v11271 = vand.u32 %v452, 4294901760
    %v11272 = vsub.f32 %v452, %v11271
    %v11273 = vand.u32 %v11272, 4294901760
    %11274 = vmatpush2.msra.mxu0 %v11273
    %11275 = vmatprep.subr.mxu0 0.0
    %v11276 = vand.u32 %v451, 4294901760
    %v11277 = vsub.f32 %v451, %v11276
    %v11278 = vand.u32 %v11277, 4294901760
    %11279 = vmatpush2.msra.mxu0 %v11278
    %11280 = vmatprep.subr.mxu0 0.0
    %v11281 = vand.u32 %v450, 4294901760
    %v11282 = vsub.f32 %v450, %v11281
    %v11283 = vand.u32 %v11282, 4294901760
    %11284 = vmatpush2.msra.mxu0 %v11283
    %11285 = vmatprep.subr.mxu0 0.0
    %v11286 = vand.u32 %v449, 4294901760
    %v11287 = vsub.f32 %v449, %v11286
    %v11288 = vand.u32 %v11287, 4294901760
    %11289 = vmatpush2.msra.mxu0 %v11288
    %11290 = vmatprep.subr.mxu0 0.0
    %v11291 = vand.u32 %v448, 4294901760
    %v11292 = vsub.f32 %v448, %v11291
    %v11293 = vand.u32 %v11292, 4294901760
    %11294 = vmatpush2.msra.mxu0 %v11293
    %11295 = vmatprep.subr.mxu0 0.0
    %v11296 = vand.u32 %v447, 4294901760
    %v11297 = vsub.f32 %v447, %v11296
    %v11298 = vand.u32 %v11297, 4294901760
    %11299 = vmatpush2.msra.mxu0 %v11298
    %11300 = vmatprep.subr.mxu0 0.0
    %v11301 = vand.u32 %v446, 4294901760
    %v11302 = vsub.f32 %v446, %v11301
    %v11303 = vand.u32 %v11302, 4294901760
    %11304 = vmatpush2.msra.mxu0 %v11303
    %11305 = vmatprep.subr.mxu0 0.0
    %v11306 = vand.u32 %v445, 4294901760
    %v11307 = vsub.f32 %v445, %v11306
    %v11308 = vand.u32 %v11307, 4294901760
    %11309 = vmatpush2.msra.mxu0 %v11308
    %11310 = vmatprep.subr.mxu0 0.0
    %v11311 = vand.u32 %v444, 4294901760
    %v11312 = vsub.f32 %v444, %v11311
    %v11313 = vand.u32 %v11312, 4294901760
    %11314 = vmatpush2.msra.mxu0 %v11313
    %11315 = vmatprep.subr.mxu0 0.0
    %v11316 = vand.u32 %v443, 4294901760
    %v11317 = vsub.f32 %v443, %v11316
    %v11318 = vand.u32 %v11317, 4294901760
    %11319 = vmatpush2.msra.mxu0 %v11318
    %11320 = vmatprep.subr.mxu0 0.0
    %v11321 = vand.u32 %v442, 4294901760
    %v11322 = vsub.f32 %v442, %v11321
    %v11323 = vand.u32 %v11322, 4294901760
    %11324 = vmatpush2.msra.mxu0 %v11323
    %11325 = vmatprep.subr.mxu0 0.0
    %v11326 = vand.u32 %v441, 4294901760
    %v11327 = vsub.f32 %v441, %v11326
    %v11328 = vand.u32 %v11327, 4294901760
    %11329 = vmatpush2.msra.mxu0 %v11328
    %11330 = vmatprep.subr.mxu0 0.0
    %v11331 = vand.u32 %v440, 4294901760
    %v11332 = vsub.f32 %v440, %v11331
    %v11333 = vand.u32 %v11332, 4294901760
    %11334 = vmatpush2.msra.mxu0 %v11333
    %11335 = vmatprep.subr.mxu0 0.0
    %v11336 = vand.u32 %v439, 4294901760
    %v11337 = vsub.f32 %v439, %v11336
    %v11338 = vand.u32 %v11337, 4294901760
    %11339 = vmatpush2.msra.mxu0 %v11338
    %11340 = vmatprep.subr.mxu0 0.0
    %v11341 = vand.u32 %v438, 4294901760
    %v11342 = vsub.f32 %v438, %v11341
    %v11343 = vand.u32 %v11342, 4294901760
    %11344 = vmatpush2.msra.mxu0 %v11343
    %11345 = vmatprep.subr.mxu0 0.0
    %v11346 = vand.u32 %v437, 4294901760
    %v11347 = vsub.f32 %v437, %v11346
    %v11348 = vand.u32 %v11347, 4294901760
    %11349 = vmatpush2.msra.mxu0 %v11348
    %v11350 = vand.u32 %v44, 4294901760
    %11351 = vmatprep.mubr.f32.mxu0 %v11350
    %v11352 = vand.u32 %v43, 4294901760
    %11353 = vmatmul.mubr.f32.gmra.mxu0 %v11352
    %v11354 = vpop.f32.mrf.mxu0
    %v11355 = vadd.f32 %v11176, %v11354
    %v11356 = vpop.f32.mrf.mxu0
    %v11357 = vand.u32 %v68, 4294901760
    %11358 = vmatprep.mubr.f32.mxu0 %v11357
    %v11359 = vand.u32 %v67, 4294901760
    %11360 = vmatmul.mubr.f32.gmra.mxu0 %v11359
    %v11361 = vpop.f32.mrf.mxu0
    %v11362 = vadd.f32 %v11187, %v11361
    %v11363 = vpop.f32.mrf.mxu0
    %11364 = vdwg.mxu0
    %11365 = vmatprep.subr.mxu0 0.0
    %v11366 = vand.u32 %v436, 4294901760
    %11367 = vmatpush1.msra.mxu0 %v11366
    %11368 = vmatprep.subr.mxu0 0.0
    %v11369 = vand.u32 %v435, 4294901760
    %11370 = vmatpush1.msra.mxu0 %v11369
    %11371 = vmatprep.subr.mxu0 0.0
    %v11372 = vand.u32 %v434, 4294901760
    %11373 = vmatpush1.msra.mxu0 %v11372
    %11374 = vmatprep.subr.mxu0 0.0
    %v11375 = vand.u32 %v433, 4294901760
    %11376 = vmatpush1.msra.mxu0 %v11375
    %11377 = vmatprep.subr.mxu0 0.0
    %v11378 = vand.u32 %v432, 4294901760
    %11379 = vmatpush1.msra.mxu0 %v11378
    %11380 = vmatprep.subr.mxu0 0.0
    %v11381 = vand.u32 %v431, 4294901760
    %11382 = vmatpush1.msra.mxu0 %v11381
    %11383 = vmatprep.subr.mxu0 0.0
    %v11384 = vand.u32 %v430, 4294901760
    %11385 = vmatpush1.msra.mxu0 %v11384
    %11386 = vmatprep.subr.mxu0 0.0
    %v11387 = vand.u32 %v429, 4294901760
    %11388 = vmatpush1.msra.mxu0 %v11387
    %11389 = vmatprep.subr.mxu0 0.0
    %v11390 = vand.u32 %v428, 4294901760
    %11391 = vmatpush1.msra.mxu0 %v11390
    %11392 = vmatprep.subr.mxu0 0.0
    %v11393 = vand.u32 %v427, 4294901760
    %11394 = vmatpush1.msra.mxu0 %v11393
    %11395 = vmatprep.subr.mxu0 0.0
    %v11396 = vand.u32 %v426, 4294901760
    %11397 = vmatpush1.msra.mxu0 %v11396
    %11398 = vmatprep.subr.mxu0 0.0
    %v11399 = vand.u32 %v425, 4294901760
    %11400 = vmatpush1.msra.mxu0 %v11399
    %11401 = vmatprep.subr.mxu0 0.0
    %v11402 = vand.u32 %v424, 4294901760
    %11403 = vmatpush1.msra.mxu0 %v11402
    %11404 = vmatprep.subr.mxu0 0.0
    %v11405 = vand.u32 %v423, 4294901760
    %11406 = vmatpush1.msra.mxu0 %v11405
    %11407 = vmatprep.subr.mxu0 0.0
    %v11408 = vand.u32 %v422, 4294901760
    %11409 = vmatpush1.msra.mxu0 %v11408
    %11410 = vmatprep.subr.mxu0 0.0
    %v11411 = vand.u32 %v421, 4294901760
    %11412 = vmatpush1.msra.mxu0 %v11411
    %11413 = vmatprep.subr.mxu0 0.0
    %v11414 = vand.u32 %v452, 4294901760
    %11415 = vmatpush2.msra.mxu0 %v11414
    %11416 = vmatprep.subr.mxu0 0.0
    %v11417 = vand.u32 %v451, 4294901760
    %11418 = vmatpush2.msra.mxu0 %v11417
    %11419 = vmatprep.subr.mxu0 0.0
    %v11420 = vand.u32 %v450, 4294901760
    %11421 = vmatpush2.msra.mxu0 %v11420
    %11422 = vmatprep.subr.mxu0 0.0
    %v11423 = vand.u32 %v449, 4294901760
    %11424 = vmatpush2.msra.mxu0 %v11423
    %11425 = vmatprep.subr.mxu0 0.0
    %v11426 = vand.u32 %v448, 4294901760
    %11427 = vmatpush2.msra.mxu0 %v11426
    %11428 = vmatprep.subr.mxu0 0.0
    %v11429 = vand.u32 %v447, 4294901760
    %11430 = vmatpush2.msra.mxu0 %v11429
    %11431 = vmatprep.subr.mxu0 0.0
    %v11432 = vand.u32 %v446, 4294901760
    %11433 = vmatpush2.msra.mxu0 %v11432
    %11434 = vmatprep.subr.mxu0 0.0
    %v11435 = vand.u32 %v445, 4294901760
    %11436 = vmatpush2.msra.mxu0 %v11435
    %11437 = vmatprep.subr.mxu0 0.0
    %v11438 = vand.u32 %v444, 4294901760
    %11439 = vmatpush2.msra.mxu0 %v11438
    %11440 = vmatprep.subr.mxu0 0.0
    %v11441 = vand.u32 %v443, 4294901760
    %11442 = vmatpush2.msra.mxu0 %v11441
    %11443 = vmatprep.subr.mxu0 0.0
    %v11444 = vand.u32 %v442, 4294901760
    %11445 = vmatpush2.msra.mxu0 %v11444
    %11446 = vmatprep.subr.mxu0 0.0
    %v11447 = vand.u32 %v441, 4294901760
    %11448 = vmatpush2.msra.mxu0 %v11447
    %11449 = vmatprep.subr.mxu0 0.0
    %v11450 = vand.u32 %v440, 4294901760
    %11451 = vmatpush2.msra.mxu0 %v11450
    %11452 = vmatprep.subr.mxu0 0.0
    %v11453 = vand.u32 %v439, 4294901760
    %11454 = vmatpush2.msra.mxu0 %v11453
    %11455 = vmatprep.subr.mxu0 0.0
    %v11456 = vand.u32 %v438, 4294901760
    %11457 = vmatpush2.msra.mxu0 %v11456
    %11458 = vmatprep.subr.mxu0 0.0
    %v11459 = vand.u32 %v437, 4294901760
    %11460 = vmatpush2.msra.mxu0 %v11459
    %v11461 = vand.u32 %v44, 4294901760
    %11462 = vmatprep.mubr.f32.mxu0 %v11461
    %v11463 = vand.u32 %v43, 4294901760
    %11464 = vmatmul.mubr.f32.gmra.mxu0 %v11463
    %v11465 = vpop.f32.mrf.mxu0
    %v11466 = vadd.f32 %v11355, %v11465
    %v11467 = vpop.f32.mrf.mxu0
    %v11468 = vand.u32 %v68, 4294901760
    %11469 = vmatprep.mubr.f32.mxu0 %v11468
    %v11470 = vand.u32 %v67, 4294901760
    %11471 = vmatmul.mubr.f32.gmra.mxu0 %v11470
    %v11472 = vpop.f32.mrf.mxu0
    %v11473 = vadd.f32 %v11362, %v11472
    %v11474 = vpop.f32.mrf.mxu0
    %11475 = vdwg.mxu0
    %v11476 = vmax.f32 %v11466, 0.0
    %v11477 = vmax.f32 %v11473, 0.0
    %v11478 = vld [vmem:[%s3] sm:$0xff]
    %v11479 = vld [vmem:[%s3 + $0x8] sm:$0xff]
    %v11480 = vld [vmem:[%s4] sm:$0x1]
    %v11482 = vlaneseq
    %v11483 = vshrl.u32 %v11482, 7
    %v11484 = vsub.s32 0, %v11483
    %v11485 = vrot.slane %v11480, %v11484
    %vm11487 = vcmask 130048
    %v11489 = vsel %vm11487, %v11476, 0
    %v11492 = vsel %vm11487, %v11477, 0
    %11494 = vmatprep.subr.mxu0 0.0
    %11495 = vmatpush1.msra.mxu0 0.0
    %11496 = vmatprep.subr.mxu0 0.0
    %11497 = vmatpush1.msra.mxu0 0.0
    %11498 = vmatprep.subr.mxu0 0.0
    %11499 = vmatpush1.msra.mxu0 0.0
    %11500 = vmatprep.subr.mxu0 0.0
    %11501 = vmatpush1.msra.mxu0 0.0
    %11502 = vmatprep.subr.mxu0 0.0
    %11503 = vmatpush1.msra.mxu0 0.0
    %11504 = vmatprep.subr.mxu0 0.0
    %11505 = vmatpush1.msra.mxu0 0.0
    %11506 = vmatprep.subr.mxu0 0.0
    %11507 = vmatpush1.msra.mxu0 0.0
    %11508 = vmatprep.subr.mxu0 0.0
    %11509 = vmatpush1.msra.mxu0 0.0
    %11510 = vmatprep.subr.mxu0 0.0
    %11511 = vmatpush1.msra.mxu0 0.0
    %11512 = vmatprep.subr.mxu0 0.0
    %11513 = vmatpush1.msra.mxu0 0.0
    %11514 = vmatprep.subr.mxu0 0.0
    %11515 = vmatpush1.msra.mxu0 0.0
    %11516 = vmatprep.subr.mxu0 0.0
    %11517 = vmatpush1.msra.mxu0 0.0
    %11518 = vmatprep.subr.mxu0 0.0
    %11519 = vmatpush1.msra.mxu0 0.0
    %11520 = vmatprep.subr.mxu0 0.0
    %11521 = vmatpush1.msra.mxu0 0.0
    %11522 = vmatprep.subr.mxu0 0.0
    %v11523 = vand.u32 %v11479, 4294901760
    %11524 = vmatpush1.msra.mxu0 %v11523
    %11525 = vmatprep.subr.mxu0 0.0
    %v11526 = vand.u32 %v11478, 4294901760
    %11527 = vmatpush1.msra.mxu0 %v11526
    %11528 = vmatprep.subr.mxu0 0.0
    %11529 = vmatpush2.msra.mxu0 0.0
    %11530 = vmatprep.subr.mxu0 0.0
    %11531 = vmatpush2.msra.mxu0 0.0
    %11532 = vmatprep.subr.mxu0 0.0
    %11533 = vmatpush2.msra.mxu0 0.0
    %11534 = vmatprep.subr.mxu0 0.0
    %11535 = vmatpush2.msra.mxu0 0.0
    %11536 = vmatprep.subr.mxu0 0.0
    %11537 = vmatpush2.msra.mxu0 0.0
    %11538 = vmatprep.subr.mxu0 0.0
    %11539 = vmatpush2.msra.mxu0 0.0
    %11540 = vmatprep.subr.mxu0 0.0
    %11541 = vmatpush2.msra.mxu0 0.0
    %11542 = vmatprep.subr.mxu0 0.0
    %11543 = vmatpush2.msra.mxu0 0.0
    %11544 = vmatprep.subr.mxu0 0.0
    %11545 = vmatpush2.msra.mxu0 0.0
    %11546 = vmatprep.subr.mxu0 0.0
    %11547 = vmatpush2.msra.mxu0 0.0
    %11548 = vmatprep.subr.mxu0 0.0
    %11549 = vmatpush2.msra.mxu0 0.0
    %11550 = vmatprep.subr.mxu0 0.0
    %11551 = vmatpush2.msra.mxu0 0.0
    %11552 = vmatprep.subr.mxu0 0.0
    %11553 = vmatpush2.msra.mxu0 0.0
    %11554 = vmatprep.subr.mxu0 0.0
    %11555 = vmatpush2.msra.mxu0 0.0
    %11556 = vmatprep.subr.mxu0 0.0
    %11557 = vmatpush2.msra.mxu0 0.0
    %11558 = vmatprep.subr.mxu0 0.0
    %11559 = vmatpush2.msra.mxu0 0.0
    %11560 = vmatprep.mubr.f32.mxu0 0.0
    %v11561 = vand.u32 %v11489, 4294901760
    %v11562 = vsub.f32 %v11489, %v11561
    %v11563 = vand.u32 %v11562, 4294901760
    %v11564 = vsub.f32 %v11562, %v11563
    %v11565 = vand.u32 %v11564, 4294901760
    %11566 = vmatmul.mubr.f32.gmra.mxu0 %v11565
    %v11567 = vpop.f32.mrf.mxu0
    %v11568 = vadd.f32 %v11485, %v11567
    %v11569 = vpop.f32.mrf.mxu0
    %11570 = vmatprep.mubr.f32.mxu0 0.0
    %v11571 = vand.u32 %v11492, 4294901760
    %v11572 = vsub.f32 %v11492, %v11571
    %v11573 = vand.u32 %v11572, 4294901760
    %v11574 = vsub.f32 %v11572, %v11573
    %v11575 = vand.u32 %v11574, 4294901760
    %11576 = vmatmul.mubr.f32.gmra.mxu0 %v11575
    %v11577 = vpop.f32.mrf.mxu0
    %v11578 = vadd.f32 %v11485, %v11577
    %v11579 = vpop.f32.mrf.mxu0
    %11580 = vdwg.mxu0
    %11581 = vmatprep.subr.mxu0 0.0
    %11582 = vmatpush1.msra.mxu0 0.0
    %11583 = vmatprep.subr.mxu0 0.0
    %11584 = vmatpush1.msra.mxu0 0.0
    %11585 = vmatprep.subr.mxu0 0.0
    %11586 = vmatpush1.msra.mxu0 0.0
    %11587 = vmatprep.subr.mxu0 0.0
    %11588 = vmatpush1.msra.mxu0 0.0
    %11589 = vmatprep.subr.mxu0 0.0
    %11590 = vmatpush1.msra.mxu0 0.0
    %11591 = vmatprep.subr.mxu0 0.0
    %11592 = vmatpush1.msra.mxu0 0.0
    %11593 = vmatprep.subr.mxu0 0.0
    %11594 = vmatpush1.msra.mxu0 0.0
    %11595 = vmatprep.subr.mxu0 0.0
    %11596 = vmatpush1.msra.mxu0 0.0
    %11597 = vmatprep.subr.mxu0 0.0
    %11598 = vmatpush1.msra.mxu0 0.0
    %11599 = vmatprep.subr.mxu0 0.0
    %11600 = vmatpush1.msra.mxu0 0.0
    %11601 = vmatprep.subr.mxu0 0.0
    %11602 = vmatpush1.msra.mxu0 0.0
    %11603 = vmatprep.subr.mxu0 0.0
    %11604 = vmatpush1.msra.mxu0 0.0
    %11605 = vmatprep.subr.mxu0 0.0
    %11606 = vmatpush1.msra.mxu0 0.0
    %11607 = vmatprep.subr.mxu0 0.0
    %11608 = vmatpush1.msra.mxu0 0.0
    %11609 = vmatprep.subr.mxu0 0.0
    %v11610 = vand.u32 %v11479, 4294901760
    %v11611 = vsub.f32 %v11479, %v11610
    %v11612 = vand.u32 %v11611, 4294901760
    %v11613 = vsub.f32 %v11611, %v11612
    %v11614 = vand.u32 %v11613, 4294901760
    %11615 = vmatpush1.msra.mxu0 %v11614
    %11616 = vmatprep.subr.mxu0 0.0
    %v11617 = vand.u32 %v11478, 4294901760
    %v11618 = vsub.f32 %v11478, %v11617
    %v11619 = vand.u32 %v11618, 4294901760
    %v11620 = vsub.f32 %v11618, %v11619
    %v11621 = vand.u32 %v11620, 4294901760
    %11622 = vmatpush1.msra.mxu0 %v11621
    %11623 = vmatprep.subr.mxu0 0.0
    %11624 = vmatpush2.msra.mxu0 0.0
    %11625 = vmatprep.subr.mxu0 0.0
    %11626 = vmatpush2.msra.mxu0 0.0
    %11627 = vmatprep.subr.mxu0 0.0
    %11628 = vmatpush2.msra.mxu0 0.0
    %11629 = vmatprep.subr.mxu0 0.0
    %11630 = vmatpush2.msra.mxu0 0.0
    %11631 = vmatprep.subr.mxu0 0.0
    %11632 = vmatpush2.msra.mxu0 0.0
    %11633 = vmatprep.subr.mxu0 0.0
    %11634 = vmatpush2.msra.mxu0 0.0
    %11635 = vmatprep.subr.mxu0 0.0
    %11636 = vmatpush2.msra.mxu0 0.0
    %11637 = vmatprep.subr.mxu0 0.0
    %11638 = vmatpush2.msra.mxu0 0.0
    %11639 = vmatprep.subr.mxu0 0.0
    %11640 = vmatpush2.msra.mxu0 0.0
    %11641 = vmatprep.subr.mxu0 0.0
    %11642 = vmatpush2.msra.mxu0 0.0
    %11643 = vmatprep.subr.mxu0 0.0
    %11644 = vmatpush2.msra.mxu0 0.0
    %11645 = vmatprep.subr.mxu0 0.0
    %11646 = vmatpush2.msra.mxu0 0.0
    %11647 = vmatprep.subr.mxu0 0.0
    %11648 = vmatpush2.msra.mxu0 0.0
    %11649 = vmatprep.subr.mxu0 0.0
    %11650 = vmatpush2.msra.mxu0 0.0
    %11651 = vmatprep.subr.mxu0 0.0
    %11652 = vmatpush2.msra.mxu0 0.0
    %11653 = vmatprep.subr.mxu0 0.0
    %11654 = vmatpush2.msra.mxu0 0.0
    %11655 = vmatprep.mubr.f32.mxu0 0.0
    %v11656 = vand.u32 %v11489, 4294901760
    %11657 = vmatmul.mubr.f32.gmra.mxu0 %v11656
    %v11658 = vpop.f32.mrf.mxu0
    %v11659 = vadd.f32 %v11568, %v11658
    %v11660 = vpop.f32.mrf.mxu0
    %11661 = vmatprep.mubr.f32.mxu0 0.0
    %v11662 = vand.u32 %v11492, 4294901760
    %11663 = vmatmul.mubr.f32.gmra.mxu0 %v11662
    %v11664 = vpop.f32.mrf.mxu0
    %v11665 = vadd.f32 %v11578, %v11664
    %v11666 = vpop.f32.mrf.mxu0
    %11667 = vdwg.mxu0
    %11668 = vmatprep.subr.mxu0 0.0
    %11669 = vmatpush1.msra.mxu0 0.0
    %11670 = vmatprep.subr.mxu0 0.0
    %11671 = vmatpush1.msra.mxu0 0.0
    %11672 = vmatprep.subr.mxu0 0.0
    %11673 = vmatpush1.msra.mxu0 0.0
    %11674 = vmatprep.subr.mxu0 0.0
    %11675 = vmatpush1.msra.mxu0 0.0
    %11676 = vmatprep.subr.mxu0 0.0
    %11677 = vmatpush1.msra.mxu0 0.0
    %11678 = vmatprep.subr.mxu0 0.0
    %11679 = vmatpush1.msra.mxu0 0.0
    %11680 = vmatprep.subr.mxu0 0.0
    %11681 = vmatpush1.msra.mxu0 0.0
    %11682 = vmatprep.subr.mxu0 0.0
    %11683 = vmatpush1.msra.mxu0 0.0
    %11684 = vmatprep.subr.mxu0 0.0
    %11685 = vmatpush1.msra.mxu0 0.0
    %11686 = vmatprep.subr.mxu0 0.0
    %11687 = vmatpush1.msra.mxu0 0.0
    %11688 = vmatprep.subr.mxu0 0.0
    %11689 = vmatpush1.msra.mxu0 0.0
    %11690 = vmatprep.subr.mxu0 0.0
    %11691 = vmatpush1.msra.mxu0 0.0
    %11692 = vmatprep.subr.mxu0 0.0
    %11693 = vmatpush1.msra.mxu0 0.0
    %11694 = vmatprep.subr.mxu0 0.0
    %11695 = vmatpush1.msra.mxu0 0.0
    %11696 = vmatprep.subr.mxu0 0.0
    %v11697 = vand.u32 %v11479, 4294901760
    %v11698 = vsub.f32 %v11479, %v11697
    %11699 = vmatpush1.msra.mxu0 %v11698
    %11700 = vmatprep.subr.mxu0 0.0
    %v11701 = vand.u32 %v11478, 4294901760
    %v11702 = vsub.f32 %v11478, %v11701
    %11703 = vmatpush1.msra.mxu0 %v11702
    %11704 = vmatprep.subr.mxu0 0.0
    %11705 = vmatpush2.msra.mxu0 0.0
    %11706 = vmatprep.subr.mxu0 0.0
    %11707 = vmatpush2.msra.mxu0 0.0
    %11708 = vmatprep.subr.mxu0 0.0
    %11709 = vmatpush2.msra.mxu0 0.0
    %11710 = vmatprep.subr.mxu0 0.0
    %11711 = vmatpush2.msra.mxu0 0.0
    %11712 = vmatprep.subr.mxu0 0.0
    %11713 = vmatpush2.msra.mxu0 0.0
    %11714 = vmatprep.subr.mxu0 0.0
    %11715 = vmatpush2.msra.mxu0 0.0
    %11716 = vmatprep.subr.mxu0 0.0
    %11717 = vmatpush2.msra.mxu0 0.0
    %11718 = vmatprep.subr.mxu0 0.0
    %11719 = vmatpush2.msra.mxu0 0.0
    %11720 = vmatprep.subr.mxu0 0.0
    %11721 = vmatpush2.msra.mxu0 0.0
    %11722 = vmatprep.subr.mxu0 0.0
    %11723 = vmatpush2.msra.mxu0 0.0
    %11724 = vmatprep.subr.mxu0 0.0
    %11725 = vmatpush2.msra.mxu0 0.0
    %11726 = vmatprep.subr.mxu0 0.0
    %11727 = vmatpush2.msra.mxu0 0.0
    %11728 = vmatprep.subr.mxu0 0.0
    %11729 = vmatpush2.msra.mxu0 0.0
    %11730 = vmatprep.subr.mxu0 0.0
    %11731 = vmatpush2.msra.mxu0 0.0
    %11732 = vmatprep.subr.mxu0 0.0
    %11733 = vmatpush2.msra.mxu0 0.0
    %11734 = vmatprep.subr.mxu0 0.0
    %11735 = vmatpush2.msra.mxu0 0.0
    %11736 = vmatprep.mubr.f32.mxu0 0.0
    %v11737 = vand.u32 %v11489, 4294901760
    %v11738 = vsub.f32 %v11489, %v11737
    %11739 = vmatmul.mubr.f32.gmra.mxu0 %v11738
    %v11740 = vpop.f32.mrf.mxu0
    %v11741 = vadd.f32 %v11659, %v11740
    %v11742 = vpop.f32.mrf.mxu0
    %11743 = vmatprep.mubr.f32.mxu0 0.0
    %v11744 = vand.u32 %v11492, 4294901760
    %v11745 = vsub.f32 %v11492, %v11744
    %11746 = vmatmul.mubr.f32.gmra.mxu0 %v11745
    %v11747 = vpop.f32.mrf.mxu0
    %v11748 = vadd.f32 %v11665, %v11747
    %v11749 = vpop.f32.mrf.mxu0
    %11750 = vdwg.mxu0
    %11751 = vmatprep.subr.mxu0 0.0
    %11752 = vmatpush1.msra.mxu0 0.0
    %11753 = vmatprep.subr.mxu0 0.0
    %11754 = vmatpush1.msra.mxu0 0.0
    %11755 = vmatprep.subr.mxu0 0.0
    %11756 = vmatpush1.msra.mxu0 0.0
    %11757 = vmatprep.subr.mxu0 0.0
    %11758 = vmatpush1.msra.mxu0 0.0
    %11759 = vmatprep.subr.mxu0 0.0
    %11760 = vmatpush1.msra.mxu0 0.0
    %11761 = vmatprep.subr.mxu0 0.0
    %11762 = vmatpush1.msra.mxu0 0.0
    %11763 = vmatprep.subr.mxu0 0.0
    %11764 = vmatpush1.msra.mxu0 0.0
    %11765 = vmatprep.subr.mxu0 0.0
    %11766 = vmatpush1.msra.mxu0 0.0
    %11767 = vmatprep.subr.mxu0 0.0
    %11768 = vmatpush1.msra.mxu0 0.0
    %11769 = vmatprep.subr.mxu0 0.0
    %11770 = vmatpush1.msra.mxu0 0.0
    %11771 = vmatprep.subr.mxu0 0.0
    %11772 = vmatpush1.msra.mxu0 0.0
    %11773 = vmatprep.subr.mxu0 0.0
    %11774 = vmatpush1.msra.mxu0 0.0
    %11775 = vmatprep.subr.mxu0 0.0
    %11776 = vmatpush1.msra.mxu0 0.0
    %11777 = vmatprep.subr.mxu0 0.0
    %11778 = vmatpush1.msra.mxu0 0.0
    %11779 = vmatprep.subr.mxu0 0.0
    %v11780 = vand.u32 %v11479, 4294901760
    %11781 = vmatpush1.msra.mxu0 %v11780
    %11782 = vmatprep.subr.mxu0 0.0
    %v11783 = vand.u32 %v11478, 4294901760
    %11784 = vmatpush1.msra.mxu0 %v11783
    %11785 = vmatprep.subr.mxu0 0.0
    %11786 = vmatpush2.msra.mxu0 0.0
    %11787 = vmatprep.subr.mxu0 0.0
    %11788 = vmatpush2.msra.mxu0 0.0
    %11789 = vmatprep.subr.mxu0 0.0
    %11790 = vmatpush2.msra.mxu0 0.0
    %11791 = vmatprep.subr.mxu0 0.0
    %11792 = vmatpush2.msra.mxu0 0.0
    %11793 = vmatprep.subr.mxu0 0.0
    %11794 = vmatpush2.msra.mxu0 0.0
    %11795 = vmatprep.subr.mxu0 0.0
    %11796 = vmatpush2.msra.mxu0 0.0
    %11797 = vmatprep.subr.mxu0 0.0
    %11798 = vmatpush2.msra.mxu0 0.0
    %11799 = vmatprep.subr.mxu0 0.0
    %11800 = vmatpush2.msra.mxu0 0.0
    %11801 = vmatprep.subr.mxu0 0.0
    %11802 = vmatpush2.msra.mxu0 0.0
    %11803 = vmatprep.subr.mxu0 0.0
    %11804 = vmatpush2.msra.mxu0 0.0
    %11805 = vmatprep.subr.mxu0 0.0
    %11806 = vmatpush2.msra.mxu0 0.0
    %11807 = vmatprep.subr.mxu0 0.0
    %11808 = vmatpush2.msra.mxu0 0.0
    %11809 = vmatprep.subr.mxu0 0.0
    %11810 = vmatpush2.msra.mxu0 0.0
    %11811 = vmatprep.subr.mxu0 0.0
    %11812 = vmatpush2.msra.mxu0 0.0
    %11813 = vmatprep.subr.mxu0 0.0
    %11814 = vmatpush2.msra.mxu0 0.0
    %11815 = vmatprep.subr.mxu0 0.0
    %11816 = vmatpush2.msra.mxu0 0.0
    %11817 = vmatprep.mubr.f32.mxu0 0.0
    %v11818 = vand.u32 %v11489, 4294901760
    %v11819 = vsub.f32 %v11489, %v11818
    %v11820 = vand.u32 %v11819, 4294901760
    %11821 = vmatmul.mubr.f32.gmra.mxu0 %v11820
    %v11822 = vpop.f32.mrf.mxu0
    %v11823 = vadd.f32 %v11741, %v11822
    %v11824 = vpop.f32.mrf.mxu0
    %11825 = vmatprep.mubr.f32.mxu0 0.0
    %v11826 = vand.u32 %v11492, 4294901760
    %v11827 = vsub.f32 %v11492, %v11826
    %v11828 = vand.u32 %v11827, 4294901760
    %11829 = vmatmul.mubr.f32.gmra.mxu0 %v11828
    %v11830 = vpop.f32.mrf.mxu0
    %v11831 = vadd.f32 %v11748, %v11830
    %v11832 = vpop.f32.mrf.mxu0
    %11833 = vdwg.mxu0
    %11834 = vmatprep.subr.mxu0 0.0
    %11835 = vmatpush1.msra.mxu0 0.0
    %11836 = vmatprep.subr.mxu0 0.0
    %11837 = vmatpush1.msra.mxu0 0.0
    %11838 = vmatprep.subr.mxu0 0.0
    %11839 = vmatpush1.msra.mxu0 0.0
    %11840 = vmatprep.subr.mxu0 0.0
    %11841 = vmatpush1.msra.mxu0 0.0
    %11842 = vmatprep.subr.mxu0 0.0
    %11843 = vmatpush1.msra.mxu0 0.0
    %11844 = vmatprep.subr.mxu0 0.0
    %11845 = vmatpush1.msra.mxu0 0.0
    %11846 = vmatprep.subr.mxu0 0.0
    %11847 = vmatpush1.msra.mxu0 0.0
    %11848 = vmatprep.subr.mxu0 0.0
    %11849 = vmatpush1.msra.mxu0 0.0
    %11850 = vmatprep.subr.mxu0 0.0
    %11851 = vmatpush1.msra.mxu0 0.0
    %11852 = vmatprep.subr.mxu0 0.0
    %11853 = vmatpush1.msra.mxu0 0.0
    %11854 = vmatprep.subr.mxu0 0.0
    %11855 = vmatpush1.msra.mxu0 0.0
    %11856 = vmatprep.subr.mxu0 0.0
    %11857 = vmatpush1.msra.mxu0 0.0
    %11858 = vmatprep.subr.mxu0 0.0
    %11859 = vmatpush1.msra.mxu0 0.0
    %11860 = vmatprep.subr.mxu0 0.0
    %11861 = vmatpush1.msra.mxu0 0.0
    %11862 = vmatprep.subr.mxu0 0.0
    %v11863 = vand.u32 %v11479, 4294901760
    %v11864 = vsub.f32 %v11479, %v11863
    %v11865 = vand.u32 %v11864, 4294901760
    %11866 = vmatpush1.msra.mxu0 %v11865
    %11867 = vmatprep.subr.mxu0 0.0
    %v11868 = vand.u32 %v11478, 4294901760
    %v11869 = vsub.f32 %v11478, %v11868
    %v11870 = vand.u32 %v11869, 4294901760
    %11871 = vmatpush1.msra.mxu0 %v11870
    %11872 = vmatprep.subr.mxu0 0.0
    %11873 = vmatpush2.msra.mxu0 0.0
    %11874 = vmatprep.subr.mxu0 0.0
    %11875 = vmatpush2.msra.mxu0 0.0
    %11876 = vmatprep.subr.mxu0 0.0
    %11877 = vmatpush2.msra.mxu0 0.0
    %11878 = vmatprep.subr.mxu0 0.0
    %11879 = vmatpush2.msra.mxu0 0.0
    %11880 = vmatprep.subr.mxu0 0.0
    %11881 = vmatpush2.msra.mxu0 0.0
    %11882 = vmatprep.subr.mxu0 0.0
    %11883 = vmatpush2.msra.mxu0 0.0
    %11884 = vmatprep.subr.mxu0 0.0
    %11885 = vmatpush2.msra.mxu0 0.0
    %11886 = vmatprep.subr.mxu0 0.0
    %11887 = vmatpush2.msra.mxu0 0.0
    %11888 = vmatprep.subr.mxu0 0.0
    %11889 = vmatpush2.msra.mxu0 0.0
    %11890 = vmatprep.subr.mxu0 0.0
    %11891 = vmatpush2.msra.mxu0 0.0
    %11892 = vmatprep.subr.mxu0 0.0
    %11893 = vmatpush2.msra.mxu0 0.0
    %11894 = vmatprep.subr.mxu0 0.0
    %11895 = vmatpush2.msra.mxu0 0.0
    %11896 = vmatprep.subr.mxu0 0.0
    %11897 = vmatpush2.msra.mxu0 0.0
    %11898 = vmatprep.subr.mxu0 0.0
    %11899 = vmatpush2.msra.mxu0 0.0
    %11900 = vmatprep.subr.mxu0 0.0
    %11901 = vmatpush2.msra.mxu0 0.0
    %11902 = vmatprep.subr.mxu0 0.0
    %11903 = vmatpush2.msra.mxu0 0.0
    %11904 = vmatprep.mubr.f32.mxu0 0.0
    %v11905 = vand.u32 %v11489, 4294901760
    %11906 = vmatmul.mubr.f32.gmra.mxu0 %v11905
    %v11907 = vpop.f32.mrf.mxu0
    %v11908 = vadd.f32 %v11823, %v11907
    %v11909 = vpop.f32.mrf.mxu0
    %11910 = vmatprep.mubr.f32.mxu0 0.0
    %v11911 = vand.u32 %v11492, 4294901760
    %11912 = vmatmul.mubr.f32.gmra.mxu0 %v11911
    %v11913 = vpop.f32.mrf.mxu0
    %v11914 = vadd.f32 %v11831, %v11913
    %v11915 = vpop.f32.mrf.mxu0
    %11916 = vdwg.mxu0
    %11917 = vmatprep.subr.mxu0 0.0
    %11918 = vmatpush1.msra.mxu0 0.0
    %11919 = vmatprep.subr.mxu0 0.0
    %11920 = vmatpush1.msra.mxu0 0.0
    %11921 = vmatprep.subr.mxu0 0.0
    %11922 = vmatpush1.msra.mxu0 0.0
    %11923 = vmatprep.subr.mxu0 0.0
    %11924 = vmatpush1.msra.mxu0 0.0
    %11925 = vmatprep.subr.mxu0 0.0
    %11926 = vmatpush1.msra.mxu0 0.0
    %11927 = vmatprep.subr.mxu0 0.0
    %11928 = vmatpush1.msra.mxu0 0.0
    %11929 = vmatprep.subr.mxu0 0.0
    %11930 = vmatpush1.msra.mxu0 0.0
    %11931 = vmatprep.subr.mxu0 0.0
    %11932 = vmatpush1.msra.mxu0 0.0
    %11933 = vmatprep.subr.mxu0 0.0
    %11934 = vmatpush1.msra.mxu0 0.0
    %11935 = vmatprep.subr.mxu0 0.0
    %11936 = vmatpush1.msra.mxu0 0.0
    %11937 = vmatprep.subr.mxu0 0.0
    %11938 = vmatpush1.msra.mxu0 0.0
    %11939 = vmatprep.subr.mxu0 0.0
    %11940 = vmatpush1.msra.mxu0 0.0
    %11941 = vmatprep.subr.mxu0 0.0
    %11942 = vmatpush1.msra.mxu0 0.0
    %11943 = vmatprep.subr.mxu0 0.0
    %11944 = vmatpush1.msra.mxu0 0.0
    %11945 = vmatprep.subr.mxu0 0.0
    %v11946 = vand.u32 %v11479, 4294901760
    %11947 = vmatpush1.msra.mxu0 %v11946
    %11948 = vmatprep.subr.mxu0 0.0
    %v11949 = vand.u32 %v11478, 4294901760
    %11950 = vmatpush1.msra.mxu0 %v11949
    %11951 = vmatprep.subr.mxu0 0.0
    %11952 = vmatpush2.msra.mxu0 0.0
    %11953 = vmatprep.subr.mxu0 0.0
    %11954 = vmatpush2.msra.mxu0 0.0
    %11955 = vmatprep.subr.mxu0 0.0
    %11956 = vmatpush2.msra.mxu0 0.0
    %11957 = vmatprep.subr.mxu0 0.0
    %11958 = vmatpush2.msra.mxu0 0.0
    %11959 = vmatprep.subr.mxu0 0.0
    %11960 = vmatpush2.msra.mxu0 0.0
    %11961 = vmatprep.subr.mxu0 0.0
    %11962 = vmatpush2.msra.mxu0 0.0
    %11963 = vmatprep.subr.mxu0 0.0
    %11964 = vmatpush2.msra.mxu0 0.0
    %11965 = vmatprep.subr.mxu0 0.0
    %11966 = vmatpush2.msra.mxu0 0.0
    %11967 = vmatprep.subr.mxu0 0.0
    %11968 = vmatpush2.msra.mxu0 0.0
    %11969 = vmatprep.subr.mxu0 0.0
    %11970 = vmatpush2.msra.mxu0 0.0
    %11971 = vmatprep.subr.mxu0 0.0
    %11972 = vmatpush2.msra.mxu0 0.0
    %11973 = vmatprep.subr.mxu0 0.0
    %11974 = vmatpush2.msra.mxu0 0.0
    %11975 = vmatprep.subr.mxu0 0.0
    %11976 = vmatpush2.msra.mxu0 0.0
    %11977 = vmatprep.subr.mxu0 0.0
    %11978 = vmatpush2.msra.mxu0 0.0
    %11979 = vmatprep.subr.mxu0 0.0
    %11980 = vmatpush2.msra.mxu0 0.0
    %11981 = vmatprep.subr.mxu0 0.0
    %11982 = vmatpush2.msra.mxu0 0.0
    %11983 = vmatprep.mubr.f32.mxu0 0.0
    %v11984 = vand.u32 %v11489, 4294901760
    %11985 = vmatmul.mubr.f32.gmra.mxu0 %v11984
    %v11986 = vpop.f32.mrf.mxu0
    %v11987 = vadd.f32 %v11908, %v11986
    %v11988 = vpop.f32.mrf.mxu0
    %11989 = vmatprep.mubr.f32.mxu0 0.0
    %v11990 = vand.u32 %v11492, 4294901760
    %11991 = vmatmul.mubr.f32.gmra.mxu0 %v11990
    %v11992 = vpop.f32.mrf.mxu0
    %v11993 = vadd.f32 %v11914, %v11992
    %v11994 = vpop.f32.mrf.mxu0
    %11995 = vdwg.mxu0
    %vm11996 = vcmask 80896
    %v11997 = vsel %vm11996, %v11987, -inf
    %11998 = vmax.xlane.f32.xlu0 %v11997
    %v11999 = vpop.xlane.xlu0 %11998
    %v12000 = vsel %vm11996, %v11993, -inf
    %12001 = vmax.xlane.f32.xlu0 %v12000
    %v12002 = vpop.xlane.xlu0 %12001
    %v12003 = vsub.f32 %v11987, %v11999
    %v12004 = vsub.f32 %v11993, %v12002
    %v12005 = vmul.f32 %v12003, 1.442695
    %v12006 = vpow.pop %v12005
    %v12007 = vmul.f32 %v12004, 1.442695
    %v12008 = vpow.pop %v12007
    %v12009 = vsel %vm11996, %v12006, 0.0
    %12010 = vadd.xlane.f32.xlu0 %v12009
    %v12011 = vpop.xlane.xlu0 %12010
    %v12012 = vsel %vm11996, %v12008, 0.0
    %12013 = vadd.xlane.f32.xlu0 %v12012
    %v12014 = vpop.xlane.xlu0 %12013
    %v12015 = vlog2.pop %v12011
    %v12016 = vmul.f32 %v12015, 0.6931472
    %v12017 = vlog2.pop %v12014
    %v12018 = vmul.f32 %v12017, 0.6931472
    %v12019 = vsub.f32 %v12003, %v12016
    %v12020 = vsub.f32 %v12004, %v12018
    %12021 = vst.msk [vmem:[#allocation2] sm:$0xff] %vm11996, %v12019
    %12022 = vst.msk [vmem:[#allocation2 + $0x8] sm:$0xff] %vm11996, %v12020
    // Predicated region
    $region22: #{tpu_custom_call.1} parent=1 // pred_check
      _
    $region23: #{tpu_custom_call.1} parent=1 // pred_check_branch
      %12024 = sbr.rel (0) target = $region25
    $region24: #{tpu_custom_call.1} parent=1 // pred_region
      %s12026 = ssub.s32 256, 256
      %12027 = vsyncadd [#allocation3], %s12026
      %s12028 = sshll.u32 [#allocation2], 4
      %s12029 = int_to_ptr.vmem [resolvable:$true] %s12028
      %12034 = dma.vmem_to_hbm [thread:$0]  %s12029, 256, %s5, [#allocation3], 128, 128, 8
    $region25: #{tpu_custom_call.1} parent=1 // pred_fallthru
      _
    // Predicated region
    $region26: #{tpu_custom_call.1} parent=1 // pred_check
      _
    $region27: #{tpu_custom_call.1} parent=1 // pred_check_branch
      %12036 = sbr.rel (0) target = $region29
    $region28: #{tpu_custom_call.1} parent=1 // pred_region
      %12037 = dma.done [#allocation3], 256
    $region29: #{tpu_custom_call.1} parent=1 // pred_fallthru
      _
    %12038 = vsyncpa [#allocation3], 1

</llo_original>
